<compile_context>
chip_gen: v7x
topology: tpu7x:2x2x1
jax: 0.10.0
libtpu: 0.0.40
codegen_flags: <defaults>
</compile_context>

<pallas_src>
import jax
import jax.numpy as jnp
import numpy as np
from jax import lax
from jax.experimental import pallas as pl
from jax.experimental.pallas import tpu as pltpu

# Constants hard-coded in the PyTorch module
D_MODEL = 512
NUM_HEADS = 2
HEAD_DIM = D_MODEL // NUM_HEADS        # 256
FF_DIM = 2048
LN_EPS = 1e-5


def encoder_kernel(pe_ref, q_ref, k_ref, v_ref,
                   wo_ref, bo_ref,
                   ln1_g_ref, ln1_b_ref,
                   w1_ref, b1_ref, w2_ref, b2_ref,
                   ln2_g_ref, ln2_b_ref,
                   out_ref):
    """Fused encoder-block forward for the whole (tiny) batch in one step."""
    B, S, D = pe_ref.shape
    H, Dh = q_ref.shape[1], q_ref.shape[3]
    BH = B * H
    inv_scale = 1.0 / (HEAD_DIM ** 0.5)

    # ---- multi-head self-attention (is_causal=False for the encoder) ----
    # Batched over the merged (B*H) leading dim: one scores dispatch and one
    # p@v dispatch instead of B*H unrolled tiny matmuls.
    qb = (q_ref[...] * inv_scale).astype(jnp.bfloat16).reshape(BH, S, Dh)
    kb = k_ref[...].astype(jnp.bfloat16).reshape(BH, S, Dh)
    vb = v_ref[...].astype(jnp.bfloat16).reshape(BH, S, Dh)

    # q @ k^T with the transpose folded into the contraction.
    scores = jnp.einsum('bqd,bkd->bqk', qb, kb,
                        preferred_element_type=jnp.float32)        # (BH, S, S)
    scores = scores - jnp.max(scores, axis=-1, keepdims=True)
    p = jnp.exp(scores)
    p = p * pl.reciprocal(jnp.sum(p, axis=-1, keepdims=True), approx=True)
    head_out = jnp.einsum('bqk,bkd->bqd', p.astype(jnp.bfloat16), vb,
                          preferred_element_type=jnp.float32)      # (BH, S, Dh)
    head_out = head_out.reshape(B, H, S, Dh)

    # Per-head slice of Wo (static, sublane-aligned) accumulated over all
    # B*S rows at once.  Equivalent to permute(0,2,1,3).view(B,-1,D) followed
    # by att @ Wo, without a lane-axis concat.
    mha = None
    for h in range(H):                                             # H = 2, static
        ho_h = head_out[:, h, :, :].reshape(B * S, Dh).astype(jnp.bfloat16)
        part = jnp.dot(ho_h, wo_ref[h * Dh:(h + 1) * Dh, :],
                       preferred_element_type=jnp.float32)         # (B*S, D)
        mha = part if mha is None else mha + part
    mha = mha + bo_ref[...]

    # ---- add & LayerNorm 1 ----
    x = mha + pe_ref[...].reshape(B * S, D)
    mu = jnp.mean(x, axis=-1, keepdims=True)
    var = jnp.mean((x - mu) ** 2, axis=-1, keepdims=True)
    x_norm = (x - mu) * lax.rsqrt(var + LN_EPS)
    x_norm = x_norm * ln1_g_ref[...] + ln1_b_ref[...]

    # ---- feed-forward (bf16 weights & activations, f32 accumulation) ----
    h1 = jnp.dot(x_norm.astype(jnp.bfloat16), w1_ref[...],
                 preferred_element_type=jnp.float32) + b1_ref[...]
    h1 = jnp.maximum(h1, 0.0).astype(jnp.bfloat16)     # ReLU + cast: half live range
    ff = jnp.dot(h1, w2_ref[...],
                 preferred_element_type=jnp.float32) + b2_ref[...]
    # TODO(synk): nn.Dropout(0.1) is stochastic in train mode; treated as identity (eval mode).

    # ---- add & LayerNorm 2 ----
    y = ff + x_norm
    mu2 = jnp.mean(y, axis=-1, keepdims=True)
    var2 = jnp.mean((y - mu2) ** 2, axis=-1, keepdims=True)
    y_norm = (y - mu2) * lax.rsqrt(var2 + LN_EPS)
    y_norm = y_norm * ln2_g_ref[...] + ln2_b_ref[...]

    out_ref[...] = y_norm.reshape(B, S, D)


def encoder_forward(pe, q, k, v, params):
    """pe: (B,S,D) f32; q,k,v: (B,H,S,Dh) f32. Returns (B,S,D) f32.

    Wo/W1/W2 in `params` are already bf16 (cast once at init); they are passed
    through unchanged so the kernel is the only HBM consumer of the weights.
    """
    B, S, D = pe.shape
    H, Dh = q.shape[1], q.shape[3]
    wo, bo, ln1_g, ln1_b, w1, b1, w2, b2, ln2_g, ln2_b = params

    def full_spec(shape):
        n = len(shape)
        return pl.BlockSpec(shape, lambda i, _n=n: (0,) * _n)

    return pl.pallas_call(
        encoder_kernel,
        out_shape=jax.ShapeDtypeStruct((B, S, D), jnp.float32),
        grid=(1,),                                  # batch folded into the M dim
        in_specs=[
            full_spec((B, S, D)),                   # positional_embeddings
            full_spec((B, H, S, Dh)),               # q
            full_spec((B, H, S, Dh)),               # k
            full_spec((B, H, S, Dh)),               # v
            full_spec((D, D)), full_spec((1, D)),   # W_o (bf16), b_o
            full_spec((1, D)), full_spec((1, D)),   # ln1 gamma, beta
            full_spec((D, FF_DIM)), full_spec((1, FF_DIM)),   # W1 (bf16), b1
            full_spec((FF_DIM, D)), full_spec((1, D)),        # W2 (bf16), b2
            full_spec((1, D)), full_spec((1, D)),   # ln2 gamma, beta
        ],
        out_specs=full_spec((B, S, D)),
        compiler_params=pltpu.CompilerParams(
            dimension_semantics=("arbitrary",),
            vmem_limit_bytes=16 * 1024 * 1024),
    )(pe, q, k, v, wo, bo, ln1_g, ln1_b, w1, b1, w2, b2, ln2_g, ln2_b)


def make_params(key):
    """Deterministic parameter init.

    Linear weights are stored (in, out).  The three large matrices (Wo, W1, W2)
    are stored in bf16 once at init — no per-call converts on the hot path.
    Biases and LayerNorm params stay f32.
    """
    ks = jax.random.split(key, 6)
    scale = 0.02
    wo = (scale * jax.random.normal(ks[0], (D_MODEL, D_MODEL), jnp.float32)
          ).astype(jnp.bfloat16)
    bo = scale * jax.random.normal(ks[1], (1, D_MODEL), jnp.float32)
    ln1_g = jnp.ones((1, D_MODEL), jnp.float32)
    ln1_b = jnp.zeros((1, D_MODEL), jnp.float32)
    w1 = (scale * jax.random.normal(ks[2], (D_MODEL, FF_DIM), jnp.float32)
          ).astype(jnp.bfloat16)
    b1 = scale * jax.random.normal(ks[3], (1, FF_DIM), jnp.float32)
    w2 = (scale * jax.random.normal(ks[4], (FF_DIM, D_MODEL), jnp.float32)
          ).astype(jnp.bfloat16)
    b2 = scale * jax.random.normal(ks[5], (1, D_MODEL), jnp.float32)
    ln2_g = jnp.ones((1, D_MODEL), jnp.float32)
    ln2_b = jnp.zeros((1, D_MODEL), jnp.float32)
    return (wo, bo, ln1_g, ln1_b, w1, b1, w2, b2, ln2_g, ln2_b)


def reference(pe, q, k, v, params):
    """Pure-JAX f32 reference mirroring the PyTorch forward (dropout = identity).

    The bf16-stored weights are upcast to f32 so both paths use the same
    parameter values; remaining deviation comes from the kernel's bf16
    activation casts and the approximate softmax reciprocal.
    """
    wo, bo, g1, be1, w1, b1, w2, b2, g2, be2 = params
    wo, w1, w2 = (m.astype(jnp.float32) for m in (wo, w1, w2))
    hp = jax.lax.Precision.HIGHEST

    def layer_norm(x, g, b):
        mu = jnp.mean(x, axis=-1, keepdims=True)
        var = jnp.mean((x - mu) ** 2, axis=-1, keepdims=True)
        return (x - mu) * jax.lax.rsqrt(var + LN_EPS) * g + b

    scores = jnp.einsum('bhqd,bhkd->bhqk', q, k, precision=hp) / (HEAD_DIM ** 0.5)
    att = jax.nn.softmax(scores, axis=-1)
    out = jnp.einsum('bhqk,bhkd->bhqd', att, v, precision=hp)
    out = out.transpose(0, 2, 1, 3).reshape(pe.shape[0], -1, D_MODEL)
    mha = jnp.einsum('bsd,de->bse', out, wo, precision=hp) + bo
    x = layer_norm(mha + pe, g1, be1)
    h1 = jnp.maximum(jnp.einsum('bsd,df->bsf', x, w1, precision=hp) + b1, 0.0)
    ff = jnp.einsum('bsf,fd->bsd', h1, w2, precision=hp) + b2
    return layer_norm(ff + x, g2, be2)


if __name__ == "__main__":
    B, S = 2, 8
    key = jax.random.PRNGKey(0)
    kpe, kq, kk, kv, kparams = jax.random.split(key, 5)

    pe = jax.random.normal(kpe, (B, S, D_MODEL), jnp.float32)
    q = jax.random.normal(kq, (B, NUM_HEADS, S, HEAD_DIM), jnp.float32)
    k = jax.random.normal(kk, (B, NUM_HEADS, S, HEAD_DIM), jnp.float32)
    v = jax.random.normal(kv, (B, NUM_HEADS, S, HEAD_DIM), jnp.float32)
    params = make_params(kparams)

    out = encoder_forward(pe, q, k, v, params)
    out = jax.block_until_ready(out)

    ref = jax.block_until_ready(reference(pe, q, k, v, params))
    assert out.shape == (B, S, D_MODEL)
    np.testing.assert_allclose(np.asarray(out), np.asarray(ref), atol=2e-2, rtol=2e-2)

    print("KERNEL_OK")
</pallas_src>

<mosaic_0001>
module attributes {stable_mosaic.version = 11 : i64} {
  func.func @encoder_kernel(%arg0: i32, %arg1: memref<2x8x512xf32, #tpu.memory_space<vmem>>, %arg2: memref<2x2x8x256xf32, #tpu.memory_space<vmem>>, %arg3: memref<2x2x8x256xf32, #tpu.memory_space<vmem>>, %arg4: memref<2x2x8x256xf32, #tpu.memory_space<vmem>>, %arg5: memref<512x512xbf16, #tpu.memory_space<vmem>>, %arg6: memref<1x512xf32, #tpu.memory_space<vmem>>, %arg7: memref<1x512xf32, #tpu.memory_space<vmem>>, %arg8: memref<1x512xf32, #tpu.memory_space<vmem>>, %arg9: memref<512x2048xbf16, #tpu.memory_space<vmem>>, %arg10: memref<1x2048xf32, #tpu.memory_space<vmem>>, %arg11: memref<2048x512xbf16, #tpu.memory_space<vmem>>, %arg12: memref<1x512xf32, #tpu.memory_space<vmem>>, %arg13: memref<1x512xf32, #tpu.memory_space<vmem>>, %arg14: memref<1x512xf32, #tpu.memory_space<vmem>>, %arg15: memref<2x8x512xf32, #tpu.memory_space<vmem>>) attributes {dimension_semantics = [#tpu.dimension_semantics<arbitrary>], iteration_bounds = array<i64: 1>, scalar_prefetch = 0 : i64, scratch_operands = 0 : i64, tpu.core_type = #tpu.core_type<tc>, window_params = [{pipeline_mode = #tpu.pipeline_mode<synchronous>, transform_indices = @transform_0, window_bounds = array<i64: 2, 8, 512>}, {pipeline_mode = #tpu.pipeline_mode<synchronous>, transform_indices = @transform_1, window_bounds = array<i64: 2, 2, 8, 256>}, {pipeline_mode = #tpu.pipeline_mode<synchronous>, transform_indices = @transform_2, window_bounds = array<i64: 2, 2, 8, 256>}, {pipeline_mode = #tpu.pipeline_mode<synchronous>, transform_indices = @transform_3, window_bounds = array<i64: 2, 2, 8, 256>}, {pipeline_mode = #tpu.pipeline_mode<synchronous>, transform_indices = @transform_4, window_bounds = array<i64: 512, 512>}, {pipeline_mode = #tpu.pipeline_mode<synchronous>, transform_indices = @transform_5, window_bounds = array<i64: 1, 512>}, {pipeline_mode = #tpu.pipeline_mode<synchronous>, transform_indices = @transform_6, window_bounds = array<i64: 1, 512>}, {pipeline_mode = #tpu.pipeline_mode<synchronous>, transform_indices = @transform_7, window_bounds = array<i64: 1, 512>}, {pipeline_mode = #tpu.pipeline_mode<synchronous>, transform_indices = @transform_8, window_bounds = array<i64: 512, 2048>}, {pipeline_mode = #tpu.pipeline_mode<synchronous>, transform_indices = @transform_9, window_bounds = array<i64: 1, 2048>}, {pipeline_mode = #tpu.pipeline_mode<synchronous>, transform_indices = @transform_10, window_bounds = array<i64: 2048, 512>}, {pipeline_mode = #tpu.pipeline_mode<synchronous>, transform_indices = @transform_11, window_bounds = array<i64: 1, 512>}, {pipeline_mode = #tpu.pipeline_mode<synchronous>, transform_indices = @transform_12, window_bounds = array<i64: 1, 512>}, {pipeline_mode = #tpu.pipeline_mode<synchronous>, transform_indices = @transform_13, window_bounds = array<i64: 1, 512>}, {pipeline_mode = #tpu.pipeline_mode<synchronous>, transform_indices = @transform_14, window_bounds = array<i64: 2, 8, 512>}]} {
    %c0 = arith.constant 0 : index
    %c0_0 = arith.constant 0 : index
    %c0_1 = arith.constant 0 : index
    %c0_2 = arith.constant 0 : index
    %0 = vector.load %arg2[%c0, %c0_0, %c0_1, %c0_2] : memref<2x2x8x256xf32, #tpu.memory_space<vmem>>, vector<2x2x8x256xf32>
    %cst = arith.constant 6.250000e-02 : f32
    %1 = vector.broadcast %cst : f32 to vector<2x2x8x256xf32>
    %2 = arith.mulf %0, %1 : vector<2x2x8x256xf32>
    %3 = arith.truncf %2 : vector<2x2x8x256xf32> to vector<2x2x8x256xbf16>
    %4 = vector.shape_cast %3 : vector<2x2x8x256xbf16> to vector<4x8x256xbf16>
    %c0_3 = arith.constant 0 : index
    %c0_4 = arith.constant 0 : index
    %c0_5 = arith.constant 0 : index
    %c0_6 = arith.constant 0 : index
    %5 = vector.load %arg3[%c0_3, %c0_4, %c0_5, %c0_6] : memref<2x2x8x256xf32, #tpu.memory_space<vmem>>, vector<2x2x8x256xf32>
    %6 = arith.truncf %5 : vector<2x2x8x256xf32> to vector<2x2x8x256xbf16>
    %7 = vector.shape_cast %6 : vector<2x2x8x256xbf16> to vector<4x8x256xbf16>
    %c0_7 = arith.constant 0 : index
    %c0_8 = arith.constant 0 : index
    %c0_9 = arith.constant 0 : index
    %c0_10 = arith.constant 0 : index
    %8 = vector.load %arg4[%c0_7, %c0_8, %c0_9, %c0_10] : memref<2x2x8x256xf32, #tpu.memory_space<vmem>>, vector<2x2x8x256xf32>
    %9 = arith.truncf %8 : vector<2x2x8x256xf32> to vector<2x2x8x256xbf16>
    %10 = vector.shape_cast %9 : vector<2x2x8x256xbf16> to vector<4x8x256xbf16>
    "tpu.trace_start"() <{level = 10 : i32, message = "bqd,bkd->bqk"}> : () -> ()
    %cst_11 = arith.constant dense<0.000000e+00> : vector<4x8x8xf32>
    %11 = tpu.matmul %4, %7, %cst_11 {dimension_numbers = #tpu.dot_dimension_numbers<[2], [2], [1], [1], [0, 0, 0, 1, 1, 1], [0], [0]>} : vector<4x8x256xbf16>, vector<4x8x256xbf16>, vector<4x8x8xf32> -> vector<4x8x8xf32>
    "tpu.trace_stop"() : () -> ()
    %cst_12 = arith.constant dense<0xFF800000> : vector<4x8xf32>
    %12 = vector.multi_reduction <maximumf>, %11, %cst_12 [2] : vector<4x8x8xf32> to vector<4x8xf32>
    %13 = vector.shape_cast %12 : vector<4x8xf32> to vector<4x8x1xf32>
    %14 = vector.broadcast %13 : vector<4x8x1xf32> to vector<4x8x8xf32>
    %15 = arith.subf %11, %14 : vector<4x8x8xf32>
    %16 = math.exp %15 : vector<4x8x8xf32>
    %cst_13 = arith.constant dense<0.000000e+00> : vector<4x8xf32>
    %17 = vector.multi_reduction <add>, %16, %cst_13 [2] : vector<4x8x8xf32> to vector<4x8xf32>
    %18 = vector.shape_cast %17 : vector<4x8xf32> to vector<4x8x1xf32>
    %19 = tpu.reciprocal %18 {approx = true} : vector<4x8x1xf32> -> vector<4x8x1xf32>
    %20 = vector.broadcast %19 : vector<4x8x1xf32> to vector<4x8x8xf32>
    %21 = arith.mulf %16, %20 : vector<4x8x8xf32>
    %22 = arith.truncf %21 : vector<4x8x8xf32> to vector<4x8x8xbf16>
    "tpu.trace_start"() <{level = 10 : i32, message = "bqk,bkd->bqd"}> : () -> ()
    %cst_14 = arith.constant dense<0.000000e+00> : vector<4x8x256xf32>
    %23 = tpu.matmul %22, %10, %cst_14 {dimension_numbers = #tpu.dot_dimension_numbers<[2], [1], [1], [2], [0, 0, 0, 1, 1, 2], [0], [0]>} : vector<4x8x8xbf16>, vector<4x8x256xbf16>, vector<4x8x256xf32> -> vector<4x8x256xf32>
    "tpu.trace_stop"() : () -> ()
    %24 = vector.shape_cast %23 : vector<4x8x256xf32> to vector<2x2x8x256xf32>
    %25 = vector.extract_strided_slice %24 {offsets = [0, 0, 0, 0], sizes = [2, 1, 8, 256], strides = [1, 1, 1, 1]} : vector<2x2x8x256xf32> to vector<2x1x8x256xf32>
    %26 = vector.shape_cast %25 : vector<2x1x8x256xf32> to vector<2x8x256xf32>
    %27 = vector.shape_cast %26 : vector<2x8x256xf32> to vector<16x256xf32>
    %28 = arith.truncf %27 : vector<16x256xf32> to vector<16x256xbf16>
    %c0_15 = arith.constant 0 : index
    %c0_16 = arith.constant 0 : index
    %29 = vector.load %arg5[%c0_15, %c0_16] : memref<512x512xbf16, #tpu.memory_space<vmem>>, vector<256x512xbf16>
    %cst_17 = arith.constant dense<0.000000e+00> : vector<16x512xf32>
    %30 = tpu.matmul %28, %29, %cst_17 {dimension_numbers = #tpu.dot_dimension_numbers<[1], [0], [0], [1], [0, 0, 1, 1], [], []>} : vector<16x256xbf16>, vector<256x512xbf16>, vector<16x512xf32> -> vector<16x512xf32>
    %31 = vector.extract_strided_slice %24 {offsets = [0, 1, 0, 0], sizes = [2, 1, 8, 256], strides = [1, 1, 1, 1]} : vector<2x2x8x256xf32> to vector<2x1x8x256xf32>
    %32 = vector.shape_cast %31 : vector<2x1x8x256xf32> to vector<2x8x256xf32>
    %33 = vector.shape_cast %32 : vector<2x8x256xf32> to vector<16x256xf32>
    %34 = arith.truncf %33 : vector<16x256xf32> to vector<16x256xbf16>
    %c256 = arith.constant 256 : index
    %c0_18 = arith.constant 0 : index
    %35 = vector.load %arg5[%c256, %c0_18] : memref<512x512xbf16, #tpu.memory_space<vmem>>, vector<256x512xbf16>
    %cst_19 = arith.constant dense<0.000000e+00> : vector<16x512xf32>
    %36 = tpu.matmul %34, %35, %cst_19 {dimension_numbers = #tpu.dot_dimension_numbers<[1], [0], [0], [1], [0, 0, 1, 1], [], []>} : vector<16x256xbf16>, vector<256x512xbf16>, vector<16x512xf32> -> vector<16x512xf32>
    %37 = arith.addf %30, %36 : vector<16x512xf32>
    %c0_20 = arith.constant 0 : index
    %c0_21 = arith.constant 0 : index
    %38 = vector.load %arg6[%c0_20, %c0_21] : memref<1x512xf32, #tpu.memory_space<vmem>>, vector<1x512xf32>
    %39 = vector.broadcast %38 : vector<1x512xf32> to vector<16x512xf32>
    %40 = arith.addf %37, %39 : vector<16x512xf32>
    %c0_22 = arith.constant 0 : index
    %c0_23 = arith.constant 0 : index
    %c0_24 = arith.constant 0 : index
    %41 = vector.load %arg1[%c0_22, %c0_23, %c0_24] : memref<2x8x512xf32, #tpu.memory_space<vmem>>, vector<2x8x512xf32>
    %42 = vector.shape_cast %41 : vector<2x8x512xf32> to vector<16x512xf32>
    %43 = arith.addf %40, %42 : vector<16x512xf32>
    %cst_25 = arith.constant dense<0.000000e+00> : vector<16xf32>
    %44 = vector.multi_reduction <add>, %43, %cst_25 [1] : vector<16x512xf32> to vector<16xf32>
    %45 = vector.shape_cast %44 : vector<16xf32> to vector<16x1xf32>
    %cst_26 = arith.constant 5.120000e+02 : f32
    %46 = vector.broadcast %cst_26 : f32 to vector<16x1xf32>
    %47 = arith.divf %45, %46 : vector<16x1xf32>
    %48 = vector.broadcast %47 : vector<16x1xf32> to vector<16x512xf32>
    %49 = arith.subf %43, %48 : vector<16x512xf32>
    %50 = arith.mulf %49, %49 : vector<16x512xf32>
    %cst_27 = arith.constant dense<0.000000e+00> : vector<16xf32>
    %51 = vector.multi_reduction <add>, %50, %cst_27 [1] : vector<16x512xf32> to vector<16xf32>
    %52 = vector.shape_cast %51 : vector<16xf32> to vector<16x1xf32>
    %cst_28 = arith.constant 5.120000e+02 : f32
    %53 = vector.broadcast %cst_28 : f32 to vector<16x1xf32>
    %54 = arith.divf %52, %53 : vector<16x1xf32>
    %55 = vector.broadcast %47 : vector<16x1xf32> to vector<16x512xf32>
    %56 = arith.subf %43, %55 : vector<16x512xf32>
    %cst_29 = arith.constant 9.99999974E-6 : f32
    %57 = vector.broadcast %cst_29 : f32 to vector<16x1xf32>
    %58 = arith.addf %54, %57 : vector<16x1xf32>
    %59 = math.rsqrt %58 : vector<16x1xf32>
    %60 = vector.broadcast %59 : vector<16x1xf32> to vector<16x512xf32>
    %61 = arith.mulf %56, %60 : vector<16x512xf32>
    %c0_30 = arith.constant 0 : index
    %c0_31 = arith.constant 0 : index
    %62 = vector.load %arg7[%c0_30, %c0_31] : memref<1x512xf32, #tpu.memory_space<vmem>>, vector<1x512xf32>
    %63 = vector.broadcast %62 : vector<1x512xf32> to vector<16x512xf32>
    %64 = arith.mulf %61, %63 : vector<16x512xf32>
    %c0_32 = arith.constant 0 : index
    %c0_33 = arith.constant 0 : index
    %65 = vector.load %arg8[%c0_32, %c0_33] : memref<1x512xf32, #tpu.memory_space<vmem>>, vector<1x512xf32>
    %66 = vector.broadcast %65 : vector<1x512xf32> to vector<16x512xf32>
    %67 = arith.addf %64, %66 : vector<16x512xf32>
    %68 = arith.truncf %67 : vector<16x512xf32> to vector<16x512xbf16>
    %c0_34 = arith.constant 0 : index
    %c0_35 = arith.constant 0 : index
    %69 = vector.load %arg9[%c0_34, %c0_35] : memref<512x2048xbf16, #tpu.memory_space<vmem>>, vector<512x2048xbf16>
    %cst_36 = arith.constant dense<0.000000e+00> : vector<16x2048xf32>
    %70 = tpu.matmul %68, %69, %cst_36 {dimension_numbers = #tpu.dot_dimension_numbers<[1], [0], [0], [1], [0, 0, 1, 1], [], []>} : vector<16x512xbf16>, vector<512x2048xbf16>, vector<16x2048xf32> -> vector<16x2048xf32>
    %c0_37 = arith.constant 0 : index
    %c0_38 = arith.constant 0 : index
    %71 = vector.load %arg10[%c0_37, %c0_38] : memref<1x2048xf32, #tpu.memory_space<vmem>>, vector<1x2048xf32>
    %72 = vector.broadcast %71 : vector<1x2048xf32> to vector<16x2048xf32>
    %73 = arith.addf %70, %72 : vector<16x2048xf32>
    %cst_39 = arith.constant 0.000000e+00 : f32
    %74 = vector.broadcast %cst_39 : f32 to vector<16x2048xf32>
    %75 = arith.maximumf %73, %74 : vector<16x2048xf32>
    %76 = arith.truncf %75 : vector<16x2048xf32> to vector<16x2048xbf16>
    %c0_40 = arith.constant 0 : index
    %c0_41 = arith.constant 0 : index
    %77 = vector.load %arg11[%c0_40, %c0_41] : memref<2048x512xbf16, #tpu.memory_space<vmem>>, vector<2048x512xbf16>
    %cst_42 = arith.constant dense<0.000000e+00> : vector<16x512xf32>
    %78 = tpu.matmul %76, %77, %cst_42 {dimension_numbers = #tpu.dot_dimension_numbers<[1], [0], [0], [1], [0, 0, 1, 1], [], []>} : vector<16x2048xbf16>, vector<2048x512xbf16>, vector<16x512xf32> -> vector<16x512xf32>
    %c0_43 = arith.constant 0 : index
    %c0_44 = arith.constant 0 : index
    %79 = vector.load %arg12[%c0_43, %c0_44] : memref<1x512xf32, #tpu.memory_space<vmem>>, vector<1x512xf32>
    %80 = vector.broadcast %79 : vector<1x512xf32> to vector<16x512xf32>
    %81 = arith.addf %78, %80 : vector<16x512xf32>
    %82 = arith.addf %81, %67 : vector<16x512xf32>
    %cst_45 = arith.constant dense<0.000000e+00> : vector<16xf32>
    %83 = vector.multi_reduction <add>, %82, %cst_45 [1] : vector<16x512xf32> to vector<16xf32>
    %84 = vector.shape_cast %83 : vector<16xf32> to vector<16x1xf32>
    %cst_46 = arith.constant 5.120000e+02 : f32
    %85 = vector.broadcast %cst_46 : f32 to vector<16x1xf32>
    %86 = arith.divf %84, %85 : vector<16x1xf32>
    %87 = vector.broadcast %86 : vector<16x1xf32> to vector<16x512xf32>
    %88 = arith.subf %82, %87 : vector<16x512xf32>
    %89 = arith.mulf %88, %88 : vector<16x512xf32>
    %cst_47 = arith.constant dense<0.000000e+00> : vector<16xf32>
    %90 = vector.multi_reduction <add>, %89, %cst_47 [1] : vector<16x512xf32> to vector<16xf32>
    %91 = vector.shape_cast %90 : vector<16xf32> to vector<16x1xf32>
    %cst_48 = arith.constant 5.120000e+02 : f32
    %92 = vector.broadcast %cst_48 : f32 to vector<16x1xf32>
    %93 = arith.divf %91, %92 : vector<16x1xf32>
    %94 = vector.broadcast %86 : vector<16x1xf32> to vector<16x512xf32>
    %95 = arith.subf %82, %94 : vector<16x512xf32>
    %cst_49 = arith.constant 9.99999974E-6 : f32
    %96 = vector.broadcast %cst_49 : f32 to vector<16x1xf32>
    %97 = arith.addf %93, %96 : vector<16x1xf32>
    %98 = math.rsqrt %97 : vector<16x1xf32>
    %99 = vector.broadcast %98 : vector<16x1xf32> to vector<16x512xf32>
    %100 = arith.mulf %95, %99 : vector<16x512xf32>
    %c0_50 = arith.constant 0 : index
    %c0_51 = arith.constant 0 : index
    %101 = vector.load %arg13[%c0_50, %c0_51] : memref<1x512xf32, #tpu.memory_space<vmem>>, vector<1x512xf32>
    %102 = vector.broadcast %101 : vector<1x512xf32> to vector<16x512xf32>
    %103 = arith.mulf %100, %102 : vector<16x512xf32>
    %c0_52 = arith.constant 0 : index
    %c0_53 = arith.constant 0 : index
    %104 = vector.load %arg14[%c0_52, %c0_53] : memref<1x512xf32, #tpu.memory_space<vmem>>, vector<1x512xf32>
    %105 = vector.broadcast %104 : vector<1x512xf32> to vector<16x512xf32>
    %106 = arith.addf %103, %105 : vector<16x512xf32>
    %107 = vector.shape_cast %106 : vector<16x512xf32> to vector<2x8x512xf32>
    %c0_54 = arith.constant 0 : index
    %c0_55 = arith.constant 0 : index
    %c0_56 = arith.constant 0 : index
    %108 = vector.load %arg15[%c0_54, %c0_55, %c0_56] : memref<2x8x512xf32, #tpu.memory_space<vmem>>, vector<2x8x512xf32>
    tpu.vector_store %arg15[%c0_54, %c0_55, %c0_56], %107 {strides = array<i32>} : memref<2x8x512xf32, #tpu.memory_space<vmem>>, vector<2x8x512xf32>,
    return
  }
  func.func @transform_0(%arg0: i32) -> (i32, i32, i32) {
    %c0_i32 = arith.constant 0 : i32
    %c0_i32_0 = arith.constant 0 : i32
    %c0_i32_1 = arith.constant 0 : i32
    %c0_i32_2 = arith.constant 0 : i32
    return %c0_i32, %c0_i32_0, %c0_i32_1 : i32, i32, i32
  }
  func.func @transform_1(%arg0: i32) -> (i32, i32, i32, i32) {
    %c0_i32 = arith.constant 0 : i32
    %c0_i32_0 = arith.constant 0 : i32
    %c0_i32_1 = arith.constant 0 : i32
    %c0_i32_2 = arith.constant 0 : i32
    %c0_i32_3 = arith.constant 0 : i32
    return %c0_i32, %c0_i32_0, %c0_i32_1, %c0_i32_2 : i32, i32, i32, i32
  }
  func.func @transform_2(%arg0: i32) -> (i32, i32, i32, i32) {
    %c0_i32 = arith.constant 0 : i32
    %c0_i32_0 = arith.constant 0 : i32
    %c0_i32_1 = arith.constant 0 : i32
    %c0_i32_2 = arith.constant 0 : i32
    %c0_i32_3 = arith.constant 0 : i32
    return %c0_i32, %c0_i32_0, %c0_i32_1, %c0_i32_2 : i32, i32, i32, i32
  }
  func.func @transform_3(%arg0: i32) -> (i32, i32, i32, i32) {
    %c0_i32 = arith.constant 0 : i32
    %c0_i32_0 = arith.constant 0 : i32
    %c0_i32_1 = arith.constant 0 : i32
    %c0_i32_2 = arith.constant 0 : i32
    %c0_i32_3 = arith.constant 0 : i32
    return %c0_i32, %c0_i32_0, %c0_i32_1, %c0_i32_2 : i32, i32, i32, i32
  }
  func.func @transform_4(%arg0: i32) -> (i32, i32) {
    %c0_i32 = arith.constant 0 : i32
    %c0_i32_0 = arith.constant 0 : i32
    %c0_i32_1 = arith.constant 0 : i32
    return %c0_i32, %c0_i32_0 : i32, i32
  }
  func.func @transform_5(%arg0: i32) -> (i32, i32) {
    %c0_i32 = arith.constant 0 : i32
    %c0_i32_0 = arith.constant 0 : i32
    %c0_i32_1 = arith.constant 0 : i32
    return %c0_i32, %c0_i32_0 : i32, i32
  }
  func.func @transform_6(%arg0: i32) -> (i32, i32) {
    %c0_i32 = arith.constant 0 : i32
    %c0_i32_0 = arith.constant 0 : i32
    %c0_i32_1 = arith.constant 0 : i32
    return %c0_i32, %c0_i32_0 : i32, i32
  }
  func.func @transform_7(%arg0: i32) -> (i32, i32) {
    %c0_i32 = arith.constant 0 : i32
    %c0_i32_0 = arith.constant 0 : i32
    %c0_i32_1 = arith.constant 0 : i32
    return %c0_i32, %c0_i32_0 : i32, i32
  }
  func.func @transform_8(%arg0: i32) -> (i32, i32) {
    %c0_i32 = arith.constant 0 : i32
    %c0_i32_0 = arith.constant 0 : i32
    %c0_i32_1 = arith.constant 0 : i32
    return %c0_i32, %c0_i32_0 : i32, i32
  }
  func.func @transform_9(%arg0: i32) -> (i32, i32) {
    %c0_i32 = arith.constant 0 : i32
    %c0_i32_0 = arith.constant 0 : i32
    %c0_i32_1 = arith.constant 0 : i32
    return %c0_i32, %c0_i32_0 : i32, i32
  }
  func.func @transform_10(%arg0: i32) -> (i32, i32) {
    %c0_i32 = arith.constant 0 : i32
    %c0_i32_0 = arith.constant 0 : i32
    %c0_i32_1 = arith.constant 0 : i32
    return %c0_i32, %c0_i32_0 : i32, i32
  }
  func.func @transform_11(%arg0: i32) -> (i32, i32) {
    %c0_i32 = arith.constant 0 : i32
    %c0_i32_0 = arith.constant 0 : i32
    %c0_i32_1 = arith.constant 0 : i32
    return %c0_i32, %c0_i32_0 : i32, i32
  }
  func.func @transform_12(%arg0: i32) -> (i32, i32) {
    %c0_i32 = arith.constant 0 : i32
    %c0_i32_0 = arith.constant 0 : i32
    %c0_i32_1 = arith.constant 0 : i32
    return %c0_i32, %c0_i32_0 : i32, i32
  }
  func.func @transform_13(%arg0: i32) -> (i32, i32) {
    %c0_i32 = arith.constant 0 : i32
    %c0_i32_0 = arith.constant 0 : i32
    %c0_i32_1 = arith.constant 0 : i32
    return %c0_i32, %c0_i32_0 : i32, i32
  }
  func.func @transform_14(%arg0: i32) -> (i32, i32, i32) {
    %c0_i32 = arith.constant 0 : i32
    %c0_i32_0 = arith.constant 0 : i32
    %c0_i32_1 = arith.constant 0 : i32
    %c0_i32_2 = arith.constant 0 : i32
    return %c0_i32, %c0_i32_0, %c0_i32_1 : i32, i32, i32
  }
}

</mosaic_0001>

<llo_original>
// kernel: tpu_custom_call.1
$region0: #{tpu_custom_call.1}
  #allocation0 [shape = 'u32[]', space=smem, size = 0x4, offset = 0x4, fixed_abs, tag = 'smem constant byte address 0x4 - core index']
  #allocation1 [shape = 'u32[144,128]{1,0:T(1,128)}', space=vmem, size = 0x12000, scoped, tag = 'internal scratch']
  %s0 = inlined_call_operand.hbm [shape: f32[2,8,512], index: 0, kind: input, shape index: {}]
  %s1 = inlined_call_operand.hbm [shape: f32[2,2,8,256], index: 1, kind: input, shape index: {}]
  %s2 = inlined_call_operand.hbm [shape: f32[2,2,8,256], index: 2, kind: input, shape index: {}]
  %s3 = inlined_call_operand.hbm [shape: f32[2,2,8,256], index: 3, kind: input, shape index: {}]
  %s4 = inlined_call_operand.hbm [shape: bf16[512,512], index: 4, kind: input, shape index: {}]
  %s5 = inlined_call_operand.hbm [shape: f32[1,512], index: 5, kind: input, shape index: {}]
  %s6 = inlined_call_operand.hbm [shape: f32[1,512], index: 6, kind: input, shape index: {}]
  %s7 = inlined_call_operand.hbm [shape: f32[1,512], index: 7, kind: input, shape index: {}]
  %s8 = inlined_call_operand.hbm [shape: bf16[512,2048], index: 8, kind: input, shape index: {}]
  %s9 = inlined_call_operand.hbm [shape: f32[1,2048], index: 9, kind: input, shape index: {}]
  %s10 = inlined_call_operand.hbm [shape: bf16[2048,512], index: 10, kind: input, shape index: {}]
  %s11 = inlined_call_operand.hbm [shape: f32[1,512], index: 11, kind: input, shape index: {}]
  %s12 = inlined_call_operand.hbm [shape: f32[1,512], index: 12, kind: input, shape index: {}]
  %s13 = inlined_call_operand.hbm [shape: f32[1,512], index: 13, kind: input, shape index: {}]
  %s14 = inlined_call_operand.hbm [shape: f32[2,8,512], index: 14, kind: output, shape index: {}]
  %s15 = sld [smem:[#allocation0]]
  $region122: #{tpu_custom_call.1} parent=0
    _
  %s17 = ssub.s32 1, %s15
  %s18 = scalar_select 0, %s17, %s15
  $region1: #{tpu_custom_call.1} parent=0
    #allocation2 [shape = 'u8[32768]{0}', space=vmem, size = 0x8000, scoped, tag = 'input window, operand 0, single buffered']
    #allocation3 [shape = 's32[1]{0}', space=sflag, size = 0x4, scoped, tag = 'scoped memory for tpu_custom_call.1']
    #allocation4 [shape = 's32[1]{0}', space=sflag, size = 0x4, scoped, tag = 'scoped memory for tpu_custom_call.1']
    #allocation5 [shape = 'u8[32768]{0}', space=vmem, size = 0x8000, scoped, tag = 'input window, operand 1, single buffered']
    #allocation6 [shape = 's32[1]{0}', space=sflag, size = 0x4, scoped, tag = 'scoped memory for tpu_custom_call.1']
    #allocation7 [shape = 'u8[32768]{0}', space=vmem, size = 0x8000, scoped, tag = 'input window, operand 2, single buffered']
    #allocation8 [shape = 'u8[32768]{0}', space=vmem, size = 0x8000, scoped, tag = 'input window, operand 3, single buffered']
    #allocation9 [shape = 's32[1]{0}', space=sflag, size = 0x4, scoped, tag = 'scoped memory for tpu_custom_call.1']
    #allocation10 [shape = 'u8[524288]{0}', space=vmem, size = 0x80000, scoped, tag = 'input window, operand 4, single buffered']
    #allocation11 [shape = 'u8[2048]{0}', space=vmem, size = 0x800, scoped, tag = 'input window, operand 5, single buffered']
    #allocation12 [shape = 's32[1]{0}', space=sflag, size = 0x4, scoped, tag = 'scoped memory for tpu_custom_call.1']
    #allocation13 [shape = 'u8[2048]{0}', space=vmem, size = 0x800, scoped, tag = 'input window, operand 6, single buffered']
    #allocation14 [shape = 'u8[2048]{0}', space=vmem, size = 0x800, scoped, tag = 'input window, operand 7, single buffered']
    #allocation15 [shape = 's32[1]{0}', space=sflag, size = 0x4, scoped, tag = 'scoped memory for tpu_custom_call.1']
    #allocation16 [shape = 'u8[2097152]{0}', space=vmem, size = 0x200000, scoped, tag = 'input window, operand 8, single buffered']
    #allocation17 [shape = 'u8[8192]{0}', space=vmem, size = 0x2000, scoped, tag = 'input window, operand 9, single buffered']
    #allocation18 [shape = 's32[1]{0}', space=sflag, size = 0x4, scoped, tag = 'scoped memory for tpu_custom_call.1']
    #allocation19 [shape = 'u8[2097152]{0}', space=vmem, size = 0x200000, scoped, tag = 'input window, operand 10, single buffered']
    #allocation20 [shape = 'u8[2048]{0}', space=vmem, size = 0x800, scoped, tag = 'input window, operand 11, single buffered']
    #allocation21 [shape = 's32[1]{0}', space=sflag, size = 0x4, scoped, tag = 'scoped memory for tpu_custom_call.1']
    #allocation22 [shape = 'u8[2048]{0}', space=vmem, size = 0x800, scoped, tag = 'input window, operand 12, single buffered']
    #allocation23 [shape = 'u8[2048]{0}', space=vmem, size = 0x800, scoped, tag = 'input window, operand 13, single buffered']
    #allocation24 [shape = 's32[1]{0}', space=sflag, size = 0x4, scoped, tag = 'scoped memory for tpu_custom_call.1']
    #allocation25 [shape = 'u8[32768]{0}', space=vmem, size = 0x8000, scoped, tag = 'output window, operand 0, single buffered']
    %19 = vsyncpa [#allocation3], 0
    %20 = vsyncpa [#allocation6], 0
    %21 = vsyncpa [#allocation9], 0
    %22 = vsyncpa [#allocation12], 0
    %23 = vsyncpa [#allocation15], 0
    %24 = vsyncpa [#allocation18], 0
    %25 = vsyncpa [#allocation21], 0
    %26 = vsyncpa [#allocation24], 0
    %27 = vsyncpa [#allocation4], 0
    // Predicated region
    $region2: #{tpu_custom_call.1} parent=1 // pred_check
      _
    $region3: #{tpu_custom_call.1} parent=1 // pred_check_branch
      %29 = sbr.rel (0) target = $region5
    $region4: #{tpu_custom_call.1} parent=1 // pred_region
      %s31 = ssub.s32 1024, 1024
      %32 = vsyncadd [#allocation3], %s31
      %s33 = sshll.u32 [#allocation2], 4
      %s34 = int_to_ptr.vmem [resolvable:$true] %s33
      %39 = dma.hbm_to_vmem [thread:$0]  %s0, 1024, %s34, [#allocation3], 512, 512, 32
    $region5: #{tpu_custom_call.1} parent=1 // pred_fallthru
      _
    // Predicated region
    $region6: #{tpu_custom_call.1} parent=1 // pred_check
      _
    $region7: #{tpu_custom_call.1} parent=1 // pred_check_branch
      %41 = sbr.rel (0) target = $region9
    $region8: #{tpu_custom_call.1} parent=1 // pred_region
      %s43 = ssub.s32 1024, 1024
      %44 = vsyncadd [#allocation6], %s43
      %s45 = sshll.u32 [#allocation5], 4
      %s46 = int_to_ptr.vmem [resolvable:$true] %s45
      %51 = dma.hbm_to_vmem [thread:$0]  %s1, 1024, %s46, [#allocation6], 256, 256, 16
    $region9: #{tpu_custom_call.1} parent=1 // pred_fallthru
      _
    // Predicated region
    $region10: #{tpu_custom_call.1} parent=1 // pred_check
      _
    $region11: #{tpu_custom_call.1} parent=1 // pred_check_branch
      %53 = sbr.rel (0) target = $region13
    $region12: #{tpu_custom_call.1} parent=1 // pred_region
      %s55 = ssub.s32 1024, 1024
      %56 = vsyncadd [#allocation6], %s55
      %s57 = sshll.u32 [#allocation7], 4
      %s58 = int_to_ptr.vmem [resolvable:$true] %s57
      %63 = dma.hbm_to_vmem [thread:$0]  %s2, 1024, %s58, [#allocation6], 256, 256, 16
    $region13: #{tpu_custom_call.1} parent=1 // pred_fallthru
      _
    // Predicated region
    $region14: #{tpu_custom_call.1} parent=1 // pred_check
      _
    $region15: #{tpu_custom_call.1} parent=1 // pred_check_branch
      %65 = sbr.rel (0) target = $region17
    $region16: #{tpu_custom_call.1} parent=1 // pred_region
      %s67 = ssub.s32 1024, 1024
      %68 = vsyncadd [#allocation9], %s67
      %s69 = sshll.u32 [#allocation8], 4
      %s70 = int_to_ptr.vmem [resolvable:$true] %s69
      %75 = dma.hbm_to_vmem [thread:$0]  %s3, 1024, %s70, [#allocation9], 256, 256, 16
    $region17: #{tpu_custom_call.1} parent=1 // pred_fallthru
      _
    // Predicated region
    $region18: #{tpu_custom_call.1} parent=1 // pred_check
      _
    $region19: #{tpu_custom_call.1} parent=1 // pred_check_branch
      %77 = sbr.rel (0) target = $region21
    $region20: #{tpu_custom_call.1} parent=1 // pred_region
      %s79 = ssub.s32 16384, 16384
      %80 = vsyncadd [#allocation9], %s79
      %s81 = sshll.u32 [#allocation10], 4
      %s82 = int_to_ptr.vmem [resolvable:$true] %s81
      %87 = dma.hbm_to_vmem [thread:$0]  %s4, 16384, %s82, [#allocation9], 256, 256, 16
    $region21: #{tpu_custom_call.1} parent=1 // pred_fallthru
      _
    // Predicated region
    $region22: #{tpu_custom_call.1} parent=1 // pred_check
      _
    $region23: #{tpu_custom_call.1} parent=1 // pred_check_branch
      %89 = sbr.rel (0) target = $region25
    $region24: #{tpu_custom_call.1} parent=1 // pred_region
      %s91 = ssub.s32 64, 64
      %92 = vsyncadd [#allocation12], %s91
      %s94 = sshll.u32 [#allocation11], 4
      %s95 = int_to_ptr.vmem [resolvable:$true] %s94
      %97 = dma.hbm_to_vmem [thread:$0]  %s5, 64, %s95, [#allocation12]
    $region25: #{tpu_custom_call.1} parent=1 // pred_fallthru
      _
    // Predicated region
    $region26: #{tpu_custom_call.1} parent=1 // pred_check
      _
    $region27: #{tpu_custom_call.1} parent=1 // pred_check_branch
      %99 = sbr.rel (0) target = $region29
    $region28: #{tpu_custom_call.1} parent=1 // pred_region
      %s101 = ssub.s32 64, 64
      %102 = vsyncadd [#allocation12], %s101
      %s104 = sshll.u32 [#allocation13], 4
      %s105 = int_to_ptr.vmem [resolvable:$true] %s104
      %107 = dma.hbm_to_vmem [thread:$0]  %s6, 64, %s105, [#allocation12]
    $region29: #{tpu_custom_call.1} parent=1 // pred_fallthru
      _
    // Predicated region
    $region30: #{tpu_custom_call.1} parent=1 // pred_check
      _
    $region31: #{tpu_custom_call.1} parent=1 // pred_check_branch
      %109 = sbr.rel (0) target = $region33
    $region32: #{tpu_custom_call.1} parent=1 // pred_region
      %s111 = ssub.s32 64, 64
      %112 = vsyncadd [#allocation15], %s111
      %s114 = sshll.u32 [#allocation14], 4
      %s115 = int_to_ptr.vmem [resolvable:$true] %s114
      %117 = dma.hbm_to_vmem [thread:$0]  %s7, 64, %s115, [#allocation15]
    $region33: #{tpu_custom_call.1} parent=1 // pred_fallthru
      _
    // Predicated region
    $region34: #{tpu_custom_call.1} parent=1 // pred_check
      _
    $region35: #{tpu_custom_call.1} parent=1 // pred_check_branch
      %119 = sbr.rel (0) target = $region37
    $region36: #{tpu_custom_call.1} parent=1 // pred_region
      %s121 = ssub.s32 65536, 65536
      %122 = vsyncadd [#allocation15], %s121
      %s123 = sshll.u32 [#allocation16], 4
      %s124 = int_to_ptr.vmem [resolvable:$true] %s123
      %129 = dma.hbm_to_vmem [thread:$0]  %s8, 65536, %s124, [#allocation15], 1024, 1024, 64
    $region37: #{tpu_custom_call.1} parent=1 // pred_fallthru
      _
    // Predicated region
    $region38: #{tpu_custom_call.1} parent=1 // pred_check
      _
    $region39: #{tpu_custom_call.1} parent=1 // pred_check_branch
      %131 = sbr.rel (0) target = $region41
    $region40: #{tpu_custom_call.1} parent=1 // pred_region
      %s133 = ssub.s32 256, 256
      %134 = vsyncadd [#allocation18], %s133
      %s136 = sshll.u32 [#allocation17], 4
      %s137 = int_to_ptr.vmem [resolvable:$true] %s136
      %139 = dma.hbm_to_vmem [thread:$0]  %s9, 256, %s137, [#allocation18]
    $region41: #{tpu_custom_call.1} parent=1 // pred_fallthru
      _
    // Predicated region
    $region42: #{tpu_custom_call.1} parent=1 // pred_check
      _
    $region43: #{tpu_custom_call.1} parent=1 // pred_check_branch
      %141 = sbr.rel (0) target = $region45
    $region44: #{tpu_custom_call.1} parent=1 // pred_region
      %s143 = ssub.s32 65536, 65536
      %144 = vsyncadd [#allocation18], %s143
      %s145 = sshll.u32 [#allocation19], 4
      %s146 = int_to_ptr.vmem [resolvable:$true] %s145
      %151 = dma.hbm_to_vmem [thread:$0]  %s10, 65536, %s146, [#allocation18], 256, 256, 16
    $region45: #{tpu_custom_call.1} parent=1 // pred_fallthru
      _
    // Predicated region
    $region46: #{tpu_custom_call.1} parent=1 // pred_check
      _
    $region47: #{tpu_custom_call.1} parent=1 // pred_check_branch
      %153 = sbr.rel (0) target = $region49
    $region48: #{tpu_custom_call.1} parent=1 // pred_region
      %s155 = ssub.s32 64, 64
      %156 = vsyncadd [#allocation21], %s155
      %s158 = sshll.u32 [#allocation20], 4
      %s159 = int_to_ptr.vmem [resolvable:$true] %s158
      %161 = dma.hbm_to_vmem [thread:$0]  %s11, 64, %s159, [#allocation21]
    $region49: #{tpu_custom_call.1} parent=1 // pred_fallthru
      _
    // Predicated region
    $region50: #{tpu_custom_call.1} parent=1 // pred_check
      _
    $region51: #{tpu_custom_call.1} parent=1 // pred_check_branch
      %163 = sbr.rel (0) target = $region53
    $region52: #{tpu_custom_call.1} parent=1 // pred_region
      %s165 = ssub.s32 64, 64
      %166 = vsyncadd [#allocation21], %s165
      %s168 = sshll.u32 [#allocation22], 4
      %s169 = int_to_ptr.vmem [resolvable:$true] %s168
      %171 = dma.hbm_to_vmem [thread:$0]  %s12, 64, %s169, [#allocation21]
    $region53: #{tpu_custom_call.1} parent=1 // pred_fallthru
      _
    // Predicated region
    $region54: #{tpu_custom_call.1} parent=1 // pred_check
      _
    $region55: #{tpu_custom_call.1} parent=1 // pred_check_branch
      %173 = sbr.rel (0) target = $region57
    $region56: #{tpu_custom_call.1} parent=1 // pred_region
      %s175 = ssub.s32 64, 64
      %176 = vsyncadd [#allocation24], %s175
      %s178 = sshll.u32 [#allocation23], 4
      %s179 = int_to_ptr.vmem [resolvable:$true] %s178
      %181 = dma.hbm_to_vmem [thread:$0]  %s13, 64, %s179, [#allocation24]
    $region57: #{tpu_custom_call.1} parent=1 // pred_fallthru
      _
    // Predicated region
    $region58: #{tpu_custom_call.1} parent=1 // pred_check
      _
    $region59: #{tpu_custom_call.1} parent=1 // pred_check_branch
      %183 = sbr.rel (0) target = $region61
    $region60: #{tpu_custom_call.1} parent=1 // pred_region
      %184 = dma.done [#allocation3], 1024
    $region61: #{tpu_custom_call.1} parent=1 // pred_fallthru
      _
    // Predicated region
    $region62: #{tpu_custom_call.1} parent=1 // pred_check
      _
    $region63: #{tpu_custom_call.1} parent=1 // pred_check_branch
      %186 = sbr.rel (0) target = $region65
    $region64: #{tpu_custom_call.1} parent=1 // pred_region
      %187 = dma.done [#allocation6], 1024
    $region65: #{tpu_custom_call.1} parent=1 // pred_fallthru
      _
    // Predicated region
    $region66: #{tpu_custom_call.1} parent=1 // pred_check
      _
    $region67: #{tpu_custom_call.1} parent=1 // pred_check_branch
      %189 = sbr.rel (0) target = $region69
    $region68: #{tpu_custom_call.1} parent=1 // pred_region
      %190 = dma.done [#allocation6], 1024
    $region69: #{tpu_custom_call.1} parent=1 // pred_fallthru
      _
    // Predicated region
    $region70: #{tpu_custom_call.1} parent=1 // pred_check
      _
    $region71: #{tpu_custom_call.1} parent=1 // pred_check_branch
      %192 = sbr.rel (0) target = $region73
    $region72: #{tpu_custom_call.1} parent=1 // pred_region
      %193 = dma.done [#allocation9], 1024
    $region73: #{tpu_custom_call.1} parent=1 // pred_fallthru
      _
    // Predicated region
    $region74: #{tpu_custom_call.1} parent=1 // pred_check
      _
    $region75: #{tpu_custom_call.1} parent=1 // pred_check_branch
      %195 = sbr.rel (0) target = $region77
    $region76: #{tpu_custom_call.1} parent=1 // pred_region
      %196 = dma.done [#allocation9], 16384
    $region77: #{tpu_custom_call.1} parent=1 // pred_fallthru
      _
    // Predicated region
    $region78: #{tpu_custom_call.1} parent=1 // pred_check
      _
    $region79: #{tpu_custom_call.1} parent=1 // pred_check_branch
      %198 = sbr.rel (0) target = $region81
    $region80: #{tpu_custom_call.1} parent=1 // pred_region
      %199 = dma.done [#allocation12], 64
    $region81: #{tpu_custom_call.1} parent=1 // pred_fallthru
      _
    // Predicated region
    $region82: #{tpu_custom_call.1} parent=1 // pred_check
      _
    $region83: #{tpu_custom_call.1} parent=1 // pred_check_branch
      %201 = sbr.rel (0) target = $region85
    $region84: #{tpu_custom_call.1} parent=1 // pred_region
      %202 = dma.done [#allocation12], 64
    $region85: #{tpu_custom_call.1} parent=1 // pred_fallthru
      _
    // Predicated region
    $region86: #{tpu_custom_call.1} parent=1 // pred_check
      _
    $region87: #{tpu_custom_call.1} parent=1 // pred_check_branch
      %204 = sbr.rel (0) target = $region89
    $region88: #{tpu_custom_call.1} parent=1 // pred_region
      %205 = dma.done [#allocation15], 64
    $region89: #{tpu_custom_call.1} parent=1 // pred_fallthru
      _
    // Predicated region
    $region90: #{tpu_custom_call.1} parent=1 // pred_check
      _
    $region91: #{tpu_custom_call.1} parent=1 // pred_check_branch
      %207 = sbr.rel (0) target = $region93
    $region92: #{tpu_custom_call.1} parent=1 // pred_region
      %208 = dma.done [#allocation15], 65536
    $region93: #{tpu_custom_call.1} parent=1 // pred_fallthru
      _
    // Predicated region
    $region94: #{tpu_custom_call.1} parent=1 // pred_check
      _
    $region95: #{tpu_custom_call.1} parent=1 // pred_check_branch
      %210 = sbr.rel (0) target = $region97
    $region96: #{tpu_custom_call.1} parent=1 // pred_region
      %211 = dma.done [#allocation18], 256
    $region97: #{tpu_custom_call.1} parent=1 // pred_fallthru
      _
    // Predicated region
    $region98: #{tpu_custom_call.1} parent=1 // pred_check
      _
    $region99: #{tpu_custom_call.1} parent=1 // pred_check_branch
      %213 = sbr.rel (0) target = $region101
    $region100: #{tpu_custom_call.1} parent=1 // pred_region
      %214 = dma.done [#allocation18], 65536
    $region101: #{tpu_custom_call.1} parent=1 // pred_fallthru
      _
    // Predicated region
    $region102: #{tpu_custom_call.1} parent=1 // pred_check
      _
    $region103: #{tpu_custom_call.1} parent=1 // pred_check_branch
      %216 = sbr.rel (0) target = $region105
    $region104: #{tpu_custom_call.1} parent=1 // pred_region
      %217 = dma.done [#allocation21], 64
    $region105: #{tpu_custom_call.1} parent=1 // pred_fallthru
      _
    // Predicated region
    $region106: #{tpu_custom_call.1} parent=1 // pred_check
      _
    $region107: #{tpu_custom_call.1} parent=1 // pred_check_branch
      %219 = sbr.rel (0) target = $region109
    $region108: #{tpu_custom_call.1} parent=1 // pred_region
      %220 = dma.done [#allocation21], 64
    $region109: #{tpu_custom_call.1} parent=1 // pred_fallthru
      _
    // Predicated region
    $region110: #{tpu_custom_call.1} parent=1 // pred_check
      _
    $region111: #{tpu_custom_call.1} parent=1 // pred_check_branch
      %222 = sbr.rel (0) target = $region113
    $region112: #{tpu_custom_call.1} parent=1 // pred_region
      %223 = dma.done [#allocation24], 64
    $region113: #{tpu_custom_call.1} parent=1 // pred_fallthru
      _
    %v225 = vld [vmem:[#allocation5] sm:$0xff]
    %v226 = vld [vmem:[#allocation5 + $0x8] sm:$0xff]
    %v227 = vld [vmem:[#allocation5 + $0x10] sm:$0xff]
    %v228 = vld [vmem:[#allocation5 + $0x18] sm:$0xff]
    %v229 = vld [vmem:[#allocation5 + $0x20] sm:$0xff]
    %v230 = vld [vmem:[#allocation5 + $0x28] sm:$0xff]
    %v231 = vld [vmem:[#allocation5 + $0x30] sm:$0xff]
    %v232 = vld [vmem:[#allocation5 + $0x38] sm:$0xff]
    %v233 = vmul.f32 %v225, 0.0625
    %v234 = vmul.f32 %v226, 0.0625
    %v235 = vmul.f32 %v227, 0.0625
    %v236 = vmul.f32 %v228, 0.0625
    %v237 = vmul.f32 %v229, 0.0625
    %v238 = vmul.f32 %v230, 0.0625
    %v239 = vmul.f32 %v231, 0.0625
    %v240 = vmul.f32 %v232, 0.0625
    %v241 = vpack.c.bf16 %v233, %v233
    %v242 = vpack.c.bf16 %v234, %v234
    %v243 = vpack.c.bf16 %v235, %v235
    %v244 = vpack.c.bf16 %v236, %v236
    %v245 = vpack.c.bf16 %v237, %v237
    %v246 = vpack.c.bf16 %v238, %v238
    %v247 = vpack.c.bf16 %v239, %v239
    %v248 = vpack.c.bf16 %v240, %v240
    %v249 = vld [vmem:[#allocation7] sm:$0xff]
    %v250 = vld [vmem:[#allocation7 + $0x8] sm:$0xff]
    %v251 = vld [vmem:[#allocation7 + $0x10] sm:$0xff]
    %v252 = vld [vmem:[#allocation7 + $0x18] sm:$0xff]
    %v253 = vld [vmem:[#allocation7 + $0x20] sm:$0xff]
    %v254 = vld [vmem:[#allocation7 + $0x28] sm:$0xff]
    %v255 = vld [vmem:[#allocation7 + $0x30] sm:$0xff]
    %v256 = vld [vmem:[#allocation7 + $0x38] sm:$0xff]
    %v257 = vpack.c.bf16 %v249, %v249
    %v258 = vpack.c.bf16 %v250, %v250
    %v259 = vpack.c.bf16 %v251, %v251
    %v260 = vpack.c.bf16 %v252, %v252
    %v261 = vpack.c.bf16 %v253, %v253
    %v262 = vpack.c.bf16 %v254, %v254
    %v263 = vpack.c.bf16 %v255, %v255
    %v264 = vpack.c.bf16 %v256, %v256
    %v265 = vld [vmem:[#allocation8] sm:$0xff]
    %v266 = vld [vmem:[#allocation8 + $0x8] sm:$0xff]
    %v267 = vld [vmem:[#allocation8 + $0x10] sm:$0xff]
    %v268 = vld [vmem:[#allocation8 + $0x18] sm:$0xff]
    %v269 = vld [vmem:[#allocation8 + $0x20] sm:$0xff]
    %v270 = vld [vmem:[#allocation8 + $0x28] sm:$0xff]
    %v271 = vld [vmem:[#allocation8 + $0x30] sm:$0xff]
    %v272 = vld [vmem:[#allocation8 + $0x38] sm:$0xff]
    %v273 = vpack.c.bf16 %v265, %v265
    %v274 = vpack.c.bf16 %v266, %v266
    %v275 = vpack.c.bf16 %v267, %v267
    %v276 = vpack.c.bf16 %v268, %v268
    %v277 = vpack.c.bf16 %v269, %v269
    %v278 = vpack.c.bf16 %v270, %v270
    %v279 = vpack.c.bf16 %v271, %v271
    %v280 = vpack.c.bf16 %v272, %v272
    %281 = vmatprep.subr.bf16.mxu0 %v258
    %282 = vmatpush1.bf16.xpose.msra.mxu0 %v257
    %283 = vmatprep.subr.bf16.mxu0 0
    %284 = vmatpush1.bf16.xpose.msra.mxu0 0
    %285 = vmatprep.subr.bf16.mxu0 0
    %286 = vmatpush1.bf16.xpose.msra.mxu0 0
    %287 = vmatprep.subr.bf16.mxu0 0
    %288 = vmatpush1.bf16.xpose.msra.mxu0 0
    %289 = vmatprep.subr.bf16.mxu0 0
    %290 = vmatpush1.bf16.xpose.msra.mxu0 0
    %291 = vmatprep.subr.bf16.mxu0 0
    %292 = vmatpush1.bf16.xpose.msra.mxu0 0
    %293 = vmatprep.subr.bf16.mxu0 0
    %294 = vmatpush1.bf16.xpose.msra.mxu0 0
    %295 = vmatprep.subr.bf16.mxu0 0
    %296 = vmatpush1.bf16.xpose.msra.mxu0 0
    %297 = vmatprep.subr.bf16.mxu0 0
    %298 = vmatpush1.bf16.xpose.msra.mxu0 0
    %299 = vmatprep.subr.bf16.mxu0 0
    %300 = vmatpush1.bf16.xpose.msra.mxu0 0
    %301 = vmatprep.subr.bf16.mxu0 0
    %302 = vmatpush1.bf16.xpose.msra.mxu0 0
    %303 = vmatprep.subr.bf16.mxu0 0
    %304 = vmatpush1.bf16.xpose.msra.mxu0 0
    %305 = vmatprep.subr.bf16.mxu0 0
    %306 = vmatpush1.bf16.xpose.msra.mxu0 0
    %307 = vmatprep.subr.bf16.mxu0 0
    %308 = vmatpush1.bf16.xpose.msra.mxu0 0
    %309 = vmatprep.subr.bf16.mxu0 0
    %310 = vmatpush1.bf16.xpose.msra.mxu0 0
    %311 = vmatprep.subr.bf16.mxu0 0
    %312 = vmatpush1.bf16.xpose.msra.mxu0 0
    %313 = vmatprep.mubr.bf16.mxu0 %v242
    %314 = vmatmul.mubr.bf16.gmra.mrb[0].mxu0 %v241
    %v315 = vpop.f32.mrb[0].mxu0
    %v316 = vadd.f32 0.0, %v315
    %v317 = vpop.f32.mrb[0].mxu0
    %v318 = vpop.f32.mrb[0].mxu0
    %v319 = vpop.f32.mrb[0].mxu0
    %320 = vdwg.mxu0
    %321 = vmatprep.subr.bf16.mxu0 %v260
    %322 = vmatpush1.bf16.xpose.msra.mxu0 %v259
    %323 = vmatprep.subr.bf16.mxu0 0
    %324 = vmatpush1.bf16.xpose.msra.mxu0 0
    %325 = vmatprep.subr.bf16.mxu0 0
    %326 = vmatpush1.bf16.xpose.msra.mxu0 0
    %327 = vmatprep.subr.bf16.mxu0 0
    %328 = vmatpush1.bf16.xpose.msra.mxu0 0
    %329 = vmatprep.subr.bf16.mxu0 0
    %330 = vmatpush1.bf16.xpose.msra.mxu0 0
    %331 = vmatprep.subr.bf16.mxu0 0
    %332 = vmatpush1.bf16.xpose.msra.mxu0 0
    %333 = vmatprep.subr.bf16.mxu0 0
    %334 = vmatpush1.bf16.xpose.msra.mxu0 0
    %335 = vmatprep.subr.bf16.mxu0 0
    %336 = vmatpush1.bf16.xpose.msra.mxu0 0
    %337 = vmatprep.subr.bf16.mxu0 0
    %338 = vmatpush1.bf16.xpose.msra.mxu0 0
    %339 = vmatprep.subr.bf16.mxu0 0
    %340 = vmatpush1.bf16.xpose.msra.mxu0 0
    %341 = vmatprep.subr.bf16.mxu0 0
    %342 = vmatpush1.bf16.xpose.msra.mxu0 0
    %343 = vmatprep.subr.bf16.mxu0 0
    %344 = vmatpush1.bf16.xpose.msra.mxu0 0
    %345 = vmatprep.subr.bf16.mxu0 0
    %346 = vmatpush1.bf16.xpose.msra.mxu0 0
    %347 = vmatprep.subr.bf16.mxu0 0
    %348 = vmatpush1.bf16.xpose.msra.mxu0 0
    %349 = vmatprep.subr.bf16.mxu0 0
    %350 = vmatpush1.bf16.xpose.msra.mxu0 0
    %351 = vmatprep.subr.bf16.mxu0 0
    %352 = vmatpush1.bf16.xpose.msra.mxu0 0
    %353 = vmatprep.mubr.bf16.mxu0 %v244
    %354 = vmatmul.mubr.bf16.gmra.mrb[0].mxu0 %v243
    %v355 = vpop.f32.mrb[0].mxu0
    %v356 = vadd.f32 0.0, %v355
    %v357 = vpop.f32.mrb[0].mxu0
    %v358 = vpop.f32.mrb[0].mxu0
    %v359 = vpop.f32.mrb[0].mxu0
    %360 = vdwg.mxu0
    %361 = vmatprep.subr.bf16.mxu0 %v262
    %362 = vmatpush1.bf16.xpose.msra.mxu0 %v261
    %363 = vmatprep.subr.bf16.mxu0 0
    %364 = vmatpush1.bf16.xpose.msra.mxu0 0
    %365 = vmatprep.subr.bf16.mxu0 0
    %366 = vmatpush1.bf16.xpose.msra.mxu0 0
    %367 = vmatprep.subr.bf16.mxu0 0
    %368 = vmatpush1.bf16.xpose.msra.mxu0 0
    %369 = vmatprep.subr.bf16.mxu0 0
    %370 = vmatpush1.bf16.xpose.msra.mxu0 0
    %371 = vmatprep.subr.bf16.mxu0 0
    %372 = vmatpush1.bf16.xpose.msra.mxu0 0
    %373 = vmatprep.subr.bf16.mxu0 0
    %374 = vmatpush1.bf16.xpose.msra.mxu0 0
    %375 = vmatprep.subr.bf16.mxu0 0
    %376 = vmatpush1.bf16.xpose.msra.mxu0 0
    %377 = vmatprep.subr.bf16.mxu0 0
    %378 = vmatpush1.bf16.xpose.msra.mxu0 0
    %379 = vmatprep.subr.bf16.mxu0 0
    %380 = vmatpush1.bf16.xpose.msra.mxu0 0
    %381 = vmatprep.subr.bf16.mxu0 0
    %382 = vmatpush1.bf16.xpose.msra.mxu0 0
    %383 = vmatprep.subr.bf16.mxu0 0
    %384 = vmatpush1.bf16.xpose.msra.mxu0 0
    %385 = vmatprep.subr.bf16.mxu0 0
    %386 = vmatpush1.bf16.xpose.msra.mxu0 0
    %387 = vmatprep.subr.bf16.mxu0 0
    %388 = vmatpush1.bf16.xpose.msra.mxu0 0
    %389 = vmatprep.subr.bf16.mxu0 0
    %390 = vmatpush1.bf16.xpose.msra.mxu0 0
    %391 = vmatprep.subr.bf16.mxu0 0
    %392 = vmatpush1.bf16.xpose.msra.mxu0 0
    %393 = vmatprep.mubr.bf16.mxu0 %v246
    %394 = vmatmul.mubr.bf16.gmra.mrb[0].mxu0 %v245
    %v395 = vpop.f32.mrb[0].mxu0
    %v396 = vadd.f32 0.0, %v395
    %v397 = vpop.f32.mrb[0].mxu0
    %v398 = vpop.f32.mrb[0].mxu0
    %v399 = vpop.f32.mrb[0].mxu0
    %400 = vdwg.mxu0
    %401 = vmatprep.subr.bf16.mxu0 %v264
    %402 = vmatpush1.bf16.xpose.msra.mxu0 %v263
    %403 = vmatprep.subr.bf16.mxu0 0
    %404 = vmatpush1.bf16.xpose.msra.mxu0 0
    %405 = vmatprep.subr.bf16.mxu0 0
    %406 = vmatpush1.bf16.xpose.msra.mxu0 0
    %407 = vmatprep.subr.bf16.mxu0 0
    %408 = vmatpush1.bf16.xpose.msra.mxu0 0
    %409 = vmatprep.subr.bf16.mxu0 0
    %410 = vmatpush1.bf16.xpose.msra.mxu0 0
    %411 = vmatprep.subr.bf16.mxu0 0
    %412 = vmatpush1.bf16.xpose.msra.mxu0 0
    %413 = vmatprep.subr.bf16.mxu0 0
    %414 = vmatpush1.bf16.xpose.msra.mxu0 0
    %415 = vmatprep.subr.bf16.mxu0 0
    %416 = vmatpush1.bf16.xpose.msra.mxu0 0
    %417 = vmatprep.subr.bf16.mxu0 0
    %418 = vmatpush1.bf16.xpose.msra.mxu0 0
    %419 = vmatprep.subr.bf16.mxu0 0
    %420 = vmatpush1.bf16.xpose.msra.mxu0 0
    %421 = vmatprep.subr.bf16.mxu0 0
    %422 = vmatpush1.bf16.xpose.msra.mxu0 0
    %423 = vmatprep.subr.bf16.mxu0 0
    %424 = vmatpush1.bf16.xpose.msra.mxu0 0
    %425 = vmatprep.subr.bf16.mxu0 0
    %426 = vmatpush1.bf16.xpose.msra.mxu0 0
    %427 = vmatprep.subr.bf16.mxu0 0
    %428 = vmatpush1.bf16.xpose.msra.mxu0 0
    %429 = vmatprep.subr.bf16.mxu0 0
    %430 = vmatpush1.bf16.xpose.msra.mxu0 0
    %431 = vmatprep.subr.bf16.mxu0 0
    %432 = vmatpush1.bf16.xpose.msra.mxu0 0
    %433 = vmatprep.mubr.bf16.mxu0 %v248
    %434 = vmatmul.mubr.bf16.gmra.mrb[0].mxu0 %v247
    %v435 = vpop.f32.mrb[0].mxu0
    %v436 = vadd.f32 0.0, %v435
    %v437 = vpop.f32.mrb[0].mxu0
    %v438 = vpop.f32.mrb[0].mxu0
    %v439 = vpop.f32.mrb[0].mxu0
    %440 = vdwg.mxu0
    %vm441 = vcmask 64512
    %v442 = vsel %vm441, %v316, -inf
    %443 = vmax.xlane.f32.xlu0 %v442
    %v444 = vpop.xlane.xlu0 %443
    %v445 = vsel %vm441, %v356, -inf
    %446 = vmax.xlane.f32.xlu0 %v445
    %v447 = vpop.xlane.xlu0 %446
    %v448 = vsel %vm441, %v396, -inf
    %449 = vmax.xlane.f32.xlu0 %v448
    %v450 = vpop.xlane.xlu0 %449
    %v451 = vsel %vm441, %v436, -inf
    %452 = vmax.xlane.f32.xlu0 %v451
    %v453 = vpop.xlane.xlu0 %452
    %v454 = vsub.f32 %v316, %v444
    %v455 = vsub.f32 %v356, %v447
    %v456 = vsub.f32 %v396, %v450
    %v457 = vsub.f32 %v436, %v453
    %v458 = vmul.f32 %v454, 1.442695
    %v459 = vpow.pop %v458
    %v460 = vmul.f32 %v455, 1.442695
    %v461 = vpow.pop %v460
    %v462 = vmul.f32 %v456, 1.442695
    %v463 = vpow.pop %v462
    %v464 = vmul.f32 %v457, 1.442695
    %v465 = vpow.pop %v464
    %v466 = vsel %vm441, %v459, 0.0
    %467 = vadd.xlane.f32.xlu0 %v466
    %v468 = vpop.xlane.xlu0 %467
    %v469 = vsel %vm441, %v461, 0.0
    %470 = vadd.xlane.f32.xlu0 %v469
    %v471 = vpop.xlane.xlu0 %470
    %v472 = vsel %vm441, %v463, 0.0
    %473 = vadd.xlane.f32.xlu0 %v472
    %v474 = vpop.xlane.xlu0 %473
    %v475 = vsel %vm441, %v465, 0.0
    %476 = vadd.xlane.f32.xlu0 %v475
    %v477 = vpop.xlane.xlu0 %476
    %v478 = vrcp.pop %v468
    %v479 = vrcp.pop %v471
    %v480 = vrcp.pop %v474
    %v481 = vrcp.pop %v477
    %v482 = vmul.f32 %v459, %v478
    %v483 = vmul.f32 %v461, %v479
    %v484 = vmul.f32 %v463, %v480
    %v485 = vmul.f32 %v465, %v481
    %v486 = vpack.c.bf16 %v482, %v482
    %v487 = vpack.c.bf16 %v483, %v483
    %v488 = vpack.c.bf16 %v484, %v484
    %v489 = vpack.c.bf16 %v485, %v485
    %v491 = vsel %vm441, %v486, 0
    %vm493 = vcmask 1043456
    %v495 = vsel %vm493, %v273, 0
    %v498 = vsel %vm493, %v274, 0
    %500 = vmatprep.subr.bf16.mxu0 %v498
    %501 = vmatpush1.bf16.msra.mxu0 %v495
    %502 = vmatprep.subr.bf16.mxu0 0
    %503 = vmatpush1.bf16.msra.mxu0 0
    %504 = vmatprep.subr.bf16.mxu0 0
    %505 = vmatpush1.bf16.msra.mxu0 0
    %506 = vmatprep.subr.bf16.mxu0 0
    %507 = vmatpush1.bf16.msra.mxu0 0
    %508 = vmatprep.subr.bf16.mxu0 0
    %509 = vmatpush1.bf16.msra.mxu0 0
    %510 = vmatprep.subr.bf16.mxu0 0
    %511 = vmatpush1.bf16.msra.mxu0 0
    %512 = vmatprep.subr.bf16.mxu0 0
    %513 = vmatpush1.bf16.msra.mxu0 0
    %514 = vmatprep.subr.bf16.mxu0 0
    %515 = vmatpush1.bf16.msra.mxu0 0
    %516 = vmatprep.subr.bf16.mxu0 0
    %517 = vmatpush1.bf16.msra.mxu0 0
    %518 = vmatprep.subr.bf16.mxu0 0
    %519 = vmatpush1.bf16.msra.mxu0 0
    %520 = vmatprep.subr.bf16.mxu0 0
    %521 = vmatpush1.bf16.msra.mxu0 0
    %522 = vmatprep.subr.bf16.mxu0 0
    %523 = vmatpush1.bf16.msra.mxu0 0
    %524 = vmatprep.subr.bf16.mxu0 0
    %525 = vmatpush1.bf16.msra.mxu0 0
    %526 = vmatprep.subr.bf16.mxu0 0
    %527 = vmatpush1.bf16.msra.mxu0 0
    %528 = vmatprep.subr.bf16.mxu0 0
    %529 = vmatpush1.bf16.msra.mxu0 0
    %530 = vmatprep.subr.bf16.mxu0 0
    %531 = vmatpush1.bf16.msra.mxu0 0
    %532 = vmatprep.mubr.bf16.mxu0 0
    %533 = vmatmul.mubr.bf16.gmra.mrb[0].mxu0 %v491
    %v534 = vpop.f32.mrb[0].mxu0
    %v535 = vadd.f32 0.0, %v534
    %v536 = vpop.f32.mrb[0].mxu0
    %v537 = vadd.f32 0.0, %v536
    %v538 = vpop.f32.mrb[0].mxu0
    %v539 = vpop.f32.mrb[0].mxu0
    %540 = vdwg.mxu0
    %v542 = vsel %vm441, %v487, 0
    %v545 = vsel %vm493, %v275, 0
    %v548 = vsel %vm493, %v276, 0
    %550 = vmatprep.subr.bf16.mxu0 %v548
    %551 = vmatpush1.bf16.msra.mxu0 %v545
    %552 = vmatprep.subr.bf16.mxu0 0
    %553 = vmatpush1.bf16.msra.mxu0 0
    %554 = vmatprep.subr.bf16.mxu0 0
    %555 = vmatpush1.bf16.msra.mxu0 0
    %556 = vmatprep.subr.bf16.mxu0 0
    %557 = vmatpush1.bf16.msra.mxu0 0
    %558 = vmatprep.subr.bf16.mxu0 0
    %559 = vmatpush1.bf16.msra.mxu0 0
    %560 = vmatprep.subr.bf16.mxu0 0
    %561 = vmatpush1.bf16.msra.mxu0 0
    %562 = vmatprep.subr.bf16.mxu0 0
    %563 = vmatpush1.bf16.msra.mxu0 0
    %564 = vmatprep.subr.bf16.mxu0 0
    %565 = vmatpush1.bf16.msra.mxu0 0
    %566 = vmatprep.subr.bf16.mxu0 0
    %567 = vmatpush1.bf16.msra.mxu0 0
    %568 = vmatprep.subr.bf16.mxu0 0
    %569 = vmatpush1.bf16.msra.mxu0 0
    %570 = vmatprep.subr.bf16.mxu0 0
    %571 = vmatpush1.bf16.msra.mxu0 0
    %572 = vmatprep.subr.bf16.mxu0 0
    %573 = vmatpush1.bf16.msra.mxu0 0
    %574 = vmatprep.subr.bf16.mxu0 0
    %575 = vmatpush1.bf16.msra.mxu0 0
    %576 = vmatprep.subr.bf16.mxu0 0
    %577 = vmatpush1.bf16.msra.mxu0 0
    %578 = vmatprep.subr.bf16.mxu0 0
    %579 = vmatpush1.bf16.msra.mxu0 0
    %580 = vmatprep.subr.bf16.mxu0 0
    %581 = vmatpush1.bf16.msra.mxu0 0
    %582 = vmatprep.mubr.bf16.mxu0 0
    %583 = vmatmul.mubr.bf16.gmra.mrb[0].mxu0 %v542
    %v584 = vpop.f32.mrb[0].mxu0
    %v585 = vadd.f32 0.0, %v584
    %v586 = vpop.f32.mrb[0].mxu0
    %v587 = vadd.f32 0.0, %v586
    %v588 = vpop.f32.mrb[0].mxu0
    %v589 = vpop.f32.mrb[0].mxu0
    %590 = vdwg.mxu0
    %v592 = vsel %vm441, %v488, 0
    %v595 = vsel %vm493, %v277, 0
    %v598 = vsel %vm493, %v278, 0
    %600 = vmatprep.subr.bf16.mxu0 %v598
    %601 = vmatpush1.bf16.msra.mxu0 %v595
    %602 = vmatprep.subr.bf16.mxu0 0
    %603 = vmatpush1.bf16.msra.mxu0 0
    %604 = vmatprep.subr.bf16.mxu0 0
    %605 = vmatpush1.bf16.msra.mxu0 0
    %606 = vmatprep.subr.bf16.mxu0 0
    %607 = vmatpush1.bf16.msra.mxu0 0
    %608 = vmatprep.subr.bf16.mxu0 0
    %609 = vmatpush1.bf16.msra.mxu0 0
    %610 = vmatprep.subr.bf16.mxu0 0
    %611 = vmatpush1.bf16.msra.mxu0 0
    %612 = vmatprep.subr.bf16.mxu0 0
    %613 = vmatpush1.bf16.msra.mxu0 0
    %614 = vmatprep.subr.bf16.mxu0 0
    %615 = vmatpush1.bf16.msra.mxu0 0
    %616 = vmatprep.subr.bf16.mxu0 0
    %617 = vmatpush1.bf16.msra.mxu0 0
    %618 = vmatprep.subr.bf16.mxu0 0
    %619 = vmatpush1.bf16.msra.mxu0 0
    %620 = vmatprep.subr.bf16.mxu0 0
    %621 = vmatpush1.bf16.msra.mxu0 0
    %622 = vmatprep.subr.bf16.mxu0 0
    %623 = vmatpush1.bf16.msra.mxu0 0
    %624 = vmatprep.subr.bf16.mxu0 0
    %625 = vmatpush1.bf16.msra.mxu0 0
    %626 = vmatprep.subr.bf16.mxu0 0
    %627 = vmatpush1.bf16.msra.mxu0 0
    %628 = vmatprep.subr.bf16.mxu0 0
    %629 = vmatpush1.bf16.msra.mxu0 0
    %630 = vmatprep.subr.bf16.mxu0 0
    %631 = vmatpush1.bf16.msra.mxu0 0
    %632 = vmatprep.mubr.bf16.mxu0 0
    %633 = vmatmul.mubr.bf16.gmra.mrb[0].mxu0 %v592
    %v634 = vpop.f32.mrb[0].mxu0
    %v635 = vadd.f32 0.0, %v634
    %v636 = vpop.f32.mrb[0].mxu0
    %v637 = vadd.f32 0.0, %v636
    %v638 = vpop.f32.mrb[0].mxu0
    %v639 = vpop.f32.mrb[0].mxu0
    %640 = vdwg.mxu0
    %v642 = vsel %vm441, %v489, 0
    %v645 = vsel %vm493, %v279, 0
    %v648 = vsel %vm493, %v280, 0
    %650 = vmatprep.subr.bf16.mxu0 %v648
    %651 = vmatpush1.bf16.msra.mxu0 %v645
    %652 = vmatprep.subr.bf16.mxu0 0
    %653 = vmatpush1.bf16.msra.mxu0 0
    %654 = vmatprep.subr.bf16.mxu0 0
    %655 = vmatpush1.bf16.msra.mxu0 0
    %656 = vmatprep.subr.bf16.mxu0 0
    %657 = vmatpush1.bf16.msra.mxu0 0
    %658 = vmatprep.subr.bf16.mxu0 0
    %659 = vmatpush1.bf16.msra.mxu0 0
    %660 = vmatprep.subr.bf16.mxu0 0
    %661 = vmatpush1.bf16.msra.mxu0 0
    %662 = vmatprep.subr.bf16.mxu0 0
    %663 = vmatpush1.bf16.msra.mxu0 0
    %664 = vmatprep.subr.bf16.mxu0 0
    %665 = vmatpush1.bf16.msra.mxu0 0
    %666 = vmatprep.subr.bf16.mxu0 0
    %667 = vmatpush1.bf16.msra.mxu0 0
    %668 = vmatprep.subr.bf16.mxu0 0
    %669 = vmatpush1.bf16.msra.mxu0 0
    %670 = vmatprep.subr.bf16.mxu0 0
    %671 = vmatpush1.bf16.msra.mxu0 0
    %672 = vmatprep.subr.bf16.mxu0 0
    %673 = vmatpush1.bf16.msra.mxu0 0
    %674 = vmatprep.subr.bf16.mxu0 0
    %675 = vmatpush1.bf16.msra.mxu0 0
    %676 = vmatprep.subr.bf16.mxu0 0
    %677 = vmatpush1.bf16.msra.mxu0 0
    %678 = vmatprep.subr.bf16.mxu0 0
    %679 = vmatpush1.bf16.msra.mxu0 0
    %680 = vmatprep.subr.bf16.mxu0 0
    %681 = vmatpush1.bf16.msra.mxu0 0
    %682 = vmatprep.mubr.bf16.mxu0 0
    %683 = vmatmul.mubr.bf16.gmra.mrb[0].mxu0 %v642
    %v684 = vpop.f32.mrb[0].mxu0
    %v685 = vadd.f32 0.0, %v684
    %v686 = vpop.f32.mrb[0].mxu0
    %v687 = vadd.f32 0.0, %v686
    %v688 = vpop.f32.mrb[0].mxu0
    %v689 = vpop.f32.mrb[0].mxu0
    %690 = vdwg.mxu0
    %v691 = vpack.c.bf16 %v635, %v535
    %v692 = vpack.c.bf16 %v637, %v537
    %v693 = vld [vmem:[#allocation10] sm:$0xff]
    %v694 = vld [vmem:[#allocation10 + $0x8] sm:$0xff]
    %v695 = vld [vmem:[#allocation10 + $0x10] sm:$0xff]
    %v696 = vld [vmem:[#allocation10 + $0x18] sm:$0xff]
    %v697 = vld [vmem:[#allocation10 + $0x20] sm:$0xff]
    %v698 = vld [vmem:[#allocation10 + $0x28] sm:$0xff]
    %v699 = vld [vmem:[#allocation10 + $0x30] sm:$0xff]
    %v700 = vld [vmem:[#allocation10 + $0x38] sm:$0xff]
    %v701 = vld [vmem:[#allocation10 + $0x40] sm:$0xff]
    %v702 = vld [vmem:[#allocation10 + $0x48] sm:$0xff]
    %v703 = vld [vmem:[#allocation10 + $0x50] sm:$0xff]
    %v704 = vld [vmem:[#allocation10 + $0x58] sm:$0xff]
    %v705 = vld [vmem:[#allocation10 + $0x60] sm:$0xff]
    %v706 = vld [vmem:[#allocation10 + $0x68] sm:$0xff]
    %v707 = vld [vmem:[#allocation10 + $0x70] sm:$0xff]
    %v708 = vld [vmem:[#allocation10 + $0x78] sm:$0xff]
    %v709 = vld [vmem:[#allocation10 + $0x80] sm:$0xff]
    %v710 = vld [vmem:[#allocation10 + $0x88] sm:$0xff]
    %v711 = vld [vmem:[#allocation10 + $0x90] sm:$0xff]
    %v712 = vld [vmem:[#allocation10 + $0x98] sm:$0xff]
    %v713 = vld [vmem:[#allocation10 + $0xa0] sm:$0xff]
    %v714 = vld [vmem:[#allocation10 + $0xa8] sm:$0xff]
    %v715 = vld [vmem:[#allocation10 + $0xb0] sm:$0xff]
    %v716 = vld [vmem:[#allocation10 + $0xb8] sm:$0xff]
    %v717 = vld [vmem:[#allocation10 + $0xc0] sm:$0xff]
    %v718 = vld [vmem:[#allocation10 + $0xc8] sm:$0xff]
    %v719 = vld [vmem:[#allocation10 + $0xd0] sm:$0xff]
    %v720 = vld [vmem:[#allocation10 + $0xd8] sm:$0xff]
    %v721 = vld [vmem:[#allocation10 + $0xe0] sm:$0xff]
    %v722 = vld [vmem:[#allocation10 + $0xe8] sm:$0xff]
    %v723 = vld [vmem:[#allocation10 + $0xf0] sm:$0xff]
    %v724 = vld [vmem:[#allocation10 + $0xf8] sm:$0xff]
    %v725 = vld [vmem:[#allocation10 + $0x100] sm:$0xff]
    %v726 = vld [vmem:[#allocation10 + $0x108] sm:$0xff]
    %v727 = vld [vmem:[#allocation10 + $0x110] sm:$0xff]
    %v728 = vld [vmem:[#allocation10 + $0x118] sm:$0xff]
    %v729 = vld [vmem:[#allocation10 + $0x120] sm:$0xff]
    %v730 = vld [vmem:[#allocation10 + $0x128] sm:$0xff]
    %v731 = vld [vmem:[#allocation10 + $0x130] sm:$0xff]
    %v732 = vld [vmem:[#allocation10 + $0x138] sm:$0xff]
    %v733 = vld [vmem:[#allocation10 + $0x140] sm:$0xff]
    %v734 = vld [vmem:[#allocation10 + $0x148] sm:$0xff]
    %v735 = vld [vmem:[#allocation10 + $0x150] sm:$0xff]
    %v736 = vld [vmem:[#allocation10 + $0x158] sm:$0xff]
    %v737 = vld [vmem:[#allocation10 + $0x160] sm:$0xff]
    %v738 = vld [vmem:[#allocation10 + $0x168] sm:$0xff]
    %v739 = vld [vmem:[#allocation10 + $0x170] sm:$0xff]
    %v740 = vld [vmem:[#allocation10 + $0x178] sm:$0xff]
    %v741 = vld [vmem:[#allocation10 + $0x180] sm:$0xff]
    %v742 = vld [vmem:[#allocation10 + $0x188] sm:$0xff]
    %v743 = vld [vmem:[#allocation10 + $0x190] sm:$0xff]
    %v744 = vld [vmem:[#allocation10 + $0x198] sm:$0xff]
    %v745 = vld [vmem:[#allocation10 + $0x1a0] sm:$0xff]
    %v746 = vld [vmem:[#allocation10 + $0x1a8] sm:$0xff]
    %v747 = vld [vmem:[#allocation10 + $0x1b0] sm:$0xff]
    %v748 = vld [vmem:[#allocation10 + $0x1b8] sm:$0xff]
    %v749 = vld [vmem:[#allocation10 + $0x1c0] sm:$0xff]
    %v750 = vld [vmem:[#allocation10 + $0x1c8] sm:$0xff]
    %v751 = vld [vmem:[#allocation10 + $0x1d0] sm:$0xff]
    %v752 = vld [vmem:[#allocation10 + $0x1d8] sm:$0xff]
    %v753 = vld [vmem:[#allocation10 + $0x1e0] sm:$0xff]
    %v754 = vld [vmem:[#allocation10 + $0x1e8] sm:$0xff]
    %v755 = vld [vmem:[#allocation10 + $0x1f0] sm:$0xff]
    %v756 = vld [vmem:[#allocation10 + $0x1f8] sm:$0xff]
    %v757 = vpack.c.bf16 %v685, %v585
    %v758 = vpack.c.bf16 %v687, %v587
    %v759 = vld [vmem:[#allocation10 + $0x200] sm:$0xff]
    %v760 = vld [vmem:[#allocation10 + $0x208] sm:$0xff]
    %v761 = vld [vmem:[#allocation10 + $0x210] sm:$0xff]
    %v762 = vld [vmem:[#allocation10 + $0x218] sm:$0xff]
    %v763 = vld [vmem:[#allocation10 + $0x220] sm:$0xff]
    %v764 = vld [vmem:[#allocation10 + $0x228] sm:$0xff]
    %v765 = vld [vmem:[#allocation10 + $0x230] sm:$0xff]
    %v766 = vld [vmem:[#allocation10 + $0x238] sm:$0xff]
    %v767 = vld [vmem:[#allocation10 + $0x240] sm:$0xff]
    %v768 = vld [vmem:[#allocation10 + $0x248] sm:$0xff]
    %v769 = vld [vmem:[#allocation10 + $0x250] sm:$0xff]
    %v770 = vld [vmem:[#allocation10 + $0x258] sm:$0xff]
    %v771 = vld [vmem:[#allocation10 + $0x260] sm:$0xff]
    %v772 = vld [vmem:[#allocation10 + $0x268] sm:$0xff]
    %v773 = vld [vmem:[#allocation10 + $0x270] sm:$0xff]
    %v774 = vld [vmem:[#allocation10 + $0x278] sm:$0xff]
    %v775 = vld [vmem:[#allocation10 + $0x280] sm:$0xff]
    %v776 = vld [vmem:[#allocation10 + $0x288] sm:$0xff]
    %v777 = vld [vmem:[#allocation10 + $0x290] sm:$0xff]
    %v778 = vld [vmem:[#allocation10 + $0x298] sm:$0xff]
    %v779 = vld [vmem:[#allocation10 + $0x2a0] sm:$0xff]
    %v780 = vld [vmem:[#allocation10 + $0x2a8] sm:$0xff]
    %v781 = vld [vmem:[#allocation10 + $0x2b0] sm:$0xff]
    %v782 = vld [vmem:[#allocation10 + $0x2b8] sm:$0xff]
    %v783 = vld [vmem:[#allocation10 + $0x2c0] sm:$0xff]
    %v784 = vld [vmem:[#allocation10 + $0x2c8] sm:$0xff]
    %v785 = vld [vmem:[#allocation10 + $0x2d0] sm:$0xff]
    %v786 = vld [vmem:[#allocation10 + $0x2d8] sm:$0xff]
    %v787 = vld [vmem:[#allocation10 + $0x2e0] sm:$0xff]
    %v788 = vld [vmem:[#allocation10 + $0x2e8] sm:$0xff]
    %v789 = vld [vmem:[#allocation10 + $0x2f0] sm:$0xff]
    %v790 = vld [vmem:[#allocation10 + $0x2f8] sm:$0xff]
    %v791 = vld [vmem:[#allocation10 + $0x300] sm:$0xff]
    %v792 = vld [vmem:[#allocation10 + $0x308] sm:$0xff]
    %v793 = vld [vmem:[#allocation10 + $0x310] sm:$0xff]
    %v794 = vld [vmem:[#allocation10 + $0x318] sm:$0xff]
    %v795 = vld [vmem:[#allocation10 + $0x320] sm:$0xff]
    %v796 = vld [vmem:[#allocation10 + $0x328] sm:$0xff]
    %v797 = vld [vmem:[#allocation10 + $0x330] sm:$0xff]
    %v798 = vld [vmem:[#allocation10 + $0x338] sm:$0xff]
    %v799 = vld [vmem:[#allocation10 + $0x340] sm:$0xff]
    %v800 = vld [vmem:[#allocation10 + $0x348] sm:$0xff]
    %v801 = vld [vmem:[#allocation10 + $0x350] sm:$0xff]
    %v802 = vld [vmem:[#allocation10 + $0x358] sm:$0xff]
    %v803 = vld [vmem:[#allocation10 + $0x360] sm:$0xff]
    %v804 = vld [vmem:[#allocation10 + $0x368] sm:$0xff]
    %v805 = vld [vmem:[#allocation10 + $0x370] sm:$0xff]
    %v806 = vld [vmem:[#allocation10 + $0x378] sm:$0xff]
    %v807 = vld [vmem:[#allocation10 + $0x380] sm:$0xff]
    %v808 = vld [vmem:[#allocation10 + $0x388] sm:$0xff]
    %v809 = vld [vmem:[#allocation10 + $0x390] sm:$0xff]
    %v810 = vld [vmem:[#allocation10 + $0x398] sm:$0xff]
    %v811 = vld [vmem:[#allocation10 + $0x3a0] sm:$0xff]
    %v812 = vld [vmem:[#allocation10 + $0x3a8] sm:$0xff]
    %v813 = vld [vmem:[#allocation10 + $0x3b0] sm:$0xff]
    %v814 = vld [vmem:[#allocation10 + $0x3b8] sm:$0xff]
    %v815 = vld [vmem:[#allocation10 + $0x3c0] sm:$0xff]
    %v816 = vld [vmem:[#allocation10 + $0x3c8] sm:$0xff]
    %v817 = vld [vmem:[#allocation10 + $0x3d0] sm:$0xff]
    %v818 = vld [vmem:[#allocation10 + $0x3d8] sm:$0xff]
    %v819 = vld [vmem:[#allocation10 + $0x3e0] sm:$0xff]
    %v820 = vld [vmem:[#allocation10 + $0x3e8] sm:$0xff]
    %v821 = vld [vmem:[#allocation10 + $0x3f0] sm:$0xff]
    %v822 = vld [vmem:[#allocation10 + $0x3f8] sm:$0xff]
    %v887 = vunpack.c.l.b16 %v759
    %v888 = vunpack.c.h.b16 %v759
    %v889 = vunpack.c.l.b16 %v760
    %v890 = vunpack.c.h.b16 %v760
    %v891 = vunpack.c.l.b16 %v761
    %v892 = vunpack.c.h.b16 %v761
    %v893 = vunpack.c.l.b16 %v762
    %v894 = vunpack.c.h.b16 %v762
    %v895 = vunpack.c.l.b16 %v763
    %v896 = vunpack.c.h.b16 %v763
    %v897 = vunpack.c.l.b16 %v764
    %v898 = vunpack.c.h.b16 %v764
    %v899 = vunpack.c.l.b16 %v765
    %v900 = vunpack.c.h.b16 %v765
    %v901 = vunpack.c.l.b16 %v766
    %v902 = vunpack.c.h.b16 %v766
    %v903 = vunpack.c.l.b16 %v767
    %v904 = vunpack.c.h.b16 %v767
    %v905 = vunpack.c.l.b16 %v768
    %v906 = vunpack.c.h.b16 %v768
    %v907 = vunpack.c.l.b16 %v769
    %v908 = vunpack.c.h.b16 %v769
    %v909 = vunpack.c.l.b16 %v770
    %v910 = vunpack.c.h.b16 %v770
    %v911 = vunpack.c.l.b16 %v771
    %v912 = vunpack.c.h.b16 %v771
    %v913 = vunpack.c.l.b16 %v772
    %v914 = vunpack.c.h.b16 %v772
    %v915 = vunpack.c.l.b16 %v773
    %v916 = vunpack.c.h.b16 %v773
    %v917 = vunpack.c.l.b16 %v774
    %v918 = vunpack.c.h.b16 %v774
    %v919 = vunpack.c.l.b16 %v775
    %v920 = vunpack.c.h.b16 %v775
    %v921 = vunpack.c.l.b16 %v776
    %v922 = vunpack.c.h.b16 %v776
    %v923 = vunpack.c.l.b16 %v777
    %v924 = vunpack.c.h.b16 %v777
    %v925 = vunpack.c.l.b16 %v778
    %v926 = vunpack.c.h.b16 %v778
    %v927 = vunpack.c.l.b16 %v779
    %v928 = vunpack.c.h.b16 %v779
    %v929 = vunpack.c.l.b16 %v780
    %v930 = vunpack.c.h.b16 %v780
    %v931 = vunpack.c.l.b16 %v781
    %v932 = vunpack.c.h.b16 %v781
    %v933 = vunpack.c.l.b16 %v782
    %v934 = vunpack.c.h.b16 %v782
    %v935 = vunpack.c.l.b16 %v783
    %v936 = vunpack.c.h.b16 %v783
    %v937 = vunpack.c.l.b16 %v784
    %v938 = vunpack.c.h.b16 %v784
    %v939 = vunpack.c.l.b16 %v785
    %v940 = vunpack.c.h.b16 %v785
    %v941 = vunpack.c.l.b16 %v786
    %v942 = vunpack.c.h.b16 %v786
    %v943 = vunpack.c.l.b16 %v787
    %v944 = vunpack.c.h.b16 %v787
    %v945 = vunpack.c.l.b16 %v788
    %v946 = vunpack.c.h.b16 %v788
    %v947 = vunpack.c.l.b16 %v789
    %v948 = vunpack.c.h.b16 %v789
    %v949 = vunpack.c.l.b16 %v790
    %v950 = vunpack.c.h.b16 %v790
    %v951 = vunpack.c.l.b16 %v791
    %v952 = vunpack.c.h.b16 %v791
    %v953 = vunpack.c.l.b16 %v792
    %v954 = vunpack.c.h.b16 %v792
    %v955 = vunpack.c.l.b16 %v793
    %v956 = vunpack.c.h.b16 %v793
    %v957 = vunpack.c.l.b16 %v794
    %v958 = vunpack.c.h.b16 %v794
    %v959 = vunpack.c.l.b16 %v795
    %v960 = vunpack.c.h.b16 %v795
    %v961 = vunpack.c.l.b16 %v796
    %v962 = vunpack.c.h.b16 %v796
    %v963 = vunpack.c.l.b16 %v797
    %v964 = vunpack.c.h.b16 %v797
    %v965 = vunpack.c.l.b16 %v798
    %v966 = vunpack.c.h.b16 %v798
    %v967 = vunpack.c.l.b16 %v799
    %v968 = vunpack.c.h.b16 %v799
    %v969 = vunpack.c.l.b16 %v800
    %v970 = vunpack.c.h.b16 %v800
    %v971 = vunpack.c.l.b16 %v801
    %v972 = vunpack.c.h.b16 %v801
    %v973 = vunpack.c.l.b16 %v802
    %v974 = vunpack.c.h.b16 %v802
    %v975 = vunpack.c.l.b16 %v803
    %v976 = vunpack.c.h.b16 %v803
    %v977 = vunpack.c.l.b16 %v804
    %v978 = vunpack.c.h.b16 %v804
    %v979 = vunpack.c.l.b16 %v805
    %v980 = vunpack.c.h.b16 %v805
    %v981 = vunpack.c.l.b16 %v806
    %v982 = vunpack.c.h.b16 %v806
    %v983 = vunpack.c.l.b16 %v807
    %v984 = vunpack.c.h.b16 %v807
    %v985 = vunpack.c.l.b16 %v808
    %v986 = vunpack.c.h.b16 %v808
    %v987 = vunpack.c.l.b16 %v809
    %v988 = vunpack.c.h.b16 %v809
    %v989 = vunpack.c.l.b16 %v810
    %v990 = vunpack.c.h.b16 %v810
    %v991 = vunpack.c.l.b16 %v811
    %v992 = vunpack.c.h.b16 %v811
    %v993 = vunpack.c.l.b16 %v812
    %v994 = vunpack.c.h.b16 %v812
    %v995 = vunpack.c.l.b16 %v813
    %v996 = vunpack.c.h.b16 %v813
    %v997 = vunpack.c.l.b16 %v814
    %v998 = vunpack.c.h.b16 %v814
    %v999 = vunpack.c.l.b16 %v815
    %v1000 = vunpack.c.h.b16 %v815
    %v1001 = vunpack.c.l.b16 %v816
    %v1002 = vunpack.c.h.b16 %v816
    %v1003 = vunpack.c.l.b16 %v817
    %v1004 = vunpack.c.h.b16 %v817
    %v1005 = vunpack.c.l.b16 %v818
    %v1006 = vunpack.c.h.b16 %v818
    %v1007 = vunpack.c.l.b16 %v819
    %v1008 = vunpack.c.h.b16 %v819
    %v1009 = vunpack.c.l.b16 %v820
    %v1010 = vunpack.c.h.b16 %v820
    %v1011 = vunpack.c.l.b16 %v821
    %v1012 = vunpack.c.h.b16 %v821
    %v1013 = vunpack.c.l.b16 %v822
    %v1014 = vunpack.c.h.b16 %v822
    %v1015 = vpack.c.b16 %v891, %v887
    %v1016 = vpack.c.b16 %v892, %v888
    %v1017 = vpack.c.b16 %v893, %v889
    %v1018 = vpack.c.b16 %v894, %v890
    %v1019 = vpack.c.b16 %v899, %v895
    %v1020 = vpack.c.b16 %v900, %v896
    %v1021 = vpack.c.b16 %v901, %v897
    %v1022 = vpack.c.b16 %v902, %v898
    %v1023 = vpack.c.b16 %v907, %v903
    %v1024 = vpack.c.b16 %v908, %v904
    %v1025 = vpack.c.b16 %v909, %v905
    %v1026 = vpack.c.b16 %v910, %v906
    %v1027 = vpack.c.b16 %v915, %v911
    %v1028 = vpack.c.b16 %v916, %v912
    %v1029 = vpack.c.b16 %v917, %v913
    %v1030 = vpack.c.b16 %v918, %v914
    %v1031 = vpack.c.b16 %v923, %v919
    %v1032 = vpack.c.b16 %v924, %v920
    %v1033 = vpack.c.b16 %v925, %v921
    %v1034 = vpack.c.b16 %v926, %v922
    %v1035 = vpack.c.b16 %v931, %v927
    %v1036 = vpack.c.b16 %v932, %v928
    %v1037 = vpack.c.b16 %v933, %v929
    %v1038 = vpack.c.b16 %v934, %v930
    %v1039 = vpack.c.b16 %v939, %v935
    %v1040 = vpack.c.b16 %v940, %v936
    %v1041 = vpack.c.b16 %v941, %v937
    %v1042 = vpack.c.b16 %v942, %v938
    %v1043 = vpack.c.b16 %v947, %v943
    %v1044 = vpack.c.b16 %v948, %v944
    %v1045 = vpack.c.b16 %v949, %v945
    %v1046 = vpack.c.b16 %v950, %v946
    %v1047 = vpack.c.b16 %v955, %v951
    %v1048 = vpack.c.b16 %v956, %v952
    %v1049 = vpack.c.b16 %v957, %v953
    %v1050 = vpack.c.b16 %v958, %v954
    %v1051 = vpack.c.b16 %v963, %v959
    %v1052 = vpack.c.b16 %v964, %v960
    %v1053 = vpack.c.b16 %v965, %v961
    %v1054 = vpack.c.b16 %v966, %v962
    %v1055 = vpack.c.b16 %v971, %v967
    %v1056 = vpack.c.b16 %v972, %v968
    %v1057 = vpack.c.b16 %v973, %v969
    %v1058 = vpack.c.b16 %v974, %v970
    %v1059 = vpack.c.b16 %v979, %v975
    %v1060 = vpack.c.b16 %v980, %v976
    %v1061 = vpack.c.b16 %v981, %v977
    %v1062 = vpack.c.b16 %v982, %v978
    %v1063 = vpack.c.b16 %v987, %v983
    %v1064 = vpack.c.b16 %v988, %v984
    %v1065 = vpack.c.b16 %v989, %v985
    %v1066 = vpack.c.b16 %v990, %v986
    %v1067 = vpack.c.b16 %v995, %v991
    %v1068 = vpack.c.b16 %v996, %v992
    %v1069 = vpack.c.b16 %v997, %v993
    %v1070 = vpack.c.b16 %v998, %v994
    %v1071 = vpack.c.b16 %v1003, %v999
    %v1072 = vpack.c.b16 %v1004, %v1000
    %v1073 = vpack.c.b16 %v1005, %v1001
    %v1074 = vpack.c.b16 %v1006, %v1002
    %v1075 = vpack.c.b16 %v1011, %v1007
    %v1076 = vpack.c.b16 %v1012, %v1008
    %v1077 = vpack.c.b16 %v1013, %v1009
    %v1078 = vpack.c.b16 %v1014, %v1010
    %1143 = vmatprep.subr.bf16.mxu0 %v1016
    %1144 = vmatpush1.bf16.msra.mxu0 %v1015
    %1145 = vmatprep.subr.bf16.mxu0 %v1020
    %1146 = vmatpush1.bf16.msra.mxu0 %v1019
    %1147 = vmatprep.subr.bf16.mxu0 %v1024
    %1148 = vmatpush1.bf16.msra.mxu0 %v1023
    %1149 = vmatprep.subr.bf16.mxu0 %v1028
    %1150 = vmatpush1.bf16.msra.mxu0 %v1027
    %1151 = vmatprep.subr.bf16.mxu0 %v1032
    %1152 = vmatpush1.bf16.msra.mxu0 %v1031
    %1153 = vmatprep.subr.bf16.mxu0 %v1036
    %1154 = vmatpush1.bf16.msra.mxu0 %v1035
    %1155 = vmatprep.subr.bf16.mxu0 %v1040
    %1156 = vmatpush1.bf16.msra.mxu0 %v1039
    %1157 = vmatprep.subr.bf16.mxu0 %v1044
    %1158 = vmatpush1.bf16.msra.mxu0 %v1043
    %1159 = vmatprep.subr.bf16.mxu0 %v1048
    %1160 = vmatpush1.bf16.msra.mxu0 %v1047
    %1161 = vmatprep.subr.bf16.mxu0 %v1052
    %1162 = vmatpush1.bf16.msra.mxu0 %v1051
    %1163 = vmatprep.subr.bf16.mxu0 %v1056
    %1164 = vmatpush1.bf16.msra.mxu0 %v1055
    %1165 = vmatprep.subr.bf16.mxu0 %v1060
    %1166 = vmatpush1.bf16.msra.mxu0 %v1059
    %1167 = vmatprep.subr.bf16.mxu0 %v1064
    %1168 = vmatpush1.bf16.msra.mxu0 %v1063
    %1169 = vmatprep.subr.bf16.mxu0 %v1068
    %1170 = vmatpush1.bf16.msra.mxu0 %v1067
    %1171 = vmatprep.subr.bf16.mxu0 %v1072
    %1172 = vmatpush1.bf16.msra.mxu0 %v1071
    %1173 = vmatprep.subr.bf16.mxu0 %v1076
    %1174 = vmatpush1.bf16.msra.mxu0 %v1075
    %1175 = vmatprep.mubr.bf16.mxu0 %v758
    %1176 = vmatmul.mubr.bf16.gmra.mrb[0].mxu0 %v757
    %v1177 = vpop.f32.mrb[0].mxu0
    %v1178 = vadd.f32 0.0, %v1177
    %v1179 = vpop.f32.mrb[0].mxu0
    %v1180 = vadd.f32 0.0, %v1179
    %v1181 = vpop.f32.mrb[0].mxu0
    %v1182 = vadd.f32 0.0, %v1181
    %v1183 = vpop.f32.mrb[0].mxu0
    %v1184 = vadd.f32 0.0, %v1183
    %1185 = vdwg.mxu0
    %1186 = vmatprep.subr.bf16.mxu0 %v1018
    %1187 = vmatpush1.bf16.msra.mxu0 %v1017
    %1188 = vmatprep.subr.bf16.mxu0 %v1022
    %1189 = vmatpush1.bf16.msra.mxu0 %v1021
    %1190 = vmatprep.subr.bf16.mxu0 %v1026
    %1191 = vmatpush1.bf16.msra.mxu0 %v1025
    %1192 = vmatprep.subr.bf16.mxu0 %v1030
    %1193 = vmatpush1.bf16.msra.mxu0 %v1029
    %1194 = vmatprep.subr.bf16.mxu0 %v1034
    %1195 = vmatpush1.bf16.msra.mxu0 %v1033
    %1196 = vmatprep.subr.bf16.mxu0 %v1038
    %1197 = vmatpush1.bf16.msra.mxu0 %v1037
    %1198 = vmatprep.subr.bf16.mxu0 %v1042
    %1199 = vmatpush1.bf16.msra.mxu0 %v1041
    %1200 = vmatprep.subr.bf16.mxu0 %v1046
    %1201 = vmatpush1.bf16.msra.mxu0 %v1045
    %1202 = vmatprep.subr.bf16.mxu0 %v1050
    %1203 = vmatpush1.bf16.msra.mxu0 %v1049
    %1204 = vmatprep.subr.bf16.mxu0 %v1054
    %1205 = vmatpush1.bf16.msra.mxu0 %v1053
    %1206 = vmatprep.subr.bf16.mxu0 %v1058
    %1207 = vmatpush1.bf16.msra.mxu0 %v1057
    %1208 = vmatprep.subr.bf16.mxu0 %v1062
    %1209 = vmatpush1.bf16.msra.mxu0 %v1061
    %1210 = vmatprep.subr.bf16.mxu0 %v1066
    %1211 = vmatpush1.bf16.msra.mxu0 %v1065
    %1212 = vmatprep.subr.bf16.mxu0 %v1070
    %1213 = vmatpush1.bf16.msra.mxu0 %v1069
    %1214 = vmatprep.subr.bf16.mxu0 %v1074
    %1215 = vmatpush1.bf16.msra.mxu0 %v1073
    %1216 = vmatprep.subr.bf16.mxu0 %v1078
    %1217 = vmatpush1.bf16.msra.mxu0 %v1077
    %1218 = vmatprep.mubr.bf16.mxu0 %v758
    %1219 = vmatmul.mubr.bf16.gmra.mrb[0].mxu0 %v757
    %v1220 = vpop.f32.mrb[0].mxu0
    %v1221 = vadd.f32 0.0, %v1220
    %v1222 = vpop.f32.mrb[0].mxu0
    %v1223 = vadd.f32 0.0, %v1222
    %v1224 = vpop.f32.mrb[0].mxu0
    %v1225 = vadd.f32 0.0, %v1224
    %v1226 = vpop.f32.mrb[0].mxu0
    %v1227 = vadd.f32 0.0, %v1226
    %1228 = vdwg.mxu0
    %v1293 = vunpack.c.l.b16 %v693
    %v1294 = vunpack.c.h.b16 %v693
    %v1295 = vunpack.c.l.b16 %v694
    %v1296 = vunpack.c.h.b16 %v694
    %v1297 = vunpack.c.l.b16 %v695
    %v1298 = vunpack.c.h.b16 %v695
    %v1299 = vunpack.c.l.b16 %v696
    %v1300 = vunpack.c.h.b16 %v696
    %v1301 = vunpack.c.l.b16 %v697
    %v1302 = vunpack.c.h.b16 %v697
    %v1303 = vunpack.c.l.b16 %v698
    %v1304 = vunpack.c.h.b16 %v698
    %v1305 = vunpack.c.l.b16 %v699
    %v1306 = vunpack.c.h.b16 %v699
    %v1307 = vunpack.c.l.b16 %v700
    %v1308 = vunpack.c.h.b16 %v700
    %v1309 = vunpack.c.l.b16 %v701
    %v1310 = vunpack.c.h.b16 %v701
    %v1311 = vunpack.c.l.b16 %v702
    %v1312 = vunpack.c.h.b16 %v702
    %v1313 = vunpack.c.l.b16 %v703
    %v1314 = vunpack.c.h.b16 %v703
    %v1315 = vunpack.c.l.b16 %v704
    %v1316 = vunpack.c.h.b16 %v704
    %v1317 = vunpack.c.l.b16 %v705
    %v1318 = vunpack.c.h.b16 %v705
    %v1319 = vunpack.c.l.b16 %v706
    %v1320 = vunpack.c.h.b16 %v706
    %v1321 = vunpack.c.l.b16 %v707
    %v1322 = vunpack.c.h.b16 %v707
    %v1323 = vunpack.c.l.b16 %v708
    %v1324 = vunpack.c.h.b16 %v708
    %v1325 = vunpack.c.l.b16 %v709
    %v1326 = vunpack.c.h.b16 %v709
    %v1327 = vunpack.c.l.b16 %v710
    %v1328 = vunpack.c.h.b16 %v710
    %v1329 = vunpack.c.l.b16 %v711
    %v1330 = vunpack.c.h.b16 %v711
    %v1331 = vunpack.c.l.b16 %v712
    %v1332 = vunpack.c.h.b16 %v712
    %v1333 = vunpack.c.l.b16 %v713
    %v1334 = vunpack.c.h.b16 %v713
    %v1335 = vunpack.c.l.b16 %v714
    %v1336 = vunpack.c.h.b16 %v714
    %v1337 = vunpack.c.l.b16 %v715
    %v1338 = vunpack.c.h.b16 %v715
    %v1339 = vunpack.c.l.b16 %v716
    %v1340 = vunpack.c.h.b16 %v716
    %v1341 = vunpack.c.l.b16 %v717
    %v1342 = vunpack.c.h.b16 %v717
    %v1343 = vunpack.c.l.b16 %v718
    %v1344 = vunpack.c.h.b16 %v718
    %v1345 = vunpack.c.l.b16 %v719
    %v1346 = vunpack.c.h.b16 %v719
    %v1347 = vunpack.c.l.b16 %v720
    %v1348 = vunpack.c.h.b16 %v720
    %v1349 = vunpack.c.l.b16 %v721
    %v1350 = vunpack.c.h.b16 %v721
    %v1351 = vunpack.c.l.b16 %v722
    %v1352 = vunpack.c.h.b16 %v722
    %v1353 = vunpack.c.l.b16 %v723
    %v1354 = vunpack.c.h.b16 %v723
    %v1355 = vunpack.c.l.b16 %v724
    %v1356 = vunpack.c.h.b16 %v724
    %v1357 = vunpack.c.l.b16 %v725
    %v1358 = vunpack.c.h.b16 %v725
    %v1359 = vunpack.c.l.b16 %v726
    %v1360 = vunpack.c.h.b16 %v726
    %v1361 = vunpack.c.l.b16 %v727
    %v1362 = vunpack.c.h.b16 %v727
    %v1363 = vunpack.c.l.b16 %v728
    %v1364 = vunpack.c.h.b16 %v728
    %v1365 = vunpack.c.l.b16 %v729
    %v1366 = vunpack.c.h.b16 %v729
    %v1367 = vunpack.c.l.b16 %v730
    %v1368 = vunpack.c.h.b16 %v730
    %v1369 = vunpack.c.l.b16 %v731
    %v1370 = vunpack.c.h.b16 %v731
    %v1371 = vunpack.c.l.b16 %v732
    %v1372 = vunpack.c.h.b16 %v732
    %v1373 = vunpack.c.l.b16 %v733
    %v1374 = vunpack.c.h.b16 %v733
    %v1375 = vunpack.c.l.b16 %v734
    %v1376 = vunpack.c.h.b16 %v734
    %v1377 = vunpack.c.l.b16 %v735
    %v1378 = vunpack.c.h.b16 %v735
    %v1379 = vunpack.c.l.b16 %v736
    %v1380 = vunpack.c.h.b16 %v736
    %v1381 = vunpack.c.l.b16 %v737
    %v1382 = vunpack.c.h.b16 %v737
    %v1383 = vunpack.c.l.b16 %v738
    %v1384 = vunpack.c.h.b16 %v738
    %v1385 = vunpack.c.l.b16 %v739
    %v1386 = vunpack.c.h.b16 %v739
    %v1387 = vunpack.c.l.b16 %v740
    %v1388 = vunpack.c.h.b16 %v740
    %v1389 = vunpack.c.l.b16 %v741
    %v1390 = vunpack.c.h.b16 %v741
    %v1391 = vunpack.c.l.b16 %v742
    %v1392 = vunpack.c.h.b16 %v742
    %v1393 = vunpack.c.l.b16 %v743
    %v1394 = vunpack.c.h.b16 %v743
    %v1395 = vunpack.c.l.b16 %v744
    %v1396 = vunpack.c.h.b16 %v744
    %v1397 = vunpack.c.l.b16 %v745
    %v1398 = vunpack.c.h.b16 %v745
    %v1399 = vunpack.c.l.b16 %v746
    %v1400 = vunpack.c.h.b16 %v746
    %v1401 = vunpack.c.l.b16 %v747
    %v1402 = vunpack.c.h.b16 %v747
    %v1403 = vunpack.c.l.b16 %v748
    %v1404 = vunpack.c.h.b16 %v748
    %v1405 = vunpack.c.l.b16 %v749
    %v1406 = vunpack.c.h.b16 %v749
    %v1407 = vunpack.c.l.b16 %v750
    %v1408 = vunpack.c.h.b16 %v750
    %v1409 = vunpack.c.l.b16 %v751
    %v1410 = vunpack.c.h.b16 %v751
    %v1411 = vunpack.c.l.b16 %v752
    %v1412 = vunpack.c.h.b16 %v752
    %v1413 = vunpack.c.l.b16 %v753
    %v1414 = vunpack.c.h.b16 %v753
    %v1415 = vunpack.c.l.b16 %v754
    %v1416 = vunpack.c.h.b16 %v754
    %v1417 = vunpack.c.l.b16 %v755
    %v1418 = vunpack.c.h.b16 %v755
    %v1419 = vunpack.c.l.b16 %v756
    %v1420 = vunpack.c.h.b16 %v756
    %v1421 = vpack.c.b16 %v1297, %v1293
    %v1422 = vpack.c.b16 %v1298, %v1294
    %v1423 = vpack.c.b16 %v1299, %v1295
    %v1424 = vpack.c.b16 %v1300, %v1296
    %v1425 = vpack.c.b16 %v1305, %v1301
    %v1426 = vpack.c.b16 %v1306, %v1302
    %v1427 = vpack.c.b16 %v1307, %v1303
    %v1428 = vpack.c.b16 %v1308, %v1304
    %v1429 = vpack.c.b16 %v1313, %v1309
    %v1430 = vpack.c.b16 %v1314, %v1310
    %v1431 = vpack.c.b16 %v1315, %v1311
    %v1432 = vpack.c.b16 %v1316, %v1312
    %v1433 = vpack.c.b16 %v1321, %v1317
    %v1434 = vpack.c.b16 %v1322, %v1318
    %v1435 = vpack.c.b16 %v1323, %v1319
    %v1436 = vpack.c.b16 %v1324, %v1320
    %v1437 = vpack.c.b16 %v1329, %v1325
    %v1438 = vpack.c.b16 %v1330, %v1326
    %v1439 = vpack.c.b16 %v1331, %v1327
    %v1440 = vpack.c.b16 %v1332, %v1328
    %v1441 = vpack.c.b16 %v1337, %v1333
    %v1442 = vpack.c.b16 %v1338, %v1334
    %v1443 = vpack.c.b16 %v1339, %v1335
    %v1444 = vpack.c.b16 %v1340, %v1336
    %v1445 = vpack.c.b16 %v1345, %v1341
    %v1446 = vpack.c.b16 %v1346, %v1342
    %v1447 = vpack.c.b16 %v1347, %v1343
    %v1448 = vpack.c.b16 %v1348, %v1344
    %v1449 = vpack.c.b16 %v1353, %v1349
    %v1450 = vpack.c.b16 %v1354, %v1350
    %v1451 = vpack.c.b16 %v1355, %v1351
    %v1452 = vpack.c.b16 %v1356, %v1352
    %v1453 = vpack.c.b16 %v1361, %v1357
    %v1454 = vpack.c.b16 %v1362, %v1358
    %v1455 = vpack.c.b16 %v1363, %v1359
    %v1456 = vpack.c.b16 %v1364, %v1360
    %v1457 = vpack.c.b16 %v1369, %v1365
    %v1458 = vpack.c.b16 %v1370, %v1366
    %v1459 = vpack.c.b16 %v1371, %v1367
    %v1460 = vpack.c.b16 %v1372, %v1368
    %v1461 = vpack.c.b16 %v1377, %v1373
    %v1462 = vpack.c.b16 %v1378, %v1374
    %v1463 = vpack.c.b16 %v1379, %v1375
    %v1464 = vpack.c.b16 %v1380, %v1376
    %v1465 = vpack.c.b16 %v1385, %v1381
    %v1466 = vpack.c.b16 %v1386, %v1382
    %v1467 = vpack.c.b16 %v1387, %v1383
    %v1468 = vpack.c.b16 %v1388, %v1384
    %v1469 = vpack.c.b16 %v1393, %v1389
    %v1470 = vpack.c.b16 %v1394, %v1390
    %v1471 = vpack.c.b16 %v1395, %v1391
    %v1472 = vpack.c.b16 %v1396, %v1392
    %v1473 = vpack.c.b16 %v1401, %v1397
    %v1474 = vpack.c.b16 %v1402, %v1398
    %v1475 = vpack.c.b16 %v1403, %v1399
    %v1476 = vpack.c.b16 %v1404, %v1400
    %v1477 = vpack.c.b16 %v1409, %v1405
    %v1478 = vpack.c.b16 %v1410, %v1406
    %v1479 = vpack.c.b16 %v1411, %v1407
    %v1480 = vpack.c.b16 %v1412, %v1408
    %v1481 = vpack.c.b16 %v1417, %v1413
    %v1482 = vpack.c.b16 %v1418, %v1414
    %v1483 = vpack.c.b16 %v1419, %v1415
    %v1484 = vpack.c.b16 %v1420, %v1416
    %1549 = vmatprep.subr.bf16.mxu0 %v1422
    %1550 = vmatpush1.bf16.msra.mxu0 %v1421
    %1551 = vmatprep.subr.bf16.mxu0 %v1426
    %1552 = vmatpush1.bf16.msra.mxu0 %v1425
    %1553 = vmatprep.subr.bf16.mxu0 %v1430
    %1554 = vmatpush1.bf16.msra.mxu0 %v1429
    %1555 = vmatprep.subr.bf16.mxu0 %v1434
    %1556 = vmatpush1.bf16.msra.mxu0 %v1433
    %1557 = vmatprep.subr.bf16.mxu0 %v1438
    %1558 = vmatpush1.bf16.msra.mxu0 %v1437
    %1559 = vmatprep.subr.bf16.mxu0 %v1442
    %1560 = vmatpush1.bf16.msra.mxu0 %v1441
    %1561 = vmatprep.subr.bf16.mxu0 %v1446
    %1562 = vmatpush1.bf16.msra.mxu0 %v1445
    %1563 = vmatprep.subr.bf16.mxu0 %v1450
    %1564 = vmatpush1.bf16.msra.mxu0 %v1449
    %1565 = vmatprep.subr.bf16.mxu0 %v1454
    %1566 = vmatpush1.bf16.msra.mxu0 %v1453
    %1567 = vmatprep.subr.bf16.mxu0 %v1458
    %1568 = vmatpush1.bf16.msra.mxu0 %v1457
    %1569 = vmatprep.subr.bf16.mxu0 %v1462
    %1570 = vmatpush1.bf16.msra.mxu0 %v1461
    %1571 = vmatprep.subr.bf16.mxu0 %v1466
    %1572 = vmatpush1.bf16.msra.mxu0 %v1465
    %1573 = vmatprep.subr.bf16.mxu0 %v1470
    %1574 = vmatpush1.bf16.msra.mxu0 %v1469
    %1575 = vmatprep.subr.bf16.mxu0 %v1474
    %1576 = vmatpush1.bf16.msra.mxu0 %v1473
    %1577 = vmatprep.subr.bf16.mxu0 %v1478
    %1578 = vmatpush1.bf16.msra.mxu0 %v1477
    %1579 = vmatprep.subr.bf16.mxu0 %v1482
    %1580 = vmatpush1.bf16.msra.mxu0 %v1481
    %1581 = vmatprep.mubr.bf16.mxu0 %v692
    %1582 = vmatmul.mubr.bf16.gmra.mrb[0].mxu0 %v691
    %v1583 = vpop.f32.mrb[0].mxu0
    %v1584 = vadd.f32 %v1178, %v1583
    %v1585 = vpop.f32.mrb[0].mxu0
    %v1586 = vadd.f32 %v1180, %v1585
    %v1587 = vpop.f32.mrb[0].mxu0
    %v1588 = vadd.f32 %v1182, %v1587
    %v1589 = vpop.f32.mrb[0].mxu0
    %v1590 = vadd.f32 %v1184, %v1589
    %1591 = vdwg.mxu0
    %1592 = vmatprep.subr.bf16.mxu0 %v1424
    %1593 = vmatpush1.bf16.msra.mxu0 %v1423
    %1594 = vmatprep.subr.bf16.mxu0 %v1428
    %1595 = vmatpush1.bf16.msra.mxu0 %v1427
    %1596 = vmatprep.subr.bf16.mxu0 %v1432
    %1597 = vmatpush1.bf16.msra.mxu0 %v1431
    %1598 = vmatprep.subr.bf16.mxu0 %v1436
    %1599 = vmatpush1.bf16.msra.mxu0 %v1435
    %1600 = vmatprep.subr.bf16.mxu0 %v1440
    %1601 = vmatpush1.bf16.msra.mxu0 %v1439
    %1602 = vmatprep.subr.bf16.mxu0 %v1444
    %1603 = vmatpush1.bf16.msra.mxu0 %v1443
    %1604 = vmatprep.subr.bf16.mxu0 %v1448
    %1605 = vmatpush1.bf16.msra.mxu0 %v1447
    %1606 = vmatprep.subr.bf16.mxu0 %v1452
    %1607 = vmatpush1.bf16.msra.mxu0 %v1451
    %1608 = vmatprep.subr.bf16.mxu0 %v1456
    %1609 = vmatpush1.bf16.msra.mxu0 %v1455
    %1610 = vmatprep.subr.bf16.mxu0 %v1460
    %1611 = vmatpush1.bf16.msra.mxu0 %v1459
    %1612 = vmatprep.subr.bf16.mxu0 %v1464
    %1613 = vmatpush1.bf16.msra.mxu0 %v1463
    %1614 = vmatprep.subr.bf16.mxu0 %v1468
    %1615 = vmatpush1.bf16.msra.mxu0 %v1467
    %1616 = vmatprep.subr.bf16.mxu0 %v1472
    %1617 = vmatpush1.bf16.msra.mxu0 %v1471
    %1618 = vmatprep.subr.bf16.mxu0 %v1476
    %1619 = vmatpush1.bf16.msra.mxu0 %v1475
    %1620 = vmatprep.subr.bf16.mxu0 %v1480
    %1621 = vmatpush1.bf16.msra.mxu0 %v1479
    %1622 = vmatprep.subr.bf16.mxu0 %v1484
    %1623 = vmatpush1.bf16.msra.mxu0 %v1483
    %1624 = vmatprep.mubr.bf16.mxu0 %v692
    %1625 = vmatmul.mubr.bf16.gmra.mrb[0].mxu0 %v691
    %v1626 = vpop.f32.mrb[0].mxu0
    %v1627 = vadd.f32 %v1221, %v1626
    %v1628 = vpop.f32.mrb[0].mxu0
    %v1629 = vadd.f32 %v1223, %v1628
    %v1630 = vpop.f32.mrb[0].mxu0
    %v1631 = vadd.f32 %v1225, %v1630
    %v1632 = vpop.f32.mrb[0].mxu0
    %v1633 = vadd.f32 %v1227, %v1632
    %1634 = vdwg.mxu0
    %v1635 = vld [vmem:[#allocation11] sm:$0xf]
    %v1637 = vlaneseq
    %v1638 = vshrl.u32 %v1637, 7
    %v1639 = vsub.s32 0, %v1638
    %v1640 = vrot.slane %v1635, %v1639
    %v1641 = vlaneseq
    %v1642 = vshrl.u32 %v1641, 7
    %v1643 = vsub.s32 1, %v1642
    %v1644 = vrot.slane %v1635, %v1643
    %v1645 = vlaneseq
    %v1646 = vshrl.u32 %v1645, 7
    %v1647 = vsub.s32 2, %v1646
    %v1648 = vrot.slane %v1635, %v1647
    %v1649 = vlaneseq
    %v1650 = vshrl.u32 %v1649, 7
    %v1651 = vsub.s32 3, %v1650
    %v1652 = vrot.slane %v1635, %v1651
    %v1657 = vadd.f32 %v1584, %v1640
    %v1658 = vadd.f32 %v1586, %v1644
    %v1659 = vadd.f32 %v1627, %v1648
    %v1660 = vadd.f32 %v1629, %v1652
    %v1661 = vadd.f32 %v1588, %v1640
    %v1662 = vadd.f32 %v1590, %v1644
    %v1663 = vadd.f32 %v1631, %v1648
    %v1664 = vadd.f32 %v1633, %v1652
    %v1665 = vld [vmem:[#allocation2] sm:$0xff]
    %v1666 = vld [vmem:[#allocation2 + $0x8] sm:$0xff]
    %v1667 = vld [vmem:[#allocation2 + $0x10] sm:$0xff]
    %v1668 = vld [vmem:[#allocation2 + $0x18] sm:$0xff]
    %v1669 = vld [vmem:[#allocation2 + $0x20] sm:$0xff]
    %v1670 = vld [vmem:[#allocation2 + $0x28] sm:$0xff]
    %v1671 = vld [vmem:[#allocation2 + $0x30] sm:$0xff]
    %v1672 = vld [vmem:[#allocation2 + $0x38] sm:$0xff]
    %v1673 = vadd.f32 %v1657, %v1665
    %v1674 = vadd.f32 %v1658, %v1666
    %v1675 = vadd.f32 %v1659, %v1667
    %v1676 = vadd.f32 %v1660, %v1668
    %v1677 = vadd.f32 %v1661, %v1669
    %v1678 = vadd.f32 %v1662, %v1670
    %v1679 = vadd.f32 %v1663, %v1671
    %v1680 = vadd.f32 %v1664, %v1672
    %v1681 = vadd.f32 %v1673, %v1674
    %v1682 = vadd.f32 %v1681, %v1675
    %v1683 = vadd.f32 %v1682, %v1676
    %1684 = vadd.xlane.f32.xlu0 %v1683
    %v1685 = vpop.xlane.xlu0 %1684
    %v1686 = vadd.f32 %v1677, %v1678
    %v1687 = vadd.f32 %v1686, %v1679
    %v1688 = vadd.f32 %v1687, %v1680
    %1689 = vadd.xlane.f32.xlu0 %v1688
    %v1690 = vpop.xlane.xlu0 %1689
    %v1691 = vrcp.pop 512.0
    %v1692 = vmul.f32 %v1685, %v1691
    %v1693 = vmul.f32 %v1690, %v1691
    %v1694 = vsub.f32 %v1673, %v1692
    %v1695 = vsub.f32 %v1674, %v1692
    %v1696 = vsub.f32 %v1675, %v1692
    %v1697 = vsub.f32 %v1676, %v1692
    %v1698 = vsub.f32 %v1677, %v1693
    %v1699 = vsub.f32 %v1678, %v1693
    %v1700 = vsub.f32 %v1679, %v1693
    %v1701 = vsub.f32 %v1680, %v1693
    %v1702 = vmul.f32 %v1694, %v1694
    %v1703 = vmul.f32 %v1695, %v1695
    %v1704 = vmul.f32 %v1696, %v1696
    %v1705 = vmul.f32 %v1697, %v1697
    %v1706 = vmul.f32 %v1698, %v1698
    %v1707 = vmul.f32 %v1699, %v1699
    %v1708 = vmul.f32 %v1700, %v1700
    %v1709 = vmul.f32 %v1701, %v1701
    %v1710 = vadd.f32 %v1702, %v1703
    %v1711 = vadd.f32 %v1710, %v1704
    %v1712 = vadd.f32 %v1711, %v1705
    %1713 = vadd.xlane.f32.xlu0 %v1712
    %v1714 = vpop.xlane.xlu0 %1713
    %v1715 = vadd.f32 %v1706, %v1707
    %v1716 = vadd.f32 %v1715, %v1708
    %v1717 = vadd.f32 %v1716, %v1709
    %1718 = vadd.xlane.f32.xlu0 %v1717
    %v1719 = vpop.xlane.xlu0 %1718
    %v1720 = vmul.f32 %v1714, %v1691
    %v1721 = vmul.f32 %v1719, %v1691
    %v1722 = vadd.f32 %v1720, 1e-05
    %v1723 = vadd.f32 %v1721, 1e-05
    %v1724 = vrsqrt.pop %v1722
    %v1725 = vrsqrt.pop %v1723
    %v1726 = vmul.f32 %v1694, %v1724
    %v1727 = vmul.f32 %v1695, %v1724
    %v1728 = vmul.f32 %v1696, %v1724
    %v1729 = vmul.f32 %v1697, %v1724
    %v1730 = vmul.f32 %v1698, %v1725
    %v1731 = vmul.f32 %v1699, %v1725
    %v1732 = vmul.f32 %v1700, %v1725
    %v1733 = vmul.f32 %v1701, %v1725
    %v1734 = vld [vmem:[#allocation13] sm:$0xf]
    %v1736 = vlaneseq
    %v1737 = vshrl.u32 %v1736, 7
    %v1738 = vsub.s32 0, %v1737
    %v1739 = vrot.slane %v1734, %v1738
    %v1740 = vlaneseq
    %v1741 = vshrl.u32 %v1740, 7
    %v1742 = vsub.s32 1, %v1741
    %v1743 = vrot.slane %v1734, %v1742
    %v1744 = vlaneseq
    %v1745 = vshrl.u32 %v1744, 7
    %v1746 = vsub.s32 2, %v1745
    %v1747 = vrot.slane %v1734, %v1746
    %v1748 = vlaneseq
    %v1749 = vshrl.u32 %v1748, 7
    %v1750 = vsub.s32 3, %v1749
    %v1751 = vrot.slane %v1734, %v1750
    %v1756 = vmul.f32 %v1726, %v1739
    %v1757 = vmul.f32 %v1727, %v1743
    %v1758 = vmul.f32 %v1728, %v1747
    %v1759 = vmul.f32 %v1729, %v1751
    %v1760 = vmul.f32 %v1730, %v1739
    %v1761 = vmul.f32 %v1731, %v1743
    %v1762 = vmul.f32 %v1732, %v1747
    %v1763 = vmul.f32 %v1733, %v1751
    %v1764 = vld [vmem:[#allocation14] sm:$0xf]
    %v1766 = vlaneseq
    %v1767 = vshrl.u32 %v1766, 7
    %v1768 = vsub.s32 0, %v1767
    %v1769 = vrot.slane %v1764, %v1768
    %v1770 = vlaneseq
    %v1771 = vshrl.u32 %v1770, 7
    %v1772 = vsub.s32 1, %v1771
    %v1773 = vrot.slane %v1764, %v1772
    %v1774 = vlaneseq
    %v1775 = vshrl.u32 %v1774, 7
    %v1776 = vsub.s32 2, %v1775
    %v1777 = vrot.slane %v1764, %v1776
    %v1778 = vlaneseq
    %v1779 = vshrl.u32 %v1778, 7
    %v1780 = vsub.s32 3, %v1779
    %v1781 = vrot.slane %v1764, %v1780
    %v1786 = vadd.f32 %v1756, %v1769
    %v1787 = vadd.f32 %v1757, %v1773
    %v1788 = vadd.f32 %v1758, %v1777
    %v1789 = vadd.f32 %v1759, %v1781
    %v1790 = vadd.f32 %v1760, %v1769
    %v1791 = vadd.f32 %v1761, %v1773
    %v1792 = vadd.f32 %v1762, %v1777
    %v1793 = vadd.f32 %v1763, %v1781
    %v1794 = vpack.c.bf16 %v1790, %v1786
    %v1795 = vpack.c.bf16 %v1791, %v1787
    %v1796 = vpack.c.bf16 %v1792, %v1788
    %v1797 = vpack.c.bf16 %v1793, %v1789
    %v1798 = vld [vmem:[#allocation16] sm:$0xff]
    %v1799 = vld [vmem:[#allocation16 + $0x8] sm:$0xff]
    %v1800 = vld [vmem:[#allocation16 + $0x10] sm:$0xff]
    %v1801 = vld [vmem:[#allocation16 + $0x18] sm:$0xff]
    %v1802 = vld [vmem:[#allocation16 + $0x20] sm:$0xff]
    %v1803 = vld [vmem:[#allocation16 + $0x28] sm:$0xff]
    %v1804 = vld [vmem:[#allocation16 + $0x30] sm:$0xff]
    %v1805 = vld [vmem:[#allocation16 + $0x38] sm:$0xff]
    %v1806 = vld [vmem:[#allocation16 + $0x40] sm:$0xff]
    %v1807 = vld [vmem:[#allocation16 + $0x48] sm:$0xff]
    %v1808 = vld [vmem:[#allocation16 + $0x50] sm:$0xff]
    %v1809 = vld [vmem:[#allocation16 + $0x58] sm:$0xff]
    %v1810 = vld [vmem:[#allocation16 + $0x60] sm:$0xff]
    %v1811 = vld [vmem:[#allocation16 + $0x68] sm:$0xff]
    %v1812 = vld [vmem:[#allocation16 + $0x70] sm:$0xff]
    %v1813 = vld [vmem:[#allocation16 + $0x78] sm:$0xff]
    %v1814 = vld [vmem:[#allocation16 + $0x80] sm:$0xff]
    %v1815 = vld [vmem:[#allocation16 + $0x88] sm:$0xff]
    %v1816 = vld [vmem:[#allocation16 + $0x90] sm:$0xff]
    %v1817 = vld [vmem:[#allocation16 + $0x98] sm:$0xff]
    %v1818 = vld [vmem:[#allocation16 + $0xa0] sm:$0xff]
    %v1819 = vld [vmem:[#allocation16 + $0xa8] sm:$0xff]
    %v1820 = vld [vmem:[#allocation16 + $0xb0] sm:$0xff]
    %v1821 = vld [vmem:[#allocation16 + $0xb8] sm:$0xff]
    %v1822 = vld [vmem:[#allocation16 + $0xc0] sm:$0xff]
    %v1823 = vld [vmem:[#allocation16 + $0xc8] sm:$0xff]
    %v1824 = vld [vmem:[#allocation16 + $0xd0] sm:$0xff]
    %v1825 = vld [vmem:[#allocation16 + $0xd8] sm:$0xff]
    %v1826 = vld [vmem:[#allocation16 + $0xe0] sm:$0xff]
    %v1827 = vld [vmem:[#allocation16 + $0xe8] sm:$0xff]
    %v1828 = vld [vmem:[#allocation16 + $0xf0] sm:$0xff]
    %v1829 = vld [vmem:[#allocation16 + $0xf8] sm:$0xff]
    %v1830 = vld [vmem:[#allocation16 + $0x100] sm:$0xff]
    %v1831 = vld [vmem:[#allocation16 + $0x108] sm:$0xff]
    %v1832 = vld [vmem:[#allocation16 + $0x110] sm:$0xff]
    %v1833 = vld [vmem:[#allocation16 + $0x118] sm:$0xff]
    %v1834 = vld [vmem:[#allocation16 + $0x120] sm:$0xff]
    %v1835 = vld [vmem:[#allocation16 + $0x128] sm:$0xff]
    %v1836 = vld [vmem:[#allocation16 + $0x130] sm:$0xff]
    %v1837 = vld [vmem:[#allocation16 + $0x138] sm:$0xff]
    %v1838 = vld [vmem:[#allocation16 + $0x140] sm:$0xff]
    %v1839 = vld [vmem:[#allocation16 + $0x148] sm:$0xff]
    %v1840 = vld [vmem:[#allocation16 + $0x150] sm:$0xff]
    %v1841 = vld [vmem:[#allocation16 + $0x158] sm:$0xff]
    %v1842 = vld [vmem:[#allocation16 + $0x160] sm:$0xff]
    %v1843 = vld [vmem:[#allocation16 + $0x168] sm:$0xff]
    %v1844 = vld [vmem:[#allocation16 + $0x170] sm:$0xff]
    %v1845 = vld [vmem:[#allocation16 + $0x178] sm:$0xff]
    %v1846 = vld [vmem:[#allocation16 + $0x180] sm:$0xff]
    %v1847 = vld [vmem:[#allocation16 + $0x188] sm:$0xff]
    %v1848 = vld [vmem:[#allocation16 + $0x190] sm:$0xff]
    %v1849 = vld [vmem:[#allocation16 + $0x198] sm:$0xff]
    %v1850 = vld [vmem:[#allocation16 + $0x1a0] sm:$0xff]
    %v1851 = vld [vmem:[#allocation16 + $0x1a8] sm:$0xff]
    %v1852 = vld [vmem:[#allocation16 + $0x1b0] sm:$0xff]
    %v1853 = vld [vmem:[#allocation16 + $0x1b8] sm:$0xff]
    %v1854 = vld [vmem:[#allocation16 + $0x1c0] sm:$0xff]
    %v1855 = vld [vmem:[#allocation16 + $0x1c8] sm:$0xff]
    %v1856 = vld [vmem:[#allocation16 + $0x1d0] sm:$0xff]
    %v1857 = vld [vmem:[#allocation16 + $0x1d8] sm:$0xff]
    %v1858 = vld [vmem:[#allocation16 + $0x1e0] sm:$0xff]
    %v1859 = vld [vmem:[#allocation16 + $0x1e8] sm:$0xff]
    %v1860 = vld [vmem:[#allocation16 + $0x1f0] sm:$0xff]
    %v1861 = vld [vmem:[#allocation16 + $0x1f8] sm:$0xff]
    %v1862 = vld [vmem:[#allocation16 + $0x200] sm:$0xff]
    %v1863 = vld [vmem:[#allocation16 + $0x208] sm:$0xff]
    %v1864 = vld [vmem:[#allocation16 + $0x210] sm:$0xff]
    %v1865 = vld [vmem:[#allocation16 + $0x218] sm:$0xff]
    %v1866 = vld [vmem:[#allocation16 + $0x220] sm:$0xff]
    %v1867 = vld [vmem:[#allocation16 + $0x228] sm:$0xff]
    %v1868 = vld [vmem:[#allocation16 + $0x230] sm:$0xff]
    %v1869 = vld [vmem:[#allocation16 + $0x238] sm:$0xff]
    %v1870 = vld [vmem:[#allocation16 + $0x240] sm:$0xff]
    %v1871 = vld [vmem:[#allocation16 + $0x248] sm:$0xff]
    %v1872 = vld [vmem:[#allocation16 + $0x250] sm:$0xff]
    %v1873 = vld [vmem:[#allocation16 + $0x258] sm:$0xff]
    %v1874 = vld [vmem:[#allocation16 + $0x260] sm:$0xff]
    %v1875 = vld [vmem:[#allocation16 + $0x268] sm:$0xff]
    %v1876 = vld [vmem:[#allocation16 + $0x270] sm:$0xff]
    %v1877 = vld [vmem:[#allocation16 + $0x278] sm:$0xff]
    %v1878 = vld [vmem:[#allocation16 + $0x280] sm:$0xff]
    %v1879 = vld [vmem:[#allocation16 + $0x288] sm:$0xff]
    %v1880 = vld [vmem:[#allocation16 + $0x290] sm:$0xff]
    %v1881 = vld [vmem:[#allocation16 + $0x298] sm:$0xff]
    %v1882 = vld [vmem:[#allocation16 + $0x2a0] sm:$0xff]
    %v1883 = vld [vmem:[#allocation16 + $0x2a8] sm:$0xff]
    %v1884 = vld [vmem:[#allocation16 + $0x2b0] sm:$0xff]
    %v1885 = vld [vmem:[#allocation16 + $0x2b8] sm:$0xff]
    %v1886 = vld [vmem:[#allocation16 + $0x2c0] sm:$0xff]
    %v1887 = vld [vmem:[#allocation16 + $0x2c8] sm:$0xff]
    %v1888 = vld [vmem:[#allocation16 + $0x2d0] sm:$0xff]
    %v1889 = vld [vmem:[#allocation16 + $0x2d8] sm:$0xff]
    %v1890 = vld [vmem:[#allocation16 + $0x2e0] sm:$0xff]
    %v1891 = vld [vmem:[#allocation16 + $0x2e8] sm:$0xff]
    %v1892 = vld [vmem:[#allocation16 + $0x2f0] sm:$0xff]
    %v1893 = vld [vmem:[#allocation16 + $0x2f8] sm:$0xff]
    %v1894 = vld [vmem:[#allocation16 + $0x300] sm:$0xff]
    %v1895 = vld [vmem:[#allocation16 + $0x308] sm:$0xff]
    %v1896 = vld [vmem:[#allocation16 + $0x310] sm:$0xff]
    %v1897 = vld [vmem:[#allocation16 + $0x318] sm:$0xff]
    %v1898 = vld [vmem:[#allocation16 + $0x320] sm:$0xff]
    %v1899 = vld [vmem:[#allocation16 + $0x328] sm:$0xff]
    %v1900 = vld [vmem:[#allocation16 + $0x330] sm:$0xff]
    %v1901 = vld [vmem:[#allocation16 + $0x338] sm:$0xff]
    %v1902 = vld [vmem:[#allocation16 + $0x340] sm:$0xff]
    %v1903 = vld [vmem:[#allocation16 + $0x348] sm:$0xff]
    %v1904 = vld [vmem:[#allocation16 + $0x350] sm:$0xff]
    %v1905 = vld [vmem:[#allocation16 + $0x358] sm:$0xff]
    %v1906 = vld [vmem:[#allocation16 + $0x360] sm:$0xff]
    %v1907 = vld [vmem:[#allocation16 + $0x368] sm:$0xff]
    %v1908 = vld [vmem:[#allocation16 + $0x370] sm:$0xff]
    %v1909 = vld [vmem:[#allocation16 + $0x378] sm:$0xff]
    %v1910 = vld [vmem:[#allocation16 + $0x380] sm:$0xff]
    %v1911 = vld [vmem:[#allocation16 + $0x388] sm:$0xff]
    %v1912 = vld [vmem:[#allocation16 + $0x390] sm:$0xff]
    %v1913 = vld [vmem:[#allocation16 + $0x398] sm:$0xff]
    %v1914 = vld [vmem:[#allocation16 + $0x3a0] sm:$0xff]
    %v1915 = vld [vmem:[#allocation16 + $0x3a8] sm:$0xff]
    %v1916 = vld [vmem:[#allocation16 + $0x3b0] sm:$0xff]
    %v1917 = vld [vmem:[#allocation16 + $0x3b8] sm:$0xff]
    %v1918 = vld [vmem:[#allocation16 + $0x3c0] sm:$0xff]
    %v1919 = vld [vmem:[#allocation16 + $0x3c8] sm:$0xff]
    %v1920 = vld [vmem:[#allocation16 + $0x3d0] sm:$0xff]
    %v1921 = vld [vmem:[#allocation16 + $0x3d8] sm:$0xff]
    %v1922 = vld [vmem:[#allocation16 + $0x3e0] sm:$0xff]
    %v1923 = vld [vmem:[#allocation16 + $0x3e8] sm:$0xff]
    %v1924 = vld [vmem:[#allocation16 + $0x3f0] sm:$0xff]
    %v1925 = vld [vmem:[#allocation16 + $0x3f8] sm:$0xff]
    %v1926 = vld [vmem:[#allocation16 + $0x400] sm:$0xff]
    %v1927 = vld [vmem:[#allocation16 + $0x408] sm:$0xff]
    %v1928 = vld [vmem:[#allocation16 + $0x410] sm:$0xff]
    %v1929 = vld [vmem:[#allocation16 + $0x418] sm:$0xff]
    %v1930 = vld [vmem:[#allocation16 + $0x420] sm:$0xff]
    %v1931 = vld [vmem:[#allocation16 + $0x428] sm:$0xff]
    %v1932 = vld [vmem:[#allocation16 + $0x430] sm:$0xff]
    %v1933 = vld [vmem:[#allocation16 + $0x438] sm:$0xff]
    %v1934 = vld [vmem:[#allocation16 + $0x440] sm:$0xff]
    %v1935 = vld [vmem:[#allocation16 + $0x448] sm:$0xff]
    %v1936 = vld [vmem:[#allocation16 + $0x450] sm:$0xff]
    %v1937 = vld [vmem:[#allocation16 + $0x458] sm:$0xff]
    %v1938 = vld [vmem:[#allocation16 + $0x460] sm:$0xff]
    %v1939 = vld [vmem:[#allocation16 + $0x468] sm:$0xff]
    %v1940 = vld [vmem:[#allocation16 + $0x470] sm:$0xff]
    %v1941 = vld [vmem:[#allocation16 + $0x478] sm:$0xff]
    %v1942 = vld [vmem:[#allocation16 + $0x480] sm:$0xff]
    %v1943 = vld [vmem:[#allocation16 + $0x488] sm:$0xff]
    %v1944 = vld [vmem:[#allocation16 + $0x490] sm:$0xff]
    %v1945 = vld [vmem:[#allocation16 + $0x498] sm:$0xff]
    %v1946 = vld [vmem:[#allocation16 + $0x4a0] sm:$0xff]
    %v1947 = vld [vmem:[#allocation16 + $0x4a8] sm:$0xff]
    %v1948 = vld [vmem:[#allocation16 + $0x4b0] sm:$0xff]
    %v1949 = vld [vmem:[#allocation16 + $0x4b8] sm:$0xff]
    %v1950 = vld [vmem:[#allocation16 + $0x4c0] sm:$0xff]
    %v1951 = vld [vmem:[#allocation16 + $0x4c8] sm:$0xff]
    %v1952 = vld [vmem:[#allocation16 + $0x4d0] sm:$0xff]
    %v1953 = vld [vmem:[#allocation16 + $0x4d8] sm:$0xff]
    %v1954 = vld [vmem:[#allocation16 + $0x4e0] sm:$0xff]
    %v1955 = vld [vmem:[#allocation16 + $0x4e8] sm:$0xff]
    %v1956 = vld [vmem:[#allocation16 + $0x4f0] sm:$0xff]
    %v1957 = vld [vmem:[#allocation16 + $0x4f8] sm:$0xff]
    %v1958 = vld [vmem:[#allocation16 + $0x500] sm:$0xff]
    %v1959 = vld [vmem:[#allocation16 + $0x508] sm:$0xff]
    %v1960 = vld [vmem:[#allocation16 + $0x510] sm:$0xff]
    %v1961 = vld [vmem:[#allocation16 + $0x518] sm:$0xff]
    %v1962 = vld [vmem:[#allocation16 + $0x520] sm:$0xff]
    %v1963 = vld [vmem:[#allocation16 + $0x528] sm:$0xff]
    %v1964 = vld [vmem:[#allocation16 + $0x530] sm:$0xff]
    %v1965 = vld [vmem:[#allocation16 + $0x538] sm:$0xff]
    %v1966 = vld [vmem:[#allocation16 + $0x540] sm:$0xff]
    %v1967 = vld [vmem:[#allocation16 + $0x548] sm:$0xff]
    %v1968 = vld [vmem:[#allocation16 + $0x550] sm:$0xff]
    %v1969 = vld [vmem:[#allocation16 + $0x558] sm:$0xff]
    %v1970 = vld [vmem:[#allocation16 + $0x560] sm:$0xff]
    %v1971 = vld [vmem:[#allocation16 + $0x568] sm:$0xff]
    %v1972 = vld [vmem:[#allocation16 + $0x570] sm:$0xff]
    %v1973 = vld [vmem:[#allocation16 + $0x578] sm:$0xff]
    %v1974 = vld [vmem:[#allocation16 + $0x580] sm:$0xff]
    %v1975 = vld [vmem:[#allocation16 + $0x588] sm:$0xff]
    %v1976 = vld [vmem:[#allocation16 + $0x590] sm:$0xff]
    %v1977 = vld [vmem:[#allocation16 + $0x598] sm:$0xff]
    %v1978 = vld [vmem:[#allocation16 + $0x5a0] sm:$0xff]
    %v1979 = vld [vmem:[#allocation16 + $0x5a8] sm:$0xff]
    %v1980 = vld [vmem:[#allocation16 + $0x5b0] sm:$0xff]
    %v1981 = vld [vmem:[#allocation16 + $0x5b8] sm:$0xff]
    %v1982 = vld [vmem:[#allocation16 + $0x5c0] sm:$0xff]
    %v1983 = vld [vmem:[#allocation16 + $0x5c8] sm:$0xff]
    %v1984 = vld [vmem:[#allocation16 + $0x5d0] sm:$0xff]
    %v1985 = vld [vmem:[#allocation16 + $0x5d8] sm:$0xff]
    %v1986 = vld [vmem:[#allocation16 + $0x5e0] sm:$0xff]
    %v1987 = vld [vmem:[#allocation16 + $0x5e8] sm:$0xff]
    %v1988 = vld [vmem:[#allocation16 + $0x5f0] sm:$0xff]
    %v1989 = vld [vmem:[#allocation16 + $0x5f8] sm:$0xff]
    %v1990 = vld [vmem:[#allocation16 + $0x600] sm:$0xff]
    %v1991 = vld [vmem:[#allocation16 + $0x608] sm:$0xff]
    %v1992 = vld [vmem:[#allocation16 + $0x610] sm:$0xff]
    %v1993 = vld [vmem:[#allocation16 + $0x618] sm:$0xff]
    %v1994 = vld [vmem:[#allocation16 + $0x620] sm:$0xff]
    %v1995 = vld [vmem:[#allocation16 + $0x628] sm:$0xff]
    %v1996 = vld [vmem:[#allocation16 + $0x630] sm:$0xff]
    %v1997 = vld [vmem:[#allocation16 + $0x638] sm:$0xff]
    %v1998 = vld [vmem:[#allocation16 + $0x640] sm:$0xff]
    %v1999 = vld [vmem:[#allocation16 + $0x648] sm:$0xff]
    %v2000 = vld [vmem:[#allocation16 + $0x650] sm:$0xff]
    %v2001 = vld [vmem:[#allocation16 + $0x658] sm:$0xff]
    %v2002 = vld [vmem:[#allocation16 + $0x660] sm:$0xff]
    %v2003 = vld [vmem:[#allocation16 + $0x668] sm:$0xff]
    %v2004 = vld [vmem:[#allocation16 + $0x670] sm:$0xff]
    %v2005 = vld [vmem:[#allocation16 + $0x678] sm:$0xff]
    %v2006 = vld [vmem:[#allocation16 + $0x680] sm:$0xff]
    %v2007 = vld [vmem:[#allocation16 + $0x688] sm:$0xff]
    %v2008 = vld [vmem:[#allocation16 + $0x690] sm:$0xff]
    %v2009 = vld [vmem:[#allocation16 + $0x698] sm:$0xff]
    %v2010 = vld [vmem:[#allocation16 + $0x6a0] sm:$0xff]
    %v2011 = vld [vmem:[#allocation16 + $0x6a8] sm:$0xff]
    %v2012 = vld [vmem:[#allocation16 + $0x6b0] sm:$0xff]
    %v2013 = vld [vmem:[#allocation16 + $0x6b8] sm:$0xff]
    %v2014 = vld [vmem:[#allocation16 + $0x6c0] sm:$0xff]
    %v2015 = vld [vmem:[#allocation16 + $0x6c8] sm:$0xff]
    %v2016 = vld [vmem:[#allocation16 + $0x6d0] sm:$0xff]
    %v2017 = vld [vmem:[#allocation16 + $0x6d8] sm:$0xff]
    %v2018 = vld [vmem:[#allocation16 + $0x6e0] sm:$0xff]
    %v2019 = vld [vmem:[#allocation16 + $0x6e8] sm:$0xff]
    %v2020 = vld [vmem:[#allocation16 + $0x6f0] sm:$0xff]
    %v2021 = vld [vmem:[#allocation16 + $0x6f8] sm:$0xff]
    %v2022 = vld [vmem:[#allocation16 + $0x700] sm:$0xff]
    %v2023 = vld [vmem:[#allocation16 + $0x708] sm:$0xff]
    %v2024 = vld [vmem:[#allocation16 + $0x710] sm:$0xff]
    %v2025 = vld [vmem:[#allocation16 + $0x718] sm:$0xff]
    %v2026 = vld [vmem:[#allocation16 + $0x720] sm:$0xff]
    %v2027 = vld [vmem:[#allocation16 + $0x728] sm:$0xff]
    %v2028 = vld [vmem:[#allocation16 + $0x730] sm:$0xff]
    %v2029 = vld [vmem:[#allocation16 + $0x738] sm:$0xff]
    %v2030 = vld [vmem:[#allocation16 + $0x740] sm:$0xff]
    %v2031 = vld [vmem:[#allocation16 + $0x748] sm:$0xff]
    %v2032 = vld [vmem:[#allocation16 + $0x750] sm:$0xff]
    %v2033 = vld [vmem:[#allocation16 + $0x758] sm:$0xff]
    %v2034 = vld [vmem:[#allocation16 + $0x760] sm:$0xff]
    %v2035 = vld [vmem:[#allocation16 + $0x768] sm:$0xff]
    %v2036 = vld [vmem:[#allocation16 + $0x770] sm:$0xff]
    %v2037 = vld [vmem:[#allocation16 + $0x778] sm:$0xff]
    %v2038 = vld [vmem:[#allocation16 + $0x780] sm:$0xff]
    %v2039 = vld [vmem:[#allocation16 + $0x788] sm:$0xff]
    %v2040 = vld [vmem:[#allocation16 + $0x790] sm:$0xff]
    %v2041 = vld [vmem:[#allocation16 + $0x798] sm:$0xff]
    %v2042 = vld [vmem:[#allocation16 + $0x7a0] sm:$0xff]
    %v2043 = vld [vmem:[#allocation16 + $0x7a8] sm:$0xff]
    %v2044 = vld [vmem:[#allocation16 + $0x7b0] sm:$0xff]
    %v2045 = vld [vmem:[#allocation16 + $0x7b8] sm:$0xff]
    %v2046 = vld [vmem:[#allocation16 + $0x7c0] sm:$0xff]
    %v2047 = vld [vmem:[#allocation16 + $0x7c8] sm:$0xff]
    %v2048 = vld [vmem:[#allocation16 + $0x7d0] sm:$0xff]
    %v2049 = vld [vmem:[#allocation16 + $0x7d8] sm:$0xff]
    %v2050 = vld [vmem:[#allocation16 + $0x7e0] sm:$0xff]
    %v2051 = vld [vmem:[#allocation16 + $0x7e8] sm:$0xff]
    %v2052 = vld [vmem:[#allocation16 + $0x7f0] sm:$0xff]
    %v2053 = vld [vmem:[#allocation16 + $0x7f8] sm:$0xff]
    %v2054 = vld [vmem:[#allocation16 + $0x800] sm:$0xff]
    %v2055 = vld [vmem:[#allocation16 + $0x808] sm:$0xff]
    %v2056 = vld [vmem:[#allocation16 + $0x810] sm:$0xff]
    %v2057 = vld [vmem:[#allocation16 + $0x818] sm:$0xff]
    %v2058 = vld [vmem:[#allocation16 + $0x820] sm:$0xff]
    %v2059 = vld [vmem:[#allocation16 + $0x828] sm:$0xff]
    %v2060 = vld [vmem:[#allocation16 + $0x830] sm:$0xff]
    %v2061 = vld [vmem:[#allocation16 + $0x838] sm:$0xff]
    %v2062 = vld [vmem:[#allocation16 + $0x840] sm:$0xff]
    %v2063 = vld [vmem:[#allocation16 + $0x848] sm:$0xff]
    %v2064 = vld [vmem:[#allocation16 + $0x850] sm:$0xff]
    %v2065 = vld [vmem:[#allocation16 + $0x858] sm:$0xff]
    %v2066 = vld [vmem:[#allocation16 + $0x860] sm:$0xff]
    %v2067 = vld [vmem:[#allocation16 + $0x868] sm:$0xff]
    %v2068 = vld [vmem:[#allocation16 + $0x870] sm:$0xff]
    %v2069 = vld [vmem:[#allocation16 + $0x878] sm:$0xff]
    %v2070 = vld [vmem:[#allocation16 + $0x880] sm:$0xff]
    %v2071 = vld [vmem:[#allocation16 + $0x888] sm:$0xff]
    %v2072 = vld [vmem:[#allocation16 + $0x890] sm:$0xff]
    %v2073 = vld [vmem:[#allocation16 + $0x898] sm:$0xff]
    %v2074 = vld [vmem:[#allocation16 + $0x8a0] sm:$0xff]
    %v2075 = vld [vmem:[#allocation16 + $0x8a8] sm:$0xff]
    %v2076 = vld [vmem:[#allocation16 + $0x8b0] sm:$0xff]
    %v2077 = vld [vmem:[#allocation16 + $0x8b8] sm:$0xff]
    %v2078 = vld [vmem:[#allocation16 + $0x8c0] sm:$0xff]
    %v2079 = vld [vmem:[#allocation16 + $0x8c8] sm:$0xff]
    %v2080 = vld [vmem:[#allocation16 + $0x8d0] sm:$0xff]
    %v2081 = vld [vmem:[#allocation16 + $0x8d8] sm:$0xff]
    %v2082 = vld [vmem:[#allocation16 + $0x8e0] sm:$0xff]
    %v2083 = vld [vmem:[#allocation16 + $0x8e8] sm:$0xff]
    %v2084 = vld [vmem:[#allocation16 + $0x8f0] sm:$0xff]
    %v2085 = vld [vmem:[#allocation16 + $0x8f8] sm:$0xff]
    %v2086 = vld [vmem:[#allocation16 + $0x900] sm:$0xff]
    %v2087 = vld [vmem:[#allocation16 + $0x908] sm:$0xff]
    %v2088 = vld [vmem:[#allocation16 + $0x910] sm:$0xff]
    %v2089 = vld [vmem:[#allocation16 + $0x918] sm:$0xff]
    %v2090 = vld [vmem:[#allocation16 + $0x920] sm:$0xff]
    %v2091 = vld [vmem:[#allocation16 + $0x928] sm:$0xff]
    %v2092 = vld [vmem:[#allocation16 + $0x930] sm:$0xff]
    %v2093 = vld [vmem:[#allocation16 + $0x938] sm:$0xff]
    %v2094 = vld [vmem:[#allocation16 + $0x940] sm:$0xff]
    %v2095 = vld [vmem:[#allocation16 + $0x948] sm:$0xff]
    %v2096 = vld [vmem:[#allocation16 + $0x950] sm:$0xff]
    %v2097 = vld [vmem:[#allocation16 + $0x958] sm:$0xff]
    %v2098 = vld [vmem:[#allocation16 + $0x960] sm:$0xff]
    %v2099 = vld [vmem:[#allocation16 + $0x968] sm:$0xff]
    %v2100 = vld [vmem:[#allocation16 + $0x970] sm:$0xff]
    %v2101 = vld [vmem:[#allocation16 + $0x978] sm:$0xff]
    %v2102 = vld [vmem:[#allocation16 + $0x980] sm:$0xff]
    %v2103 = vld [vmem:[#allocation16 + $0x988] sm:$0xff]
    %v2104 = vld [vmem:[#allocation16 + $0x990] sm:$0xff]
    %v2105 = vld [vmem:[#allocation16 + $0x998] sm:$0xff]
    %v2106 = vld [vmem:[#allocation16 + $0x9a0] sm:$0xff]
    %v2107 = vld [vmem:[#allocation16 + $0x9a8] sm:$0xff]
    %v2108 = vld [vmem:[#allocation16 + $0x9b0] sm:$0xff]
    %v2109 = vld [vmem:[#allocation16 + $0x9b8] sm:$0xff]
    %v2110 = vld [vmem:[#allocation16 + $0x9c0] sm:$0xff]
    %v2111 = vld [vmem:[#allocation16 + $0x9c8] sm:$0xff]
    %v2112 = vld [vmem:[#allocation16 + $0x9d0] sm:$0xff]
    %v2113 = vld [vmem:[#allocation16 + $0x9d8] sm:$0xff]
    %v2114 = vld [vmem:[#allocation16 + $0x9e0] sm:$0xff]
    %v2115 = vld [vmem:[#allocation16 + $0x9e8] sm:$0xff]
    %v2116 = vld [vmem:[#allocation16 + $0x9f0] sm:$0xff]
    %v2117 = vld [vmem:[#allocation16 + $0x9f8] sm:$0xff]
    %v2118 = vld [vmem:[#allocation16 + $0xa00] sm:$0xff]
    %v2119 = vld [vmem:[#allocation16 + $0xa08] sm:$0xff]
    %v2120 = vld [vmem:[#allocation16 + $0xa10] sm:$0xff]
    %v2121 = vld [vmem:[#allocation16 + $0xa18] sm:$0xff]
    %v2122 = vld [vmem:[#allocation16 + $0xa20] sm:$0xff]
    %v2123 = vld [vmem:[#allocation16 + $0xa28] sm:$0xff]
    %v2124 = vld [vmem:[#allocation16 + $0xa30] sm:$0xff]
    %v2125 = vld [vmem:[#allocation16 + $0xa38] sm:$0xff]
    %v2126 = vld [vmem:[#allocation16 + $0xa40] sm:$0xff]
    %v2127 = vld [vmem:[#allocation16 + $0xa48] sm:$0xff]
    %v2128 = vld [vmem:[#allocation16 + $0xa50] sm:$0xff]
    %v2129 = vld [vmem:[#allocation16 + $0xa58] sm:$0xff]
    %v2130 = vld [vmem:[#allocation16 + $0xa60] sm:$0xff]
    %v2131 = vld [vmem:[#allocation16 + $0xa68] sm:$0xff]
    %v2132 = vld [vmem:[#allocation16 + $0xa70] sm:$0xff]
    %v2133 = vld [vmem:[#allocation16 + $0xa78] sm:$0xff]
    %v2134 = vld [vmem:[#allocation16 + $0xa80] sm:$0xff]
    %v2135 = vld [vmem:[#allocation16 + $0xa88] sm:$0xff]
    %v2136 = vld [vmem:[#allocation16 + $0xa90] sm:$0xff]
    %v2137 = vld [vmem:[#allocation16 + $0xa98] sm:$0xff]
    %v2138 = vld [vmem:[#allocation16 + $0xaa0] sm:$0xff]
    %v2139 = vld [vmem:[#allocation16 + $0xaa8] sm:$0xff]
    %v2140 = vld [vmem:[#allocation16 + $0xab0] sm:$0xff]
    %v2141 = vld [vmem:[#allocation16 + $0xab8] sm:$0xff]
    %v2142 = vld [vmem:[#allocation16 + $0xac0] sm:$0xff]
    %v2143 = vld [vmem:[#allocation16 + $0xac8] sm:$0xff]
    %v2144 = vld [vmem:[#allocation16 + $0xad0] sm:$0xff]
    %v2145 = vld [vmem:[#allocation16 + $0xad8] sm:$0xff]
    %v2146 = vld [vmem:[#allocation16 + $0xae0] sm:$0xff]
    %v2147 = vld [vmem:[#allocation16 + $0xae8] sm:$0xff]
    %v2148 = vld [vmem:[#allocation16 + $0xaf0] sm:$0xff]
    %v2149 = vld [vmem:[#allocation16 + $0xaf8] sm:$0xff]
    %v2150 = vld [vmem:[#allocation16 + $0xb00] sm:$0xff]
    %v2151 = vld [vmem:[#allocation16 + $0xb08] sm:$0xff]
    %v2152 = vld [vmem:[#allocation16 + $0xb10] sm:$0xff]
    %v2153 = vld [vmem:[#allocation16 + $0xb18] sm:$0xff]
    %v2154 = vld [vmem:[#allocation16 + $0xb20] sm:$0xff]
    %v2155 = vld [vmem:[#allocation16 + $0xb28] sm:$0xff]
    %v2156 = vld [vmem:[#allocation16 + $0xb30] sm:$0xff]
    %v2157 = vld [vmem:[#allocation16 + $0xb38] sm:$0xff]
    %v2158 = vld [vmem:[#allocation16 + $0xb40] sm:$0xff]
    %v2159 = vld [vmem:[#allocation16 + $0xb48] sm:$0xff]
    %v2160 = vld [vmem:[#allocation16 + $0xb50] sm:$0xff]
    %v2161 = vld [vmem:[#allocation16 + $0xb58] sm:$0xff]
    %v2162 = vld [vmem:[#allocation16 + $0xb60] sm:$0xff]
    %v2163 = vld [vmem:[#allocation16 + $0xb68] sm:$0xff]
    %v2164 = vld [vmem:[#allocation16 + $0xb70] sm:$0xff]
    %v2165 = vld [vmem:[#allocation16 + $0xb78] sm:$0xff]
    %v2166 = vld [vmem:[#allocation16 + $0xb80] sm:$0xff]
    %v2167 = vld [vmem:[#allocation16 + $0xb88] sm:$0xff]
    %v2168 = vld [vmem:[#allocation16 + $0xb90] sm:$0xff]
    %v2169 = vld [vmem:[#allocation16 + $0xb98] sm:$0xff]
    %v2170 = vld [vmem:[#allocation16 + $0xba0] sm:$0xff]
    %v2171 = vld [vmem:[#allocation16 + $0xba8] sm:$0xff]
    %v2172 = vld [vmem:[#allocation16 + $0xbb0] sm:$0xff]
    %v2173 = vld [vmem:[#allocation16 + $0xbb8] sm:$0xff]
    %v2174 = vld [vmem:[#allocation16 + $0xbc0] sm:$0xff]
    %v2175 = vld [vmem:[#allocation16 + $0xbc8] sm:$0xff]
    %v2176 = vld [vmem:[#allocation16 + $0xbd0] sm:$0xff]
    %v2177 = vld [vmem:[#allocation16 + $0xbd8] sm:$0xff]
    %v2178 = vld [vmem:[#allocation16 + $0xbe0] sm:$0xff]
    %v2179 = vld [vmem:[#allocation16 + $0xbe8] sm:$0xff]
    %v2180 = vld [vmem:[#allocation16 + $0xbf0] sm:$0xff]
    %v2181 = vld [vmem:[#allocation16 + $0xbf8] sm:$0xff]
    %v2182 = vld [vmem:[#allocation16 + $0xc00] sm:$0xff]
    %v2183 = vld [vmem:[#allocation16 + $0xc08] sm:$0xff]
    %v2184 = vld [vmem:[#allocation16 + $0xc10] sm:$0xff]
    %v2185 = vld [vmem:[#allocation16 + $0xc18] sm:$0xff]
    %v2186 = vld [vmem:[#allocation16 + $0xc20] sm:$0xff]
    %v2187 = vld [vmem:[#allocation16 + $0xc28] sm:$0xff]
    %v2188 = vld [vmem:[#allocation16 + $0xc30] sm:$0xff]
    %v2189 = vld [vmem:[#allocation16 + $0xc38] sm:$0xff]
    %v2190 = vld [vmem:[#allocation16 + $0xc40] sm:$0xff]
    %v2191 = vld [vmem:[#allocation16 + $0xc48] sm:$0xff]
    %v2192 = vld [vmem:[#allocation16 + $0xc50] sm:$0xff]
    %v2193 = vld [vmem:[#allocation16 + $0xc58] sm:$0xff]
    %v2194 = vld [vmem:[#allocation16 + $0xc60] sm:$0xff]
    %v2195 = vld [vmem:[#allocation16 + $0xc68] sm:$0xff]
    %v2196 = vld [vmem:[#allocation16 + $0xc70] sm:$0xff]
    %v2197 = vld [vmem:[#allocation16 + $0xc78] sm:$0xff]
    %v2198 = vld [vmem:[#allocation16 + $0xc80] sm:$0xff]
    %v2199 = vld [vmem:[#allocation16 + $0xc88] sm:$0xff]
    %v2200 = vld [vmem:[#allocation16 + $0xc90] sm:$0xff]
    %v2201 = vld [vmem:[#allocation16 + $0xc98] sm:$0xff]
    %v2202 = vld [vmem:[#allocation16 + $0xca0] sm:$0xff]
    %v2203 = vld [vmem:[#allocation16 + $0xca8] sm:$0xff]
    %v2204 = vld [vmem:[#allocation16 + $0xcb0] sm:$0xff]
    %v2205 = vld [vmem:[#allocation16 + $0xcb8] sm:$0xff]
    %v2206 = vld [vmem:[#allocation16 + $0xcc0] sm:$0xff]
    %v2207 = vld [vmem:[#allocation16 + $0xcc8] sm:$0xff]
    %v2208 = vld [vmem:[#allocation16 + $0xcd0] sm:$0xff]
    %v2209 = vld [vmem:[#allocation16 + $0xcd8] sm:$0xff]
    %v2210 = vld [vmem:[#allocation16 + $0xce0] sm:$0xff]
    %v2211 = vld [vmem:[#allocation16 + $0xce8] sm:$0xff]
    %v2212 = vld [vmem:[#allocation16 + $0xcf0] sm:$0xff]
    %v2213 = vld [vmem:[#allocation16 + $0xcf8] sm:$0xff]
    %v2214 = vld [vmem:[#allocation16 + $0xd00] sm:$0xff]
    %v2215 = vld [vmem:[#allocation16 + $0xd08] sm:$0xff]
    %v2216 = vld [vmem:[#allocation16 + $0xd10] sm:$0xff]
    %v2217 = vld [vmem:[#allocation16 + $0xd18] sm:$0xff]
    %v2218 = vld [vmem:[#allocation16 + $0xd20] sm:$0xff]
    %v2219 = vld [vmem:[#allocation16 + $0xd28] sm:$0xff]
    %v2220 = vld [vmem:[#allocation16 + $0xd30] sm:$0xff]
    %v2221 = vld [vmem:[#allocation16 + $0xd38] sm:$0xff]
    %v2222 = vld [vmem:[#allocation16 + $0xd40] sm:$0xff]
    %v2223 = vld [vmem:[#allocation16 + $0xd48] sm:$0xff]
    %v2224 = vld [vmem:[#allocation16 + $0xd50] sm:$0xff]
    %v2225 = vld [vmem:[#allocation16 + $0xd58] sm:$0xff]
    %v2226 = vld [vmem:[#allocation16 + $0xd60] sm:$0xff]
    %v2227 = vld [vmem:[#allocation16 + $0xd68] sm:$0xff]
    %v2228 = vld [vmem:[#allocation16 + $0xd70] sm:$0xff]
    %v2229 = vld [vmem:[#allocation16 + $0xd78] sm:$0xff]
    %v2230 = vld [vmem:[#allocation16 + $0xd80] sm:$0xff]
    %v2231 = vld [vmem:[#allocation16 + $0xd88] sm:$0xff]
    %v2232 = vld [vmem:[#allocation16 + $0xd90] sm:$0xff]
    %v2233 = vld [vmem:[#allocation16 + $0xd98] sm:$0xff]
    %v2234 = vld [vmem:[#allocation16 + $0xda0] sm:$0xff]
    %v2235 = vld [vmem:[#allocation16 + $0xda8] sm:$0xff]
    %v2236 = vld [vmem:[#allocation16 + $0xdb0] sm:$0xff]
    %v2237 = vld [vmem:[#allocation16 + $0xdb8] sm:$0xff]
    %v2238 = vld [vmem:[#allocation16 + $0xdc0] sm:$0xff]
    %v2239 = vld [vmem:[#allocation16 + $0xdc8] sm:$0xff]
    %v2240 = vld [vmem:[#allocation16 + $0xdd0] sm:$0xff]
    %v2241 = vld [vmem:[#allocation16 + $0xdd8] sm:$0xff]
    %v2242 = vld [vmem:[#allocation16 + $0xde0] sm:$0xff]
    %v2243 = vld [vmem:[#allocation16 + $0xde8] sm:$0xff]
    %v2244 = vld [vmem:[#allocation16 + $0xdf0] sm:$0xff]
    %v2245 = vld [vmem:[#allocation16 + $0xdf8] sm:$0xff]
    %v2246 = vld [vmem:[#allocation16 + $0xe00] sm:$0xff]
    %v2247 = vld [vmem:[#allocation16 + $0xe08] sm:$0xff]
    %v2248 = vld [vmem:[#allocation16 + $0xe10] sm:$0xff]
    %v2249 = vld [vmem:[#allocation16 + $0xe18] sm:$0xff]
    %v2250 = vld [vmem:[#allocation16 + $0xe20] sm:$0xff]
    %v2251 = vld [vmem:[#allocation16 + $0xe28] sm:$0xff]
    %v2252 = vld [vmem:[#allocation16 + $0xe30] sm:$0xff]
    %v2253 = vld [vmem:[#allocation16 + $0xe38] sm:$0xff]
    %v2254 = vld [vmem:[#allocation16 + $0xe40] sm:$0xff]
    %v2255 = vld [vmem:[#allocation16 + $0xe48] sm:$0xff]
    %v2256 = vld [vmem:[#allocation16 + $0xe50] sm:$0xff]
    %v2257 = vld [vmem:[#allocation16 + $0xe58] sm:$0xff]
    %v2258 = vld [vmem:[#allocation16 + $0xe60] sm:$0xff]
    %v2259 = vld [vmem:[#allocation16 + $0xe68] sm:$0xff]
    %v2260 = vld [vmem:[#allocation16 + $0xe70] sm:$0xff]
    %v2261 = vld [vmem:[#allocation16 + $0xe78] sm:$0xff]
    %v2262 = vld [vmem:[#allocation16 + $0xe80] sm:$0xff]
    %v2263 = vld [vmem:[#allocation16 + $0xe88] sm:$0xff]
    %v2264 = vld [vmem:[#allocation16 + $0xe90] sm:$0xff]
    %v2265 = vld [vmem:[#allocation16 + $0xe98] sm:$0xff]
    %v2266 = vld [vmem:[#allocation16 + $0xea0] sm:$0xff]
    %v2267 = vld [vmem:[#allocation16 + $0xea8] sm:$0xff]
    %v2268 = vld [vmem:[#allocation16 + $0xeb0] sm:$0xff]
    %v2269 = vld [vmem:[#allocation16 + $0xeb8] sm:$0xff]
    %v2270 = vld [vmem:[#allocation16 + $0xec0] sm:$0xff]
    %v2271 = vld [vmem:[#allocation16 + $0xec8] sm:$0xff]
    %v2272 = vld [vmem:[#allocation16 + $0xed0] sm:$0xff]
    %v2273 = vld [vmem:[#allocation16 + $0xed8] sm:$0xff]
    %v2274 = vld [vmem:[#allocation16 + $0xee0] sm:$0xff]
    %v2275 = vld [vmem:[#allocation16 + $0xee8] sm:$0xff]
    %v2276 = vld [vmem:[#allocation16 + $0xef0] sm:$0xff]
    %v2277 = vld [vmem:[#allocation16 + $0xef8] sm:$0xff]
    %v2278 = vld [vmem:[#allocation16 + $0xf00] sm:$0xff]
    %v2279 = vld [vmem:[#allocation16 + $0xf08] sm:$0xff]
    %v2280 = vld [vmem:[#allocation16 + $0xf10] sm:$0xff]
    %v2281 = vld [vmem:[#allocation16 + $0xf18] sm:$0xff]
    %v2282 = vld [vmem:[#allocation16 + $0xf20] sm:$0xff]
    %v2283 = vld [vmem:[#allocation16 + $0xf28] sm:$0xff]
    %v2284 = vld [vmem:[#allocation16 + $0xf30] sm:$0xff]
    %v2285 = vld [vmem:[#allocation16 + $0xf38] sm:$0xff]
    %v2286 = vld [vmem:[#allocation16 + $0xf40] sm:$0xff]
    %v2287 = vld [vmem:[#allocation16 + $0xf48] sm:$0xff]
    %v2288 = vld [vmem:[#allocation16 + $0xf50] sm:$0xff]
    %v2289 = vld [vmem:[#allocation16 + $0xf58] sm:$0xff]
    %v2290 = vld [vmem:[#allocation16 + $0xf60] sm:$0xff]
    %v2291 = vld [vmem:[#allocation16 + $0xf68] sm:$0xff]
    %v2292 = vld [vmem:[#allocation16 + $0xf70] sm:$0xff]
    %v2293 = vld [vmem:[#allocation16 + $0xf78] sm:$0xff]
    %v2294 = vld [vmem:[#allocation16 + $0xf80] sm:$0xff]
    %v2295 = vld [vmem:[#allocation16 + $0xf88] sm:$0xff]
    %v2296 = vld [vmem:[#allocation16 + $0xf90] sm:$0xff]
    %v2297 = vld [vmem:[#allocation16 + $0xf98] sm:$0xff]
    %v2298 = vld [vmem:[#allocation16 + $0xfa0] sm:$0xff]
    %v2299 = vld [vmem:[#allocation16 + $0xfa8] sm:$0xff]
    %v2300 = vld [vmem:[#allocation16 + $0xfb0] sm:$0xff]
    %v2301 = vld [vmem:[#allocation16 + $0xfb8] sm:$0xff]
    %v2302 = vld [vmem:[#allocation16 + $0xfc0] sm:$0xff]
    %v2303 = vld [vmem:[#allocation16 + $0xfc8] sm:$0xff]
    %v2304 = vld [vmem:[#allocation16 + $0xfd0] sm:$0xff]
    %v2305 = vld [vmem:[#allocation16 + $0xfd8] sm:$0xff]
    %v2306 = vld [vmem:[#allocation16 + $0xfe0] sm:$0xff]
    %v2307 = vld [vmem:[#allocation16 + $0xfe8] sm:$0xff]
    %v2308 = vld [vmem:[#allocation16 + $0xff0] sm:$0xff]
    %v2309 = vld [vmem:[#allocation16 + $0xff8] sm:$0xff]
    %v2310 = vld [vmem:[#allocation17] sm:$0xff]
    %v2311 = vld [vmem:[#allocation17 + $0x8] sm:$0xff]
    %v2314 = vlaneseq
    %v2315 = vshrl.u32 %v2314, 7
    %v2316 = vsub.s32 0, %v2315
    %v2317 = vrot.slane %v2310, %v2316
    %v2318 = vlaneseq
    %v2319 = vshrl.u32 %v2318, 7
    %v2320 = vsub.s32 1, %v2319
    %v2321 = vrot.slane %v2310, %v2320
    %v2322 = vlaneseq
    %v2323 = vshrl.u32 %v2322, 7
    %v2324 = vsub.s32 2, %v2323
    %v2325 = vrot.slane %v2310, %v2324
    %v2326 = vlaneseq
    %v2327 = vshrl.u32 %v2326, 7
    %v2328 = vsub.s32 3, %v2327
    %v2329 = vrot.slane %v2310, %v2328
    %v2330 = vlaneseq
    %v2331 = vshrl.u32 %v2330, 7
    %v2332 = vsub.s32 4, %v2331
    %v2333 = vrot.slane %v2310, %v2332
    %v2334 = vlaneseq
    %v2335 = vshrl.u32 %v2334, 7
    %v2336 = vsub.s32 5, %v2335
    %v2337 = vrot.slane %v2310, %v2336
    %v2338 = vlaneseq
    %v2339 = vshrl.u32 %v2338, 7
    %v2340 = vsub.s32 6, %v2339
    %v2341 = vrot.slane %v2310, %v2340
    %v2342 = vlaneseq
    %v2343 = vshrl.u32 %v2342, 7
    %v2344 = vsub.s32 7, %v2343
    %v2345 = vrot.slane %v2310, %v2344
    %v2346 = vlaneseq
    %v2347 = vshrl.u32 %v2346, 7
    %v2348 = vsub.s32 0, %v2347
    %v2349 = vrot.slane %v2311, %v2348
    %v2350 = vlaneseq
    %v2351 = vshrl.u32 %v2350, 7
    %v2352 = vsub.s32 1, %v2351
    %v2353 = vrot.slane %v2311, %v2352
    %v2354 = vlaneseq
    %v2355 = vshrl.u32 %v2354, 7
    %v2356 = vsub.s32 2, %v2355
    %v2357 = vrot.slane %v2311, %v2356
    %v2358 = vlaneseq
    %v2359 = vshrl.u32 %v2358, 7
    %v2360 = vsub.s32 3, %v2359
    %v2361 = vrot.slane %v2311, %v2360
    %v2362 = vlaneseq
    %v2363 = vshrl.u32 %v2362, 7
    %v2364 = vsub.s32 4, %v2363
    %v2365 = vrot.slane %v2311, %v2364
    %v2366 = vlaneseq
    %v2367 = vshrl.u32 %v2366, 7
    %v2368 = vsub.s32 5, %v2367
    %v2369 = vrot.slane %v2311, %v2368
    %v2370 = vlaneseq
    %v2371 = vshrl.u32 %v2370, 7
    %v2372 = vsub.s32 6, %v2371
    %v2373 = vrot.slane %v2311, %v2372
    %v2374 = vlaneseq
    %v2375 = vshrl.u32 %v2374, 7
    %v2376 = vsub.s32 7, %v2375
    %v2377 = vrot.slane %v2311, %v2376
    %v2906 = vunpack.c.l.b16 %v1798
    %v2907 = vunpack.c.h.b16 %v1798
    %v2908 = vunpack.c.l.b16 %v1799
    %v2909 = vunpack.c.h.b16 %v1799
    %v2910 = vunpack.c.l.b16 %v1800
    %v2911 = vunpack.c.h.b16 %v1800
    %v2912 = vunpack.c.l.b16 %v1801
    %v2913 = vunpack.c.h.b16 %v1801
    %v2914 = vunpack.c.l.b16 %v1802
    %v2915 = vunpack.c.h.b16 %v1802
    %v2916 = vunpack.c.l.b16 %v1803
    %v2917 = vunpack.c.h.b16 %v1803
    %v2918 = vunpack.c.l.b16 %v1804
    %v2919 = vunpack.c.h.b16 %v1804
    %v2920 = vunpack.c.l.b16 %v1805
    %v2921 = vunpack.c.h.b16 %v1805
    %v2922 = vunpack.c.l.b16 %v1806
    %v2923 = vunpack.c.h.b16 %v1806
    %v2924 = vunpack.c.l.b16 %v1807
    %v2925 = vunpack.c.h.b16 %v1807
    %v2926 = vunpack.c.l.b16 %v1808
    %v2927 = vunpack.c.h.b16 %v1808
    %v2928 = vunpack.c.l.b16 %v1809
    %v2929 = vunpack.c.h.b16 %v1809
    %v2930 = vunpack.c.l.b16 %v1810
    %v2931 = vunpack.c.h.b16 %v1810
    %v2932 = vunpack.c.l.b16 %v1811
    %v2933 = vunpack.c.h.b16 %v1811
    %v2934 = vunpack.c.l.b16 %v1812
    %v2935 = vunpack.c.h.b16 %v1812
    %v2936 = vunpack.c.l.b16 %v1813
    %v2937 = vunpack.c.h.b16 %v1813
    %v2938 = vunpack.c.l.b16 %v1814
    %v2939 = vunpack.c.h.b16 %v1814
    %v2940 = vunpack.c.l.b16 %v1815
    %v2941 = vunpack.c.h.b16 %v1815
    %v2942 = vunpack.c.l.b16 %v1816
    %v2943 = vunpack.c.h.b16 %v1816
    %v2944 = vunpack.c.l.b16 %v1817
    %v2945 = vunpack.c.h.b16 %v1817
    %v2946 = vunpack.c.l.b16 %v1818
    %v2947 = vunpack.c.h.b16 %v1818
    %v2948 = vunpack.c.l.b16 %v1819
    %v2949 = vunpack.c.h.b16 %v1819
    %v2950 = vunpack.c.l.b16 %v1820
    %v2951 = vunpack.c.h.b16 %v1820
    %v2952 = vunpack.c.l.b16 %v1821
    %v2953 = vunpack.c.h.b16 %v1821
    %v2954 = vunpack.c.l.b16 %v1822
    %v2955 = vunpack.c.h.b16 %v1822
    %v2956 = vunpack.c.l.b16 %v1823
    %v2957 = vunpack.c.h.b16 %v1823
    %v2958 = vunpack.c.l.b16 %v1824
    %v2959 = vunpack.c.h.b16 %v1824
    %v2960 = vunpack.c.l.b16 %v1825
    %v2961 = vunpack.c.h.b16 %v1825
    %v2962 = vunpack.c.l.b16 %v1826
    %v2963 = vunpack.c.h.b16 %v1826
    %v2964 = vunpack.c.l.b16 %v1827
    %v2965 = vunpack.c.h.b16 %v1827
    %v2966 = vunpack.c.l.b16 %v1828
    %v2967 = vunpack.c.h.b16 %v1828
    %v2968 = vunpack.c.l.b16 %v1829
    %v2969 = vunpack.c.h.b16 %v1829
    %v2970 = vunpack.c.l.b16 %v1830
    %v2971 = vunpack.c.h.b16 %v1830
    %v2972 = vunpack.c.l.b16 %v1831
    %v2973 = vunpack.c.h.b16 %v1831
    %v2974 = vunpack.c.l.b16 %v1832
    %v2975 = vunpack.c.h.b16 %v1832
    %v2976 = vunpack.c.l.b16 %v1833
    %v2977 = vunpack.c.h.b16 %v1833
    %v2978 = vunpack.c.l.b16 %v1834
    %v2979 = vunpack.c.h.b16 %v1834
    %v2980 = vunpack.c.l.b16 %v1835
    %v2981 = vunpack.c.h.b16 %v1835
    %v2982 = vunpack.c.l.b16 %v1836
    %v2983 = vunpack.c.h.b16 %v1836
    %v2984 = vunpack.c.l.b16 %v1837
    %v2985 = vunpack.c.h.b16 %v1837
    %v2986 = vunpack.c.l.b16 %v1838
    %v2987 = vunpack.c.h.b16 %v1838
    %v2988 = vunpack.c.l.b16 %v1839
    %v2989 = vunpack.c.h.b16 %v1839
    %v2990 = vunpack.c.l.b16 %v1840
    %v2991 = vunpack.c.h.b16 %v1840
    %v2992 = vunpack.c.l.b16 %v1841
    %v2993 = vunpack.c.h.b16 %v1841
    %v2994 = vunpack.c.l.b16 %v1842
    %v2995 = vunpack.c.h.b16 %v1842
    %v2996 = vunpack.c.l.b16 %v1843
    %v2997 = vunpack.c.h.b16 %v1843
    %v2998 = vunpack.c.l.b16 %v1844
    %v2999 = vunpack.c.h.b16 %v1844
    %v3000 = vunpack.c.l.b16 %v1845
    %v3001 = vunpack.c.h.b16 %v1845
    %v3002 = vunpack.c.l.b16 %v1846
    %v3003 = vunpack.c.h.b16 %v1846
    %v3004 = vunpack.c.l.b16 %v1847
    %v3005 = vunpack.c.h.b16 %v1847
    %v3006 = vunpack.c.l.b16 %v1848
    %v3007 = vunpack.c.h.b16 %v1848
    %v3008 = vunpack.c.l.b16 %v1849
    %v3009 = vunpack.c.h.b16 %v1849
    %v3010 = vunpack.c.l.b16 %v1850
    %v3011 = vunpack.c.h.b16 %v1850
    %v3012 = vunpack.c.l.b16 %v1851
    %v3013 = vunpack.c.h.b16 %v1851
    %v3014 = vunpack.c.l.b16 %v1852
    %v3015 = vunpack.c.h.b16 %v1852
    %v3016 = vunpack.c.l.b16 %v1853
    %v3017 = vunpack.c.h.b16 %v1853
    %v3018 = vunpack.c.l.b16 %v1854
    %v3019 = vunpack.c.h.b16 %v1854
    %v3020 = vunpack.c.l.b16 %v1855
    %v3021 = vunpack.c.h.b16 %v1855
    %v3022 = vunpack.c.l.b16 %v1856
    %v3023 = vunpack.c.h.b16 %v1856
    %v3024 = vunpack.c.l.b16 %v1857
    %v3025 = vunpack.c.h.b16 %v1857
    %v3026 = vunpack.c.l.b16 %v1858
    %v3027 = vunpack.c.h.b16 %v1858
    %v3028 = vunpack.c.l.b16 %v1859
    %v3029 = vunpack.c.h.b16 %v1859
    %v3030 = vunpack.c.l.b16 %v1860
    %v3031 = vunpack.c.h.b16 %v1860
    %v3032 = vunpack.c.l.b16 %v1861
    %v3033 = vunpack.c.h.b16 %v1861
    %v3034 = vunpack.c.l.b16 %v1862
    %v3035 = vunpack.c.h.b16 %v1862
    %v3036 = vunpack.c.l.b16 %v1863
    %v3037 = vunpack.c.h.b16 %v1863
    %v3038 = vunpack.c.l.b16 %v1864
    %v3039 = vunpack.c.h.b16 %v1864
    %v3040 = vunpack.c.l.b16 %v1865
    %v3041 = vunpack.c.h.b16 %v1865
    %v3042 = vunpack.c.l.b16 %v1866
    %v3043 = vunpack.c.h.b16 %v1866
    %v3044 = vunpack.c.l.b16 %v1867
    %v3045 = vunpack.c.h.b16 %v1867
    %v3046 = vunpack.c.l.b16 %v1868
    %v3047 = vunpack.c.h.b16 %v1868
    %v3048 = vunpack.c.l.b16 %v1869
    %v3049 = vunpack.c.h.b16 %v1869
    %v3050 = vunpack.c.l.b16 %v1870
    %v3051 = vunpack.c.h.b16 %v1870
    %v3052 = vunpack.c.l.b16 %v1871
    %v3053 = vunpack.c.h.b16 %v1871
    %v3054 = vunpack.c.l.b16 %v1872
    %v3055 = vunpack.c.h.b16 %v1872
    %v3056 = vunpack.c.l.b16 %v1873
    %v3057 = vunpack.c.h.b16 %v1873
    %v3058 = vunpack.c.l.b16 %v1874
    %v3059 = vunpack.c.h.b16 %v1874
    %v3060 = vunpack.c.l.b16 %v1875
    %v3061 = vunpack.c.h.b16 %v1875
    %v3062 = vunpack.c.l.b16 %v1876
    %v3063 = vunpack.c.h.b16 %v1876
    %v3064 = vunpack.c.l.b16 %v1877
    %v3065 = vunpack.c.h.b16 %v1877
    %v3066 = vunpack.c.l.b16 %v1878
    %v3067 = vunpack.c.h.b16 %v1878
    %v3068 = vunpack.c.l.b16 %v1879
    %v3069 = vunpack.c.h.b16 %v1879
    %v3070 = vunpack.c.l.b16 %v1880
    %v3071 = vunpack.c.h.b16 %v1880
    %v3072 = vunpack.c.l.b16 %v1881
    %v3073 = vunpack.c.h.b16 %v1881
    %v3074 = vunpack.c.l.b16 %v1882
    %v3075 = vunpack.c.h.b16 %v1882
    %v3076 = vunpack.c.l.b16 %v1883
    %v3077 = vunpack.c.h.b16 %v1883
    %v3078 = vunpack.c.l.b16 %v1884
    %v3079 = vunpack.c.h.b16 %v1884
    %v3080 = vunpack.c.l.b16 %v1885
    %v3081 = vunpack.c.h.b16 %v1885
    %v3082 = vunpack.c.l.b16 %v1886
    %v3083 = vunpack.c.h.b16 %v1886
    %v3084 = vunpack.c.l.b16 %v1887
    %v3085 = vunpack.c.h.b16 %v1887
    %v3086 = vunpack.c.l.b16 %v1888
    %v3087 = vunpack.c.h.b16 %v1888
    %v3088 = vunpack.c.l.b16 %v1889
    %v3089 = vunpack.c.h.b16 %v1889
    %v3090 = vunpack.c.l.b16 %v1890
    %v3091 = vunpack.c.h.b16 %v1890
    %v3092 = vunpack.c.l.b16 %v1891
    %v3093 = vunpack.c.h.b16 %v1891
    %v3094 = vunpack.c.l.b16 %v1892
    %v3095 = vunpack.c.h.b16 %v1892
    %v3096 = vunpack.c.l.b16 %v1893
    %v3097 = vunpack.c.h.b16 %v1893
    %v3098 = vunpack.c.l.b16 %v1894
    %v3099 = vunpack.c.h.b16 %v1894
    %v3100 = vunpack.c.l.b16 %v1895
    %v3101 = vunpack.c.h.b16 %v1895
    %v3102 = vunpack.c.l.b16 %v1896
    %v3103 = vunpack.c.h.b16 %v1896
    %v3104 = vunpack.c.l.b16 %v1897
    %v3105 = vunpack.c.h.b16 %v1897
    %v3106 = vunpack.c.l.b16 %v1898
    %v3107 = vunpack.c.h.b16 %v1898
    %v3108 = vunpack.c.l.b16 %v1899
    %v3109 = vunpack.c.h.b16 %v1899
    %v3110 = vunpack.c.l.b16 %v1900
    %v3111 = vunpack.c.h.b16 %v1900
    %v3112 = vunpack.c.l.b16 %v1901
    %v3113 = vunpack.c.h.b16 %v1901
    %v3114 = vunpack.c.l.b16 %v1902
    %v3115 = vunpack.c.h.b16 %v1902
    %v3116 = vunpack.c.l.b16 %v1903
    %v3117 = vunpack.c.h.b16 %v1903
    %v3118 = vunpack.c.l.b16 %v1904
    %v3119 = vunpack.c.h.b16 %v1904
    %v3120 = vunpack.c.l.b16 %v1905
    %v3121 = vunpack.c.h.b16 %v1905
    %v3122 = vunpack.c.l.b16 %v1906
    %v3123 = vunpack.c.h.b16 %v1906
    %v3124 = vunpack.c.l.b16 %v1907
    %v3125 = vunpack.c.h.b16 %v1907
    %v3126 = vunpack.c.l.b16 %v1908
    %v3127 = vunpack.c.h.b16 %v1908
    %v3128 = vunpack.c.l.b16 %v1909
    %v3129 = vunpack.c.h.b16 %v1909
    %v3130 = vunpack.c.l.b16 %v1910
    %v3131 = vunpack.c.h.b16 %v1910
    %v3132 = vunpack.c.l.b16 %v1911
    %v3133 = vunpack.c.h.b16 %v1911
    %v3134 = vunpack.c.l.b16 %v1912
    %v3135 = vunpack.c.h.b16 %v1912
    %v3136 = vunpack.c.l.b16 %v1913
    %v3137 = vunpack.c.h.b16 %v1913
    %v3138 = vunpack.c.l.b16 %v1914
    %v3139 = vunpack.c.h.b16 %v1914
    %v3140 = vunpack.c.l.b16 %v1915
    %v3141 = vunpack.c.h.b16 %v1915
    %v3142 = vunpack.c.l.b16 %v1916
    %v3143 = vunpack.c.h.b16 %v1916
    %v3144 = vunpack.c.l.b16 %v1917
    %v3145 = vunpack.c.h.b16 %v1917
    %v3146 = vunpack.c.l.b16 %v1918
    %v3147 = vunpack.c.h.b16 %v1918
    %v3148 = vunpack.c.l.b16 %v1919
    %v3149 = vunpack.c.h.b16 %v1919
    %v3150 = vunpack.c.l.b16 %v1920
    %v3151 = vunpack.c.h.b16 %v1920
    %v3152 = vunpack.c.l.b16 %v1921
    %v3153 = vunpack.c.h.b16 %v1921
    %v3154 = vunpack.c.l.b16 %v1922
    %v3155 = vunpack.c.h.b16 %v1922
    %v3156 = vunpack.c.l.b16 %v1923
    %v3157 = vunpack.c.h.b16 %v1923
    %v3158 = vunpack.c.l.b16 %v1924
    %v3159 = vunpack.c.h.b16 %v1924
    %v3160 = vunpack.c.l.b16 %v1925
    %v3161 = vunpack.c.h.b16 %v1925
    %v3162 = vunpack.c.l.b16 %v1926
    %v3163 = vunpack.c.h.b16 %v1926
    %v3164 = vunpack.c.l.b16 %v1927
    %v3165 = vunpack.c.h.b16 %v1927
    %v3166 = vunpack.c.l.b16 %v1928
    %v3167 = vunpack.c.h.b16 %v1928
    %v3168 = vunpack.c.l.b16 %v1929
    %v3169 = vunpack.c.h.b16 %v1929
    %v3170 = vunpack.c.l.b16 %v1930
    %v3171 = vunpack.c.h.b16 %v1930
    %v3172 = vunpack.c.l.b16 %v1931
    %v3173 = vunpack.c.h.b16 %v1931
    %v3174 = vunpack.c.l.b16 %v1932
    %v3175 = vunpack.c.h.b16 %v1932
    %v3176 = vunpack.c.l.b16 %v1933
    %v3177 = vunpack.c.h.b16 %v1933
    %v3178 = vunpack.c.l.b16 %v1934
    %v3179 = vunpack.c.h.b16 %v1934
    %v3180 = vunpack.c.l.b16 %v1935
    %v3181 = vunpack.c.h.b16 %v1935
    %v3182 = vunpack.c.l.b16 %v1936
    %v3183 = vunpack.c.h.b16 %v1936
    %v3184 = vunpack.c.l.b16 %v1937
    %v3185 = vunpack.c.h.b16 %v1937
    %v3186 = vunpack.c.l.b16 %v1938
    %v3187 = vunpack.c.h.b16 %v1938
    %v3188 = vunpack.c.l.b16 %v1939
    %v3189 = vunpack.c.h.b16 %v1939
    %v3190 = vunpack.c.l.b16 %v1940
    %v3191 = vunpack.c.h.b16 %v1940
    %v3192 = vunpack.c.l.b16 %v1941
    %v3193 = vunpack.c.h.b16 %v1941
    %v3194 = vunpack.c.l.b16 %v1942
    %v3195 = vunpack.c.h.b16 %v1942
    %v3196 = vunpack.c.l.b16 %v1943
    %v3197 = vunpack.c.h.b16 %v1943
    %v3198 = vunpack.c.l.b16 %v1944
    %v3199 = vunpack.c.h.b16 %v1944
    %v3200 = vunpack.c.l.b16 %v1945
    %v3201 = vunpack.c.h.b16 %v1945
    %v3202 = vunpack.c.l.b16 %v1946
    %v3203 = vunpack.c.h.b16 %v1946
    %v3204 = vunpack.c.l.b16 %v1947
    %v3205 = vunpack.c.h.b16 %v1947
    %v3206 = vunpack.c.l.b16 %v1948
    %v3207 = vunpack.c.h.b16 %v1948
    %v3208 = vunpack.c.l.b16 %v1949
    %v3209 = vunpack.c.h.b16 %v1949
    %v3210 = vunpack.c.l.b16 %v1950
    %v3211 = vunpack.c.h.b16 %v1950
    %v3212 = vunpack.c.l.b16 %v1951
    %v3213 = vunpack.c.h.b16 %v1951
    %v3214 = vunpack.c.l.b16 %v1952
    %v3215 = vunpack.c.h.b16 %v1952
    %v3216 = vunpack.c.l.b16 %v1953
    %v3217 = vunpack.c.h.b16 %v1953
    %v3218 = vunpack.c.l.b16 %v1954
    %v3219 = vunpack.c.h.b16 %v1954
    %v3220 = vunpack.c.l.b16 %v1955
    %v3221 = vunpack.c.h.b16 %v1955
    %v3222 = vunpack.c.l.b16 %v1956
    %v3223 = vunpack.c.h.b16 %v1956
    %v3224 = vunpack.c.l.b16 %v1957
    %v3225 = vunpack.c.h.b16 %v1957
    %v3226 = vunpack.c.l.b16 %v1958
    %v3227 = vunpack.c.h.b16 %v1958
    %v3228 = vunpack.c.l.b16 %v1959
    %v3229 = vunpack.c.h.b16 %v1959
    %v3230 = vunpack.c.l.b16 %v1960
    %v3231 = vunpack.c.h.b16 %v1960
    %v3232 = vunpack.c.l.b16 %v1961
    %v3233 = vunpack.c.h.b16 %v1961
    %v3234 = vunpack.c.l.b16 %v1962
    %v3235 = vunpack.c.h.b16 %v1962
    %v3236 = vunpack.c.l.b16 %v1963
    %v3237 = vunpack.c.h.b16 %v1963
    %v3238 = vunpack.c.l.b16 %v1964
    %v3239 = vunpack.c.h.b16 %v1964
    %v3240 = vunpack.c.l.b16 %v1965
    %v3241 = vunpack.c.h.b16 %v1965
    %v3242 = vunpack.c.l.b16 %v1966
    %v3243 = vunpack.c.h.b16 %v1966
    %v3244 = vunpack.c.l.b16 %v1967
    %v3245 = vunpack.c.h.b16 %v1967
    %v3246 = vunpack.c.l.b16 %v1968
    %v3247 = vunpack.c.h.b16 %v1968
    %v3248 = vunpack.c.l.b16 %v1969
    %v3249 = vunpack.c.h.b16 %v1969
    %v3250 = vunpack.c.l.b16 %v1970
    %v3251 = vunpack.c.h.b16 %v1970
    %v3252 = vunpack.c.l.b16 %v1971
    %v3253 = vunpack.c.h.b16 %v1971
    %v3254 = vunpack.c.l.b16 %v1972
    %v3255 = vunpack.c.h.b16 %v1972
    %v3256 = vunpack.c.l.b16 %v1973
    %v3257 = vunpack.c.h.b16 %v1973
    %v3258 = vunpack.c.l.b16 %v1974
    %v3259 = vunpack.c.h.b16 %v1974
    %v3260 = vunpack.c.l.b16 %v1975
    %v3261 = vunpack.c.h.b16 %v1975
    %v3262 = vunpack.c.l.b16 %v1976
    %v3263 = vunpack.c.h.b16 %v1976
    %v3264 = vunpack.c.l.b16 %v1977
    %v3265 = vunpack.c.h.b16 %v1977
    %v3266 = vunpack.c.l.b16 %v1978
    %v3267 = vunpack.c.h.b16 %v1978
    %v3268 = vunpack.c.l.b16 %v1979
    %v3269 = vunpack.c.h.b16 %v1979
    %v3270 = vunpack.c.l.b16 %v1980
    %v3271 = vunpack.c.h.b16 %v1980
    %v3272 = vunpack.c.l.b16 %v1981
    %v3273 = vunpack.c.h.b16 %v1981
    %v3274 = vunpack.c.l.b16 %v1982
    %v3275 = vunpack.c.h.b16 %v1982
    %v3276 = vunpack.c.l.b16 %v1983
    %v3277 = vunpack.c.h.b16 %v1983
    %v3278 = vunpack.c.l.b16 %v1984
    %v3279 = vunpack.c.h.b16 %v1984
    %v3280 = vunpack.c.l.b16 %v1985
    %v3281 = vunpack.c.h.b16 %v1985
    %v3282 = vunpack.c.l.b16 %v1986
    %v3283 = vunpack.c.h.b16 %v1986
    %v3284 = vunpack.c.l.b16 %v1987
    %v3285 = vunpack.c.h.b16 %v1987
    %v3286 = vunpack.c.l.b16 %v1988
    %v3287 = vunpack.c.h.b16 %v1988
    %v3288 = vunpack.c.l.b16 %v1989
    %v3289 = vunpack.c.h.b16 %v1989
    %v3290 = vunpack.c.l.b16 %v1990
    %v3291 = vunpack.c.h.b16 %v1990
    %v3292 = vunpack.c.l.b16 %v1991
    %v3293 = vunpack.c.h.b16 %v1991
    %v3294 = vunpack.c.l.b16 %v1992
    %v3295 = vunpack.c.h.b16 %v1992
    %v3296 = vunpack.c.l.b16 %v1993
    %v3297 = vunpack.c.h.b16 %v1993
    %v3298 = vunpack.c.l.b16 %v1994
    %v3299 = vunpack.c.h.b16 %v1994
    %v3300 = vunpack.c.l.b16 %v1995
    %v3301 = vunpack.c.h.b16 %v1995
    %v3302 = vunpack.c.l.b16 %v1996
    %v3303 = vunpack.c.h.b16 %v1996
    %v3304 = vunpack.c.l.b16 %v1997
    %v3305 = vunpack.c.h.b16 %v1997
    %v3306 = vunpack.c.l.b16 %v1998
    %v3307 = vunpack.c.h.b16 %v1998
    %v3308 = vunpack.c.l.b16 %v1999
    %v3309 = vunpack.c.h.b16 %v1999
    %v3310 = vunpack.c.l.b16 %v2000
    %v3311 = vunpack.c.h.b16 %v2000
    %v3312 = vunpack.c.l.b16 %v2001
    %v3313 = vunpack.c.h.b16 %v2001
    %v3314 = vunpack.c.l.b16 %v2002
    %v3315 = vunpack.c.h.b16 %v2002
    %v3316 = vunpack.c.l.b16 %v2003
    %v3317 = vunpack.c.h.b16 %v2003
    %v3318 = vunpack.c.l.b16 %v2004
    %v3319 = vunpack.c.h.b16 %v2004
    %v3320 = vunpack.c.l.b16 %v2005
    %v3321 = vunpack.c.h.b16 %v2005
    %v3322 = vunpack.c.l.b16 %v2006
    %v3323 = vunpack.c.h.b16 %v2006
    %v3324 = vunpack.c.l.b16 %v2007
    %v3325 = vunpack.c.h.b16 %v2007
    %v3326 = vunpack.c.l.b16 %v2008
    %v3327 = vunpack.c.h.b16 %v2008
    %v3328 = vunpack.c.l.b16 %v2009
    %v3329 = vunpack.c.h.b16 %v2009
    %v3330 = vunpack.c.l.b16 %v2010
    %v3331 = vunpack.c.h.b16 %v2010
    %v3332 = vunpack.c.l.b16 %v2011
    %v3333 = vunpack.c.h.b16 %v2011
    %v3334 = vunpack.c.l.b16 %v2012
    %v3335 = vunpack.c.h.b16 %v2012
    %v3336 = vunpack.c.l.b16 %v2013
    %v3337 = vunpack.c.h.b16 %v2013
    %v3338 = vunpack.c.l.b16 %v2014
    %v3339 = vunpack.c.h.b16 %v2014
    %v3340 = vunpack.c.l.b16 %v2015
    %v3341 = vunpack.c.h.b16 %v2015
    %v3342 = vunpack.c.l.b16 %v2016
    %v3343 = vunpack.c.h.b16 %v2016
    %v3344 = vunpack.c.l.b16 %v2017
    %v3345 = vunpack.c.h.b16 %v2017
    %v3346 = vunpack.c.l.b16 %v2018
    %v3347 = vunpack.c.h.b16 %v2018
    %v3348 = vunpack.c.l.b16 %v2019
    %v3349 = vunpack.c.h.b16 %v2019
    %v3350 = vunpack.c.l.b16 %v2020
    %v3351 = vunpack.c.h.b16 %v2020
    %v3352 = vunpack.c.l.b16 %v2021
    %v3353 = vunpack.c.h.b16 %v2021
    %v3354 = vunpack.c.l.b16 %v2022
    %v3355 = vunpack.c.h.b16 %v2022
    %v3356 = vunpack.c.l.b16 %v2023
    %v3357 = vunpack.c.h.b16 %v2023
    %v3358 = vunpack.c.l.b16 %v2024
    %v3359 = vunpack.c.h.b16 %v2024
    %v3360 = vunpack.c.l.b16 %v2025
    %v3361 = vunpack.c.h.b16 %v2025
    %v3362 = vunpack.c.l.b16 %v2026
    %v3363 = vunpack.c.h.b16 %v2026
    %v3364 = vunpack.c.l.b16 %v2027
    %v3365 = vunpack.c.h.b16 %v2027
    %v3366 = vunpack.c.l.b16 %v2028
    %v3367 = vunpack.c.h.b16 %v2028
    %v3368 = vunpack.c.l.b16 %v2029
    %v3369 = vunpack.c.h.b16 %v2029
    %v3370 = vunpack.c.l.b16 %v2030
    %v3371 = vunpack.c.h.b16 %v2030
    %v3372 = vunpack.c.l.b16 %v2031
    %v3373 = vunpack.c.h.b16 %v2031
    %v3374 = vunpack.c.l.b16 %v2032
    %v3375 = vunpack.c.h.b16 %v2032
    %v3376 = vunpack.c.l.b16 %v2033
    %v3377 = vunpack.c.h.b16 %v2033
    %v3378 = vunpack.c.l.b16 %v2034
    %v3379 = vunpack.c.h.b16 %v2034
    %v3380 = vunpack.c.l.b16 %v2035
    %v3381 = vunpack.c.h.b16 %v2035
    %v3382 = vunpack.c.l.b16 %v2036
    %v3383 = vunpack.c.h.b16 %v2036
    %v3384 = vunpack.c.l.b16 %v2037
    %v3385 = vunpack.c.h.b16 %v2037
    %v3386 = vunpack.c.l.b16 %v2038
    %v3387 = vunpack.c.h.b16 %v2038
    %v3388 = vunpack.c.l.b16 %v2039
    %v3389 = vunpack.c.h.b16 %v2039
    %v3390 = vunpack.c.l.b16 %v2040
    %v3391 = vunpack.c.h.b16 %v2040
    %v3392 = vunpack.c.l.b16 %v2041
    %v3393 = vunpack.c.h.b16 %v2041
    %v3394 = vunpack.c.l.b16 %v2042
    %v3395 = vunpack.c.h.b16 %v2042
    %v3396 = vunpack.c.l.b16 %v2043
    %v3397 = vunpack.c.h.b16 %v2043
    %v3398 = vunpack.c.l.b16 %v2044
    %v3399 = vunpack.c.h.b16 %v2044
    %v3400 = vunpack.c.l.b16 %v2045
    %v3401 = vunpack.c.h.b16 %v2045
    %v3402 = vunpack.c.l.b16 %v2046
    %v3403 = vunpack.c.h.b16 %v2046
    %v3404 = vunpack.c.l.b16 %v2047
    %v3405 = vunpack.c.h.b16 %v2047
    %v3406 = vunpack.c.l.b16 %v2048
    %v3407 = vunpack.c.h.b16 %v2048
    %v3408 = vunpack.c.l.b16 %v2049
    %v3409 = vunpack.c.h.b16 %v2049
    %v3410 = vunpack.c.l.b16 %v2050
    %v3411 = vunpack.c.h.b16 %v2050
    %v3412 = vunpack.c.l.b16 %v2051
    %v3413 = vunpack.c.h.b16 %v2051
    %v3414 = vunpack.c.l.b16 %v2052
    %v3415 = vunpack.c.h.b16 %v2052
    %v3416 = vunpack.c.l.b16 %v2053
    %v3417 = vunpack.c.h.b16 %v2053
    %v3418 = vunpack.c.l.b16 %v2054
    %v3419 = vunpack.c.h.b16 %v2054
    %v3420 = vunpack.c.l.b16 %v2055
    %v3421 = vunpack.c.h.b16 %v2055
    %v3422 = vunpack.c.l.b16 %v2056
    %v3423 = vunpack.c.h.b16 %v2056
    %v3424 = vunpack.c.l.b16 %v2057
    %v3425 = vunpack.c.h.b16 %v2057
    %v3426 = vunpack.c.l.b16 %v2058
    %v3427 = vunpack.c.h.b16 %v2058
    %v3428 = vunpack.c.l.b16 %v2059
    %v3429 = vunpack.c.h.b16 %v2059
    %v3430 = vunpack.c.l.b16 %v2060
    %v3431 = vunpack.c.h.b16 %v2060
    %v3432 = vunpack.c.l.b16 %v2061
    %v3433 = vunpack.c.h.b16 %v2061
    %v3434 = vunpack.c.l.b16 %v2062
    %v3435 = vunpack.c.h.b16 %v2062
    %v3436 = vunpack.c.l.b16 %v2063
    %v3437 = vunpack.c.h.b16 %v2063
    %v3438 = vunpack.c.l.b16 %v2064
    %v3439 = vunpack.c.h.b16 %v2064
    %v3440 = vunpack.c.l.b16 %v2065
    %v3441 = vunpack.c.h.b16 %v2065
    %v3442 = vunpack.c.l.b16 %v2066
    %v3443 = vunpack.c.h.b16 %v2066
    %v3444 = vunpack.c.l.b16 %v2067
    %v3445 = vunpack.c.h.b16 %v2067
    %v3446 = vunpack.c.l.b16 %v2068
    %v3447 = vunpack.c.h.b16 %v2068
    %v3448 = vunpack.c.l.b16 %v2069
    %v3449 = vunpack.c.h.b16 %v2069
    %v3450 = vunpack.c.l.b16 %v2070
    %v3451 = vunpack.c.h.b16 %v2070
    %v3452 = vunpack.c.l.b16 %v2071
    %v3453 = vunpack.c.h.b16 %v2071
    %v3454 = vunpack.c.l.b16 %v2072
    %v3455 = vunpack.c.h.b16 %v2072
    %v3456 = vunpack.c.l.b16 %v2073
    %v3457 = vunpack.c.h.b16 %v2073
    %v3458 = vunpack.c.l.b16 %v2074
    %v3459 = vunpack.c.h.b16 %v2074
    %v3460 = vunpack.c.l.b16 %v2075
    %v3461 = vunpack.c.h.b16 %v2075
    %v3462 = vunpack.c.l.b16 %v2076
    %v3463 = vunpack.c.h.b16 %v2076
    %v3464 = vunpack.c.l.b16 %v2077
    %v3465 = vunpack.c.h.b16 %v2077
    %v3466 = vunpack.c.l.b16 %v2078
    %v3467 = vunpack.c.h.b16 %v2078
    %v3468 = vunpack.c.l.b16 %v2079
    %v3469 = vunpack.c.h.b16 %v2079
    %v3470 = vunpack.c.l.b16 %v2080
    %v3471 = vunpack.c.h.b16 %v2080
    %v3472 = vunpack.c.l.b16 %v2081
    %v3473 = vunpack.c.h.b16 %v2081
    %v3474 = vunpack.c.l.b16 %v2082
    %v3475 = vunpack.c.h.b16 %v2082
    %v3476 = vunpack.c.l.b16 %v2083
    %v3477 = vunpack.c.h.b16 %v2083
    %v3478 = vunpack.c.l.b16 %v2084
    %v3479 = vunpack.c.h.b16 %v2084
    %v3480 = vunpack.c.l.b16 %v2085
    %v3481 = vunpack.c.h.b16 %v2085
    %v3482 = vunpack.c.l.b16 %v2086
    %v3483 = vunpack.c.h.b16 %v2086
    %v3484 = vunpack.c.l.b16 %v2087
    %v3485 = vunpack.c.h.b16 %v2087
    %v3486 = vunpack.c.l.b16 %v2088
    %v3487 = vunpack.c.h.b16 %v2088
    %v3488 = vunpack.c.l.b16 %v2089
    %v3489 = vunpack.c.h.b16 %v2089
    %v3490 = vunpack.c.l.b16 %v2090
    %v3491 = vunpack.c.h.b16 %v2090
    %v3492 = vunpack.c.l.b16 %v2091
    %v3493 = vunpack.c.h.b16 %v2091
    %v3494 = vunpack.c.l.b16 %v2092
    %v3495 = vunpack.c.h.b16 %v2092
    %v3496 = vunpack.c.l.b16 %v2093
    %v3497 = vunpack.c.h.b16 %v2093
    %v3498 = vunpack.c.l.b16 %v2094
    %v3499 = vunpack.c.h.b16 %v2094
    %v3500 = vunpack.c.l.b16 %v2095
    %v3501 = vunpack.c.h.b16 %v2095
    %v3502 = vunpack.c.l.b16 %v2096
    %v3503 = vunpack.c.h.b16 %v2096
    %v3504 = vunpack.c.l.b16 %v2097
    %v3505 = vunpack.c.h.b16 %v2097
    %v3506 = vunpack.c.l.b16 %v2098
    %v3507 = vunpack.c.h.b16 %v2098
    %v3508 = vunpack.c.l.b16 %v2099
    %v3509 = vunpack.c.h.b16 %v2099
    %v3510 = vunpack.c.l.b16 %v2100
    %v3511 = vunpack.c.h.b16 %v2100
    %v3512 = vunpack.c.l.b16 %v2101
    %v3513 = vunpack.c.h.b16 %v2101
    %v3514 = vunpack.c.l.b16 %v2102
    %v3515 = vunpack.c.h.b16 %v2102
    %v3516 = vunpack.c.l.b16 %v2103
    %v3517 = vunpack.c.h.b16 %v2103
    %v3518 = vunpack.c.l.b16 %v2104
    %v3519 = vunpack.c.h.b16 %v2104
    %v3520 = vunpack.c.l.b16 %v2105
    %v3521 = vunpack.c.h.b16 %v2105
    %v3522 = vunpack.c.l.b16 %v2106
    %v3523 = vunpack.c.h.b16 %v2106
    %v3524 = vunpack.c.l.b16 %v2107
    %v3525 = vunpack.c.h.b16 %v2107
    %v3526 = vunpack.c.l.b16 %v2108
    %v3527 = vunpack.c.h.b16 %v2108
    %v3528 = vunpack.c.l.b16 %v2109
    %v3529 = vunpack.c.h.b16 %v2109
    %v3530 = vunpack.c.l.b16 %v2110
    %v3531 = vunpack.c.h.b16 %v2110
    %v3532 = vunpack.c.l.b16 %v2111
    %v3533 = vunpack.c.h.b16 %v2111
    %v3534 = vunpack.c.l.b16 %v2112
    %v3535 = vunpack.c.h.b16 %v2112
    %v3536 = vunpack.c.l.b16 %v2113
    %v3537 = vunpack.c.h.b16 %v2113
    %v3538 = vunpack.c.l.b16 %v2114
    %v3539 = vunpack.c.h.b16 %v2114
    %v3540 = vunpack.c.l.b16 %v2115
    %v3541 = vunpack.c.h.b16 %v2115
    %v3542 = vunpack.c.l.b16 %v2116
    %v3543 = vunpack.c.h.b16 %v2116
    %v3544 = vunpack.c.l.b16 %v2117
    %v3545 = vunpack.c.h.b16 %v2117
    %v3546 = vunpack.c.l.b16 %v2118
    %v3547 = vunpack.c.h.b16 %v2118
    %v3548 = vunpack.c.l.b16 %v2119
    %v3549 = vunpack.c.h.b16 %v2119
    %v3550 = vunpack.c.l.b16 %v2120
    %v3551 = vunpack.c.h.b16 %v2120
    %v3552 = vunpack.c.l.b16 %v2121
    %v3553 = vunpack.c.h.b16 %v2121
    %v3554 = vunpack.c.l.b16 %v2122
    %v3555 = vunpack.c.h.b16 %v2122
    %v3556 = vunpack.c.l.b16 %v2123
    %v3557 = vunpack.c.h.b16 %v2123
    %v3558 = vunpack.c.l.b16 %v2124
    %v3559 = vunpack.c.h.b16 %v2124
    %v3560 = vunpack.c.l.b16 %v2125
    %v3561 = vunpack.c.h.b16 %v2125
    %v3562 = vunpack.c.l.b16 %v2126
    %v3563 = vunpack.c.h.b16 %v2126
    %v3564 = vunpack.c.l.b16 %v2127
    %v3565 = vunpack.c.h.b16 %v2127
    %v3566 = vunpack.c.l.b16 %v2128
    %v3567 = vunpack.c.h.b16 %v2128
    %v3568 = vunpack.c.l.b16 %v2129
    %v3569 = vunpack.c.h.b16 %v2129
    %v3570 = vunpack.c.l.b16 %v2130
    %v3571 = vunpack.c.h.b16 %v2130
    %v3572 = vunpack.c.l.b16 %v2131
    %v3573 = vunpack.c.h.b16 %v2131
    %v3574 = vunpack.c.l.b16 %v2132
    %v3575 = vunpack.c.h.b16 %v2132
    %v3576 = vunpack.c.l.b16 %v2133
    %v3577 = vunpack.c.h.b16 %v2133
    %v3578 = vunpack.c.l.b16 %v2134
    %v3579 = vunpack.c.h.b16 %v2134
    %v3580 = vunpack.c.l.b16 %v2135
    %v3581 = vunpack.c.h.b16 %v2135
    %v3582 = vunpack.c.l.b16 %v2136
    %v3583 = vunpack.c.h.b16 %v2136
    %v3584 = vunpack.c.l.b16 %v2137
    %v3585 = vunpack.c.h.b16 %v2137
    %v3586 = vunpack.c.l.b16 %v2138
    %v3587 = vunpack.c.h.b16 %v2138
    %v3588 = vunpack.c.l.b16 %v2139
    %v3589 = vunpack.c.h.b16 %v2139
    %v3590 = vunpack.c.l.b16 %v2140
    %v3591 = vunpack.c.h.b16 %v2140
    %v3592 = vunpack.c.l.b16 %v2141
    %v3593 = vunpack.c.h.b16 %v2141
    %v3594 = vunpack.c.l.b16 %v2142
    %v3595 = vunpack.c.h.b16 %v2142
    %v3596 = vunpack.c.l.b16 %v2143
    %v3597 = vunpack.c.h.b16 %v2143
    %v3598 = vunpack.c.l.b16 %v2144
    %v3599 = vunpack.c.h.b16 %v2144
    %v3600 = vunpack.c.l.b16 %v2145
    %v3601 = vunpack.c.h.b16 %v2145
    %v3602 = vunpack.c.l.b16 %v2146
    %v3603 = vunpack.c.h.b16 %v2146
    %v3604 = vunpack.c.l.b16 %v2147
    %v3605 = vunpack.c.h.b16 %v2147
    %v3606 = vunpack.c.l.b16 %v2148
    %v3607 = vunpack.c.h.b16 %v2148
    %v3608 = vunpack.c.l.b16 %v2149
    %v3609 = vunpack.c.h.b16 %v2149
    %v3610 = vunpack.c.l.b16 %v2150
    %v3611 = vunpack.c.h.b16 %v2150
    %v3612 = vunpack.c.l.b16 %v2151
    %v3613 = vunpack.c.h.b16 %v2151
    %v3614 = vunpack.c.l.b16 %v2152
    %v3615 = vunpack.c.h.b16 %v2152
    %v3616 = vunpack.c.l.b16 %v2153
    %v3617 = vunpack.c.h.b16 %v2153
    %v3618 = vunpack.c.l.b16 %v2154
    %v3619 = vunpack.c.h.b16 %v2154
    %v3620 = vunpack.c.l.b16 %v2155
    %v3621 = vunpack.c.h.b16 %v2155
    %v3622 = vunpack.c.l.b16 %v2156
    %v3623 = vunpack.c.h.b16 %v2156
    %v3624 = vunpack.c.l.b16 %v2157
    %v3625 = vunpack.c.h.b16 %v2157
    %v3626 = vunpack.c.l.b16 %v2158
    %v3627 = vunpack.c.h.b16 %v2158
    %v3628 = vunpack.c.l.b16 %v2159
    %v3629 = vunpack.c.h.b16 %v2159
    %v3630 = vunpack.c.l.b16 %v2160
    %v3631 = vunpack.c.h.b16 %v2160
    %v3632 = vunpack.c.l.b16 %v2161
    %v3633 = vunpack.c.h.b16 %v2161
    %v3634 = vunpack.c.l.b16 %v2162
    %v3635 = vunpack.c.h.b16 %v2162
    %v3636 = vunpack.c.l.b16 %v2163
    %v3637 = vunpack.c.h.b16 %v2163
    %v3638 = vunpack.c.l.b16 %v2164
    %v3639 = vunpack.c.h.b16 %v2164
    %v3640 = vunpack.c.l.b16 %v2165
    %v3641 = vunpack.c.h.b16 %v2165
    %v3642 = vunpack.c.l.b16 %v2166
    %v3643 = vunpack.c.h.b16 %v2166
    %v3644 = vunpack.c.l.b16 %v2167
    %v3645 = vunpack.c.h.b16 %v2167
    %v3646 = vunpack.c.l.b16 %v2168
    %v3647 = vunpack.c.h.b16 %v2168
    %v3648 = vunpack.c.l.b16 %v2169
    %v3649 = vunpack.c.h.b16 %v2169
    %v3650 = vunpack.c.l.b16 %v2170
    %v3651 = vunpack.c.h.b16 %v2170
    %v3652 = vunpack.c.l.b16 %v2171
    %v3653 = vunpack.c.h.b16 %v2171
    %v3654 = vunpack.c.l.b16 %v2172
    %v3655 = vunpack.c.h.b16 %v2172
    %v3656 = vunpack.c.l.b16 %v2173
    %v3657 = vunpack.c.h.b16 %v2173
    %v3658 = vunpack.c.l.b16 %v2174
    %v3659 = vunpack.c.h.b16 %v2174
    %v3660 = vunpack.c.l.b16 %v2175
    %v3661 = vunpack.c.h.b16 %v2175
    %v3662 = vunpack.c.l.b16 %v2176
    %v3663 = vunpack.c.h.b16 %v2176
    %v3664 = vunpack.c.l.b16 %v2177
    %v3665 = vunpack.c.h.b16 %v2177
    %v3666 = vunpack.c.l.b16 %v2178
    %v3667 = vunpack.c.h.b16 %v2178
    %v3668 = vunpack.c.l.b16 %v2179
    %v3669 = vunpack.c.h.b16 %v2179
    %v3670 = vunpack.c.l.b16 %v2180
    %v3671 = vunpack.c.h.b16 %v2180
    %v3672 = vunpack.c.l.b16 %v2181
    %v3673 = vunpack.c.h.b16 %v2181
    %v3674 = vunpack.c.l.b16 %v2182
    %v3675 = vunpack.c.h.b16 %v2182
    %v3676 = vunpack.c.l.b16 %v2183
    %v3677 = vunpack.c.h.b16 %v2183
    %v3678 = vunpack.c.l.b16 %v2184
    %v3679 = vunpack.c.h.b16 %v2184
    %v3680 = vunpack.c.l.b16 %v2185
    %v3681 = vunpack.c.h.b16 %v2185
    %v3682 = vunpack.c.l.b16 %v2186
    %v3683 = vunpack.c.h.b16 %v2186
    %v3684 = vunpack.c.l.b16 %v2187
    %v3685 = vunpack.c.h.b16 %v2187
    %v3686 = vunpack.c.l.b16 %v2188
    %v3687 = vunpack.c.h.b16 %v2188
    %v3688 = vunpack.c.l.b16 %v2189
    %v3689 = vunpack.c.h.b16 %v2189
    %v3690 = vunpack.c.l.b16 %v2190
    %v3691 = vunpack.c.h.b16 %v2190
    %v3692 = vunpack.c.l.b16 %v2191
    %v3693 = vunpack.c.h.b16 %v2191
    %v3694 = vunpack.c.l.b16 %v2192
    %v3695 = vunpack.c.h.b16 %v2192
    %v3696 = vunpack.c.l.b16 %v2193
    %v3697 = vunpack.c.h.b16 %v2193
    %v3698 = vunpack.c.l.b16 %v2194
    %v3699 = vunpack.c.h.b16 %v2194
    %v3700 = vunpack.c.l.b16 %v2195
    %v3701 = vunpack.c.h.b16 %v2195
    %v3702 = vunpack.c.l.b16 %v2196
    %v3703 = vunpack.c.h.b16 %v2196
    %v3704 = vunpack.c.l.b16 %v2197
    %v3705 = vunpack.c.h.b16 %v2197
    %v3706 = vunpack.c.l.b16 %v2198
    %v3707 = vunpack.c.h.b16 %v2198
    %v3708 = vunpack.c.l.b16 %v2199
    %v3709 = vunpack.c.h.b16 %v2199
    %v3710 = vunpack.c.l.b16 %v2200
    %v3711 = vunpack.c.h.b16 %v2200
    %v3712 = vunpack.c.l.b16 %v2201
    %v3713 = vunpack.c.h.b16 %v2201
    %v3714 = vunpack.c.l.b16 %v2202
    %v3715 = vunpack.c.h.b16 %v2202
    %v3716 = vunpack.c.l.b16 %v2203
    %v3717 = vunpack.c.h.b16 %v2203
    %v3718 = vunpack.c.l.b16 %v2204
    %v3719 = vunpack.c.h.b16 %v2204
    %v3720 = vunpack.c.l.b16 %v2205
    %v3721 = vunpack.c.h.b16 %v2205
    %v3722 = vunpack.c.l.b16 %v2206
    %v3723 = vunpack.c.h.b16 %v2206
    %v3724 = vunpack.c.l.b16 %v2207
    %v3725 = vunpack.c.h.b16 %v2207
    %v3726 = vunpack.c.l.b16 %v2208
    %v3727 = vunpack.c.h.b16 %v2208
    %v3728 = vunpack.c.l.b16 %v2209
    %v3729 = vunpack.c.h.b16 %v2209
    %v3730 = vunpack.c.l.b16 %v2210
    %v3731 = vunpack.c.h.b16 %v2210
    %v3732 = vunpack.c.l.b16 %v2211
    %v3733 = vunpack.c.h.b16 %v2211
    %v3734 = vunpack.c.l.b16 %v2212
    %v3735 = vunpack.c.h.b16 %v2212
    %v3736 = vunpack.c.l.b16 %v2213
    %v3737 = vunpack.c.h.b16 %v2213
    %v3738 = vunpack.c.l.b16 %v2214
    %v3739 = vunpack.c.h.b16 %v2214
    %v3740 = vunpack.c.l.b16 %v2215
    %v3741 = vunpack.c.h.b16 %v2215
    %v3742 = vunpack.c.l.b16 %v2216
    %v3743 = vunpack.c.h.b16 %v2216
    %v3744 = vunpack.c.l.b16 %v2217
    %v3745 = vunpack.c.h.b16 %v2217
    %v3746 = vunpack.c.l.b16 %v2218
    %v3747 = vunpack.c.h.b16 %v2218
    %v3748 = vunpack.c.l.b16 %v2219
    %v3749 = vunpack.c.h.b16 %v2219
    %v3750 = vunpack.c.l.b16 %v2220
    %v3751 = vunpack.c.h.b16 %v2220
    %v3752 = vunpack.c.l.b16 %v2221
    %v3753 = vunpack.c.h.b16 %v2221
    %v3754 = vunpack.c.l.b16 %v2222
    %v3755 = vunpack.c.h.b16 %v2222
    %v3756 = vunpack.c.l.b16 %v2223
    %v3757 = vunpack.c.h.b16 %v2223
    %v3758 = vunpack.c.l.b16 %v2224
    %v3759 = vunpack.c.h.b16 %v2224
    %v3760 = vunpack.c.l.b16 %v2225
    %v3761 = vunpack.c.h.b16 %v2225
    %v3762 = vunpack.c.l.b16 %v2226
    %v3763 = vunpack.c.h.b16 %v2226
    %v3764 = vunpack.c.l.b16 %v2227
    %v3765 = vunpack.c.h.b16 %v2227
    %v3766 = vunpack.c.l.b16 %v2228
    %v3767 = vunpack.c.h.b16 %v2228
    %v3768 = vunpack.c.l.b16 %v2229
    %v3769 = vunpack.c.h.b16 %v2229
    %v3770 = vunpack.c.l.b16 %v2230
    %v3771 = vunpack.c.h.b16 %v2230
    %v3772 = vunpack.c.l.b16 %v2231
    %v3773 = vunpack.c.h.b16 %v2231
    %v3774 = vunpack.c.l.b16 %v2232
    %v3775 = vunpack.c.h.b16 %v2232
    %v3776 = vunpack.c.l.b16 %v2233
    %v3777 = vunpack.c.h.b16 %v2233
    %v3778 = vunpack.c.l.b16 %v2234
    %v3779 = vunpack.c.h.b16 %v2234
    %v3780 = vunpack.c.l.b16 %v2235
    %v3781 = vunpack.c.h.b16 %v2235
    %v3782 = vunpack.c.l.b16 %v2236
    %v3783 = vunpack.c.h.b16 %v2236
    %v3784 = vunpack.c.l.b16 %v2237
    %v3785 = vunpack.c.h.b16 %v2237
    %v3786 = vunpack.c.l.b16 %v2238
    %v3787 = vunpack.c.h.b16 %v2238
    %v3788 = vunpack.c.l.b16 %v2239
    %v3789 = vunpack.c.h.b16 %v2239
    %v3790 = vunpack.c.l.b16 %v2240
    %v3791 = vunpack.c.h.b16 %v2240
    %v3792 = vunpack.c.l.b16 %v2241
    %v3793 = vunpack.c.h.b16 %v2241
    %v3794 = vunpack.c.l.b16 %v2242
    %v3795 = vunpack.c.h.b16 %v2242
    %v3796 = vunpack.c.l.b16 %v2243
    %v3797 = vunpack.c.h.b16 %v2243
    %v3798 = vunpack.c.l.b16 %v2244
    %v3799 = vunpack.c.h.b16 %v2244
    %v3800 = vunpack.c.l.b16 %v2245
    %v3801 = vunpack.c.h.b16 %v2245
    %v3802 = vunpack.c.l.b16 %v2246
    %v3803 = vunpack.c.h.b16 %v2246
    %v3804 = vunpack.c.l.b16 %v2247
    %v3805 = vunpack.c.h.b16 %v2247
    %v3806 = vunpack.c.l.b16 %v2248
    %v3807 = vunpack.c.h.b16 %v2248
    %v3808 = vunpack.c.l.b16 %v2249
    %v3809 = vunpack.c.h.b16 %v2249
    %v3810 = vunpack.c.l.b16 %v2250
    %v3811 = vunpack.c.h.b16 %v2250
    %v3812 = vunpack.c.l.b16 %v2251
    %v3813 = vunpack.c.h.b16 %v2251
    %v3814 = vunpack.c.l.b16 %v2252
    %v3815 = vunpack.c.h.b16 %v2252
    %v3816 = vunpack.c.l.b16 %v2253
    %v3817 = vunpack.c.h.b16 %v2253
    %v3818 = vunpack.c.l.b16 %v2254
    %v3819 = vunpack.c.h.b16 %v2254
    %v3820 = vunpack.c.l.b16 %v2255
    %v3821 = vunpack.c.h.b16 %v2255
    %v3822 = vunpack.c.l.b16 %v2256
    %v3823 = vunpack.c.h.b16 %v2256
    %v3824 = vunpack.c.l.b16 %v2257
    %v3825 = vunpack.c.h.b16 %v2257
    %v3826 = vunpack.c.l.b16 %v2258
    %v3827 = vunpack.c.h.b16 %v2258
    %v3828 = vunpack.c.l.b16 %v2259
    %v3829 = vunpack.c.h.b16 %v2259
    %v3830 = vunpack.c.l.b16 %v2260
    %v3831 = vunpack.c.h.b16 %v2260
    %v3832 = vunpack.c.l.b16 %v2261
    %v3833 = vunpack.c.h.b16 %v2261
    %v3834 = vunpack.c.l.b16 %v2262
    %v3835 = vunpack.c.h.b16 %v2262
    %v3836 = vunpack.c.l.b16 %v2263
    %v3837 = vunpack.c.h.b16 %v2263
    %v3838 = vunpack.c.l.b16 %v2264
    %v3839 = vunpack.c.h.b16 %v2264
    %v3840 = vunpack.c.l.b16 %v2265
    %v3841 = vunpack.c.h.b16 %v2265
    %v3842 = vunpack.c.l.b16 %v2266
    %v3843 = vunpack.c.h.b16 %v2266
    %v3844 = vunpack.c.l.b16 %v2267
    %v3845 = vunpack.c.h.b16 %v2267
    %v3846 = vunpack.c.l.b16 %v2268
    %v3847 = vunpack.c.h.b16 %v2268
    %v3848 = vunpack.c.l.b16 %v2269
    %v3849 = vunpack.c.h.b16 %v2269
    %v3850 = vunpack.c.l.b16 %v2270
    %v3851 = vunpack.c.h.b16 %v2270
    %v3852 = vunpack.c.l.b16 %v2271
    %v3853 = vunpack.c.h.b16 %v2271
    %v3854 = vunpack.c.l.b16 %v2272
    %v3855 = vunpack.c.h.b16 %v2272
    %v3856 = vunpack.c.l.b16 %v2273
    %v3857 = vunpack.c.h.b16 %v2273
    %v3858 = vunpack.c.l.b16 %v2274
    %v3859 = vunpack.c.h.b16 %v2274
    %v3860 = vunpack.c.l.b16 %v2275
    %v3861 = vunpack.c.h.b16 %v2275
    %v3862 = vunpack.c.l.b16 %v2276
    %v3863 = vunpack.c.h.b16 %v2276
    %v3864 = vunpack.c.l.b16 %v2277
    %v3865 = vunpack.c.h.b16 %v2277
    %v3866 = vunpack.c.l.b16 %v2278
    %v3867 = vunpack.c.h.b16 %v2278
    %v3868 = vunpack.c.l.b16 %v2279
    %v3869 = vunpack.c.h.b16 %v2279
    %v3870 = vunpack.c.l.b16 %v2280
    %v3871 = vunpack.c.h.b16 %v2280
    %v3872 = vunpack.c.l.b16 %v2281
    %v3873 = vunpack.c.h.b16 %v2281
    %v3874 = vunpack.c.l.b16 %v2282
    %v3875 = vunpack.c.h.b16 %v2282
    %v3876 = vunpack.c.l.b16 %v2283
    %v3877 = vunpack.c.h.b16 %v2283
    %v3878 = vunpack.c.l.b16 %v2284
    %v3879 = vunpack.c.h.b16 %v2284
    %v3880 = vunpack.c.l.b16 %v2285
    %v3881 = vunpack.c.h.b16 %v2285
    %v3882 = vunpack.c.l.b16 %v2286
    %v3883 = vunpack.c.h.b16 %v2286
    %v3884 = vunpack.c.l.b16 %v2287
    %v3885 = vunpack.c.h.b16 %v2287
    %v3886 = vunpack.c.l.b16 %v2288
    %v3887 = vunpack.c.h.b16 %v2288
    %v3888 = vunpack.c.l.b16 %v2289
    %v3889 = vunpack.c.h.b16 %v2289
    %v3890 = vunpack.c.l.b16 %v2290
    %v3891 = vunpack.c.h.b16 %v2290
    %v3892 = vunpack.c.l.b16 %v2291
    %v3893 = vunpack.c.h.b16 %v2291
    %v3894 = vunpack.c.l.b16 %v2292
    %v3895 = vunpack.c.h.b16 %v2292
    %v3896 = vunpack.c.l.b16 %v2293
    %v3897 = vunpack.c.h.b16 %v2293
    %v3898 = vunpack.c.l.b16 %v2294
    %v3899 = vunpack.c.h.b16 %v2294
    %v3900 = vunpack.c.l.b16 %v2295
    %v3901 = vunpack.c.h.b16 %v2295
    %v3902 = vunpack.c.l.b16 %v2296
    %v3903 = vunpack.c.h.b16 %v2296
    %v3904 = vunpack.c.l.b16 %v2297
    %v3905 = vunpack.c.h.b16 %v2297
    %v3906 = vunpack.c.l.b16 %v2298
    %v3907 = vunpack.c.h.b16 %v2298
    %v3908 = vunpack.c.l.b16 %v2299
    %v3909 = vunpack.c.h.b16 %v2299
    %v3910 = vunpack.c.l.b16 %v2300
    %v3911 = vunpack.c.h.b16 %v2300
    %v3912 = vunpack.c.l.b16 %v2301
    %v3913 = vunpack.c.h.b16 %v2301
    %v3914 = vunpack.c.l.b16 %v2302
    %v3915 = vunpack.c.h.b16 %v2302
    %v3916 = vunpack.c.l.b16 %v2303
    %v3917 = vunpack.c.h.b16 %v2303
    %v3918 = vunpack.c.l.b16 %v2304
    %v3919 = vunpack.c.h.b16 %v2304
    %v3920 = vunpack.c.l.b16 %v2305
    %v3921 = vunpack.c.h.b16 %v2305
    %v3922 = vunpack.c.l.b16 %v2306
    %v3923 = vunpack.c.h.b16 %v2306
    %v3924 = vunpack.c.l.b16 %v2307
    %v3925 = vunpack.c.h.b16 %v2307
    %v3926 = vunpack.c.l.b16 %v2308
    %v3927 = vunpack.c.h.b16 %v2308
    %v3928 = vunpack.c.l.b16 %v2309
    %v3929 = vunpack.c.h.b16 %v2309
    %v3930 = vpack.c.b16 %v2922, %v2906
    %v3931 = vpack.c.b16 %v2923, %v2907
    %v3932 = vpack.c.b16 %v2924, %v2908
    %v3933 = vpack.c.b16 %v2925, %v2909
    %v3934 = vpack.c.b16 %v2926, %v2910
    %v3935 = vpack.c.b16 %v2927, %v2911
    %v3936 = vpack.c.b16 %v2928, %v2912
    %v3937 = vpack.c.b16 %v2929, %v2913
    %v3938 = vpack.c.b16 %v2930, %v2914
    %v3939 = vpack.c.b16 %v2931, %v2915
    %v3940 = vpack.c.b16 %v2932, %v2916
    %v3941 = vpack.c.b16 %v2933, %v2917
    %v3942 = vpack.c.b16 %v2934, %v2918
    %v3943 = vpack.c.b16 %v2935, %v2919
    %v3944 = vpack.c.b16 %v2936, %v2920
    %v3945 = vpack.c.b16 %v2937, %v2921
    %v3946 = vpack.c.b16 %v2954, %v2938
    %v3947 = vpack.c.b16 %v2955, %v2939
    %v3948 = vpack.c.b16 %v2956, %v2940
    %v3949 = vpack.c.b16 %v2957, %v2941
    %v3950 = vpack.c.b16 %v2958, %v2942
    %v3951 = vpack.c.b16 %v2959, %v2943
    %v3952 = vpack.c.b16 %v2960, %v2944
    %v3953 = vpack.c.b16 %v2961, %v2945
    %v3954 = vpack.c.b16 %v2962, %v2946
    %v3955 = vpack.c.b16 %v2963, %v2947
    %v3956 = vpack.c.b16 %v2964, %v2948
    %v3957 = vpack.c.b16 %v2965, %v2949
    %v3958 = vpack.c.b16 %v2966, %v2950
    %v3959 = vpack.c.b16 %v2967, %v2951
    %v3960 = vpack.c.b16 %v2968, %v2952
    %v3961 = vpack.c.b16 %v2969, %v2953
    %v3962 = vpack.c.b16 %v2986, %v2970
    %v3963 = vpack.c.b16 %v2987, %v2971
    %v3964 = vpack.c.b16 %v2988, %v2972
    %v3965 = vpack.c.b16 %v2989, %v2973
    %v3966 = vpack.c.b16 %v2990, %v2974
    %v3967 = vpack.c.b16 %v2991, %v2975
    %v3968 = vpack.c.b16 %v2992, %v2976
    %v3969 = vpack.c.b16 %v2993, %v2977
    %v3970 = vpack.c.b16 %v2994, %v2978
    %v3971 = vpack.c.b16 %v2995, %v2979
    %v3972 = vpack.c.b16 %v2996, %v2980
    %v3973 = vpack.c.b16 %v2997, %v2981
    %v3974 = vpack.c.b16 %v2998, %v2982
    %v3975 = vpack.c.b16 %v2999, %v2983
    %v3976 = vpack.c.b16 %v3000, %v2984
    %v3977 = vpack.c.b16 %v3001, %v2985
    %v3978 = vpack.c.b16 %v3018, %v3002
    %v3979 = vpack.c.b16 %v3019, %v3003
    %v3980 = vpack.c.b16 %v3020, %v3004
    %v3981 = vpack.c.b16 %v3021, %v3005
    %v3982 = vpack.c.b16 %v3022, %v3006
    %v3983 = vpack.c.b16 %v3023, %v3007
    %v3984 = vpack.c.b16 %v3024, %v3008
    %v3985 = vpack.c.b16 %v3025, %v3009
    %v3986 = vpack.c.b16 %v3026, %v3010
    %v3987 = vpack.c.b16 %v3027, %v3011
    %v3988 = vpack.c.b16 %v3028, %v3012
    %v3989 = vpack.c.b16 %v3029, %v3013
    %v3990 = vpack.c.b16 %v3030, %v3014
    %v3991 = vpack.c.b16 %v3031, %v3015
    %v3992 = vpack.c.b16 %v3032, %v3016
    %v3993 = vpack.c.b16 %v3033, %v3017
    %v3994 = vpack.c.b16 %v3050, %v3034
    %v3995 = vpack.c.b16 %v3051, %v3035
    %v3996 = vpack.c.b16 %v3052, %v3036
    %v3997 = vpack.c.b16 %v3053, %v3037
    %v3998 = vpack.c.b16 %v3054, %v3038
    %v3999 = vpack.c.b16 %v3055, %v3039
    %v4000 = vpack.c.b16 %v3056, %v3040
    %v4001 = vpack.c.b16 %v3057, %v3041
    %v4002 = vpack.c.b16 %v3058, %v3042
    %v4003 = vpack.c.b16 %v3059, %v3043
    %v4004 = vpack.c.b16 %v3060, %v3044
    %v4005 = vpack.c.b16 %v3061, %v3045
    %v4006 = vpack.c.b16 %v3062, %v3046
    %v4007 = vpack.c.b16 %v3063, %v3047
    %v4008 = vpack.c.b16 %v3064, %v3048
    %v4009 = vpack.c.b16 %v3065, %v3049
    %v4010 = vpack.c.b16 %v3082, %v3066
    %v4011 = vpack.c.b16 %v3083, %v3067
    %v4012 = vpack.c.b16 %v3084, %v3068
    %v4013 = vpack.c.b16 %v3085, %v3069
    %v4014 = vpack.c.b16 %v3086, %v3070
    %v4015 = vpack.c.b16 %v3087, %v3071
    %v4016 = vpack.c.b16 %v3088, %v3072
    %v4017 = vpack.c.b16 %v3089, %v3073
    %v4018 = vpack.c.b16 %v3090, %v3074
    %v4019 = vpack.c.b16 %v3091, %v3075
    %v4020 = vpack.c.b16 %v3092, %v3076
    %v4021 = vpack.c.b16 %v3093, %v3077
    %v4022 = vpack.c.b16 %v3094, %v3078
    %v4023 = vpack.c.b16 %v3095, %v3079
    %v4024 = vpack.c.b16 %v3096, %v3080
    %v4025 = vpack.c.b16 %v3097, %v3081
    %v4026 = vpack.c.b16 %v3114, %v3098
    %v4027 = vpack.c.b16 %v3115, %v3099
    %v4028 = vpack.c.b16 %v3116, %v3100
    %v4029 = vpack.c.b16 %v3117, %v3101
    %v4030 = vpack.c.b16 %v3118, %v3102
    %v4031 = vpack.c.b16 %v3119, %v3103
    %v4032 = vpack.c.b16 %v3120, %v3104
    %v4033 = vpack.c.b16 %v3121, %v3105
    %v4034 = vpack.c.b16 %v3122, %v3106
    %v4035 = vpack.c.b16 %v3123, %v3107
    %v4036 = vpack.c.b16 %v3124, %v3108
    %v4037 = vpack.c.b16 %v3125, %v3109
    %v4038 = vpack.c.b16 %v3126, %v3110
    %v4039 = vpack.c.b16 %v3127, %v3111
    %v4040 = vpack.c.b16 %v3128, %v3112
    %v4041 = vpack.c.b16 %v3129, %v3113
    %v4042 = vpack.c.b16 %v3146, %v3130
    %v4043 = vpack.c.b16 %v3147, %v3131
    %v4044 = vpack.c.b16 %v3148, %v3132
    %v4045 = vpack.c.b16 %v3149, %v3133
    %v4046 = vpack.c.b16 %v3150, %v3134
    %v4047 = vpack.c.b16 %v3151, %v3135
    %v4048 = vpack.c.b16 %v3152, %v3136
    %v4049 = vpack.c.b16 %v3153, %v3137
    %v4050 = vpack.c.b16 %v3154, %v3138
    %v4051 = vpack.c.b16 %v3155, %v3139
    %v4052 = vpack.c.b16 %v3156, %v3140
    %v4053 = vpack.c.b16 %v3157, %v3141
    %v4054 = vpack.c.b16 %v3158, %v3142
    %v4055 = vpack.c.b16 %v3159, %v3143
    %v4056 = vpack.c.b16 %v3160, %v3144
    %v4057 = vpack.c.b16 %v3161, %v3145
    %v4058 = vpack.c.b16 %v3178, %v3162
    %v4059 = vpack.c.b16 %v3179, %v3163
    %v4060 = vpack.c.b16 %v3180, %v3164
    %v4061 = vpack.c.b16 %v3181, %v3165
    %v4062 = vpack.c.b16 %v3182, %v3166
    %v4063 = vpack.c.b16 %v3183, %v3167
    %v4064 = vpack.c.b16 %v3184, %v3168
    %v4065 = vpack.c.b16 %v3185, %v3169
    %v4066 = vpack.c.b16 %v3186, %v3170
    %v4067 = vpack.c.b16 %v3187, %v3171
    %v4068 = vpack.c.b16 %v3188, %v3172
    %v4069 = vpack.c.b16 %v3189, %v3173
    %v4070 = vpack.c.b16 %v3190, %v3174
    %v4071 = vpack.c.b16 %v3191, %v3175
    %v4072 = vpack.c.b16 %v3192, %v3176
    %v4073 = vpack.c.b16 %v3193, %v3177
    %v4074 = vpack.c.b16 %v3210, %v3194
    %v4075 = vpack.c.b16 %v3211, %v3195
    %v4076 = vpack.c.b16 %v3212, %v3196
    %v4077 = vpack.c.b16 %v3213, %v3197
    %v4078 = vpack.c.b16 %v3214, %v3198
    %v4079 = vpack.c.b16 %v3215, %v3199
    %v4080 = vpack.c.b16 %v3216, %v3200
    %v4081 = vpack.c.b16 %v3217, %v3201
    %v4082 = vpack.c.b16 %v3218, %v3202
    %v4083 = vpack.c.b16 %v3219, %v3203
    %v4084 = vpack.c.b16 %v3220, %v3204
    %v4085 = vpack.c.b16 %v3221, %v3205
    %v4086 = vpack.c.b16 %v3222, %v3206
    %v4087 = vpack.c.b16 %v3223, %v3207
    %v4088 = vpack.c.b16 %v3224, %v3208
    %v4089 = vpack.c.b16 %v3225, %v3209
    %v4090 = vpack.c.b16 %v3242, %v3226
    %v4091 = vpack.c.b16 %v3243, %v3227
    %v4092 = vpack.c.b16 %v3244, %v3228
    %v4093 = vpack.c.b16 %v3245, %v3229
    %v4094 = vpack.c.b16 %v3246, %v3230
    %v4095 = vpack.c.b16 %v3247, %v3231
    %v4096 = vpack.c.b16 %v3248, %v3232
    %v4097 = vpack.c.b16 %v3249, %v3233
    %v4098 = vpack.c.b16 %v3250, %v3234
    %v4099 = vpack.c.b16 %v3251, %v3235
    %v4100 = vpack.c.b16 %v3252, %v3236
    %v4101 = vpack.c.b16 %v3253, %v3237
    %v4102 = vpack.c.b16 %v3254, %v3238
    %v4103 = vpack.c.b16 %v3255, %v3239
    %v4104 = vpack.c.b16 %v3256, %v3240
    %v4105 = vpack.c.b16 %v3257, %v3241
    %v4106 = vpack.c.b16 %v3274, %v3258
    %v4107 = vpack.c.b16 %v3275, %v3259
    %v4108 = vpack.c.b16 %v3276, %v3260
    %v4109 = vpack.c.b16 %v3277, %v3261
    %v4110 = vpack.c.b16 %v3278, %v3262
    %v4111 = vpack.c.b16 %v3279, %v3263
    %v4112 = vpack.c.b16 %v3280, %v3264
    %v4113 = vpack.c.b16 %v3281, %v3265
    %v4114 = vpack.c.b16 %v3282, %v3266
    %v4115 = vpack.c.b16 %v3283, %v3267
    %v4116 = vpack.c.b16 %v3284, %v3268
    %v4117 = vpack.c.b16 %v3285, %v3269
    %v4118 = vpack.c.b16 %v3286, %v3270
    %v4119 = vpack.c.b16 %v3287, %v3271
    %v4120 = vpack.c.b16 %v3288, %v3272
    %v4121 = vpack.c.b16 %v3289, %v3273
    %v4122 = vpack.c.b16 %v3306, %v3290
    %v4123 = vpack.c.b16 %v3307, %v3291
    %v4124 = vpack.c.b16 %v3308, %v3292
    %v4125 = vpack.c.b16 %v3309, %v3293
    %v4126 = vpack.c.b16 %v3310, %v3294
    %v4127 = vpack.c.b16 %v3311, %v3295
    %v4128 = vpack.c.b16 %v3312, %v3296
    %v4129 = vpack.c.b16 %v3313, %v3297
    %v4130 = vpack.c.b16 %v3314, %v3298
    %v4131 = vpack.c.b16 %v3315, %v3299
    %v4132 = vpack.c.b16 %v3316, %v3300
    %v4133 = vpack.c.b16 %v3317, %v3301
    %v4134 = vpack.c.b16 %v3318, %v3302
    %v4135 = vpack.c.b16 %v3319, %v3303
    %v4136 = vpack.c.b16 %v3320, %v3304
    %v4137 = vpack.c.b16 %v3321, %v3305
    %v4138 = vpack.c.b16 %v3338, %v3322
    %v4139 = vpack.c.b16 %v3339, %v3323
    %v4140 = vpack.c.b16 %v3340, %v3324
    %v4141 = vpack.c.b16 %v3341, %v3325
    %v4142 = vpack.c.b16 %v3342, %v3326
    %v4143 = vpack.c.b16 %v3343, %v3327
    %v4144 = vpack.c.b16 %v3344, %v3328
    %v4145 = vpack.c.b16 %v3345, %v3329
    %v4146 = vpack.c.b16 %v3346, %v3330
    %v4147 = vpack.c.b16 %v3347, %v3331
    %v4148 = vpack.c.b16 %v3348, %v3332
    %v4149 = vpack.c.b16 %v3349, %v3333
    %v4150 = vpack.c.b16 %v3350, %v3334
    %v4151 = vpack.c.b16 %v3351, %v3335
    %v4152 = vpack.c.b16 %v3352, %v3336
    %v4153 = vpack.c.b16 %v3353, %v3337
    %v4154 = vpack.c.b16 %v3370, %v3354
    %v4155 = vpack.c.b16 %v3371, %v3355
    %v4156 = vpack.c.b16 %v3372, %v3356
    %v4157 = vpack.c.b16 %v3373, %v3357
    %v4158 = vpack.c.b16 %v3374, %v3358
    %v4159 = vpack.c.b16 %v3375, %v3359
    %v4160 = vpack.c.b16 %v3376, %v3360
    %v4161 = vpack.c.b16 %v3377, %v3361
    %v4162 = vpack.c.b16 %v3378, %v3362
    %v4163 = vpack.c.b16 %v3379, %v3363
    %v4164 = vpack.c.b16 %v3380, %v3364
    %v4165 = vpack.c.b16 %v3381, %v3365
    %v4166 = vpack.c.b16 %v3382, %v3366
    %v4167 = vpack.c.b16 %v3383, %v3367
    %v4168 = vpack.c.b16 %v3384, %v3368
    %v4169 = vpack.c.b16 %v3385, %v3369
    %v4170 = vpack.c.b16 %v3402, %v3386
    %v4171 = vpack.c.b16 %v3403, %v3387
    %v4172 = vpack.c.b16 %v3404, %v3388
    %v4173 = vpack.c.b16 %v3405, %v3389
    %v4174 = vpack.c.b16 %v3406, %v3390
    %v4175 = vpack.c.b16 %v3407, %v3391
    %v4176 = vpack.c.b16 %v3408, %v3392
    %v4177 = vpack.c.b16 %v3409, %v3393
    %v4178 = vpack.c.b16 %v3410, %v3394
    %v4179 = vpack.c.b16 %v3411, %v3395
    %v4180 = vpack.c.b16 %v3412, %v3396
    %v4181 = vpack.c.b16 %v3413, %v3397
    %v4182 = vpack.c.b16 %v3414, %v3398
    %v4183 = vpack.c.b16 %v3415, %v3399
    %v4184 = vpack.c.b16 %v3416, %v3400
    %v4185 = vpack.c.b16 %v3417, %v3401
    %v4186 = vpack.c.b16 %v3434, %v3418
    %v4187 = vpack.c.b16 %v3435, %v3419
    %v4188 = vpack.c.b16 %v3436, %v3420
    %v4189 = vpack.c.b16 %v3437, %v3421
    %v4190 = vpack.c.b16 %v3438, %v3422
    %v4191 = vpack.c.b16 %v3439, %v3423
    %v4192 = vpack.c.b16 %v3440, %v3424
    %v4193 = vpack.c.b16 %v3441, %v3425
    %v4194 = vpack.c.b16 %v3442, %v3426
    %v4195 = vpack.c.b16 %v3443, %v3427
    %v4196 = vpack.c.b16 %v3444, %v3428
    %v4197 = vpack.c.b16 %v3445, %v3429
    %v4198 = vpack.c.b16 %v3446, %v3430
    %v4199 = vpack.c.b16 %v3447, %v3431
    %v4200 = vpack.c.b16 %v3448, %v3432
    %v4201 = vpack.c.b16 %v3449, %v3433
    %v4202 = vpack.c.b16 %v3466, %v3450
    %v4203 = vpack.c.b16 %v3467, %v3451
    %v4204 = vpack.c.b16 %v3468, %v3452
    %v4205 = vpack.c.b16 %v3469, %v3453
    %v4206 = vpack.c.b16 %v3470, %v3454
    %v4207 = vpack.c.b16 %v3471, %v3455
    %v4208 = vpack.c.b16 %v3472, %v3456
    %v4209 = vpack.c.b16 %v3473, %v3457
    %v4210 = vpack.c.b16 %v3474, %v3458
    %v4211 = vpack.c.b16 %v3475, %v3459
    %v4212 = vpack.c.b16 %v3476, %v3460
    %v4213 = vpack.c.b16 %v3477, %v3461
    %v4214 = vpack.c.b16 %v3478, %v3462
    %v4215 = vpack.c.b16 %v3479, %v3463
    %v4216 = vpack.c.b16 %v3480, %v3464
    %v4217 = vpack.c.b16 %v3481, %v3465
    %v4218 = vpack.c.b16 %v3498, %v3482
    %v4219 = vpack.c.b16 %v3499, %v3483
    %v4220 = vpack.c.b16 %v3500, %v3484
    %v4221 = vpack.c.b16 %v3501, %v3485
    %v4222 = vpack.c.b16 %v3502, %v3486
    %v4223 = vpack.c.b16 %v3503, %v3487
    %v4224 = vpack.c.b16 %v3504, %v3488
    %v4225 = vpack.c.b16 %v3505, %v3489
    %v4226 = vpack.c.b16 %v3506, %v3490
    %v4227 = vpack.c.b16 %v3507, %v3491
    %v4228 = vpack.c.b16 %v3508, %v3492
    %v4229 = vpack.c.b16 %v3509, %v3493
    %v4230 = vpack.c.b16 %v3510, %v3494
    %v4231 = vpack.c.b16 %v3511, %v3495
    %v4232 = vpack.c.b16 %v3512, %v3496
    %v4233 = vpack.c.b16 %v3513, %v3497
    %v4234 = vpack.c.b16 %v3530, %v3514
    %v4235 = vpack.c.b16 %v3531, %v3515
    %v4236 = vpack.c.b16 %v3532, %v3516
    %v4237 = vpack.c.b16 %v3533, %v3517
    %v4238 = vpack.c.b16 %v3534, %v3518
    %v4239 = vpack.c.b16 %v3535, %v3519
    %v4240 = vpack.c.b16 %v3536, %v3520
    %v4241 = vpack.c.b16 %v3537, %v3521
    %v4242 = vpack.c.b16 %v3538, %v3522
    %v4243 = vpack.c.b16 %v3539, %v3523
    %v4244 = vpack.c.b16 %v3540, %v3524
    %v4245 = vpack.c.b16 %v3541, %v3525
    %v4246 = vpack.c.b16 %v3542, %v3526
    %v4247 = vpack.c.b16 %v3543, %v3527
    %v4248 = vpack.c.b16 %v3544, %v3528
    %v4249 = vpack.c.b16 %v3545, %v3529
    %v4250 = vpack.c.b16 %v3562, %v3546
    %v4251 = vpack.c.b16 %v3563, %v3547
    %v4252 = vpack.c.b16 %v3564, %v3548
    %v4253 = vpack.c.b16 %v3565, %v3549
    %v4254 = vpack.c.b16 %v3566, %v3550
    %v4255 = vpack.c.b16 %v3567, %v3551
    %v4256 = vpack.c.b16 %v3568, %v3552
    %v4257 = vpack.c.b16 %v3569, %v3553
    %v4258 = vpack.c.b16 %v3570, %v3554
    %v4259 = vpack.c.b16 %v3571, %v3555
    %v4260 = vpack.c.b16 %v3572, %v3556
    %v4261 = vpack.c.b16 %v3573, %v3557
    %v4262 = vpack.c.b16 %v3574, %v3558
    %v4263 = vpack.c.b16 %v3575, %v3559
    %v4264 = vpack.c.b16 %v3576, %v3560
    %v4265 = vpack.c.b16 %v3577, %v3561
    %v4266 = vpack.c.b16 %v3594, %v3578
    %v4267 = vpack.c.b16 %v3595, %v3579
    %v4268 = vpack.c.b16 %v3596, %v3580
    %v4269 = vpack.c.b16 %v3597, %v3581
    %v4270 = vpack.c.b16 %v3598, %v3582
    %v4271 = vpack.c.b16 %v3599, %v3583
    %v4272 = vpack.c.b16 %v3600, %v3584
    %v4273 = vpack.c.b16 %v3601, %v3585
    %v4274 = vpack.c.b16 %v3602, %v3586
    %v4275 = vpack.c.b16 %v3603, %v3587
    %v4276 = vpack.c.b16 %v3604, %v3588
    %v4277 = vpack.c.b16 %v3605, %v3589
    %v4278 = vpack.c.b16 %v3606, %v3590
    %v4279 = vpack.c.b16 %v3607, %v3591
    %v4280 = vpack.c.b16 %v3608, %v3592
    %v4281 = vpack.c.b16 %v3609, %v3593
    %v4282 = vpack.c.b16 %v3626, %v3610
    %v4283 = vpack.c.b16 %v3627, %v3611
    %v4284 = vpack.c.b16 %v3628, %v3612
    %v4285 = vpack.c.b16 %v3629, %v3613
    %v4286 = vpack.c.b16 %v3630, %v3614
    %v4287 = vpack.c.b16 %v3631, %v3615
    %v4288 = vpack.c.b16 %v3632, %v3616
    %v4289 = vpack.c.b16 %v3633, %v3617
    %v4290 = vpack.c.b16 %v3634, %v3618
    %v4291 = vpack.c.b16 %v3635, %v3619
    %v4292 = vpack.c.b16 %v3636, %v3620
    %v4293 = vpack.c.b16 %v3637, %v3621
    %v4294 = vpack.c.b16 %v3638, %v3622
    %v4295 = vpack.c.b16 %v3639, %v3623
    %v4296 = vpack.c.b16 %v3640, %v3624
    %v4297 = vpack.c.b16 %v3641, %v3625
    %v4298 = vpack.c.b16 %v3658, %v3642
    %v4299 = vpack.c.b16 %v3659, %v3643
    %v4300 = vpack.c.b16 %v3660, %v3644
    %v4301 = vpack.c.b16 %v3661, %v3645
    %v4302 = vpack.c.b16 %v3662, %v3646
    %v4303 = vpack.c.b16 %v3663, %v3647
    %v4304 = vpack.c.b16 %v3664, %v3648
    %v4305 = vpack.c.b16 %v3665, %v3649
    %v4306 = vpack.c.b16 %v3666, %v3650
    %v4307 = vpack.c.b16 %v3667, %v3651
    %v4308 = vpack.c.b16 %v3668, %v3652
    %v4309 = vpack.c.b16 %v3669, %v3653
    %v4310 = vpack.c.b16 %v3670, %v3654
    %v4311 = vpack.c.b16 %v3671, %v3655
    %v4312 = vpack.c.b16 %v3672, %v3656
    %v4313 = vpack.c.b16 %v3673, %v3657
    %v4314 = vpack.c.b16 %v3690, %v3674
    %v4315 = vpack.c.b16 %v3691, %v3675
    %v4316 = vpack.c.b16 %v3692, %v3676
    %v4317 = vpack.c.b16 %v3693, %v3677
    %v4318 = vpack.c.b16 %v3694, %v3678
    %v4319 = vpack.c.b16 %v3695, %v3679
    %v4320 = vpack.c.b16 %v3696, %v3680
    %v4321 = vpack.c.b16 %v3697, %v3681
    %v4322 = vpack.c.b16 %v3698, %v3682
    %v4323 = vpack.c.b16 %v3699, %v3683
    %v4324 = vpack.c.b16 %v3700, %v3684
    %v4325 = vpack.c.b16 %v3701, %v3685
    %v4326 = vpack.c.b16 %v3702, %v3686
    %v4327 = vpack.c.b16 %v3703, %v3687
    %v4328 = vpack.c.b16 %v3704, %v3688
    %v4329 = vpack.c.b16 %v3705, %v3689
    %v4330 = vpack.c.b16 %v3722, %v3706
    %v4331 = vpack.c.b16 %v3723, %v3707
    %v4332 = vpack.c.b16 %v3724, %v3708
    %v4333 = vpack.c.b16 %v3725, %v3709
    %v4334 = vpack.c.b16 %v3726, %v3710
    %v4335 = vpack.c.b16 %v3727, %v3711
    %v4336 = vpack.c.b16 %v3728, %v3712
    %v4337 = vpack.c.b16 %v3729, %v3713
    %v4338 = vpack.c.b16 %v3730, %v3714
    %v4339 = vpack.c.b16 %v3731, %v3715
    %v4340 = vpack.c.b16 %v3732, %v3716
    %v4341 = vpack.c.b16 %v3733, %v3717
    %v4342 = vpack.c.b16 %v3734, %v3718
    %v4343 = vpack.c.b16 %v3735, %v3719
    %v4344 = vpack.c.b16 %v3736, %v3720
    %v4345 = vpack.c.b16 %v3737, %v3721
    %v4346 = vpack.c.b16 %v3754, %v3738
    %v4347 = vpack.c.b16 %v3755, %v3739
    %v4348 = vpack.c.b16 %v3756, %v3740
    %v4349 = vpack.c.b16 %v3757, %v3741
    %v4350 = vpack.c.b16 %v3758, %v3742
    %v4351 = vpack.c.b16 %v3759, %v3743
    %v4352 = vpack.c.b16 %v3760, %v3744
    %v4353 = vpack.c.b16 %v3761, %v3745
    %v4354 = vpack.c.b16 %v3762, %v3746
    %v4355 = vpack.c.b16 %v3763, %v3747
    %v4356 = vpack.c.b16 %v3764, %v3748
    %v4357 = vpack.c.b16 %v3765, %v3749
    %v4358 = vpack.c.b16 %v3766, %v3750
    %v4359 = vpack.c.b16 %v3767, %v3751
    %v4360 = vpack.c.b16 %v3768, %v3752
    %v4361 = vpack.c.b16 %v3769, %v3753
    %v4362 = vpack.c.b16 %v3786, %v3770
    %v4363 = vpack.c.b16 %v3787, %v3771
    %v4364 = vpack.c.b16 %v3788, %v3772
    %v4365 = vpack.c.b16 %v3789, %v3773
    %v4366 = vpack.c.b16 %v3790, %v3774
    %v4367 = vpack.c.b16 %v3791, %v3775
    %v4368 = vpack.c.b16 %v3792, %v3776
    %v4369 = vpack.c.b16 %v3793, %v3777
    %v4370 = vpack.c.b16 %v3794, %v3778
    %v4371 = vpack.c.b16 %v3795, %v3779
    %v4372 = vpack.c.b16 %v3796, %v3780
    %v4373 = vpack.c.b16 %v3797, %v3781
    %v4374 = vpack.c.b16 %v3798, %v3782
    %v4375 = vpack.c.b16 %v3799, %v3783
    %v4376 = vpack.c.b16 %v3800, %v3784
    %v4377 = vpack.c.b16 %v3801, %v3785
    %v4378 = vpack.c.b16 %v3818, %v3802
    %v4379 = vpack.c.b16 %v3819, %v3803
    %v4380 = vpack.c.b16 %v3820, %v3804
    %v4381 = vpack.c.b16 %v3821, %v3805
    %v4382 = vpack.c.b16 %v3822, %v3806
    %v4383 = vpack.c.b16 %v3823, %v3807
    %v4384 = vpack.c.b16 %v3824, %v3808
    %v4385 = vpack.c.b16 %v3825, %v3809
    %v4386 = vpack.c.b16 %v3826, %v3810
    %v4387 = vpack.c.b16 %v3827, %v3811
    %v4388 = vpack.c.b16 %v3828, %v3812
    %v4389 = vpack.c.b16 %v3829, %v3813
    %v4390 = vpack.c.b16 %v3830, %v3814
    %v4391 = vpack.c.b16 %v3831, %v3815
    %v4392 = vpack.c.b16 %v3832, %v3816
    %v4393 = vpack.c.b16 %v3833, %v3817
    %v4394 = vpack.c.b16 %v3850, %v3834
    %v4395 = vpack.c.b16 %v3851, %v3835
    %v4396 = vpack.c.b16 %v3852, %v3836
    %v4397 = vpack.c.b16 %v3853, %v3837
    %v4398 = vpack.c.b16 %v3854, %v3838
    %v4399 = vpack.c.b16 %v3855, %v3839
    %v4400 = vpack.c.b16 %v3856, %v3840
    %v4401 = vpack.c.b16 %v3857, %v3841
    %v4402 = vpack.c.b16 %v3858, %v3842
    %v4403 = vpack.c.b16 %v3859, %v3843
    %v4404 = vpack.c.b16 %v3860, %v3844
    %v4405 = vpack.c.b16 %v3861, %v3845
    %v4406 = vpack.c.b16 %v3862, %v3846
    %v4407 = vpack.c.b16 %v3863, %v3847
    %v4408 = vpack.c.b16 %v3864, %v3848
    %v4409 = vpack.c.b16 %v3865, %v3849
    %v4410 = vpack.c.b16 %v3882, %v3866
    %v4411 = vpack.c.b16 %v3883, %v3867
    %v4412 = vpack.c.b16 %v3884, %v3868
    %v4413 = vpack.c.b16 %v3885, %v3869
    %v4414 = vpack.c.b16 %v3886, %v3870
    %v4415 = vpack.c.b16 %v3887, %v3871
    %v4416 = vpack.c.b16 %v3888, %v3872
    %v4417 = vpack.c.b16 %v3889, %v3873
    %v4418 = vpack.c.b16 %v3890, %v3874
    %v4419 = vpack.c.b16 %v3891, %v3875
    %v4420 = vpack.c.b16 %v3892, %v3876
    %v4421 = vpack.c.b16 %v3893, %v3877
    %v4422 = vpack.c.b16 %v3894, %v3878
    %v4423 = vpack.c.b16 %v3895, %v3879
    %v4424 = vpack.c.b16 %v3896, %v3880
    %v4425 = vpack.c.b16 %v3897, %v3881
    %v4426 = vpack.c.b16 %v3914, %v3898
    %v4427 = vpack.c.b16 %v3915, %v3899
    %v4428 = vpack.c.b16 %v3916, %v3900
    %v4429 = vpack.c.b16 %v3917, %v3901
    %v4430 = vpack.c.b16 %v3918, %v3902
    %v4431 = vpack.c.b16 %v3919, %v3903
    %v4432 = vpack.c.b16 %v3920, %v3904
    %v4433 = vpack.c.b16 %v3921, %v3905
    %v4434 = vpack.c.b16 %v3922, %v3906
    %v4435 = vpack.c.b16 %v3923, %v3907
    %v4436 = vpack.c.b16 %v3924, %v3908
    %v4437 = vpack.c.b16 %v3925, %v3909
    %v4438 = vpack.c.b16 %v3926, %v3910
    %v4439 = vpack.c.b16 %v3927, %v3911
    %v4440 = vpack.c.b16 %v3928, %v3912
    %v4441 = vpack.c.b16 %v3929, %v3913
    %4954 = vmatprep.subr.bf16.mxu0 %v3931
    %4955 = vmatpush1.bf16.msra.mxu0 %v3930
    %4956 = vmatprep.subr.bf16.mxu0 %v3947
    %4957 = vmatpush1.bf16.msra.mxu0 %v3946
    %4958 = vmatprep.subr.bf16.mxu0 %v3963
    %4959 = vmatpush1.bf16.msra.mxu0 %v3962
    %4960 = vmatprep.subr.bf16.mxu0 %v3979
    %4961 = vmatpush1.bf16.msra.mxu0 %v3978
    %4962 = vmatprep.subr.bf16.mxu0 %v3995
    %4963 = vmatpush1.bf16.msra.mxu0 %v3994
    %4964 = vmatprep.subr.bf16.mxu0 %v4011
    %4965 = vmatpush1.bf16.msra.mxu0 %v4010
    %4966 = vmatprep.subr.bf16.mxu0 %v4027
    %4967 = vmatpush1.bf16.msra.mxu0 %v4026
    %4968 = vmatprep.subr.bf16.mxu0 %v4043
    %4969 = vmatpush1.bf16.msra.mxu0 %v4042
    %4970 = vmatprep.subr.bf16.mxu0 %v4059
    %4971 = vmatpush1.bf16.msra.mxu0 %v4058
    %4972 = vmatprep.subr.bf16.mxu0 %v4075
    %4973 = vmatpush1.bf16.msra.mxu0 %v4074
    %4974 = vmatprep.subr.bf16.mxu0 %v4091
    %4975 = vmatpush1.bf16.msra.mxu0 %v4090
    %4976 = vmatprep.subr.bf16.mxu0 %v4107
    %4977 = vmatpush1.bf16.msra.mxu0 %v4106
    %4978 = vmatprep.subr.bf16.mxu0 %v4123
    %4979 = vmatpush1.bf16.msra.mxu0 %v4122
    %4980 = vmatprep.subr.bf16.mxu0 %v4139
    %4981 = vmatpush1.bf16.msra.mxu0 %v4138
    %4982 = vmatprep.subr.bf16.mxu0 %v4155
    %4983 = vmatpush1.bf16.msra.mxu0 %v4154
    %4984 = vmatprep.subr.bf16.mxu0 %v4171
    %4985 = vmatpush1.bf16.msra.mxu0 %v4170
    %4986 = vmatprep.mubr.bf16.mxu0 %v1795
    %4987 = vmatmul.mubr.bf16.gmra.mrb[0].mxu0 %v1794
    %v4988 = vpop.f32.mrb[0].mxu0
    %v4989 = vadd.f32 %v2317, %v4988
    %v4990 = vpop.f32.mrb[0].mxu0
    %v4991 = vadd.f32 %v2321, %v4990
    %v4992 = vpop.f32.mrb[0].mxu0
    %v4993 = vadd.f32 %v2317, %v4992
    %v4994 = vpop.f32.mrb[0].mxu0
    %v4995 = vadd.f32 %v2321, %v4994
    %4996 = vdwg.mxu0
    %4997 = vmatprep.subr.bf16.mxu0 %v4187
    %4998 = vmatpush1.bf16.msra.mxu0 %v4186
    %4999 = vmatprep.subr.bf16.mxu0 %v4203
    %5000 = vmatpush1.bf16.msra.mxu0 %v4202
    %5001 = vmatprep.subr.bf16.mxu0 %v4219
    %5002 = vmatpush1.bf16.msra.mxu0 %v4218
    %5003 = vmatprep.subr.bf16.mxu0 %v4235
    %5004 = vmatpush1.bf16.msra.mxu0 %v4234
    %5005 = vmatprep.subr.bf16.mxu0 %v4251
    %5006 = vmatpush1.bf16.msra.mxu0 %v4250
    %5007 = vmatprep.subr.bf16.mxu0 %v4267
    %5008 = vmatpush1.bf16.msra.mxu0 %v4266
    %5009 = vmatprep.subr.bf16.mxu0 %v4283
    %5010 = vmatpush1.bf16.msra.mxu0 %v4282
    %5011 = vmatprep.subr.bf16.mxu0 %v4299
    %5012 = vmatpush1.bf16.msra.mxu0 %v4298
    %5013 = vmatprep.subr.bf16.mxu0 %v4315
    %5014 = vmatpush1.bf16.msra.mxu0 %v4314
    %5015 = vmatprep.subr.bf16.mxu0 %v4331
    %5016 = vmatpush1.bf16.msra.mxu0 %v4330
    %5017 = vmatprep.subr.bf16.mxu0 %v4347
    %5018 = vmatpush1.bf16.msra.mxu0 %v4346
    %5019 = vmatprep.subr.bf16.mxu0 %v4363
    %5020 = vmatpush1.bf16.msra.mxu0 %v4362
    %5021 = vmatprep.subr.bf16.mxu0 %v4379
    %5022 = vmatpush1.bf16.msra.mxu0 %v4378
    %5023 = vmatprep.subr.bf16.mxu0 %v4395
    %5024 = vmatpush1.bf16.msra.mxu0 %v4394
    %5025 = vmatprep.subr.bf16.mxu0 %v4411
    %5026 = vmatpush1.bf16.msra.mxu0 %v4410
    %5027 = vmatprep.subr.bf16.mxu0 %v4427
    %5028 = vmatpush1.bf16.msra.mxu0 %v4426
    %5029 = vmatprep.mubr.bf16.mxu0 %v1797
    %5030 = vmatmul.mubr.bf16.gmra.mrb[0].mxu0 %v1796
    %v5031 = vpop.f32.mrb[0].mxu0
    %v5032 = vadd.f32 %v4989, %v5031
    %v5033 = vpop.f32.mrb[0].mxu0
    %v5034 = vadd.f32 %v4991, %v5033
    %v5035 = vpop.f32.mrb[0].mxu0
    %v5036 = vadd.f32 %v4993, %v5035
    %v5037 = vpop.f32.mrb[0].mxu0
    %v5038 = vadd.f32 %v4995, %v5037
    %5039 = vdwg.mxu0
    %5040 = vmatprep.subr.bf16.mxu0 %v3933
    %5041 = vmatpush1.bf16.msra.mxu0 %v3932
    %5042 = vmatprep.subr.bf16.mxu0 %v3949
    %5043 = vmatpush1.bf16.msra.mxu0 %v3948
    %5044 = vmatprep.subr.bf16.mxu0 %v3965
    %5045 = vmatpush1.bf16.msra.mxu0 %v3964
    %5046 = vmatprep.subr.bf16.mxu0 %v3981
    %5047 = vmatpush1.bf16.msra.mxu0 %v3980
    %5048 = vmatprep.subr.bf16.mxu0 %v3997
    %5049 = vmatpush1.bf16.msra.mxu0 %v3996
    %5050 = vmatprep.subr.bf16.mxu0 %v4013
    %5051 = vmatpush1.bf16.msra.mxu0 %v4012
    %5052 = vmatprep.subr.bf16.mxu0 %v4029
    %5053 = vmatpush1.bf16.msra.mxu0 %v4028
    %5054 = vmatprep.subr.bf16.mxu0 %v4045
    %5055 = vmatpush1.bf16.msra.mxu0 %v4044
    %5056 = vmatprep.subr.bf16.mxu0 %v4061
    %5057 = vmatpush1.bf16.msra.mxu0 %v4060
    %5058 = vmatprep.subr.bf16.mxu0 %v4077
    %5059 = vmatpush1.bf16.msra.mxu0 %v4076
    %5060 = vmatprep.subr.bf16.mxu0 %v4093
    %5061 = vmatpush1.bf16.msra.mxu0 %v4092
    %5062 = vmatprep.subr.bf16.mxu0 %v4109
    %5063 = vmatpush1.bf16.msra.mxu0 %v4108
    %5064 = vmatprep.subr.bf16.mxu0 %v4125
    %5065 = vmatpush1.bf16.msra.mxu0 %v4124
    %5066 = vmatprep.subr.bf16.mxu0 %v4141
    %5067 = vmatpush1.bf16.msra.mxu0 %v4140
    %5068 = vmatprep.subr.bf16.mxu0 %v4157
    %5069 = vmatpush1.bf16.msra.mxu0 %v4156
    %5070 = vmatprep.subr.bf16.mxu0 %v4173
    %5071 = vmatpush1.bf16.msra.mxu0 %v4172
    %5072 = vmatprep.mubr.bf16.mxu0 %v1795
    %5073 = vmatmul.mubr.bf16.gmra.mrb[0].mxu0 %v1794
    %v5074 = vpop.f32.mrb[0].mxu0
    %v5075 = vadd.f32 %v2325, %v5074
    %v5076 = vpop.f32.mrb[0].mxu0
    %v5077 = vadd.f32 %v2329, %v5076
    %v5078 = vpop.f32.mrb[0].mxu0
    %v5079 = vadd.f32 %v2325, %v5078
    %v5080 = vpop.f32.mrb[0].mxu0
    %v5081 = vadd.f32 %v2329, %v5080
    %5082 = vdwg.mxu0
    %5083 = vmatprep.subr.bf16.mxu0 %v4189
    %5084 = vmatpush1.bf16.msra.mxu0 %v4188
    %5085 = vmatprep.subr.bf16.mxu0 %v4205
    %5086 = vmatpush1.bf16.msra.mxu0 %v4204
    %5087 = vmatprep.subr.bf16.mxu0 %v4221
    %5088 = vmatpush1.bf16.msra.mxu0 %v4220
    %5089 = vmatprep.subr.bf16.mxu0 %v4237
    %5090 = vmatpush1.bf16.msra.mxu0 %v4236
    %5091 = vmatprep.subr.bf16.mxu0 %v4253
    %5092 = vmatpush1.bf16.msra.mxu0 %v4252
    %5093 = vmatprep.subr.bf16.mxu0 %v4269
    %5094 = vmatpush1.bf16.msra.mxu0 %v4268
    %5095 = vmatprep.subr.bf16.mxu0 %v4285
    %5096 = vmatpush1.bf16.msra.mxu0 %v4284
    %5097 = vmatprep.subr.bf16.mxu0 %v4301
    %5098 = vmatpush1.bf16.msra.mxu0 %v4300
    %5099 = vmatprep.subr.bf16.mxu0 %v4317
    %5100 = vmatpush1.bf16.msra.mxu0 %v4316
    %5101 = vmatprep.subr.bf16.mxu0 %v4333
    %5102 = vmatpush1.bf16.msra.mxu0 %v4332
    %5103 = vmatprep.subr.bf16.mxu0 %v4349
    %5104 = vmatpush1.bf16.msra.mxu0 %v4348
    %5105 = vmatprep.subr.bf16.mxu0 %v4365
    %5106 = vmatpush1.bf16.msra.mxu0 %v4364
    %5107 = vmatprep.subr.bf16.mxu0 %v4381
    %5108 = vmatpush1.bf16.msra.mxu0 %v4380
    %5109 = vmatprep.subr.bf16.mxu0 %v4397
    %5110 = vmatpush1.bf16.msra.mxu0 %v4396
    %5111 = vmatprep.subr.bf16.mxu0 %v4413
    %5112 = vmatpush1.bf16.msra.mxu0 %v4412
    %5113 = vmatprep.subr.bf16.mxu0 %v4429
    %5114 = vmatpush1.bf16.msra.mxu0 %v4428
    %5115 = vmatprep.mubr.bf16.mxu0 %v1797
    %5116 = vmatmul.mubr.bf16.gmra.mrb[0].mxu0 %v1796
    %v5117 = vpop.f32.mrb[0].mxu0
    %v5118 = vadd.f32 %v5075, %v5117
    %v5119 = vpop.f32.mrb[0].mxu0
    %v5120 = vadd.f32 %v5077, %v5119
    %v5121 = vpop.f32.mrb[0].mxu0
    %v5122 = vadd.f32 %v5079, %v5121
    %v5123 = vpop.f32.mrb[0].mxu0
    %v5124 = vadd.f32 %v5081, %v5123
    %5125 = vdwg.mxu0
    %5126 = vmatprep.subr.bf16.mxu0 %v3935
    %5127 = vmatpush1.bf16.msra.mxu0 %v3934
    %5128 = vmatprep.subr.bf16.mxu0 %v3951
    %5129 = vmatpush1.bf16.msra.mxu0 %v3950
    %5130 = vmatprep.subr.bf16.mxu0 %v3967
    %5131 = vmatpush1.bf16.msra.mxu0 %v3966
    %5132 = vmatprep.subr.bf16.mxu0 %v3983
    %5133 = vmatpush1.bf16.msra.mxu0 %v3982
    %5134 = vmatprep.subr.bf16.mxu0 %v3999
    %5135 = vmatpush1.bf16.msra.mxu0 %v3998
    %5136 = vmatprep.subr.bf16.mxu0 %v4015
    %5137 = vmatpush1.bf16.msra.mxu0 %v4014
    %5138 = vmatprep.subr.bf16.mxu0 %v4031
    %5139 = vmatpush1.bf16.msra.mxu0 %v4030
    %5140 = vmatprep.subr.bf16.mxu0 %v4047
    %5141 = vmatpush1.bf16.msra.mxu0 %v4046
    %5142 = vmatprep.subr.bf16.mxu0 %v4063
    %5143 = vmatpush1.bf16.msra.mxu0 %v4062
    %5144 = vmatprep.subr.bf16.mxu0 %v4079
    %5145 = vmatpush1.bf16.msra.mxu0 %v4078
    %5146 = vmatprep.subr.bf16.mxu0 %v4095
    %5147 = vmatpush1.bf16.msra.mxu0 %v4094
    %5148 = vmatprep.subr.bf16.mxu0 %v4111
    %5149 = vmatpush1.bf16.msra.mxu0 %v4110
    %5150 = vmatprep.subr.bf16.mxu0 %v4127
    %5151 = vmatpush1.bf16.msra.mxu0 %v4126
    %5152 = vmatprep.subr.bf16.mxu0 %v4143
    %5153 = vmatpush1.bf16.msra.mxu0 %v4142
    %5154 = vmatprep.subr.bf16.mxu0 %v4159
    %5155 = vmatpush1.bf16.msra.mxu0 %v4158
    %5156 = vmatprep.subr.bf16.mxu0 %v4175
    %5157 = vmatpush1.bf16.msra.mxu0 %v4174
    %5158 = vmatprep.mubr.bf16.mxu0 %v1795
    %5159 = vmatmul.mubr.bf16.gmra.mrb[0].mxu0 %v1794
    %v5160 = vpop.f32.mrb[0].mxu0
    %v5161 = vadd.f32 %v2333, %v5160
    %v5162 = vpop.f32.mrb[0].mxu0
    %v5163 = vadd.f32 %v2337, %v5162
    %v5164 = vpop.f32.mrb[0].mxu0
    %v5165 = vadd.f32 %v2333, %v5164
    %v5166 = vpop.f32.mrb[0].mxu0
    %v5167 = vadd.f32 %v2337, %v5166
    %5168 = vdwg.mxu0
    %5169 = vmatprep.subr.bf16.mxu0 %v4191
    %5170 = vmatpush1.bf16.msra.mxu0 %v4190
    %5171 = vmatprep.subr.bf16.mxu0 %v4207
    %5172 = vmatpush1.bf16.msra.mxu0 %v4206
    %5173 = vmatprep.subr.bf16.mxu0 %v4223
    %5174 = vmatpush1.bf16.msra.mxu0 %v4222
    %5175 = vmatprep.subr.bf16.mxu0 %v4239
    %5176 = vmatpush1.bf16.msra.mxu0 %v4238
    %5177 = vmatprep.subr.bf16.mxu0 %v4255
    %5178 = vmatpush1.bf16.msra.mxu0 %v4254
    %5179 = vmatprep.subr.bf16.mxu0 %v4271
    %5180 = vmatpush1.bf16.msra.mxu0 %v4270
    %5181 = vmatprep.subr.bf16.mxu0 %v4287
    %5182 = vmatpush1.bf16.msra.mxu0 %v4286
    %5183 = vmatprep.subr.bf16.mxu0 %v4303
    %5184 = vmatpush1.bf16.msra.mxu0 %v4302
    %5185 = vmatprep.subr.bf16.mxu0 %v4319
    %5186 = vmatpush1.bf16.msra.mxu0 %v4318
    %5187 = vmatprep.subr.bf16.mxu0 %v4335
    %5188 = vmatpush1.bf16.msra.mxu0 %v4334
    %5189 = vmatprep.subr.bf16.mxu0 %v4351
    %5190 = vmatpush1.bf16.msra.mxu0 %v4350
    %5191 = vmatprep.subr.bf16.mxu0 %v4367
    %5192 = vmatpush1.bf16.msra.mxu0 %v4366
    %5193 = vmatprep.subr.bf16.mxu0 %v4383
    %5194 = vmatpush1.bf16.msra.mxu0 %v4382
    %5195 = vmatprep.subr.bf16.mxu0 %v4399
    %5196 = vmatpush1.bf16.msra.mxu0 %v4398
    %5197 = vmatprep.subr.bf16.mxu0 %v4415
    %5198 = vmatpush1.bf16.msra.mxu0 %v4414
    %5199 = vmatprep.subr.bf16.mxu0 %v4431
    %5200 = vmatpush1.bf16.msra.mxu0 %v4430
    %5201 = vmatprep.mubr.bf16.mxu0 %v1797
    %5202 = vmatmul.mubr.bf16.gmra.mrb[0].mxu0 %v1796
    %v5203 = vpop.f32.mrb[0].mxu0
    %v5204 = vadd.f32 %v5161, %v5203
    %v5205 = vpop.f32.mrb[0].mxu0
    %v5206 = vadd.f32 %v5163, %v5205
    %v5207 = vpop.f32.mrb[0].mxu0
    %v5208 = vadd.f32 %v5165, %v5207
    %v5209 = vpop.f32.mrb[0].mxu0
    %v5210 = vadd.f32 %v5167, %v5209
    %5211 = vdwg.mxu0
    %5212 = vmatprep.subr.bf16.mxu0 %v3937
    %5213 = vmatpush1.bf16.msra.mxu0 %v3936
    %5214 = vmatprep.subr.bf16.mxu0 %v3953
    %5215 = vmatpush1.bf16.msra.mxu0 %v3952
    %5216 = vmatprep.subr.bf16.mxu0 %v3969
    %5217 = vmatpush1.bf16.msra.mxu0 %v3968
    %5218 = vmatprep.subr.bf16.mxu0 %v3985
    %5219 = vmatpush1.bf16.msra.mxu0 %v3984
    %5220 = vmatprep.subr.bf16.mxu0 %v4001
    %5221 = vmatpush1.bf16.msra.mxu0 %v4000
    %5222 = vmatprep.subr.bf16.mxu0 %v4017
    %5223 = vmatpush1.bf16.msra.mxu0 %v4016
    %5224 = vmatprep.subr.bf16.mxu0 %v4033
    %5225 = vmatpush1.bf16.msra.mxu0 %v4032
    %5226 = vmatprep.subr.bf16.mxu0 %v4049
    %5227 = vmatpush1.bf16.msra.mxu0 %v4048
    %5228 = vmatprep.subr.bf16.mxu0 %v4065
    %5229 = vmatpush1.bf16.msra.mxu0 %v4064
    %5230 = vmatprep.subr.bf16.mxu0 %v4081
    %5231 = vmatpush1.bf16.msra.mxu0 %v4080
    %5232 = vmatprep.subr.bf16.mxu0 %v4097
    %5233 = vmatpush1.bf16.msra.mxu0 %v4096
    %5234 = vmatprep.subr.bf16.mxu0 %v4113
    %5235 = vmatpush1.bf16.msra.mxu0 %v4112
    %5236 = vmatprep.subr.bf16.mxu0 %v4129
    %5237 = vmatpush1.bf16.msra.mxu0 %v4128
    %5238 = vmatprep.subr.bf16.mxu0 %v4145
    %5239 = vmatpush1.bf16.msra.mxu0 %v4144
    %5240 = vmatprep.subr.bf16.mxu0 %v4161
    %5241 = vmatpush1.bf16.msra.mxu0 %v4160
    %5242 = vmatprep.subr.bf16.mxu0 %v4177
    %5243 = vmatpush1.bf16.msra.mxu0 %v4176
    %5244 = vmatprep.mubr.bf16.mxu0 %v1795
    %5245 = vmatmul.mubr.bf16.gmra.mrb[0].mxu0 %v1794
    %v5246 = vpop.f32.mrb[0].mxu0
    %v5247 = vadd.f32 %v2341, %v5246
    %v5248 = vpop.f32.mrb[0].mxu0
    %v5249 = vadd.f32 %v2345, %v5248
    %v5250 = vpop.f32.mrb[0].mxu0
    %v5251 = vadd.f32 %v2341, %v5250
    %v5252 = vpop.f32.mrb[0].mxu0
    %v5253 = vadd.f32 %v2345, %v5252
    %5254 = vdwg.mxu0
    %5255 = vmatprep.subr.bf16.mxu0 %v4193
    %5256 = vmatpush1.bf16.msra.mxu0 %v4192
    %5257 = vmatprep.subr.bf16.mxu0 %v4209
    %5258 = vmatpush1.bf16.msra.mxu0 %v4208
    %5259 = vmatprep.subr.bf16.mxu0 %v4225
    %5260 = vmatpush1.bf16.msra.mxu0 %v4224
    %5261 = vmatprep.subr.bf16.mxu0 %v4241
    %5262 = vmatpush1.bf16.msra.mxu0 %v4240
    %5263 = vmatprep.subr.bf16.mxu0 %v4257
    %5264 = vmatpush1.bf16.msra.mxu0 %v4256
    %5265 = vmatprep.subr.bf16.mxu0 %v4273
    %5266 = vmatpush1.bf16.msra.mxu0 %v4272
    %5267 = vmatprep.subr.bf16.mxu0 %v4289
    %5268 = vmatpush1.bf16.msra.mxu0 %v4288
    %5269 = vmatprep.subr.bf16.mxu0 %v4305
    %5270 = vmatpush1.bf16.msra.mxu0 %v4304
    %5271 = vmatprep.subr.bf16.mxu0 %v4321
    %5272 = vmatpush1.bf16.msra.mxu0 %v4320
    %5273 = vmatprep.subr.bf16.mxu0 %v4337
    %5274 = vmatpush1.bf16.msra.mxu0 %v4336
    %5275 = vmatprep.subr.bf16.mxu0 %v4353
    %5276 = vmatpush1.bf16.msra.mxu0 %v4352
    %5277 = vmatprep.subr.bf16.mxu0 %v4369
    %5278 = vmatpush1.bf16.msra.mxu0 %v4368
    %5279 = vmatprep.subr.bf16.mxu0 %v4385
    %5280 = vmatpush1.bf16.msra.mxu0 %v4384
    %5281 = vmatprep.subr.bf16.mxu0 %v4401
    %5282 = vmatpush1.bf16.msra.mxu0 %v4400
    %5283 = vmatprep.subr.bf16.mxu0 %v4417
    %5284 = vmatpush1.bf16.msra.mxu0 %v4416
    %5285 = vmatprep.subr.bf16.mxu0 %v4433
    %5286 = vmatpush1.bf16.msra.mxu0 %v4432
    %5287 = vmatprep.mubr.bf16.mxu0 %v1797
    %5288 = vmatmul.mubr.bf16.gmra.mrb[0].mxu0 %v1796
    %v5289 = vpop.f32.mrb[0].mxu0
    %v5290 = vadd.f32 %v5247, %v5289
    %v5291 = vpop.f32.mrb[0].mxu0
    %v5292 = vadd.f32 %v5249, %v5291
    %v5293 = vpop.f32.mrb[0].mxu0
    %v5294 = vadd.f32 %v5251, %v5293
    %v5295 = vpop.f32.mrb[0].mxu0
    %v5296 = vadd.f32 %v5253, %v5295
    %5297 = vdwg.mxu0
    %5298 = vmatprep.subr.bf16.mxu0 %v3939
    %5299 = vmatpush1.bf16.msra.mxu0 %v3938
    %5300 = vmatprep.subr.bf16.mxu0 %v3955
    %5301 = vmatpush1.bf16.msra.mxu0 %v3954
    %5302 = vmatprep.subr.bf16.mxu0 %v3971
    %5303 = vmatpush1.bf16.msra.mxu0 %v3970
    %5304 = vmatprep.subr.bf16.mxu0 %v3987
    %5305 = vmatpush1.bf16.msra.mxu0 %v3986
    %5306 = vmatprep.subr.bf16.mxu0 %v4003
    %5307 = vmatpush1.bf16.msra.mxu0 %v4002
    %5308 = vmatprep.subr.bf16.mxu0 %v4019
    %5309 = vmatpush1.bf16.msra.mxu0 %v4018
    %5310 = vmatprep.subr.bf16.mxu0 %v4035
    %5311 = vmatpush1.bf16.msra.mxu0 %v4034
    %5312 = vmatprep.subr.bf16.mxu0 %v4051
    %5313 = vmatpush1.bf16.msra.mxu0 %v4050
    %5314 = vmatprep.subr.bf16.mxu0 %v4067
    %5315 = vmatpush1.bf16.msra.mxu0 %v4066
    %5316 = vmatprep.subr.bf16.mxu0 %v4083
    %5317 = vmatpush1.bf16.msra.mxu0 %v4082
    %5318 = vmatprep.subr.bf16.mxu0 %v4099
    %5319 = vmatpush1.bf16.msra.mxu0 %v4098
    %5320 = vmatprep.subr.bf16.mxu0 %v4115
    %5321 = vmatpush1.bf16.msra.mxu0 %v4114
    %5322 = vmatprep.subr.bf16.mxu0 %v4131
    %5323 = vmatpush1.bf16.msra.mxu0 %v4130
    %5324 = vmatprep.subr.bf16.mxu0 %v4147
    %5325 = vmatpush1.bf16.msra.mxu0 %v4146
    %5326 = vmatprep.subr.bf16.mxu0 %v4163
    %5327 = vmatpush1.bf16.msra.mxu0 %v4162
    %5328 = vmatprep.subr.bf16.mxu0 %v4179
    %5329 = vmatpush1.bf16.msra.mxu0 %v4178
    %5330 = vmatprep.mubr.bf16.mxu0 %v1795
    %5331 = vmatmul.mubr.bf16.gmra.mrb[0].mxu0 %v1794
    %v5332 = vpop.f32.mrb[0].mxu0
    %v5333 = vadd.f32 %v2349, %v5332
    %v5334 = vpop.f32.mrb[0].mxu0
    %v5335 = vadd.f32 %v2353, %v5334
    %v5336 = vpop.f32.mrb[0].mxu0
    %v5337 = vadd.f32 %v2349, %v5336
    %v5338 = vpop.f32.mrb[0].mxu0
    %v5339 = vadd.f32 %v2353, %v5338
    %5340 = vdwg.mxu0
    %5341 = vmatprep.subr.bf16.mxu0 %v4195
    %5342 = vmatpush1.bf16.msra.mxu0 %v4194
    %5343 = vmatprep.subr.bf16.mxu0 %v4211
    %5344 = vmatpush1.bf16.msra.mxu0 %v4210
    %5345 = vmatprep.subr.bf16.mxu0 %v4227
    %5346 = vmatpush1.bf16.msra.mxu0 %v4226
    %5347 = vmatprep.subr.bf16.mxu0 %v4243
    %5348 = vmatpush1.bf16.msra.mxu0 %v4242
    %5349 = vmatprep.subr.bf16.mxu0 %v4259
    %5350 = vmatpush1.bf16.msra.mxu0 %v4258
    %5351 = vmatprep.subr.bf16.mxu0 %v4275
    %5352 = vmatpush1.bf16.msra.mxu0 %v4274
    %5353 = vmatprep.subr.bf16.mxu0 %v4291
    %5354 = vmatpush1.bf16.msra.mxu0 %v4290
    %5355 = vmatprep.subr.bf16.mxu0 %v4307
    %5356 = vmatpush1.bf16.msra.mxu0 %v4306
    %5357 = vmatprep.subr.bf16.mxu0 %v4323
    %5358 = vmatpush1.bf16.msra.mxu0 %v4322
    %5359 = vmatprep.subr.bf16.mxu0 %v4339
    %5360 = vmatpush1.bf16.msra.mxu0 %v4338
    %5361 = vmatprep.subr.bf16.mxu0 %v4355
    %5362 = vmatpush1.bf16.msra.mxu0 %v4354
    %5363 = vmatprep.subr.bf16.mxu0 %v4371
    %5364 = vmatpush1.bf16.msra.mxu0 %v4370
    %5365 = vmatprep.subr.bf16.mxu0 %v4387
    %5366 = vmatpush1.bf16.msra.mxu0 %v4386
    %5367 = vmatprep.subr.bf16.mxu0 %v4403
    %5368 = vmatpush1.bf16.msra.mxu0 %v4402
    %5369 = vmatprep.subr.bf16.mxu0 %v4419
    %5370 = vmatpush1.bf16.msra.mxu0 %v4418
    %5371 = vmatprep.subr.bf16.mxu0 %v4435
    %5372 = vmatpush1.bf16.msra.mxu0 %v4434
    %5373 = vmatprep.mubr.bf16.mxu0 %v1797
    %5374 = vmatmul.mubr.bf16.gmra.mrb[0].mxu0 %v1796
    %v5375 = vpop.f32.mrb[0].mxu0
    %v5376 = vadd.f32 %v5333, %v5375
    %v5377 = vpop.f32.mrb[0].mxu0
    %v5378 = vadd.f32 %v5335, %v5377
    %v5379 = vpop.f32.mrb[0].mxu0
    %v5380 = vadd.f32 %v5337, %v5379
    %v5381 = vpop.f32.mrb[0].mxu0
    %v5382 = vadd.f32 %v5339, %v5381
    %5383 = vdwg.mxu0
    %5384 = vmatprep.subr.bf16.mxu0 %v3941
    %5385 = vmatpush1.bf16.msra.mxu0 %v3940
    %5386 = vmatprep.subr.bf16.mxu0 %v3957
    %5387 = vmatpush1.bf16.msra.mxu0 %v3956
    %5388 = vmatprep.subr.bf16.mxu0 %v3973
    %5389 = vmatpush1.bf16.msra.mxu0 %v3972
    %5390 = vmatprep.subr.bf16.mxu0 %v3989
    %5391 = vmatpush1.bf16.msra.mxu0 %v3988
    %5392 = vmatprep.subr.bf16.mxu0 %v4005
    %5393 = vmatpush1.bf16.msra.mxu0 %v4004
    %5394 = vmatprep.subr.bf16.mxu0 %v4021
    %5395 = vmatpush1.bf16.msra.mxu0 %v4020
    %5396 = vmatprep.subr.bf16.mxu0 %v4037
    %5397 = vmatpush1.bf16.msra.mxu0 %v4036
    %5398 = vmatprep.subr.bf16.mxu0 %v4053
    %5399 = vmatpush1.bf16.msra.mxu0 %v4052
    %5400 = vmatprep.subr.bf16.mxu0 %v4069
    %5401 = vmatpush1.bf16.msra.mxu0 %v4068
    %5402 = vmatprep.subr.bf16.mxu0 %v4085
    %5403 = vmatpush1.bf16.msra.mxu0 %v4084
    %5404 = vmatprep.subr.bf16.mxu0 %v4101
    %5405 = vmatpush1.bf16.msra.mxu0 %v4100
    %5406 = vmatprep.subr.bf16.mxu0 %v4117
    %5407 = vmatpush1.bf16.msra.mxu0 %v4116
    %5408 = vmatprep.subr.bf16.mxu0 %v4133
    %5409 = vmatpush1.bf16.msra.mxu0 %v4132
    %5410 = vmatprep.subr.bf16.mxu0 %v4149
    %5411 = vmatpush1.bf16.msra.mxu0 %v4148
    %5412 = vmatprep.subr.bf16.mxu0 %v4165
    %5413 = vmatpush1.bf16.msra.mxu0 %v4164
    %5414 = vmatprep.subr.bf16.mxu0 %v4181
    %5415 = vmatpush1.bf16.msra.mxu0 %v4180
    %5416 = vmatprep.mubr.bf16.mxu0 %v1795
    %5417 = vmatmul.mubr.bf16.gmra.mrb[0].mxu0 %v1794
    %v5418 = vpop.f32.mrb[0].mxu0
    %v5419 = vadd.f32 %v2357, %v5418
    %v5420 = vpop.f32.mrb[0].mxu0
    %v5421 = vadd.f32 %v2361, %v5420
    %v5422 = vpop.f32.mrb[0].mxu0
    %v5423 = vadd.f32 %v2357, %v5422
    %v5424 = vpop.f32.mrb[0].mxu0
    %v5425 = vadd.f32 %v2361, %v5424
    %5426 = vdwg.mxu0
    %5427 = vmatprep.subr.bf16.mxu0 %v4197
    %5428 = vmatpush1.bf16.msra.mxu0 %v4196
    %5429 = vmatprep.subr.bf16.mxu0 %v4213
    %5430 = vmatpush1.bf16.msra.mxu0 %v4212
    %5431 = vmatprep.subr.bf16.mxu0 %v4229
    %5432 = vmatpush1.bf16.msra.mxu0 %v4228
    %5433 = vmatprep.subr.bf16.mxu0 %v4245
    %5434 = vmatpush1.bf16.msra.mxu0 %v4244
    %5435 = vmatprep.subr.bf16.mxu0 %v4261
    %5436 = vmatpush1.bf16.msra.mxu0 %v4260
    %5437 = vmatprep.subr.bf16.mxu0 %v4277
    %5438 = vmatpush1.bf16.msra.mxu0 %v4276
    %5439 = vmatprep.subr.bf16.mxu0 %v4293
    %5440 = vmatpush1.bf16.msra.mxu0 %v4292
    %5441 = vmatprep.subr.bf16.mxu0 %v4309
    %5442 = vmatpush1.bf16.msra.mxu0 %v4308
    %5443 = vmatprep.subr.bf16.mxu0 %v4325
    %5444 = vmatpush1.bf16.msra.mxu0 %v4324
    %5445 = vmatprep.subr.bf16.mxu0 %v4341
    %5446 = vmatpush1.bf16.msra.mxu0 %v4340
    %5447 = vmatprep.subr.bf16.mxu0 %v4357
    %5448 = vmatpush1.bf16.msra.mxu0 %v4356
    %5449 = vmatprep.subr.bf16.mxu0 %v4373
    %5450 = vmatpush1.bf16.msra.mxu0 %v4372
    %5451 = vmatprep.subr.bf16.mxu0 %v4389
    %5452 = vmatpush1.bf16.msra.mxu0 %v4388
    %5453 = vmatprep.subr.bf16.mxu0 %v4405
    %5454 = vmatpush1.bf16.msra.mxu0 %v4404
    %5455 = vmatprep.subr.bf16.mxu0 %v4421
    %5456 = vmatpush1.bf16.msra.mxu0 %v4420
    %5457 = vmatprep.subr.bf16.mxu0 %v4437
    %5458 = vmatpush1.bf16.msra.mxu0 %v4436
    %5459 = vmatprep.mubr.bf16.mxu0 %v1797
    %5460 = vmatmul.mubr.bf16.gmra.mrb[0].mxu0 %v1796
    %v5461 = vpop.f32.mrb[0].mxu0
    %v5462 = vadd.f32 %v5419, %v5461
    %v5463 = vpop.f32.mrb[0].mxu0
    %v5464 = vadd.f32 %v5421, %v5463
    %v5465 = vpop.f32.mrb[0].mxu0
    %v5466 = vadd.f32 %v5423, %v5465
    %v5467 = vpop.f32.mrb[0].mxu0
    %v5468 = vadd.f32 %v5425, %v5467
    %5469 = vdwg.mxu0
    %5470 = vmatprep.subr.bf16.mxu0 %v3943
    %5471 = vmatpush1.bf16.msra.mxu0 %v3942
    %5472 = vmatprep.subr.bf16.mxu0 %v3959
    %5473 = vmatpush1.bf16.msra.mxu0 %v3958
    %5474 = vmatprep.subr.bf16.mxu0 %v3975
    %5475 = vmatpush1.bf16.msra.mxu0 %v3974
    %5476 = vmatprep.subr.bf16.mxu0 %v3991
    %5477 = vmatpush1.bf16.msra.mxu0 %v3990
    %5478 = vmatprep.subr.bf16.mxu0 %v4007
    %5479 = vmatpush1.bf16.msra.mxu0 %v4006
    %5480 = vmatprep.subr.bf16.mxu0 %v4023
    %5481 = vmatpush1.bf16.msra.mxu0 %v4022
    %5482 = vmatprep.subr.bf16.mxu0 %v4039
    %5483 = vmatpush1.bf16.msra.mxu0 %v4038
    %5484 = vmatprep.subr.bf16.mxu0 %v4055
    %5485 = vmatpush1.bf16.msra.mxu0 %v4054
    %5486 = vmatprep.subr.bf16.mxu0 %v4071
    %5487 = vmatpush1.bf16.msra.mxu0 %v4070
    %5488 = vmatprep.subr.bf16.mxu0 %v4087
    %5489 = vmatpush1.bf16.msra.mxu0 %v4086
    %5490 = vmatprep.subr.bf16.mxu0 %v4103
    %5491 = vmatpush1.bf16.msra.mxu0 %v4102
    %5492 = vmatprep.subr.bf16.mxu0 %v4119
    %5493 = vmatpush1.bf16.msra.mxu0 %v4118
    %5494 = vmatprep.subr.bf16.mxu0 %v4135
    %5495 = vmatpush1.bf16.msra.mxu0 %v4134
    %5496 = vmatprep.subr.bf16.mxu0 %v4151
    %5497 = vmatpush1.bf16.msra.mxu0 %v4150
    %5498 = vmatprep.subr.bf16.mxu0 %v4167
    %5499 = vmatpush1.bf16.msra.mxu0 %v4166
    %5500 = vmatprep.subr.bf16.mxu0 %v4183
    %5501 = vmatpush1.bf16.msra.mxu0 %v4182
    %5502 = vmatprep.mubr.bf16.mxu0 %v1795
    %5503 = vmatmul.mubr.bf16.gmra.mrb[0].mxu0 %v1794
    %v5504 = vpop.f32.mrb[0].mxu0
    %v5505 = vadd.f32 %v2365, %v5504
    %v5506 = vpop.f32.mrb[0].mxu0
    %v5507 = vadd.f32 %v2369, %v5506
    %v5508 = vpop.f32.mrb[0].mxu0
    %v5509 = vadd.f32 %v2365, %v5508
    %v5510 = vpop.f32.mrb[0].mxu0
    %v5511 = vadd.f32 %v2369, %v5510
    %5512 = vdwg.mxu0
    %5513 = vmatprep.subr.bf16.mxu0 %v4199
    %5514 = vmatpush1.bf16.msra.mxu0 %v4198
    %5515 = vmatprep.subr.bf16.mxu0 %v4215
    %5516 = vmatpush1.bf16.msra.mxu0 %v4214
    %5517 = vmatprep.subr.bf16.mxu0 %v4231
    %5518 = vmatpush1.bf16.msra.mxu0 %v4230
    %5519 = vmatprep.subr.bf16.mxu0 %v4247
    %5520 = vmatpush1.bf16.msra.mxu0 %v4246
    %5521 = vmatprep.subr.bf16.mxu0 %v4263
    %5522 = vmatpush1.bf16.msra.mxu0 %v4262
    %5523 = vmatprep.subr.bf16.mxu0 %v4279
    %5524 = vmatpush1.bf16.msra.mxu0 %v4278
    %5525 = vmatprep.subr.bf16.mxu0 %v4295
    %5526 = vmatpush1.bf16.msra.mxu0 %v4294
    %5527 = vmatprep.subr.bf16.mxu0 %v4311
    %5528 = vmatpush1.bf16.msra.mxu0 %v4310
    %5529 = vmatprep.subr.bf16.mxu0 %v4327
    %5530 = vmatpush1.bf16.msra.mxu0 %v4326
    %5531 = vmatprep.subr.bf16.mxu0 %v4343
    %5532 = vmatpush1.bf16.msra.mxu0 %v4342
    %5533 = vmatprep.subr.bf16.mxu0 %v4359
    %5534 = vmatpush1.bf16.msra.mxu0 %v4358
    %5535 = vmatprep.subr.bf16.mxu0 %v4375
    %5536 = vmatpush1.bf16.msra.mxu0 %v4374
    %5537 = vmatprep.subr.bf16.mxu0 %v4391
    %5538 = vmatpush1.bf16.msra.mxu0 %v4390
    %5539 = vmatprep.subr.bf16.mxu0 %v4407
    %5540 = vmatpush1.bf16.msra.mxu0 %v4406
    %5541 = vmatprep.subr.bf16.mxu0 %v4423
    %5542 = vmatpush1.bf16.msra.mxu0 %v4422
    %5543 = vmatprep.subr.bf16.mxu0 %v4439
    %5544 = vmatpush1.bf16.msra.mxu0 %v4438
    %5545 = vmatprep.mubr.bf16.mxu0 %v1797
    %5546 = vmatmul.mubr.bf16.gmra.mrb[0].mxu0 %v1796
    %v5547 = vpop.f32.mrb[0].mxu0
    %v5548 = vadd.f32 %v5505, %v5547
    %v5549 = vpop.f32.mrb[0].mxu0
    %v5550 = vadd.f32 %v5507, %v5549
    %v5551 = vpop.f32.mrb[0].mxu0
    %v5552 = vadd.f32 %v5509, %v5551
    %v5553 = vpop.f32.mrb[0].mxu0
    %v5554 = vadd.f32 %v5511, %v5553
    %5555 = vdwg.mxu0
    %5556 = vmatprep.subr.bf16.mxu0 %v3945
    %5557 = vmatpush1.bf16.msra.mxu0 %v3944
    %5558 = vmatprep.subr.bf16.mxu0 %v3961
    %5559 = vmatpush1.bf16.msra.mxu0 %v3960
    %5560 = vmatprep.subr.bf16.mxu0 %v3977
    %5561 = vmatpush1.bf16.msra.mxu0 %v3976
    %5562 = vmatprep.subr.bf16.mxu0 %v3993
    %5563 = vmatpush1.bf16.msra.mxu0 %v3992
    %5564 = vmatprep.subr.bf16.mxu0 %v4009
    %5565 = vmatpush1.bf16.msra.mxu0 %v4008
    %5566 = vmatprep.subr.bf16.mxu0 %v4025
    %5567 = vmatpush1.bf16.msra.mxu0 %v4024
    %5568 = vmatprep.subr.bf16.mxu0 %v4041
    %5569 = vmatpush1.bf16.msra.mxu0 %v4040
    %5570 = vmatprep.subr.bf16.mxu0 %v4057
    %5571 = vmatpush1.bf16.msra.mxu0 %v4056
    %5572 = vmatprep.subr.bf16.mxu0 %v4073
    %5573 = vmatpush1.bf16.msra.mxu0 %v4072
    %5574 = vmatprep.subr.bf16.mxu0 %v4089
    %5575 = vmatpush1.bf16.msra.mxu0 %v4088
    %5576 = vmatprep.subr.bf16.mxu0 %v4105
    %5577 = vmatpush1.bf16.msra.mxu0 %v4104
    %5578 = vmatprep.subr.bf16.mxu0 %v4121
    %5579 = vmatpush1.bf16.msra.mxu0 %v4120
    %5580 = vmatprep.subr.bf16.mxu0 %v4137
    %5581 = vmatpush1.bf16.msra.mxu0 %v4136
    %5582 = vmatprep.subr.bf16.mxu0 %v4153
    %5583 = vmatpush1.bf16.msra.mxu0 %v4152
    %5584 = vmatprep.subr.bf16.mxu0 %v4169
    %5585 = vmatpush1.bf16.msra.mxu0 %v4168
    %5586 = vmatprep.subr.bf16.mxu0 %v4185
    %5587 = vmatpush1.bf16.msra.mxu0 %v4184
    %5588 = vmatprep.mubr.bf16.mxu0 %v1795
    %5589 = vmatmul.mubr.bf16.gmra.mrb[0].mxu0 %v1794
    %v5590 = vpop.f32.mrb[0].mxu0
    %v5591 = vadd.f32 %v2373, %v5590
    %v5592 = vpop.f32.mrb[0].mxu0
    %v5593 = vadd.f32 %v2377, %v5592
    %v5594 = vpop.f32.mrb[0].mxu0
    %v5595 = vadd.f32 %v2373, %v5594
    %v5596 = vpop.f32.mrb[0].mxu0
    %v5597 = vadd.f32 %v2377, %v5596
    %5598 = vdwg.mxu0
    %5599 = vmatprep.subr.bf16.mxu0 %v4201
    %5600 = vmatpush1.bf16.msra.mxu0 %v4200
    %5601 = vmatprep.subr.bf16.mxu0 %v4217
    %5602 = vmatpush1.bf16.msra.mxu0 %v4216
    %5603 = vmatprep.subr.bf16.mxu0 %v4233
    %5604 = vmatpush1.bf16.msra.mxu0 %v4232
    %5605 = vmatprep.subr.bf16.mxu0 %v4249
    %5606 = vmatpush1.bf16.msra.mxu0 %v4248
    %5607 = vmatprep.subr.bf16.mxu0 %v4265
    %5608 = vmatpush1.bf16.msra.mxu0 %v4264
    %5609 = vmatprep.subr.bf16.mxu0 %v4281
    %5610 = vmatpush1.bf16.msra.mxu0 %v4280
    %5611 = vmatprep.subr.bf16.mxu0 %v4297
    %5612 = vmatpush1.bf16.msra.mxu0 %v4296
    %5613 = vmatprep.subr.bf16.mxu0 %v4313
    %5614 = vmatpush1.bf16.msra.mxu0 %v4312
    %5615 = vmatprep.subr.bf16.mxu0 %v4329
    %5616 = vmatpush1.bf16.msra.mxu0 %v4328
    %5617 = vmatprep.subr.bf16.mxu0 %v4345
    %5618 = vmatpush1.bf16.msra.mxu0 %v4344
    %5619 = vmatprep.subr.bf16.mxu0 %v4361
    %5620 = vmatpush1.bf16.msra.mxu0 %v4360
    %5621 = vmatprep.subr.bf16.mxu0 %v4377
    %5622 = vmatpush1.bf16.msra.mxu0 %v4376
    %5623 = vmatprep.subr.bf16.mxu0 %v4393
    %5624 = vmatpush1.bf16.msra.mxu0 %v4392
    %5625 = vmatprep.subr.bf16.mxu0 %v4409
    %5626 = vmatpush1.bf16.msra.mxu0 %v4408
    %5627 = vmatprep.subr.bf16.mxu0 %v4425
    %5628 = vmatpush1.bf16.msra.mxu0 %v4424
    %5629 = vmatprep.subr.bf16.mxu0 %v4441
    %5630 = vmatpush1.bf16.msra.mxu0 %v4440
    %5631 = vmatprep.mubr.bf16.mxu0 %v1797
    %5632 = vmatmul.mubr.bf16.gmra.mrb[0].mxu0 %v1796
    %v5633 = vpop.f32.mrb[0].mxu0
    %v5634 = vadd.f32 %v5591, %v5633
    %v5635 = vpop.f32.mrb[0].mxu0
    %v5636 = vadd.f32 %v5593, %v5635
    %v5637 = vpop.f32.mrb[0].mxu0
    %v5638 = vadd.f32 %v5595, %v5637
    %v5639 = vpop.f32.mrb[0].mxu0
    %v5640 = vadd.f32 %v5597, %v5639
    %5641 = vdwg.mxu0
    %v5642 = vmax.f32 %v5032, 0.0
    %v5643 = vmax.f32 %v5034, 0.0
    %v5644 = vmax.f32 %v5118, 0.0
    %v5645 = vmax.f32 %v5120, 0.0
    %v5646 = vmax.f32 %v5204, 0.0
    %v5647 = vmax.f32 %v5206, 0.0
    %v5648 = vmax.f32 %v5290, 0.0
    %v5649 = vmax.f32 %v5292, 0.0
    %v5650 = vmax.f32 %v5376, 0.0
    %v5651 = vmax.f32 %v5378, 0.0
    %v5652 = vmax.f32 %v5462, 0.0
    %v5653 = vmax.f32 %v5464, 0.0
    %v5654 = vmax.f32 %v5548, 0.0
    %v5655 = vmax.f32 %v5550, 0.0
    %v5656 = vmax.f32 %v5634, 0.0
    %v5657 = vmax.f32 %v5636, 0.0
    %v5658 = vmax.f32 %v5036, 0.0
    %v5659 = vmax.f32 %v5038, 0.0
    %v5660 = vmax.f32 %v5122, 0.0
    %v5661 = vmax.f32 %v5124, 0.0
    %v5662 = vmax.f32 %v5208, 0.0
    %v5663 = vmax.f32 %v5210, 0.0
    %v5664 = vmax.f32 %v5294, 0.0
    %v5665 = vmax.f32 %v5296, 0.0
    %v5666 = vmax.f32 %v5380, 0.0
    %v5667 = vmax.f32 %v5382, 0.0
    %v5668 = vmax.f32 %v5466, 0.0
    %v5669 = vmax.f32 %v5468, 0.0
    %v5670 = vmax.f32 %v5552, 0.0
    %v5671 = vmax.f32 %v5554, 0.0
    %v5672 = vmax.f32 %v5638, 0.0
    %v5673 = vmax.f32 %v5640, 0.0
    %v5674 = vpack.c.bf16 %v5658, %v5642
    %v5675 = vpack.c.bf16 %v5659, %v5643
    %v5676 = vpack.c.bf16 %v5660, %v5644
    %v5677 = vpack.c.bf16 %v5661, %v5645
    %v5678 = vpack.c.bf16 %v5662, %v5646
    %v5679 = vpack.c.bf16 %v5663, %v5647
    %v5680 = vpack.c.bf16 %v5664, %v5648
    %v5681 = vpack.c.bf16 %v5665, %v5649
    %v5682 = vpack.c.bf16 %v5666, %v5650
    %v5683 = vpack.c.bf16 %v5667, %v5651
    %v5684 = vpack.c.bf16 %v5668, %v5652
    %v5685 = vpack.c.bf16 %v5669, %v5653
    %v5686 = vpack.c.bf16 %v5670, %v5654
    %v5687 = vpack.c.bf16 %v5671, %v5655
    %v5688 = vpack.c.bf16 %v5672, %v5656
    %v5689 = vpack.c.bf16 %v5673, %v5657
    %v5690 = vld [vmem:[#allocation19] sm:$0xff]
    %v5691 = vld [vmem:[#allocation19 + $0x8] sm:$0xff]
    %v5692 = vld [vmem:[#allocation19 + $0x10] sm:$0xff]
    %v5693 = vld [vmem:[#allocation19 + $0x18] sm:$0xff]
    %v5694 = vld [vmem:[#allocation19 + $0x20] sm:$0xff]
    %v5695 = vld [vmem:[#allocation19 + $0x28] sm:$0xff]
    %v5696 = vld [vmem:[#allocation19 + $0x30] sm:$0xff]
    %v5697 = vld [vmem:[#allocation19 + $0x38] sm:$0xff]
    %v5698 = vld [vmem:[#allocation19 + $0x40] sm:$0xff]
    %v5699 = vld [vmem:[#allocation19 + $0x48] sm:$0xff]
    %v5700 = vld [vmem:[#allocation19 + $0x50] sm:$0xff]
    %v5701 = vld [vmem:[#allocation19 + $0x58] sm:$0xff]
    %v5702 = vld [vmem:[#allocation19 + $0x60] sm:$0xff]
    %v5703 = vld [vmem:[#allocation19 + $0x68] sm:$0xff]
    %v5704 = vld [vmem:[#allocation19 + $0x70] sm:$0xff]
    %v5705 = vld [vmem:[#allocation19 + $0x78] sm:$0xff]
    %v5706 = vld [vmem:[#allocation19 + $0x80] sm:$0xff]
    %v5707 = vld [vmem:[#allocation19 + $0x88] sm:$0xff]
    %v5708 = vld [vmem:[#allocation19 + $0x90] sm:$0xff]
    %v5709 = vld [vmem:[#allocation19 + $0x98] sm:$0xff]
    %v5710 = vld [vmem:[#allocation19 + $0xa0] sm:$0xff]
    %v5711 = vld [vmem:[#allocation19 + $0xa8] sm:$0xff]
    %v5712 = vld [vmem:[#allocation19 + $0xb0] sm:$0xff]
    %v5713 = vld [vmem:[#allocation19 + $0xb8] sm:$0xff]
    %v5714 = vld [vmem:[#allocation19 + $0xc0] sm:$0xff]
    %v5715 = vld [vmem:[#allocation19 + $0xc8] sm:$0xff]
    %v5716 = vld [vmem:[#allocation19 + $0xd0] sm:$0xff]
    %v5717 = vld [vmem:[#allocation19 + $0xd8] sm:$0xff]
    %v5718 = vld [vmem:[#allocation19 + $0xe0] sm:$0xff]
    %v5719 = vld [vmem:[#allocation19 + $0xe8] sm:$0xff]
    %v5720 = vld [vmem:[#allocation19 + $0xf0] sm:$0xff]
    %v5721 = vld [vmem:[#allocation19 + $0xf8] sm:$0xff]
    %v5722 = vld [vmem:[#allocation19 + $0x100] sm:$0xff]
    %v5723 = vld [vmem:[#allocation19 + $0x108] sm:$0xff]
    %v5724 = vld [vmem:[#allocation19 + $0x110] sm:$0xff]
    %v5725 = vld [vmem:[#allocation19 + $0x118] sm:$0xff]
    %v5726 = vld [vmem:[#allocation19 + $0x120] sm:$0xff]
    %v5727 = vld [vmem:[#allocation19 + $0x128] sm:$0xff]
    %v5728 = vld [vmem:[#allocation19 + $0x130] sm:$0xff]
    %v5729 = vld [vmem:[#allocation19 + $0x138] sm:$0xff]
    %v5730 = vld [vmem:[#allocation19 + $0x140] sm:$0xff]
    %v5731 = vld [vmem:[#allocation19 + $0x148] sm:$0xff]
    %v5732 = vld [vmem:[#allocation19 + $0x150] sm:$0xff]
    %v5733 = vld [vmem:[#allocation19 + $0x158] sm:$0xff]
    %v5734 = vld [vmem:[#allocation19 + $0x160] sm:$0xff]
    %v5735 = vld [vmem:[#allocation19 + $0x168] sm:$0xff]
    %v5736 = vld [vmem:[#allocation19 + $0x170] sm:$0xff]
    %v5737 = vld [vmem:[#allocation19 + $0x178] sm:$0xff]
    %v5738 = vld [vmem:[#allocation19 + $0x180] sm:$0xff]
    %v5739 = vld [vmem:[#allocation19 + $0x188] sm:$0xff]
    %v5740 = vld [vmem:[#allocation19 + $0x190] sm:$0xff]
    %v5741 = vld [vmem:[#allocation19 + $0x198] sm:$0xff]
    %v5742 = vld [vmem:[#allocation19 + $0x1a0] sm:$0xff]
    %v5743 = vld [vmem:[#allocation19 + $0x1a8] sm:$0xff]
    %v5744 = vld [vmem:[#allocation19 + $0x1b0] sm:$0xff]
    %v5745 = vld [vmem:[#allocation19 + $0x1b8] sm:$0xff]
    %v5746 = vld [vmem:[#allocation19 + $0x1c0] sm:$0xff]
    %v5747 = vld [vmem:[#allocation19 + $0x1c8] sm:$0xff]
    %v5748 = vld [vmem:[#allocation19 + $0x1d0] sm:$0xff]
    %v5749 = vld [vmem:[#allocation19 + $0x1d8] sm:$0xff]
    %v5750 = vld [vmem:[#allocation19 + $0x1e0] sm:$0xff]
    %v5751 = vld [vmem:[#allocation19 + $0x1e8] sm:$0xff]
    %v5752 = vld [vmem:[#allocation19 + $0x1f0] sm:$0xff]
    %v5753 = vld [vmem:[#allocation19 + $0x1f8] sm:$0xff]
    %v5754 = vld [vmem:[#allocation19 + $0x200] sm:$0xff]
    %v5755 = vld [vmem:[#allocation19 + $0x208] sm:$0xff]
    %v5756 = vld [vmem:[#allocation19 + $0x210] sm:$0xff]
    %v5757 = vld [vmem:[#allocation19 + $0x218] sm:$0xff]
    %v5758 = vld [vmem:[#allocation19 + $0x220] sm:$0xff]
    %v5759 = vld [vmem:[#allocation19 + $0x228] sm:$0xff]
    %v5760 = vld [vmem:[#allocation19 + $0x230] sm:$0xff]
    %v5761 = vld [vmem:[#allocation19 + $0x238] sm:$0xff]
    %v5762 = vld [vmem:[#allocation19 + $0x240] sm:$0xff]
    %v5763 = vld [vmem:[#allocation19 + $0x248] sm:$0xff]
    %v5764 = vld [vmem:[#allocation19 + $0x250] sm:$0xff]
    %v5765 = vld [vmem:[#allocation19 + $0x258] sm:$0xff]
    %v5766 = vld [vmem:[#allocation19 + $0x260] sm:$0xff]
    %v5767 = vld [vmem:[#allocation19 + $0x268] sm:$0xff]
    %v5768 = vld [vmem:[#allocation19 + $0x270] sm:$0xff]
    %v5769 = vld [vmem:[#allocation19 + $0x278] sm:$0xff]
    %v5770 = vld [vmem:[#allocation19 + $0x280] sm:$0xff]
    %v5771 = vld [vmem:[#allocation19 + $0x288] sm:$0xff]
    %v5772 = vld [vmem:[#allocation19 + $0x290] sm:$0xff]
    %v5773 = vld [vmem:[#allocation19 + $0x298] sm:$0xff]
    %v5774 = vld [vmem:[#allocation19 + $0x2a0] sm:$0xff]
    %v5775 = vld [vmem:[#allocation19 + $0x2a8] sm:$0xff]
    %v5776 = vld [vmem:[#allocation19 + $0x2b0] sm:$0xff]
    %v5777 = vld [vmem:[#allocation19 + $0x2b8] sm:$0xff]
    %v5778 = vld [vmem:[#allocation19 + $0x2c0] sm:$0xff]
    %v5779 = vld [vmem:[#allocation19 + $0x2c8] sm:$0xff]
    %v5780 = vld [vmem:[#allocation19 + $0x2d0] sm:$0xff]
    %v5781 = vld [vmem:[#allocation19 + $0x2d8] sm:$0xff]
    %v5782 = vld [vmem:[#allocation19 + $0x2e0] sm:$0xff]
    %v5783 = vld [vmem:[#allocation19 + $0x2e8] sm:$0xff]
    %v5784 = vld [vmem:[#allocation19 + $0x2f0] sm:$0xff]
    %v5785 = vld [vmem:[#allocation19 + $0x2f8] sm:$0xff]
    %v5786 = vld [vmem:[#allocation19 + $0x300] sm:$0xff]
    %v5787 = vld [vmem:[#allocation19 + $0x308] sm:$0xff]
    %v5788 = vld [vmem:[#allocation19 + $0x310] sm:$0xff]
    %v5789 = vld [vmem:[#allocation19 + $0x318] sm:$0xff]
    %v5790 = vld [vmem:[#allocation19 + $0x320] sm:$0xff]
    %v5791 = vld [vmem:[#allocation19 + $0x328] sm:$0xff]
    %v5792 = vld [vmem:[#allocation19 + $0x330] sm:$0xff]
    %v5793 = vld [vmem:[#allocation19 + $0x338] sm:$0xff]
    %v5794 = vld [vmem:[#allocation19 + $0x340] sm:$0xff]
    %v5795 = vld [vmem:[#allocation19 + $0x348] sm:$0xff]
    %v5796 = vld [vmem:[#allocation19 + $0x350] sm:$0xff]
    %v5797 = vld [vmem:[#allocation19 + $0x358] sm:$0xff]
    %v5798 = vld [vmem:[#allocation19 + $0x360] sm:$0xff]
    %v5799 = vld [vmem:[#allocation19 + $0x368] sm:$0xff]
    %v5800 = vld [vmem:[#allocation19 + $0x370] sm:$0xff]
    %v5801 = vld [vmem:[#allocation19 + $0x378] sm:$0xff]
    %v5802 = vld [vmem:[#allocation19 + $0x380] sm:$0xff]
    %v5803 = vld [vmem:[#allocation19 + $0x388] sm:$0xff]
    %v5804 = vld [vmem:[#allocation19 + $0x390] sm:$0xff]
    %v5805 = vld [vmem:[#allocation19 + $0x398] sm:$0xff]
    %v5806 = vld [vmem:[#allocation19 + $0x3a0] sm:$0xff]
    %v5807 = vld [vmem:[#allocation19 + $0x3a8] sm:$0xff]
    %v5808 = vld [vmem:[#allocation19 + $0x3b0] sm:$0xff]
    %v5809 = vld [vmem:[#allocation19 + $0x3b8] sm:$0xff]
    %v5810 = vld [vmem:[#allocation19 + $0x3c0] sm:$0xff]
    %v5811 = vld [vmem:[#allocation19 + $0x3c8] sm:$0xff]
    %v5812 = vld [vmem:[#allocation19 + $0x3d0] sm:$0xff]
    %v5813 = vld [vmem:[#allocation19 + $0x3d8] sm:$0xff]
    %v5814 = vld [vmem:[#allocation19 + $0x3e0] sm:$0xff]
    %v5815 = vld [vmem:[#allocation19 + $0x3e8] sm:$0xff]
    %v5816 = vld [vmem:[#allocation19 + $0x3f0] sm:$0xff]
    %v5817 = vld [vmem:[#allocation19 + $0x3f8] sm:$0xff]
    %v5818 = vld [vmem:[#allocation19 + $0x400] sm:$0xff]
    %v5819 = vld [vmem:[#allocation19 + $0x408] sm:$0xff]
    %v5820 = vld [vmem:[#allocation19 + $0x410] sm:$0xff]
    %v5821 = vld [vmem:[#allocation19 + $0x418] sm:$0xff]
    %v5822 = vld [vmem:[#allocation19 + $0x420] sm:$0xff]
    %v5823 = vld [vmem:[#allocation19 + $0x428] sm:$0xff]
    %v5824 = vld [vmem:[#allocation19 + $0x430] sm:$0xff]
    %v5825 = vld [vmem:[#allocation19 + $0x438] sm:$0xff]
    %v5826 = vld [vmem:[#allocation19 + $0x440] sm:$0xff]
    %v5827 = vld [vmem:[#allocation19 + $0x448] sm:$0xff]
    %v5828 = vld [vmem:[#allocation19 + $0x450] sm:$0xff]
    %v5829 = vld [vmem:[#allocation19 + $0x458] sm:$0xff]
    %v5830 = vld [vmem:[#allocation19 + $0x460] sm:$0xff]
    %v5831 = vld [vmem:[#allocation19 + $0x468] sm:$0xff]
    %v5832 = vld [vmem:[#allocation19 + $0x470] sm:$0xff]
    %v5833 = vld [vmem:[#allocation19 + $0x478] sm:$0xff]
    %v5834 = vld [vmem:[#allocation19 + $0x480] sm:$0xff]
    %v5835 = vld [vmem:[#allocation19 + $0x488] sm:$0xff]
    %v5836 = vld [vmem:[#allocation19 + $0x490] sm:$0xff]
    %v5837 = vld [vmem:[#allocation19 + $0x498] sm:$0xff]
    %v5838 = vld [vmem:[#allocation19 + $0x4a0] sm:$0xff]
    %v5839 = vld [vmem:[#allocation19 + $0x4a8] sm:$0xff]
    %v5840 = vld [vmem:[#allocation19 + $0x4b0] sm:$0xff]
    %v5841 = vld [vmem:[#allocation19 + $0x4b8] sm:$0xff]
    %v5842 = vld [vmem:[#allocation19 + $0x4c0] sm:$0xff]
    %v5843 = vld [vmem:[#allocation19 + $0x4c8] sm:$0xff]
    %v5844 = vld [vmem:[#allocation19 + $0x4d0] sm:$0xff]
    %v5845 = vld [vmem:[#allocation19 + $0x4d8] sm:$0xff]
    %v5846 = vld [vmem:[#allocation19 + $0x4e0] sm:$0xff]
    %v5847 = vld [vmem:[#allocation19 + $0x4e8] sm:$0xff]
    %v5848 = vld [vmem:[#allocation19 + $0x4f0] sm:$0xff]
    %v5849 = vld [vmem:[#allocation19 + $0x4f8] sm:$0xff]
    %v5850 = vld [vmem:[#allocation19 + $0x500] sm:$0xff]
    %v5851 = vld [vmem:[#allocation19 + $0x508] sm:$0xff]
    %v5852 = vld [vmem:[#allocation19 + $0x510] sm:$0xff]
    %v5853 = vld [vmem:[#allocation19 + $0x518] sm:$0xff]
    %v5854 = vld [vmem:[#allocation19 + $0x520] sm:$0xff]
    %v5855 = vld [vmem:[#allocation19 + $0x528] sm:$0xff]
    %v5856 = vld [vmem:[#allocation19 + $0x530] sm:$0xff]
    %v5857 = vld [vmem:[#allocation19 + $0x538] sm:$0xff]
    %v5858 = vld [vmem:[#allocation19 + $0x540] sm:$0xff]
    %v5859 = vld [vmem:[#allocation19 + $0x548] sm:$0xff]
    %v5860 = vld [vmem:[#allocation19 + $0x550] sm:$0xff]
    %v5861 = vld [vmem:[#allocation19 + $0x558] sm:$0xff]
    %v5862 = vld [vmem:[#allocation19 + $0x560] sm:$0xff]
    %v5863 = vld [vmem:[#allocation19 + $0x568] sm:$0xff]
    %v5864 = vld [vmem:[#allocation19 + $0x570] sm:$0xff]
    %v5865 = vld [vmem:[#allocation19 + $0x578] sm:$0xff]
    %v5866 = vld [vmem:[#allocation19 + $0x580] sm:$0xff]
    %v5867 = vld [vmem:[#allocation19 + $0x588] sm:$0xff]
    %v5868 = vld [vmem:[#allocation19 + $0x590] sm:$0xff]
    %v5869 = vld [vmem:[#allocation19 + $0x598] sm:$0xff]
    %v5870 = vld [vmem:[#allocation19 + $0x5a0] sm:$0xff]
    %v5871 = vld [vmem:[#allocation19 + $0x5a8] sm:$0xff]
    %v5872 = vld [vmem:[#allocation19 + $0x5b0] sm:$0xff]
    %v5873 = vld [vmem:[#allocation19 + $0x5b8] sm:$0xff]
    %v5874 = vld [vmem:[#allocation19 + $0x5c0] sm:$0xff]
    %v5875 = vld [vmem:[#allocation19 + $0x5c8] sm:$0xff]
    %v5876 = vld [vmem:[#allocation19 + $0x5d0] sm:$0xff]
    %v5877 = vld [vmem:[#allocation19 + $0x5d8] sm:$0xff]
    %v5878 = vld [vmem:[#allocation19 + $0x5e0] sm:$0xff]
    %v5879 = vld [vmem:[#allocation19 + $0x5e8] sm:$0xff]
    %v5880 = vld [vmem:[#allocation19 + $0x5f0] sm:$0xff]
    %v5881 = vld [vmem:[#allocation19 + $0x5f8] sm:$0xff]
    %v5882 = vld [vmem:[#allocation19 + $0x600] sm:$0xff]
    %v5883 = vld [vmem:[#allocation19 + $0x608] sm:$0xff]
    %v5884 = vld [vmem:[#allocation19 + $0x610] sm:$0xff]
    %v5885 = vld [vmem:[#allocation19 + $0x618] sm:$0xff]
    %v5886 = vld [vmem:[#allocation19 + $0x620] sm:$0xff]
    %v5887 = vld [vmem:[#allocation19 + $0x628] sm:$0xff]
    %v5888 = vld [vmem:[#allocation19 + $0x630] sm:$0xff]
    %v5889 = vld [vmem:[#allocation19 + $0x638] sm:$0xff]
    %v5890 = vld [vmem:[#allocation19 + $0x640] sm:$0xff]
    %v5891 = vld [vmem:[#allocation19 + $0x648] sm:$0xff]
    %v5892 = vld [vmem:[#allocation19 + $0x650] sm:$0xff]
    %v5893 = vld [vmem:[#allocation19 + $0x658] sm:$0xff]
    %v5894 = vld [vmem:[#allocation19 + $0x660] sm:$0xff]
    %v5895 = vld [vmem:[#allocation19 + $0x668] sm:$0xff]
    %v5896 = vld [vmem:[#allocation19 + $0x670] sm:$0xff]
    %v5897 = vld [vmem:[#allocation19 + $0x678] sm:$0xff]
    %v5898 = vld [vmem:[#allocation19 + $0x680] sm:$0xff]
    %v5899 = vld [vmem:[#allocation19 + $0x688] sm:$0xff]
    %v5900 = vld [vmem:[#allocation19 + $0x690] sm:$0xff]
    %v5901 = vld [vmem:[#allocation19 + $0x698] sm:$0xff]
    %v5902 = vld [vmem:[#allocation19 + $0x6a0] sm:$0xff]
    %v5903 = vld [vmem:[#allocation19 + $0x6a8] sm:$0xff]
    %v5904 = vld [vmem:[#allocation19 + $0x6b0] sm:$0xff]
    %v5905 = vld [vmem:[#allocation19 + $0x6b8] sm:$0xff]
    %v5906 = vld [vmem:[#allocation19 + $0x6c0] sm:$0xff]
    %v5907 = vld [vmem:[#allocation19 + $0x6c8] sm:$0xff]
    %v5908 = vld [vmem:[#allocation19 + $0x6d0] sm:$0xff]
    %v5909 = vld [vmem:[#allocation19 + $0x6d8] sm:$0xff]
    %v5910 = vld [vmem:[#allocation19 + $0x6e0] sm:$0xff]
    %v5911 = vld [vmem:[#allocation19 + $0x6e8] sm:$0xff]
    %v5912 = vld [vmem:[#allocation19 + $0x6f0] sm:$0xff]
    %v5913 = vld [vmem:[#allocation19 + $0x6f8] sm:$0xff]
    %v5914 = vld [vmem:[#allocation19 + $0x700] sm:$0xff]
    %v5915 = vld [vmem:[#allocation19 + $0x708] sm:$0xff]
    %v5916 = vld [vmem:[#allocation19 + $0x710] sm:$0xff]
    %v5917 = vld [vmem:[#allocation19 + $0x718] sm:$0xff]
    %v5918 = vld [vmem:[#allocation19 + $0x720] sm:$0xff]
    %v5919 = vld [vmem:[#allocation19 + $0x728] sm:$0xff]
    %v5920 = vld [vmem:[#allocation19 + $0x730] sm:$0xff]
    %v5921 = vld [vmem:[#allocation19 + $0x738] sm:$0xff]
    %v5922 = vld [vmem:[#allocation19 + $0x740] sm:$0xff]
    %v5923 = vld [vmem:[#allocation19 + $0x748] sm:$0xff]
    %v5924 = vld [vmem:[#allocation19 + $0x750] sm:$0xff]
    %v5925 = vld [vmem:[#allocation19 + $0x758] sm:$0xff]
    %v5926 = vld [vmem:[#allocation19 + $0x760] sm:$0xff]
    %v5927 = vld [vmem:[#allocation19 + $0x768] sm:$0xff]
    %v5928 = vld [vmem:[#allocation19 + $0x770] sm:$0xff]
    %v5929 = vld [vmem:[#allocation19 + $0x778] sm:$0xff]
    %v5930 = vld [vmem:[#allocation19 + $0x780] sm:$0xff]
    %v5931 = vld [vmem:[#allocation19 + $0x788] sm:$0xff]
    %v5932 = vld [vmem:[#allocation19 + $0x790] sm:$0xff]
    %v5933 = vld [vmem:[#allocation19 + $0x798] sm:$0xff]
    %v5934 = vld [vmem:[#allocation19 + $0x7a0] sm:$0xff]
    %v5935 = vld [vmem:[#allocation19 + $0x7a8] sm:$0xff]
    %v5936 = vld [vmem:[#allocation19 + $0x7b0] sm:$0xff]
    %v5937 = vld [vmem:[#allocation19 + $0x7b8] sm:$0xff]
    %v5938 = vld [vmem:[#allocation19 + $0x7c0] sm:$0xff]
    %v5939 = vld [vmem:[#allocation19 + $0x7c8] sm:$0xff]
    %v5940 = vld [vmem:[#allocation19 + $0x7d0] sm:$0xff]
    %v5941 = vld [vmem:[#allocation19 + $0x7d8] sm:$0xff]
    %v5942 = vld [vmem:[#allocation19 + $0x7e0] sm:$0xff]
    %v5943 = vld [vmem:[#allocation19 + $0x7e8] sm:$0xff]
    %v5944 = vld [vmem:[#allocation19 + $0x7f0] sm:$0xff]
    %v5945 = vld [vmem:[#allocation19 + $0x7f8] sm:$0xff]
    %v5946 = vld [vmem:[#allocation19 + $0x800] sm:$0xff]
    %v5947 = vld [vmem:[#allocation19 + $0x808] sm:$0xff]
    %v5948 = vld [vmem:[#allocation19 + $0x810] sm:$0xff]
    %v5949 = vld [vmem:[#allocation19 + $0x818] sm:$0xff]
    %v5950 = vld [vmem:[#allocation19 + $0x820] sm:$0xff]
    %v5951 = vld [vmem:[#allocation19 + $0x828] sm:$0xff]
    %v5952 = vld [vmem:[#allocation19 + $0x830] sm:$0xff]
    %v5953 = vld [vmem:[#allocation19 + $0x838] sm:$0xff]
    %v5954 = vld [vmem:[#allocation19 + $0x840] sm:$0xff]
    %v5955 = vld [vmem:[#allocation19 + $0x848] sm:$0xff]
    %v5956 = vld [vmem:[#allocation19 + $0x850] sm:$0xff]
    %v5957 = vld [vmem:[#allocation19 + $0x858] sm:$0xff]
    %v5958 = vld [vmem:[#allocation19 + $0x860] sm:$0xff]
    %v5959 = vld [vmem:[#allocation19 + $0x868] sm:$0xff]
    %v5960 = vld [vmem:[#allocation19 + $0x870] sm:$0xff]
    %v5961 = vld [vmem:[#allocation19 + $0x878] sm:$0xff]
    %v5962 = vld [vmem:[#allocation19 + $0x880] sm:$0xff]
    %v5963 = vld [vmem:[#allocation19 + $0x888] sm:$0xff]
    %v5964 = vld [vmem:[#allocation19 + $0x890] sm:$0xff]
    %v5965 = vld [vmem:[#allocation19 + $0x898] sm:$0xff]
    %v5966 = vld [vmem:[#allocation19 + $0x8a0] sm:$0xff]
    %v5967 = vld [vmem:[#allocation19 + $0x8a8] sm:$0xff]
    %v5968 = vld [vmem:[#allocation19 + $0x8b0] sm:$0xff]
    %v5969 = vld [vmem:[#allocation19 + $0x8b8] sm:$0xff]
    %v5970 = vld [vmem:[#allocation19 + $0x8c0] sm:$0xff]
    %v5971 = vld [vmem:[#allocation19 + $0x8c8] sm:$0xff]
    %v5972 = vld [vmem:[#allocation19 + $0x8d0] sm:$0xff]
    %v5973 = vld [vmem:[#allocation19 + $0x8d8] sm:$0xff]
    %v5974 = vld [vmem:[#allocation19 + $0x8e0] sm:$0xff]
    %v5975 = vld [vmem:[#allocation19 + $0x8e8] sm:$0xff]
    %v5976 = vld [vmem:[#allocation19 + $0x8f0] sm:$0xff]
    %v5977 = vld [vmem:[#allocation19 + $0x8f8] sm:$0xff]
    %v5978 = vld [vmem:[#allocation19 + $0x900] sm:$0xff]
    %v5979 = vld [vmem:[#allocation19 + $0x908] sm:$0xff]
    %v5980 = vld [vmem:[#allocation19 + $0x910] sm:$0xff]
    %v5981 = vld [vmem:[#allocation19 + $0x918] sm:$0xff]
    %v5982 = vld [vmem:[#allocation19 + $0x920] sm:$0xff]
    %v5983 = vld [vmem:[#allocation19 + $0x928] sm:$0xff]
    %v5984 = vld [vmem:[#allocation19 + $0x930] sm:$0xff]
    %v5985 = vld [vmem:[#allocation19 + $0x938] sm:$0xff]
    %v5986 = vld [vmem:[#allocation19 + $0x940] sm:$0xff]
    %v5987 = vld [vmem:[#allocation19 + $0x948] sm:$0xff]
    %v5988 = vld [vmem:[#allocation19 + $0x950] sm:$0xff]
    %v5989 = vld [vmem:[#allocation19 + $0x958] sm:$0xff]
    %v5990 = vld [vmem:[#allocation19 + $0x960] sm:$0xff]
    %v5991 = vld [vmem:[#allocation19 + $0x968] sm:$0xff]
    %v5992 = vld [vmem:[#allocation19 + $0x970] sm:$0xff]
    %v5993 = vld [vmem:[#allocation19 + $0x978] sm:$0xff]
    %v5994 = vld [vmem:[#allocation19 + $0x980] sm:$0xff]
    %v5995 = vld [vmem:[#allocation19 + $0x988] sm:$0xff]
    %v5996 = vld [vmem:[#allocation19 + $0x990] sm:$0xff]
    %v5997 = vld [vmem:[#allocation19 + $0x998] sm:$0xff]
    %v5998 = vld [vmem:[#allocation19 + $0x9a0] sm:$0xff]
    %v5999 = vld [vmem:[#allocation19 + $0x9a8] sm:$0xff]
    %v6000 = vld [vmem:[#allocation19 + $0x9b0] sm:$0xff]
    %v6001 = vld [vmem:[#allocation19 + $0x9b8] sm:$0xff]
    %v6002 = vld [vmem:[#allocation19 + $0x9c0] sm:$0xff]
    %v6003 = vld [vmem:[#allocation19 + $0x9c8] sm:$0xff]
    %v6004 = vld [vmem:[#allocation19 + $0x9d0] sm:$0xff]
    %v6005 = vld [vmem:[#allocation19 + $0x9d8] sm:$0xff]
    %v6006 = vld [vmem:[#allocation19 + $0x9e0] sm:$0xff]
    %v6007 = vld [vmem:[#allocation19 + $0x9e8] sm:$0xff]
    %v6008 = vld [vmem:[#allocation19 + $0x9f0] sm:$0xff]
    %v6009 = vld [vmem:[#allocation19 + $0x9f8] sm:$0xff]
    %v6010 = vld [vmem:[#allocation19 + $0xa00] sm:$0xff]
    %v6011 = vld [vmem:[#allocation19 + $0xa08] sm:$0xff]
    %v6012 = vld [vmem:[#allocation19 + $0xa10] sm:$0xff]
    %v6013 = vld [vmem:[#allocation19 + $0xa18] sm:$0xff]
    %v6014 = vld [vmem:[#allocation19 + $0xa20] sm:$0xff]
    %v6015 = vld [vmem:[#allocation19 + $0xa28] sm:$0xff]
    %v6016 = vld [vmem:[#allocation19 + $0xa30] sm:$0xff]
    %v6017 = vld [vmem:[#allocation19 + $0xa38] sm:$0xff]
    %v6018 = vld [vmem:[#allocation19 + $0xa40] sm:$0xff]
    %v6019 = vld [vmem:[#allocation19 + $0xa48] sm:$0xff]
    %v6020 = vld [vmem:[#allocation19 + $0xa50] sm:$0xff]
    %v6021 = vld [vmem:[#allocation19 + $0xa58] sm:$0xff]
    %v6022 = vld [vmem:[#allocation19 + $0xa60] sm:$0xff]
    %v6023 = vld [vmem:[#allocation19 + $0xa68] sm:$0xff]
    %v6024 = vld [vmem:[#allocation19 + $0xa70] sm:$0xff]
    %v6025 = vld [vmem:[#allocation19 + $0xa78] sm:$0xff]
    %v6026 = vld [vmem:[#allocation19 + $0xa80] sm:$0xff]
    %v6027 = vld [vmem:[#allocation19 + $0xa88] sm:$0xff]
    %v6028 = vld [vmem:[#allocation19 + $0xa90] sm:$0xff]
    %v6029 = vld [vmem:[#allocation19 + $0xa98] sm:$0xff]
    %v6030 = vld [vmem:[#allocation19 + $0xaa0] sm:$0xff]
    %v6031 = vld [vmem:[#allocation19 + $0xaa8] sm:$0xff]
    %v6032 = vld [vmem:[#allocation19 + $0xab0] sm:$0xff]
    %v6033 = vld [vmem:[#allocation19 + $0xab8] sm:$0xff]
    %v6034 = vld [vmem:[#allocation19 + $0xac0] sm:$0xff]
    %v6035 = vld [vmem:[#allocation19 + $0xac8] sm:$0xff]
    %v6036 = vld [vmem:[#allocation19 + $0xad0] sm:$0xff]
    %v6037 = vld [vmem:[#allocation19 + $0xad8] sm:$0xff]
    %v6038 = vld [vmem:[#allocation19 + $0xae0] sm:$0xff]
    %v6039 = vld [vmem:[#allocation19 + $0xae8] sm:$0xff]
    %v6040 = vld [vmem:[#allocation19 + $0xaf0] sm:$0xff]
    %v6041 = vld [vmem:[#allocation19 + $0xaf8] sm:$0xff]
    %v6042 = vld [vmem:[#allocation19 + $0xb00] sm:$0xff]
    %v6043 = vld [vmem:[#allocation19 + $0xb08] sm:$0xff]
    %v6044 = vld [vmem:[#allocation19 + $0xb10] sm:$0xff]
    %v6045 = vld [vmem:[#allocation19 + $0xb18] sm:$0xff]
    %v6046 = vld [vmem:[#allocation19 + $0xb20] sm:$0xff]
    %v6047 = vld [vmem:[#allocation19 + $0xb28] sm:$0xff]
    %v6048 = vld [vmem:[#allocation19 + $0xb30] sm:$0xff]
    %v6049 = vld [vmem:[#allocation19 + $0xb38] sm:$0xff]
    %v6050 = vld [vmem:[#allocation19 + $0xb40] sm:$0xff]
    %v6051 = vld [vmem:[#allocation19 + $0xb48] sm:$0xff]
    %v6052 = vld [vmem:[#allocation19 + $0xb50] sm:$0xff]
    %v6053 = vld [vmem:[#allocation19 + $0xb58] sm:$0xff]
    %v6054 = vld [vmem:[#allocation19 + $0xb60] sm:$0xff]
    %v6055 = vld [vmem:[#allocation19 + $0xb68] sm:$0xff]
    %v6056 = vld [vmem:[#allocation19 + $0xb70] sm:$0xff]
    %v6057 = vld [vmem:[#allocation19 + $0xb78] sm:$0xff]
    %v6058 = vld [vmem:[#allocation19 + $0xb80] sm:$0xff]
    %v6059 = vld [vmem:[#allocation19 + $0xb88] sm:$0xff]
    %v6060 = vld [vmem:[#allocation19 + $0xb90] sm:$0xff]
    %v6061 = vld [vmem:[#allocation19 + $0xb98] sm:$0xff]
    %v6062 = vld [vmem:[#allocation19 + $0xba0] sm:$0xff]
    %v6063 = vld [vmem:[#allocation19 + $0xba8] sm:$0xff]
    %v6064 = vld [vmem:[#allocation19 + $0xbb0] sm:$0xff]
    %v6065 = vld [vmem:[#allocation19 + $0xbb8] sm:$0xff]
    %v6066 = vld [vmem:[#allocation19 + $0xbc0] sm:$0xff]
    %v6067 = vld [vmem:[#allocation19 + $0xbc8] sm:$0xff]
    %v6068 = vld [vmem:[#allocation19 + $0xbd0] sm:$0xff]
    %v6069 = vld [vmem:[#allocation19 + $0xbd8] sm:$0xff]
    %v6070 = vld [vmem:[#allocation19 + $0xbe0] sm:$0xff]
    %v6071 = vld [vmem:[#allocation19 + $0xbe8] sm:$0xff]
    %v6072 = vld [vmem:[#allocation19 + $0xbf0] sm:$0xff]
    %v6073 = vld [vmem:[#allocation19 + $0xbf8] sm:$0xff]
    %v6074 = vld [vmem:[#allocation19 + $0xc00] sm:$0xff]
    %v6075 = vld [vmem:[#allocation19 + $0xc08] sm:$0xff]
    %v6076 = vld [vmem:[#allocation19 + $0xc10] sm:$0xff]
    %v6077 = vld [vmem:[#allocation19 + $0xc18] sm:$0xff]
    %v6078 = vld [vmem:[#allocation19 + $0xc20] sm:$0xff]
    %v6079 = vld [vmem:[#allocation19 + $0xc28] sm:$0xff]
    %v6080 = vld [vmem:[#allocation19 + $0xc30] sm:$0xff]
    %v6081 = vld [vmem:[#allocation19 + $0xc38] sm:$0xff]
    %v6082 = vld [vmem:[#allocation19 + $0xc40] sm:$0xff]
    %v6083 = vld [vmem:[#allocation19 + $0xc48] sm:$0xff]
    %v6084 = vld [vmem:[#allocation19 + $0xc50] sm:$0xff]
    %v6085 = vld [vmem:[#allocation19 + $0xc58] sm:$0xff]
    %v6086 = vld [vmem:[#allocation19 + $0xc60] sm:$0xff]
    %v6087 = vld [vmem:[#allocation19 + $0xc68] sm:$0xff]
    %v6088 = vld [vmem:[#allocation19 + $0xc70] sm:$0xff]
    %v6089 = vld [vmem:[#allocation19 + $0xc78] sm:$0xff]
    %v6090 = vld [vmem:[#allocation19 + $0xc80] sm:$0xff]
    %v6091 = vld [vmem:[#allocation19 + $0xc88] sm:$0xff]
    %v6092 = vld [vmem:[#allocation19 + $0xc90] sm:$0xff]
    %v6093 = vld [vmem:[#allocation19 + $0xc98] sm:$0xff]
    %v6094 = vld [vmem:[#allocation19 + $0xca0] sm:$0xff]
    %v6095 = vld [vmem:[#allocation19 + $0xca8] sm:$0xff]
    %v6096 = vld [vmem:[#allocation19 + $0xcb0] sm:$0xff]
    %v6097 = vld [vmem:[#allocation19 + $0xcb8] sm:$0xff]
    %v6098 = vld [vmem:[#allocation19 + $0xcc0] sm:$0xff]
    %v6099 = vld [vmem:[#allocation19 + $0xcc8] sm:$0xff]
    %v6100 = vld [vmem:[#allocation19 + $0xcd0] sm:$0xff]
    %v6101 = vld [vmem:[#allocation19 + $0xcd8] sm:$0xff]
    %v6102 = vld [vmem:[#allocation19 + $0xce0] sm:$0xff]
    %v6103 = vld [vmem:[#allocation19 + $0xce8] sm:$0xff]
    %v6104 = vld [vmem:[#allocation19 + $0xcf0] sm:$0xff]
    %v6105 = vld [vmem:[#allocation19 + $0xcf8] sm:$0xff]
    %v6106 = vld [vmem:[#allocation19 + $0xd00] sm:$0xff]
    %v6107 = vld [vmem:[#allocation19 + $0xd08] sm:$0xff]
    %v6108 = vld [vmem:[#allocation19 + $0xd10] sm:$0xff]
    %v6109 = vld [vmem:[#allocation19 + $0xd18] sm:$0xff]
    %v6110 = vld [vmem:[#allocation19 + $0xd20] sm:$0xff]
    %v6111 = vld [vmem:[#allocation19 + $0xd28] sm:$0xff]
    %v6112 = vld [vmem:[#allocation19 + $0xd30] sm:$0xff]
    %v6113 = vld [vmem:[#allocation19 + $0xd38] sm:$0xff]
    %v6114 = vld [vmem:[#allocation19 + $0xd40] sm:$0xff]
    %v6115 = vld [vmem:[#allocation19 + $0xd48] sm:$0xff]
    %v6116 = vld [vmem:[#allocation19 + $0xd50] sm:$0xff]
    %v6117 = vld [vmem:[#allocation19 + $0xd58] sm:$0xff]
    %v6118 = vld [vmem:[#allocation19 + $0xd60] sm:$0xff]
    %v6119 = vld [vmem:[#allocation19 + $0xd68] sm:$0xff]
    %v6120 = vld [vmem:[#allocation19 + $0xd70] sm:$0xff]
    %v6121 = vld [vmem:[#allocation19 + $0xd78] sm:$0xff]
    %v6122 = vld [vmem:[#allocation19 + $0xd80] sm:$0xff]
    %v6123 = vld [vmem:[#allocation19 + $0xd88] sm:$0xff]
    %v6124 = vld [vmem:[#allocation19 + $0xd90] sm:$0xff]
    %v6125 = vld [vmem:[#allocation19 + $0xd98] sm:$0xff]
    %v6126 = vld [vmem:[#allocation19 + $0xda0] sm:$0xff]
    %v6127 = vld [vmem:[#allocation19 + $0xda8] sm:$0xff]
    %v6128 = vld [vmem:[#allocation19 + $0xdb0] sm:$0xff]
    %v6129 = vld [vmem:[#allocation19 + $0xdb8] sm:$0xff]
    %v6130 = vld [vmem:[#allocation19 + $0xdc0] sm:$0xff]
    %v6131 = vld [vmem:[#allocation19 + $0xdc8] sm:$0xff]
    %v6132 = vld [vmem:[#allocation19 + $0xdd0] sm:$0xff]
    %v6133 = vld [vmem:[#allocation19 + $0xdd8] sm:$0xff]
    %v6134 = vld [vmem:[#allocation19 + $0xde0] sm:$0xff]
    %v6135 = vld [vmem:[#allocation19 + $0xde8] sm:$0xff]
    %v6136 = vld [vmem:[#allocation19 + $0xdf0] sm:$0xff]
    %v6137 = vld [vmem:[#allocation19 + $0xdf8] sm:$0xff]
    %v6138 = vld [vmem:[#allocation19 + $0xe00] sm:$0xff]
    %v6139 = vld [vmem:[#allocation19 + $0xe08] sm:$0xff]
    %v6140 = vld [vmem:[#allocation19 + $0xe10] sm:$0xff]
    %v6141 = vld [vmem:[#allocation19 + $0xe18] sm:$0xff]
    %v6142 = vld [vmem:[#allocation19 + $0xe20] sm:$0xff]
    %v6143 = vld [vmem:[#allocation19 + $0xe28] sm:$0xff]
    %v6144 = vld [vmem:[#allocation19 + $0xe30] sm:$0xff]
    %v6145 = vld [vmem:[#allocation19 + $0xe38] sm:$0xff]
    %v6146 = vld [vmem:[#allocation19 + $0xe40] sm:$0xff]
    %v6147 = vld [vmem:[#allocation19 + $0xe48] sm:$0xff]
    %v6148 = vld [vmem:[#allocation19 + $0xe50] sm:$0xff]
    %v6149 = vld [vmem:[#allocation19 + $0xe58] sm:$0xff]
    %v6150 = vld [vmem:[#allocation19 + $0xe60] sm:$0xff]
    %v6151 = vld [vmem:[#allocation19 + $0xe68] sm:$0xff]
    %v6152 = vld [vmem:[#allocation19 + $0xe70] sm:$0xff]
    %v6153 = vld [vmem:[#allocation19 + $0xe78] sm:$0xff]
    %v6154 = vld [vmem:[#allocation19 + $0xe80] sm:$0xff]
    %v6155 = vld [vmem:[#allocation19 + $0xe88] sm:$0xff]
    %v6156 = vld [vmem:[#allocation19 + $0xe90] sm:$0xff]
    %v6157 = vld [vmem:[#allocation19 + $0xe98] sm:$0xff]
    %v6158 = vld [vmem:[#allocation19 + $0xea0] sm:$0xff]
    %v6159 = vld [vmem:[#allocation19 + $0xea8] sm:$0xff]
    %v6160 = vld [vmem:[#allocation19 + $0xeb0] sm:$0xff]
    %v6161 = vld [vmem:[#allocation19 + $0xeb8] sm:$0xff]
    %v6162 = vld [vmem:[#allocation19 + $0xec0] sm:$0xff]
    %v6163 = vld [vmem:[#allocation19 + $0xec8] sm:$0xff]
    %v6164 = vld [vmem:[#allocation19 + $0xed0] sm:$0xff]
    %v6165 = vld [vmem:[#allocation19 + $0xed8] sm:$0xff]
    %v6166 = vld [vmem:[#allocation19 + $0xee0] sm:$0xff]
    %v6167 = vld [vmem:[#allocation19 + $0xee8] sm:$0xff]
    %v6168 = vld [vmem:[#allocation19 + $0xef0] sm:$0xff]
    %v6169 = vld [vmem:[#allocation19 + $0xef8] sm:$0xff]
    %v6170 = vld [vmem:[#allocation19 + $0xf00] sm:$0xff]
    %v6171 = vld [vmem:[#allocation19 + $0xf08] sm:$0xff]
    %v6172 = vld [vmem:[#allocation19 + $0xf10] sm:$0xff]
    %v6173 = vld [vmem:[#allocation19 + $0xf18] sm:$0xff]
    %v6174 = vld [vmem:[#allocation19 + $0xf20] sm:$0xff]
    %v6175 = vld [vmem:[#allocation19 + $0xf28] sm:$0xff]
    %v6176 = vld [vmem:[#allocation19 + $0xf30] sm:$0xff]
    %v6177 = vld [vmem:[#allocation19 + $0xf38] sm:$0xff]
    %v6178 = vld [vmem:[#allocation19 + $0xf40] sm:$0xff]
    %v6179 = vld [vmem:[#allocation19 + $0xf48] sm:$0xff]
    %v6180 = vld [vmem:[#allocation19 + $0xf50] sm:$0xff]
    %v6181 = vld [vmem:[#allocation19 + $0xf58] sm:$0xff]
    %v6182 = vld [vmem:[#allocation19 + $0xf60] sm:$0xff]
    %v6183 = vld [vmem:[#allocation19 + $0xf68] sm:$0xff]
    %v6184 = vld [vmem:[#allocation19 + $0xf70] sm:$0xff]
    %v6185 = vld [vmem:[#allocation19 + $0xf78] sm:$0xff]
    %v6186 = vld [vmem:[#allocation19 + $0xf80] sm:$0xff]
    %v6187 = vld [vmem:[#allocation19 + $0xf88] sm:$0xff]
    %v6188 = vld [vmem:[#allocation19 + $0xf90] sm:$0xff]
    %v6189 = vld [vmem:[#allocation19 + $0xf98] sm:$0xff]
    %v6190 = vld [vmem:[#allocation19 + $0xfa0] sm:$0xff]
    %v6191 = vld [vmem:[#allocation19 + $0xfa8] sm:$0xff]
    %v6192 = vld [vmem:[#allocation19 + $0xfb0] sm:$0xff]
    %v6193 = vld [vmem:[#allocation19 + $0xfb8] sm:$0xff]
    %v6194 = vld [vmem:[#allocation19 + $0xfc0] sm:$0xff]
    %v6195 = vld [vmem:[#allocation19 + $0xfc8] sm:$0xff]
    %v6196 = vld [vmem:[#allocation19 + $0xfd0] sm:$0xff]
    %v6197 = vld [vmem:[#allocation19 + $0xfd8] sm:$0xff]
    %v6198 = vld [vmem:[#allocation19 + $0xfe0] sm:$0xff]
    %v6199 = vld [vmem:[#allocation19 + $0xfe8] sm:$0xff]
    %v6200 = vld [vmem:[#allocation19 + $0xff0] sm:$0xff]
    %v6201 = vld [vmem:[#allocation19 + $0xff8] sm:$0xff]
    %v6202 = vld [vmem:[#allocation20] sm:$0xf]
    %v6204 = vlaneseq
    %v6205 = vshrl.u32 %v6204, 7
    %v6206 = vsub.s32 0, %v6205
    %v6207 = vrot.slane %v6202, %v6206
    %v6208 = vlaneseq
    %v6209 = vshrl.u32 %v6208, 7
    %v6210 = vsub.s32 1, %v6209
    %v6211 = vrot.slane %v6202, %v6210
    %v6212 = vlaneseq
    %v6213 = vshrl.u32 %v6212, 7
    %v6214 = vsub.s32 2, %v6213
    %v6215 = vrot.slane %v6202, %v6214
    %v6216 = vlaneseq
    %v6217 = vshrl.u32 %v6216, 7
    %v6218 = vsub.s32 3, %v6217
    %v6219 = vrot.slane %v6202, %v6218
    %v6736 = vunpack.c.l.b16 %v5690
    %v6737 = vunpack.c.h.b16 %v5690
    %v6738 = vunpack.c.l.b16 %v5691
    %v6739 = vunpack.c.h.b16 %v5691
    %v6740 = vunpack.c.l.b16 %v5692
    %v6741 = vunpack.c.h.b16 %v5692
    %v6742 = vunpack.c.l.b16 %v5693
    %v6743 = vunpack.c.h.b16 %v5693
    %v6744 = vunpack.c.l.b16 %v5694
    %v6745 = vunpack.c.h.b16 %v5694
    %v6746 = vunpack.c.l.b16 %v5695
    %v6747 = vunpack.c.h.b16 %v5695
    %v6748 = vunpack.c.l.b16 %v5696
    %v6749 = vunpack.c.h.b16 %v5696
    %v6750 = vunpack.c.l.b16 %v5697
    %v6751 = vunpack.c.h.b16 %v5697
    %v6752 = vunpack.c.l.b16 %v5698
    %v6753 = vunpack.c.h.b16 %v5698
    %v6754 = vunpack.c.l.b16 %v5699
    %v6755 = vunpack.c.h.b16 %v5699
    %v6756 = vunpack.c.l.b16 %v5700
    %v6757 = vunpack.c.h.b16 %v5700
    %v6758 = vunpack.c.l.b16 %v5701
    %v6759 = vunpack.c.h.b16 %v5701
    %v6760 = vunpack.c.l.b16 %v5702
    %v6761 = vunpack.c.h.b16 %v5702
    %v6762 = vunpack.c.l.b16 %v5703
    %v6763 = vunpack.c.h.b16 %v5703
    %v6764 = vunpack.c.l.b16 %v5704
    %v6765 = vunpack.c.h.b16 %v5704
    %v6766 = vunpack.c.l.b16 %v5705
    %v6767 = vunpack.c.h.b16 %v5705
    %v6768 = vunpack.c.l.b16 %v5706
    %v6769 = vunpack.c.h.b16 %v5706
    %v6770 = vunpack.c.l.b16 %v5707
    %v6771 = vunpack.c.h.b16 %v5707
    %v6772 = vunpack.c.l.b16 %v5708
    %v6773 = vunpack.c.h.b16 %v5708
    %v6774 = vunpack.c.l.b16 %v5709
    %v6775 = vunpack.c.h.b16 %v5709
    %v6776 = vunpack.c.l.b16 %v5710
    %v6777 = vunpack.c.h.b16 %v5710
    %v6778 = vunpack.c.l.b16 %v5711
    %v6779 = vunpack.c.h.b16 %v5711
    %v6780 = vunpack.c.l.b16 %v5712
    %v6781 = vunpack.c.h.b16 %v5712
    %v6782 = vunpack.c.l.b16 %v5713
    %v6783 = vunpack.c.h.b16 %v5713
    %v6784 = vunpack.c.l.b16 %v5714
    %v6785 = vunpack.c.h.b16 %v5714
    %v6786 = vunpack.c.l.b16 %v5715
    %v6787 = vunpack.c.h.b16 %v5715
    %v6788 = vunpack.c.l.b16 %v5716
    %v6789 = vunpack.c.h.b16 %v5716
    %v6790 = vunpack.c.l.b16 %v5717
    %v6791 = vunpack.c.h.b16 %v5717
    %v6792 = vunpack.c.l.b16 %v5718
    %v6793 = vunpack.c.h.b16 %v5718
    %v6794 = vunpack.c.l.b16 %v5719
    %v6795 = vunpack.c.h.b16 %v5719
    %v6796 = vunpack.c.l.b16 %v5720
    %v6797 = vunpack.c.h.b16 %v5720
    %v6798 = vunpack.c.l.b16 %v5721
    %v6799 = vunpack.c.h.b16 %v5721
    %v6800 = vunpack.c.l.b16 %v5722
    %v6801 = vunpack.c.h.b16 %v5722
    %v6802 = vunpack.c.l.b16 %v5723
    %v6803 = vunpack.c.h.b16 %v5723
    %v6804 = vunpack.c.l.b16 %v5724
    %v6805 = vunpack.c.h.b16 %v5724
    %v6806 = vunpack.c.l.b16 %v5725
    %v6807 = vunpack.c.h.b16 %v5725
    %v6808 = vunpack.c.l.b16 %v5726
    %v6809 = vunpack.c.h.b16 %v5726
    %v6810 = vunpack.c.l.b16 %v5727
    %v6811 = vunpack.c.h.b16 %v5727
    %v6812 = vunpack.c.l.b16 %v5728
    %v6813 = vunpack.c.h.b16 %v5728
    %v6814 = vunpack.c.l.b16 %v5729
    %v6815 = vunpack.c.h.b16 %v5729
    %v6816 = vunpack.c.l.b16 %v5730
    %v6817 = vunpack.c.h.b16 %v5730
    %v6818 = vunpack.c.l.b16 %v5731
    %v6819 = vunpack.c.h.b16 %v5731
    %v6820 = vunpack.c.l.b16 %v5732
    %v6821 = vunpack.c.h.b16 %v5732
    %v6822 = vunpack.c.l.b16 %v5733
    %v6823 = vunpack.c.h.b16 %v5733
    %v6824 = vunpack.c.l.b16 %v5734
    %v6825 = vunpack.c.h.b16 %v5734
    %v6826 = vunpack.c.l.b16 %v5735
    %v6827 = vunpack.c.h.b16 %v5735
    %v6828 = vunpack.c.l.b16 %v5736
    %v6829 = vunpack.c.h.b16 %v5736
    %v6830 = vunpack.c.l.b16 %v5737
    %v6831 = vunpack.c.h.b16 %v5737
    %v6832 = vunpack.c.l.b16 %v5738
    %v6833 = vunpack.c.h.b16 %v5738
    %v6834 = vunpack.c.l.b16 %v5739
    %v6835 = vunpack.c.h.b16 %v5739
    %v6836 = vunpack.c.l.b16 %v5740
    %v6837 = vunpack.c.h.b16 %v5740
    %v6838 = vunpack.c.l.b16 %v5741
    %v6839 = vunpack.c.h.b16 %v5741
    %v6840 = vunpack.c.l.b16 %v5742
    %v6841 = vunpack.c.h.b16 %v5742
    %v6842 = vunpack.c.l.b16 %v5743
    %v6843 = vunpack.c.h.b16 %v5743
    %v6844 = vunpack.c.l.b16 %v5744
    %v6845 = vunpack.c.h.b16 %v5744
    %v6846 = vunpack.c.l.b16 %v5745
    %v6847 = vunpack.c.h.b16 %v5745
    %v6848 = vunpack.c.l.b16 %v5746
    %v6849 = vunpack.c.h.b16 %v5746
    %v6850 = vunpack.c.l.b16 %v5747
    %v6851 = vunpack.c.h.b16 %v5747
    %v6852 = vunpack.c.l.b16 %v5748
    %v6853 = vunpack.c.h.b16 %v5748
    %v6854 = vunpack.c.l.b16 %v5749
    %v6855 = vunpack.c.h.b16 %v5749
    %v6856 = vunpack.c.l.b16 %v5750
    %v6857 = vunpack.c.h.b16 %v5750
    %v6858 = vunpack.c.l.b16 %v5751
    %v6859 = vunpack.c.h.b16 %v5751
    %v6860 = vunpack.c.l.b16 %v5752
    %v6861 = vunpack.c.h.b16 %v5752
    %v6862 = vunpack.c.l.b16 %v5753
    %v6863 = vunpack.c.h.b16 %v5753
    %v6864 = vunpack.c.l.b16 %v5754
    %v6865 = vunpack.c.h.b16 %v5754
    %v6866 = vunpack.c.l.b16 %v5755
    %v6867 = vunpack.c.h.b16 %v5755
    %v6868 = vunpack.c.l.b16 %v5756
    %v6869 = vunpack.c.h.b16 %v5756
    %v6870 = vunpack.c.l.b16 %v5757
    %v6871 = vunpack.c.h.b16 %v5757
    %v6872 = vunpack.c.l.b16 %v5758
    %v6873 = vunpack.c.h.b16 %v5758
    %v6874 = vunpack.c.l.b16 %v5759
    %v6875 = vunpack.c.h.b16 %v5759
    %v6876 = vunpack.c.l.b16 %v5760
    %v6877 = vunpack.c.h.b16 %v5760
    %v6878 = vunpack.c.l.b16 %v5761
    %v6879 = vunpack.c.h.b16 %v5761
    %v6880 = vunpack.c.l.b16 %v5762
    %v6881 = vunpack.c.h.b16 %v5762
    %v6882 = vunpack.c.l.b16 %v5763
    %v6883 = vunpack.c.h.b16 %v5763
    %v6884 = vunpack.c.l.b16 %v5764
    %v6885 = vunpack.c.h.b16 %v5764
    %v6886 = vunpack.c.l.b16 %v5765
    %v6887 = vunpack.c.h.b16 %v5765
    %v6888 = vunpack.c.l.b16 %v5766
    %v6889 = vunpack.c.h.b16 %v5766
    %v6890 = vunpack.c.l.b16 %v5767
    %v6891 = vunpack.c.h.b16 %v5767
    %v6892 = vunpack.c.l.b16 %v5768
    %v6893 = vunpack.c.h.b16 %v5768
    %v6894 = vunpack.c.l.b16 %v5769
    %v6895 = vunpack.c.h.b16 %v5769
    %v6896 = vunpack.c.l.b16 %v5770
    %v6897 = vunpack.c.h.b16 %v5770
    %v6898 = vunpack.c.l.b16 %v5771
    %v6899 = vunpack.c.h.b16 %v5771
    %v6900 = vunpack.c.l.b16 %v5772
    %v6901 = vunpack.c.h.b16 %v5772
    %v6902 = vunpack.c.l.b16 %v5773
    %v6903 = vunpack.c.h.b16 %v5773
    %v6904 = vunpack.c.l.b16 %v5774
    %v6905 = vunpack.c.h.b16 %v5774
    %v6906 = vunpack.c.l.b16 %v5775
    %v6907 = vunpack.c.h.b16 %v5775
    %v6908 = vunpack.c.l.b16 %v5776
    %v6909 = vunpack.c.h.b16 %v5776
    %v6910 = vunpack.c.l.b16 %v5777
    %v6911 = vunpack.c.h.b16 %v5777
    %v6912 = vunpack.c.l.b16 %v5778
    %v6913 = vunpack.c.h.b16 %v5778
    %v6914 = vunpack.c.l.b16 %v5779
    %v6915 = vunpack.c.h.b16 %v5779
    %v6916 = vunpack.c.l.b16 %v5780
    %v6917 = vunpack.c.h.b16 %v5780
    %v6918 = vunpack.c.l.b16 %v5781
    %v6919 = vunpack.c.h.b16 %v5781
    %v6920 = vunpack.c.l.b16 %v5782
    %v6921 = vunpack.c.h.b16 %v5782
    %v6922 = vunpack.c.l.b16 %v5783
    %v6923 = vunpack.c.h.b16 %v5783
    %v6924 = vunpack.c.l.b16 %v5784
    %v6925 = vunpack.c.h.b16 %v5784
    %v6926 = vunpack.c.l.b16 %v5785
    %v6927 = vunpack.c.h.b16 %v5785
    %v6928 = vunpack.c.l.b16 %v5786
    %v6929 = vunpack.c.h.b16 %v5786
    %v6930 = vunpack.c.l.b16 %v5787
    %v6931 = vunpack.c.h.b16 %v5787
    %v6932 = vunpack.c.l.b16 %v5788
    %v6933 = vunpack.c.h.b16 %v5788
    %v6934 = vunpack.c.l.b16 %v5789
    %v6935 = vunpack.c.h.b16 %v5789
    %v6936 = vunpack.c.l.b16 %v5790
    %v6937 = vunpack.c.h.b16 %v5790
    %v6938 = vunpack.c.l.b16 %v5791
    %v6939 = vunpack.c.h.b16 %v5791
    %v6940 = vunpack.c.l.b16 %v5792
    %v6941 = vunpack.c.h.b16 %v5792
    %v6942 = vunpack.c.l.b16 %v5793
    %v6943 = vunpack.c.h.b16 %v5793
    %v6944 = vunpack.c.l.b16 %v5794
    %v6945 = vunpack.c.h.b16 %v5794
    %v6946 = vunpack.c.l.b16 %v5795
    %v6947 = vunpack.c.h.b16 %v5795
    %v6948 = vunpack.c.l.b16 %v5796
    %v6949 = vunpack.c.h.b16 %v5796
    %v6950 = vunpack.c.l.b16 %v5797
    %v6951 = vunpack.c.h.b16 %v5797
    %v6952 = vunpack.c.l.b16 %v5798
    %v6953 = vunpack.c.h.b16 %v5798
    %v6954 = vunpack.c.l.b16 %v5799
    %v6955 = vunpack.c.h.b16 %v5799
    %v6956 = vunpack.c.l.b16 %v5800
    %v6957 = vunpack.c.h.b16 %v5800
    %v6958 = vunpack.c.l.b16 %v5801
    %v6959 = vunpack.c.h.b16 %v5801
    %v6960 = vunpack.c.l.b16 %v5802
    %v6961 = vunpack.c.h.b16 %v5802
    %v6962 = vunpack.c.l.b16 %v5803
    %v6963 = vunpack.c.h.b16 %v5803
    %v6964 = vunpack.c.l.b16 %v5804
    %v6965 = vunpack.c.h.b16 %v5804
    %v6966 = vunpack.c.l.b16 %v5805
    %v6967 = vunpack.c.h.b16 %v5805
    %v6968 = vunpack.c.l.b16 %v5806
    %v6969 = vunpack.c.h.b16 %v5806
    %v6970 = vunpack.c.l.b16 %v5807
    %v6971 = vunpack.c.h.b16 %v5807
    %v6972 = vunpack.c.l.b16 %v5808
    %v6973 = vunpack.c.h.b16 %v5808
    %v6974 = vunpack.c.l.b16 %v5809
    %v6975 = vunpack.c.h.b16 %v5809
    %v6976 = vunpack.c.l.b16 %v5810
    %v6977 = vunpack.c.h.b16 %v5810
    %v6978 = vunpack.c.l.b16 %v5811
    %v6979 = vunpack.c.h.b16 %v5811
    %v6980 = vunpack.c.l.b16 %v5812
    %v6981 = vunpack.c.h.b16 %v5812
    %v6982 = vunpack.c.l.b16 %v5813
    %v6983 = vunpack.c.h.b16 %v5813
    %v6984 = vunpack.c.l.b16 %v5814
    %v6985 = vunpack.c.h.b16 %v5814
    %v6986 = vunpack.c.l.b16 %v5815
    %v6987 = vunpack.c.h.b16 %v5815
    %v6988 = vunpack.c.l.b16 %v5816
    %v6989 = vunpack.c.h.b16 %v5816
    %v6990 = vunpack.c.l.b16 %v5817
    %v6991 = vunpack.c.h.b16 %v5817
    %v6992 = vunpack.c.l.b16 %v5818
    %v6993 = vunpack.c.h.b16 %v5818
    %v6994 = vunpack.c.l.b16 %v5819
    %v6995 = vunpack.c.h.b16 %v5819
    %v6996 = vunpack.c.l.b16 %v5820
    %v6997 = vunpack.c.h.b16 %v5820
    %v6998 = vunpack.c.l.b16 %v5821
    %v6999 = vunpack.c.h.b16 %v5821
    %v7000 = vunpack.c.l.b16 %v5822
    %v7001 = vunpack.c.h.b16 %v5822
    %v7002 = vunpack.c.l.b16 %v5823
    %v7003 = vunpack.c.h.b16 %v5823
    %v7004 = vunpack.c.l.b16 %v5824
    %v7005 = vunpack.c.h.b16 %v5824
    %v7006 = vunpack.c.l.b16 %v5825
    %v7007 = vunpack.c.h.b16 %v5825
    %v7008 = vunpack.c.l.b16 %v5826
    %v7009 = vunpack.c.h.b16 %v5826
    %v7010 = vunpack.c.l.b16 %v5827
    %v7011 = vunpack.c.h.b16 %v5827
    %v7012 = vunpack.c.l.b16 %v5828
    %v7013 = vunpack.c.h.b16 %v5828
    %v7014 = vunpack.c.l.b16 %v5829
    %v7015 = vunpack.c.h.b16 %v5829
    %v7016 = vunpack.c.l.b16 %v5830
    %v7017 = vunpack.c.h.b16 %v5830
    %v7018 = vunpack.c.l.b16 %v5831
    %v7019 = vunpack.c.h.b16 %v5831
    %v7020 = vunpack.c.l.b16 %v5832
    %v7021 = vunpack.c.h.b16 %v5832
    %v7022 = vunpack.c.l.b16 %v5833
    %v7023 = vunpack.c.h.b16 %v5833
    %v7024 = vunpack.c.l.b16 %v5834
    %v7025 = vunpack.c.h.b16 %v5834
    %v7026 = vunpack.c.l.b16 %v5835
    %v7027 = vunpack.c.h.b16 %v5835
    %v7028 = vunpack.c.l.b16 %v5836
    %v7029 = vunpack.c.h.b16 %v5836
    %v7030 = vunpack.c.l.b16 %v5837
    %v7031 = vunpack.c.h.b16 %v5837
    %v7032 = vunpack.c.l.b16 %v5838
    %v7033 = vunpack.c.h.b16 %v5838
    %v7034 = vunpack.c.l.b16 %v5839
    %v7035 = vunpack.c.h.b16 %v5839
    %v7036 = vunpack.c.l.b16 %v5840
    %v7037 = vunpack.c.h.b16 %v5840
    %v7038 = vunpack.c.l.b16 %v5841
    %v7039 = vunpack.c.h.b16 %v5841
    %v7040 = vunpack.c.l.b16 %v5842
    %v7041 = vunpack.c.h.b16 %v5842
    %v7042 = vunpack.c.l.b16 %v5843
    %v7043 = vunpack.c.h.b16 %v5843
    %v7044 = vunpack.c.l.b16 %v5844
    %v7045 = vunpack.c.h.b16 %v5844
    %v7046 = vunpack.c.l.b16 %v5845
    %v7047 = vunpack.c.h.b16 %v5845
    %v7048 = vunpack.c.l.b16 %v5846
    %v7049 = vunpack.c.h.b16 %v5846
    %v7050 = vunpack.c.l.b16 %v5847
    %v7051 = vunpack.c.h.b16 %v5847
    %v7052 = vunpack.c.l.b16 %v5848
    %v7053 = vunpack.c.h.b16 %v5848
    %v7054 = vunpack.c.l.b16 %v5849
    %v7055 = vunpack.c.h.b16 %v5849
    %v7056 = vunpack.c.l.b16 %v5850
    %v7057 = vunpack.c.h.b16 %v5850
    %v7058 = vunpack.c.l.b16 %v5851
    %v7059 = vunpack.c.h.b16 %v5851
    %v7060 = vunpack.c.l.b16 %v5852
    %v7061 = vunpack.c.h.b16 %v5852
    %v7062 = vunpack.c.l.b16 %v5853
    %v7063 = vunpack.c.h.b16 %v5853
    %v7064 = vunpack.c.l.b16 %v5854
    %v7065 = vunpack.c.h.b16 %v5854
    %v7066 = vunpack.c.l.b16 %v5855
    %v7067 = vunpack.c.h.b16 %v5855
    %v7068 = vunpack.c.l.b16 %v5856
    %v7069 = vunpack.c.h.b16 %v5856
    %v7070 = vunpack.c.l.b16 %v5857
    %v7071 = vunpack.c.h.b16 %v5857
    %v7072 = vunpack.c.l.b16 %v5858
    %v7073 = vunpack.c.h.b16 %v5858
    %v7074 = vunpack.c.l.b16 %v5859
    %v7075 = vunpack.c.h.b16 %v5859
    %v7076 = vunpack.c.l.b16 %v5860
    %v7077 = vunpack.c.h.b16 %v5860
    %v7078 = vunpack.c.l.b16 %v5861
    %v7079 = vunpack.c.h.b16 %v5861
    %v7080 = vunpack.c.l.b16 %v5862
    %v7081 = vunpack.c.h.b16 %v5862
    %v7082 = vunpack.c.l.b16 %v5863
    %v7083 = vunpack.c.h.b16 %v5863
    %v7084 = vunpack.c.l.b16 %v5864
    %v7085 = vunpack.c.h.b16 %v5864
    %v7086 = vunpack.c.l.b16 %v5865
    %v7087 = vunpack.c.h.b16 %v5865
    %v7088 = vunpack.c.l.b16 %v5866
    %v7089 = vunpack.c.h.b16 %v5866
    %v7090 = vunpack.c.l.b16 %v5867
    %v7091 = vunpack.c.h.b16 %v5867
    %v7092 = vunpack.c.l.b16 %v5868
    %v7093 = vunpack.c.h.b16 %v5868
    %v7094 = vunpack.c.l.b16 %v5869
    %v7095 = vunpack.c.h.b16 %v5869
    %v7096 = vunpack.c.l.b16 %v5870
    %v7097 = vunpack.c.h.b16 %v5870
    %v7098 = vunpack.c.l.b16 %v5871
    %v7099 = vunpack.c.h.b16 %v5871
    %v7100 = vunpack.c.l.b16 %v5872
    %v7101 = vunpack.c.h.b16 %v5872
    %v7102 = vunpack.c.l.b16 %v5873
    %v7103 = vunpack.c.h.b16 %v5873
    %v7104 = vunpack.c.l.b16 %v5874
    %v7105 = vunpack.c.h.b16 %v5874
    %v7106 = vunpack.c.l.b16 %v5875
    %v7107 = vunpack.c.h.b16 %v5875
    %v7108 = vunpack.c.l.b16 %v5876
    %v7109 = vunpack.c.h.b16 %v5876
    %v7110 = vunpack.c.l.b16 %v5877
    %v7111 = vunpack.c.h.b16 %v5877
    %v7112 = vunpack.c.l.b16 %v5878
    %v7113 = vunpack.c.h.b16 %v5878
    %v7114 = vunpack.c.l.b16 %v5879
    %v7115 = vunpack.c.h.b16 %v5879
    %v7116 = vunpack.c.l.b16 %v5880
    %v7117 = vunpack.c.h.b16 %v5880
    %v7118 = vunpack.c.l.b16 %v5881
    %v7119 = vunpack.c.h.b16 %v5881
    %v7120 = vunpack.c.l.b16 %v5882
    %v7121 = vunpack.c.h.b16 %v5882
    %v7122 = vunpack.c.l.b16 %v5883
    %v7123 = vunpack.c.h.b16 %v5883
    %v7124 = vunpack.c.l.b16 %v5884
    %v7125 = vunpack.c.h.b16 %v5884
    %v7126 = vunpack.c.l.b16 %v5885
    %v7127 = vunpack.c.h.b16 %v5885
    %v7128 = vunpack.c.l.b16 %v5886
    %v7129 = vunpack.c.h.b16 %v5886
    %v7130 = vunpack.c.l.b16 %v5887
    %v7131 = vunpack.c.h.b16 %v5887
    %v7132 = vunpack.c.l.b16 %v5888
    %v7133 = vunpack.c.h.b16 %v5888
    %v7134 = vunpack.c.l.b16 %v5889
    %v7135 = vunpack.c.h.b16 %v5889
    %v7136 = vunpack.c.l.b16 %v5890
    %v7137 = vunpack.c.h.b16 %v5890
    %v7138 = vunpack.c.l.b16 %v5891
    %v7139 = vunpack.c.h.b16 %v5891
    %v7140 = vunpack.c.l.b16 %v5892
    %v7141 = vunpack.c.h.b16 %v5892
    %v7142 = vunpack.c.l.b16 %v5893
    %v7143 = vunpack.c.h.b16 %v5893
    %v7144 = vunpack.c.l.b16 %v5894
    %v7145 = vunpack.c.h.b16 %v5894
    %v7146 = vunpack.c.l.b16 %v5895
    %v7147 = vunpack.c.h.b16 %v5895
    %v7148 = vunpack.c.l.b16 %v5896
    %v7149 = vunpack.c.h.b16 %v5896
    %v7150 = vunpack.c.l.b16 %v5897
    %v7151 = vunpack.c.h.b16 %v5897
    %v7152 = vunpack.c.l.b16 %v5898
    %v7153 = vunpack.c.h.b16 %v5898
    %v7154 = vunpack.c.l.b16 %v5899
    %v7155 = vunpack.c.h.b16 %v5899
    %v7156 = vunpack.c.l.b16 %v5900
    %v7157 = vunpack.c.h.b16 %v5900
    %v7158 = vunpack.c.l.b16 %v5901
    %v7159 = vunpack.c.h.b16 %v5901
    %v7160 = vunpack.c.l.b16 %v5902
    %v7161 = vunpack.c.h.b16 %v5902
    %v7162 = vunpack.c.l.b16 %v5903
    %v7163 = vunpack.c.h.b16 %v5903
    %v7164 = vunpack.c.l.b16 %v5904
    %v7165 = vunpack.c.h.b16 %v5904
    %v7166 = vunpack.c.l.b16 %v5905
    %v7167 = vunpack.c.h.b16 %v5905
    %v7168 = vunpack.c.l.b16 %v5906
    %v7169 = vunpack.c.h.b16 %v5906
    %v7170 = vunpack.c.l.b16 %v5907
    %v7171 = vunpack.c.h.b16 %v5907
    %v7172 = vunpack.c.l.b16 %v5908
    %v7173 = vunpack.c.h.b16 %v5908
    %v7174 = vunpack.c.l.b16 %v5909
    %v7175 = vunpack.c.h.b16 %v5909
    %v7176 = vunpack.c.l.b16 %v5910
    %v7177 = vunpack.c.h.b16 %v5910
    %v7178 = vunpack.c.l.b16 %v5911
    %v7179 = vunpack.c.h.b16 %v5911
    %v7180 = vunpack.c.l.b16 %v5912
    %v7181 = vunpack.c.h.b16 %v5912
    %v7182 = vunpack.c.l.b16 %v5913
    %v7183 = vunpack.c.h.b16 %v5913
    %v7184 = vunpack.c.l.b16 %v5914
    %v7185 = vunpack.c.h.b16 %v5914
    %v7186 = vunpack.c.l.b16 %v5915
    %v7187 = vunpack.c.h.b16 %v5915
    %v7188 = vunpack.c.l.b16 %v5916
    %v7189 = vunpack.c.h.b16 %v5916
    %v7190 = vunpack.c.l.b16 %v5917
    %v7191 = vunpack.c.h.b16 %v5917
    %v7192 = vunpack.c.l.b16 %v5918
    %v7193 = vunpack.c.h.b16 %v5918
    %v7194 = vunpack.c.l.b16 %v5919
    %v7195 = vunpack.c.h.b16 %v5919
    %v7196 = vunpack.c.l.b16 %v5920
    %v7197 = vunpack.c.h.b16 %v5920
    %v7198 = vunpack.c.l.b16 %v5921
    %v7199 = vunpack.c.h.b16 %v5921
    %v7200 = vunpack.c.l.b16 %v5922
    %v7201 = vunpack.c.h.b16 %v5922
    %v7202 = vunpack.c.l.b16 %v5923
    %v7203 = vunpack.c.h.b16 %v5923
    %v7204 = vunpack.c.l.b16 %v5924
    %v7205 = vunpack.c.h.b16 %v5924
    %v7206 = vunpack.c.l.b16 %v5925
    %v7207 = vunpack.c.h.b16 %v5925
    %v7208 = vunpack.c.l.b16 %v5926
    %v7209 = vunpack.c.h.b16 %v5926
    %v7210 = vunpack.c.l.b16 %v5927
    %v7211 = vunpack.c.h.b16 %v5927
    %v7212 = vunpack.c.l.b16 %v5928
    %v7213 = vunpack.c.h.b16 %v5928
    %v7214 = vunpack.c.l.b16 %v5929
    %v7215 = vunpack.c.h.b16 %v5929
    %v7216 = vunpack.c.l.b16 %v5930
    %v7217 = vunpack.c.h.b16 %v5930
    %v7218 = vunpack.c.l.b16 %v5931
    %v7219 = vunpack.c.h.b16 %v5931
    %v7220 = vunpack.c.l.b16 %v5932
    %v7221 = vunpack.c.h.b16 %v5932
    %v7222 = vunpack.c.l.b16 %v5933
    %v7223 = vunpack.c.h.b16 %v5933
    %v7224 = vunpack.c.l.b16 %v5934
    %v7225 = vunpack.c.h.b16 %v5934
    %v7226 = vunpack.c.l.b16 %v5935
    %v7227 = vunpack.c.h.b16 %v5935
    %v7228 = vunpack.c.l.b16 %v5936
    %v7229 = vunpack.c.h.b16 %v5936
    %v7230 = vunpack.c.l.b16 %v5937
    %v7231 = vunpack.c.h.b16 %v5937
    %v7232 = vunpack.c.l.b16 %v5938
    %v7233 = vunpack.c.h.b16 %v5938
    %v7234 = vunpack.c.l.b16 %v5939
    %v7235 = vunpack.c.h.b16 %v5939
    %v7236 = vunpack.c.l.b16 %v5940
    %v7237 = vunpack.c.h.b16 %v5940
    %v7238 = vunpack.c.l.b16 %v5941
    %v7239 = vunpack.c.h.b16 %v5941
    %v7240 = vunpack.c.l.b16 %v5942
    %v7241 = vunpack.c.h.b16 %v5942
    %v7242 = vunpack.c.l.b16 %v5943
    %v7243 = vunpack.c.h.b16 %v5943
    %v7244 = vunpack.c.l.b16 %v5944
    %v7245 = vunpack.c.h.b16 %v5944
    %v7246 = vunpack.c.l.b16 %v5945
    %v7247 = vunpack.c.h.b16 %v5945
    %v7248 = vunpack.c.l.b16 %v5946
    %v7249 = vunpack.c.h.b16 %v5946
    %v7250 = vunpack.c.l.b16 %v5947
    %v7251 = vunpack.c.h.b16 %v5947
    %v7252 = vunpack.c.l.b16 %v5948
    %v7253 = vunpack.c.h.b16 %v5948
    %v7254 = vunpack.c.l.b16 %v5949
    %v7255 = vunpack.c.h.b16 %v5949
    %v7256 = vunpack.c.l.b16 %v5950
    %v7257 = vunpack.c.h.b16 %v5950
    %v7258 = vunpack.c.l.b16 %v5951
    %v7259 = vunpack.c.h.b16 %v5951
    %v7260 = vunpack.c.l.b16 %v5952
    %v7261 = vunpack.c.h.b16 %v5952
    %v7262 = vunpack.c.l.b16 %v5953
    %v7263 = vunpack.c.h.b16 %v5953
    %v7264 = vunpack.c.l.b16 %v5954
    %v7265 = vunpack.c.h.b16 %v5954
    %v7266 = vunpack.c.l.b16 %v5955
    %v7267 = vunpack.c.h.b16 %v5955
    %v7268 = vunpack.c.l.b16 %v5956
    %v7269 = vunpack.c.h.b16 %v5956
    %v7270 = vunpack.c.l.b16 %v5957
    %v7271 = vunpack.c.h.b16 %v5957
    %v7272 = vunpack.c.l.b16 %v5958
    %v7273 = vunpack.c.h.b16 %v5958
    %v7274 = vunpack.c.l.b16 %v5959
    %v7275 = vunpack.c.h.b16 %v5959
    %v7276 = vunpack.c.l.b16 %v5960
    %v7277 = vunpack.c.h.b16 %v5960
    %v7278 = vunpack.c.l.b16 %v5961
    %v7279 = vunpack.c.h.b16 %v5961
    %v7280 = vunpack.c.l.b16 %v5962
    %v7281 = vunpack.c.h.b16 %v5962
    %v7282 = vunpack.c.l.b16 %v5963
    %v7283 = vunpack.c.h.b16 %v5963
    %v7284 = vunpack.c.l.b16 %v5964
    %v7285 = vunpack.c.h.b16 %v5964
    %v7286 = vunpack.c.l.b16 %v5965
    %v7287 = vunpack.c.h.b16 %v5965
    %v7288 = vunpack.c.l.b16 %v5966
    %v7289 = vunpack.c.h.b16 %v5966
    %v7290 = vunpack.c.l.b16 %v5967
    %v7291 = vunpack.c.h.b16 %v5967
    %v7292 = vunpack.c.l.b16 %v5968
    %v7293 = vunpack.c.h.b16 %v5968
    %v7294 = vunpack.c.l.b16 %v5969
    %v7295 = vunpack.c.h.b16 %v5969
    %v7296 = vunpack.c.l.b16 %v5970
    %v7297 = vunpack.c.h.b16 %v5970
    %v7298 = vunpack.c.l.b16 %v5971
    %v7299 = vunpack.c.h.b16 %v5971
    %v7300 = vunpack.c.l.b16 %v5972
    %v7301 = vunpack.c.h.b16 %v5972
    %v7302 = vunpack.c.l.b16 %v5973
    %v7303 = vunpack.c.h.b16 %v5973
    %v7304 = vunpack.c.l.b16 %v5974
    %v7305 = vunpack.c.h.b16 %v5974
    %v7306 = vunpack.c.l.b16 %v5975
    %v7307 = vunpack.c.h.b16 %v5975
    %v7308 = vunpack.c.l.b16 %v5976
    %v7309 = vunpack.c.h.b16 %v5976
    %v7310 = vunpack.c.l.b16 %v5977
    %v7311 = vunpack.c.h.b16 %v5977
    %v7312 = vunpack.c.l.b16 %v5978
    %v7313 = vunpack.c.h.b16 %v5978
    %v7314 = vunpack.c.l.b16 %v5979
    %v7315 = vunpack.c.h.b16 %v5979
    %v7316 = vunpack.c.l.b16 %v5980
    %v7317 = vunpack.c.h.b16 %v5980
    %v7318 = vunpack.c.l.b16 %v5981
    %v7319 = vunpack.c.h.b16 %v5981
    %v7320 = vunpack.c.l.b16 %v5982
    %v7321 = vunpack.c.h.b16 %v5982
    %v7322 = vunpack.c.l.b16 %v5983
    %v7323 = vunpack.c.h.b16 %v5983
    %v7324 = vunpack.c.l.b16 %v5984
    %v7325 = vunpack.c.h.b16 %v5984
    %v7326 = vunpack.c.l.b16 %v5985
    %v7327 = vunpack.c.h.b16 %v5985
    %v7328 = vunpack.c.l.b16 %v5986
    %v7329 = vunpack.c.h.b16 %v5986
    %v7330 = vunpack.c.l.b16 %v5987
    %v7331 = vunpack.c.h.b16 %v5987
    %v7332 = vunpack.c.l.b16 %v5988
    %v7333 = vunpack.c.h.b16 %v5988
    %v7334 = vunpack.c.l.b16 %v5989
    %v7335 = vunpack.c.h.b16 %v5989
    %v7336 = vunpack.c.l.b16 %v5990
    %v7337 = vunpack.c.h.b16 %v5990
    %v7338 = vunpack.c.l.b16 %v5991
    %v7339 = vunpack.c.h.b16 %v5991
    %v7340 = vunpack.c.l.b16 %v5992
    %v7341 = vunpack.c.h.b16 %v5992
    %v7342 = vunpack.c.l.b16 %v5993
    %v7343 = vunpack.c.h.b16 %v5993
    %v7344 = vunpack.c.l.b16 %v5994
    %v7345 = vunpack.c.h.b16 %v5994
    %v7346 = vunpack.c.l.b16 %v5995
    %v7347 = vunpack.c.h.b16 %v5995
    %v7348 = vunpack.c.l.b16 %v5996
    %v7349 = vunpack.c.h.b16 %v5996
    %v7350 = vunpack.c.l.b16 %v5997
    %v7351 = vunpack.c.h.b16 %v5997
    %v7352 = vunpack.c.l.b16 %v5998
    %v7353 = vunpack.c.h.b16 %v5998
    %v7354 = vunpack.c.l.b16 %v5999
    %v7355 = vunpack.c.h.b16 %v5999
    %v7356 = vunpack.c.l.b16 %v6000
    %v7357 = vunpack.c.h.b16 %v6000
    %v7358 = vunpack.c.l.b16 %v6001
    %v7359 = vunpack.c.h.b16 %v6001
    %v7360 = vunpack.c.l.b16 %v6002
    %v7361 = vunpack.c.h.b16 %v6002
    %v7362 = vunpack.c.l.b16 %v6003
    %v7363 = vunpack.c.h.b16 %v6003
    %v7364 = vunpack.c.l.b16 %v6004
    %v7365 = vunpack.c.h.b16 %v6004
    %v7366 = vunpack.c.l.b16 %v6005
    %v7367 = vunpack.c.h.b16 %v6005
    %v7368 = vunpack.c.l.b16 %v6006
    %v7369 = vunpack.c.h.b16 %v6006
    %v7370 = vunpack.c.l.b16 %v6007
    %v7371 = vunpack.c.h.b16 %v6007
    %v7372 = vunpack.c.l.b16 %v6008
    %v7373 = vunpack.c.h.b16 %v6008
    %v7374 = vunpack.c.l.b16 %v6009
    %v7375 = vunpack.c.h.b16 %v6009
    %v7376 = vunpack.c.l.b16 %v6010
    %v7377 = vunpack.c.h.b16 %v6010
    %v7378 = vunpack.c.l.b16 %v6011
    %v7379 = vunpack.c.h.b16 %v6011
    %v7380 = vunpack.c.l.b16 %v6012
    %v7381 = vunpack.c.h.b16 %v6012
    %v7382 = vunpack.c.l.b16 %v6013
    %v7383 = vunpack.c.h.b16 %v6013
    %v7384 = vunpack.c.l.b16 %v6014
    %v7385 = vunpack.c.h.b16 %v6014
    %v7386 = vunpack.c.l.b16 %v6015
    %v7387 = vunpack.c.h.b16 %v6015
    %v7388 = vunpack.c.l.b16 %v6016
    %v7389 = vunpack.c.h.b16 %v6016
    %v7390 = vunpack.c.l.b16 %v6017
    %v7391 = vunpack.c.h.b16 %v6017
    %v7392 = vunpack.c.l.b16 %v6018
    %v7393 = vunpack.c.h.b16 %v6018
    %v7394 = vunpack.c.l.b16 %v6019
    %v7395 = vunpack.c.h.b16 %v6019
    %v7396 = vunpack.c.l.b16 %v6020
    %v7397 = vunpack.c.h.b16 %v6020
    %v7398 = vunpack.c.l.b16 %v6021
    %v7399 = vunpack.c.h.b16 %v6021
    %v7400 = vunpack.c.l.b16 %v6022
    %v7401 = vunpack.c.h.b16 %v6022
    %v7402 = vunpack.c.l.b16 %v6023
    %v7403 = vunpack.c.h.b16 %v6023
    %v7404 = vunpack.c.l.b16 %v6024
    %v7405 = vunpack.c.h.b16 %v6024
    %v7406 = vunpack.c.l.b16 %v6025
    %v7407 = vunpack.c.h.b16 %v6025
    %v7408 = vunpack.c.l.b16 %v6026
    %v7409 = vunpack.c.h.b16 %v6026
    %v7410 = vunpack.c.l.b16 %v6027
    %v7411 = vunpack.c.h.b16 %v6027
    %v7412 = vunpack.c.l.b16 %v6028
    %v7413 = vunpack.c.h.b16 %v6028
    %v7414 = vunpack.c.l.b16 %v6029
    %v7415 = vunpack.c.h.b16 %v6029
    %v7416 = vunpack.c.l.b16 %v6030
    %v7417 = vunpack.c.h.b16 %v6030
    %v7418 = vunpack.c.l.b16 %v6031
    %v7419 = vunpack.c.h.b16 %v6031
    %v7420 = vunpack.c.l.b16 %v6032
    %v7421 = vunpack.c.h.b16 %v6032
    %v7422 = vunpack.c.l.b16 %v6033
    %v7423 = vunpack.c.h.b16 %v6033
    %v7424 = vunpack.c.l.b16 %v6034
    %v7425 = vunpack.c.h.b16 %v6034
    %v7426 = vunpack.c.l.b16 %v6035
    %v7427 = vunpack.c.h.b16 %v6035
    %v7428 = vunpack.c.l.b16 %v6036
    %v7429 = vunpack.c.h.b16 %v6036
    %v7430 = vunpack.c.l.b16 %v6037
    %v7431 = vunpack.c.h.b16 %v6037
    %v7432 = vunpack.c.l.b16 %v6038
    %v7433 = vunpack.c.h.b16 %v6038
    %v7434 = vunpack.c.l.b16 %v6039
    %v7435 = vunpack.c.h.b16 %v6039
    %v7436 = vunpack.c.l.b16 %v6040
    %v7437 = vunpack.c.h.b16 %v6040
    %v7438 = vunpack.c.l.b16 %v6041
    %v7439 = vunpack.c.h.b16 %v6041
    %v7440 = vunpack.c.l.b16 %v6042
    %v7441 = vunpack.c.h.b16 %v6042
    %v7442 = vunpack.c.l.b16 %v6043
    %v7443 = vunpack.c.h.b16 %v6043
    %v7444 = vunpack.c.l.b16 %v6044
    %v7445 = vunpack.c.h.b16 %v6044
    %v7446 = vunpack.c.l.b16 %v6045
    %v7447 = vunpack.c.h.b16 %v6045
    %v7448 = vunpack.c.l.b16 %v6046
    %v7449 = vunpack.c.h.b16 %v6046
    %v7450 = vunpack.c.l.b16 %v6047
    %v7451 = vunpack.c.h.b16 %v6047
    %v7452 = vunpack.c.l.b16 %v6048
    %v7453 = vunpack.c.h.b16 %v6048
    %v7454 = vunpack.c.l.b16 %v6049
    %v7455 = vunpack.c.h.b16 %v6049
    %v7456 = vunpack.c.l.b16 %v6050
    %v7457 = vunpack.c.h.b16 %v6050
    %v7458 = vunpack.c.l.b16 %v6051
    %v7459 = vunpack.c.h.b16 %v6051
    %v7460 = vunpack.c.l.b16 %v6052
    %v7461 = vunpack.c.h.b16 %v6052
    %v7462 = vunpack.c.l.b16 %v6053
    %v7463 = vunpack.c.h.b16 %v6053
    %v7464 = vunpack.c.l.b16 %v6054
    %v7465 = vunpack.c.h.b16 %v6054
    %v7466 = vunpack.c.l.b16 %v6055
    %v7467 = vunpack.c.h.b16 %v6055
    %v7468 = vunpack.c.l.b16 %v6056
    %v7469 = vunpack.c.h.b16 %v6056
    %v7470 = vunpack.c.l.b16 %v6057
    %v7471 = vunpack.c.h.b16 %v6057
    %v7472 = vunpack.c.l.b16 %v6058
    %v7473 = vunpack.c.h.b16 %v6058
    %v7474 = vunpack.c.l.b16 %v6059
    %v7475 = vunpack.c.h.b16 %v6059
    %v7476 = vunpack.c.l.b16 %v6060
    %v7477 = vunpack.c.h.b16 %v6060
    %v7478 = vunpack.c.l.b16 %v6061
    %v7479 = vunpack.c.h.b16 %v6061
    %v7480 = vunpack.c.l.b16 %v6062
    %v7481 = vunpack.c.h.b16 %v6062
    %v7482 = vunpack.c.l.b16 %v6063
    %v7483 = vunpack.c.h.b16 %v6063
    %v7484 = vunpack.c.l.b16 %v6064
    %v7485 = vunpack.c.h.b16 %v6064
    %v7486 = vunpack.c.l.b16 %v6065
    %v7487 = vunpack.c.h.b16 %v6065
    %v7488 = vunpack.c.l.b16 %v6066
    %v7489 = vunpack.c.h.b16 %v6066
    %v7490 = vunpack.c.l.b16 %v6067
    %v7491 = vunpack.c.h.b16 %v6067
    %v7492 = vunpack.c.l.b16 %v6068
    %v7493 = vunpack.c.h.b16 %v6068
    %v7494 = vunpack.c.l.b16 %v6069
    %v7495 = vunpack.c.h.b16 %v6069
    %v7496 = vunpack.c.l.b16 %v6070
    %v7497 = vunpack.c.h.b16 %v6070
    %v7498 = vunpack.c.l.b16 %v6071
    %v7499 = vunpack.c.h.b16 %v6071
    %v7500 = vunpack.c.l.b16 %v6072
    %v7501 = vunpack.c.h.b16 %v6072
    %v7502 = vunpack.c.l.b16 %v6073
    %v7503 = vunpack.c.h.b16 %v6073
    %v7504 = vunpack.c.l.b16 %v6074
    %v7505 = vunpack.c.h.b16 %v6074
    %v7506 = vunpack.c.l.b16 %v6075
    %v7507 = vunpack.c.h.b16 %v6075
    %v7508 = vunpack.c.l.b16 %v6076
    %v7509 = vunpack.c.h.b16 %v6076
    %v7510 = vunpack.c.l.b16 %v6077
    %v7511 = vunpack.c.h.b16 %v6077
    %v7512 = vunpack.c.l.b16 %v6078
    %v7513 = vunpack.c.h.b16 %v6078
    %v7514 = vunpack.c.l.b16 %v6079
    %v7515 = vunpack.c.h.b16 %v6079
    %v7516 = vunpack.c.l.b16 %v6080
    %v7517 = vunpack.c.h.b16 %v6080
    %v7518 = vunpack.c.l.b16 %v6081
    %v7519 = vunpack.c.h.b16 %v6081
    %v7520 = vunpack.c.l.b16 %v6082
    %v7521 = vunpack.c.h.b16 %v6082
    %v7522 = vunpack.c.l.b16 %v6083
    %v7523 = vunpack.c.h.b16 %v6083
    %v7524 = vunpack.c.l.b16 %v6084
    %v7525 = vunpack.c.h.b16 %v6084
    %v7526 = vunpack.c.l.b16 %v6085
    %v7527 = vunpack.c.h.b16 %v6085
    %v7528 = vunpack.c.l.b16 %v6086
    %v7529 = vunpack.c.h.b16 %v6086
    %v7530 = vunpack.c.l.b16 %v6087
    %v7531 = vunpack.c.h.b16 %v6087
    %v7532 = vunpack.c.l.b16 %v6088
    %v7533 = vunpack.c.h.b16 %v6088
    %v7534 = vunpack.c.l.b16 %v6089
    %v7535 = vunpack.c.h.b16 %v6089
    %v7536 = vunpack.c.l.b16 %v6090
    %v7537 = vunpack.c.h.b16 %v6090
    %v7538 = vunpack.c.l.b16 %v6091
    %v7539 = vunpack.c.h.b16 %v6091
    %v7540 = vunpack.c.l.b16 %v6092
    %v7541 = vunpack.c.h.b16 %v6092
    %v7542 = vunpack.c.l.b16 %v6093
    %v7543 = vunpack.c.h.b16 %v6093
    %v7544 = vunpack.c.l.b16 %v6094
    %v7545 = vunpack.c.h.b16 %v6094
    %v7546 = vunpack.c.l.b16 %v6095
    %v7547 = vunpack.c.h.b16 %v6095
    %v7548 = vunpack.c.l.b16 %v6096
    %v7549 = vunpack.c.h.b16 %v6096
    %v7550 = vunpack.c.l.b16 %v6097
    %v7551 = vunpack.c.h.b16 %v6097
    %v7552 = vunpack.c.l.b16 %v6098
    %v7553 = vunpack.c.h.b16 %v6098
    %v7554 = vunpack.c.l.b16 %v6099
    %v7555 = vunpack.c.h.b16 %v6099
    %v7556 = vunpack.c.l.b16 %v6100
    %v7557 = vunpack.c.h.b16 %v6100
    %v7558 = vunpack.c.l.b16 %v6101
    %v7559 = vunpack.c.h.b16 %v6101
    %v7560 = vunpack.c.l.b16 %v6102
    %v7561 = vunpack.c.h.b16 %v6102
    %v7562 = vunpack.c.l.b16 %v6103
    %v7563 = vunpack.c.h.b16 %v6103
    %v7564 = vunpack.c.l.b16 %v6104
    %v7565 = vunpack.c.h.b16 %v6104
    %v7566 = vunpack.c.l.b16 %v6105
    %v7567 = vunpack.c.h.b16 %v6105
    %v7568 = vunpack.c.l.b16 %v6106
    %v7569 = vunpack.c.h.b16 %v6106
    %v7570 = vunpack.c.l.b16 %v6107
    %v7571 = vunpack.c.h.b16 %v6107
    %v7572 = vunpack.c.l.b16 %v6108
    %v7573 = vunpack.c.h.b16 %v6108
    %v7574 = vunpack.c.l.b16 %v6109
    %v7575 = vunpack.c.h.b16 %v6109
    %v7576 = vunpack.c.l.b16 %v6110
    %v7577 = vunpack.c.h.b16 %v6110
    %v7578 = vunpack.c.l.b16 %v6111
    %v7579 = vunpack.c.h.b16 %v6111
    %v7580 = vunpack.c.l.b16 %v6112
    %v7581 = vunpack.c.h.b16 %v6112
    %v7582 = vunpack.c.l.b16 %v6113
    %v7583 = vunpack.c.h.b16 %v6113
    %v7584 = vunpack.c.l.b16 %v6114
    %v7585 = vunpack.c.h.b16 %v6114
    %v7586 = vunpack.c.l.b16 %v6115
    %v7587 = vunpack.c.h.b16 %v6115
    %v7588 = vunpack.c.l.b16 %v6116
    %v7589 = vunpack.c.h.b16 %v6116
    %v7590 = vunpack.c.l.b16 %v6117
    %v7591 = vunpack.c.h.b16 %v6117
    %v7592 = vunpack.c.l.b16 %v6118
    %v7593 = vunpack.c.h.b16 %v6118
    %v7594 = vunpack.c.l.b16 %v6119
    %v7595 = vunpack.c.h.b16 %v6119
    %v7596 = vunpack.c.l.b16 %v6120
    %v7597 = vunpack.c.h.b16 %v6120
    %v7598 = vunpack.c.l.b16 %v6121
    %v7599 = vunpack.c.h.b16 %v6121
    %v7600 = vunpack.c.l.b16 %v6122
    %v7601 = vunpack.c.h.b16 %v6122
    %v7602 = vunpack.c.l.b16 %v6123
    %v7603 = vunpack.c.h.b16 %v6123
    %v7604 = vunpack.c.l.b16 %v6124
    %v7605 = vunpack.c.h.b16 %v6124
    %v7606 = vunpack.c.l.b16 %v6125
    %v7607 = vunpack.c.h.b16 %v6125
    %v7608 = vunpack.c.l.b16 %v6126
    %v7609 = vunpack.c.h.b16 %v6126
    %v7610 = vunpack.c.l.b16 %v6127
    %v7611 = vunpack.c.h.b16 %v6127
    %v7612 = vunpack.c.l.b16 %v6128
    %v7613 = vunpack.c.h.b16 %v6128
    %v7614 = vunpack.c.l.b16 %v6129
    %v7615 = vunpack.c.h.b16 %v6129
    %v7616 = vunpack.c.l.b16 %v6130
    %v7617 = vunpack.c.h.b16 %v6130
    %v7618 = vunpack.c.l.b16 %v6131
    %v7619 = vunpack.c.h.b16 %v6131
    %v7620 = vunpack.c.l.b16 %v6132
    %v7621 = vunpack.c.h.b16 %v6132
    %v7622 = vunpack.c.l.b16 %v6133
    %v7623 = vunpack.c.h.b16 %v6133
    %v7624 = vunpack.c.l.b16 %v6134
    %v7625 = vunpack.c.h.b16 %v6134
    %v7626 = vunpack.c.l.b16 %v6135
    %v7627 = vunpack.c.h.b16 %v6135
    %v7628 = vunpack.c.l.b16 %v6136
    %v7629 = vunpack.c.h.b16 %v6136
    %v7630 = vunpack.c.l.b16 %v6137
    %v7631 = vunpack.c.h.b16 %v6137
    %v7632 = vunpack.c.l.b16 %v6138
    %v7633 = vunpack.c.h.b16 %v6138
    %v7634 = vunpack.c.l.b16 %v6139
    %v7635 = vunpack.c.h.b16 %v6139
    %v7636 = vunpack.c.l.b16 %v6140
    %v7637 = vunpack.c.h.b16 %v6140
    %v7638 = vunpack.c.l.b16 %v6141
    %v7639 = vunpack.c.h.b16 %v6141
    %v7640 = vunpack.c.l.b16 %v6142
    %v7641 = vunpack.c.h.b16 %v6142
    %v7642 = vunpack.c.l.b16 %v6143
    %v7643 = vunpack.c.h.b16 %v6143
    %v7644 = vunpack.c.l.b16 %v6144
    %v7645 = vunpack.c.h.b16 %v6144
    %v7646 = vunpack.c.l.b16 %v6145
    %v7647 = vunpack.c.h.b16 %v6145
    %v7648 = vunpack.c.l.b16 %v6146
    %v7649 = vunpack.c.h.b16 %v6146
    %v7650 = vunpack.c.l.b16 %v6147
    %v7651 = vunpack.c.h.b16 %v6147
    %v7652 = vunpack.c.l.b16 %v6148
    %v7653 = vunpack.c.h.b16 %v6148
    %v7654 = vunpack.c.l.b16 %v6149
    %v7655 = vunpack.c.h.b16 %v6149
    %v7656 = vunpack.c.l.b16 %v6150
    %v7657 = vunpack.c.h.b16 %v6150
    %v7658 = vunpack.c.l.b16 %v6151
    %v7659 = vunpack.c.h.b16 %v6151
    %v7660 = vunpack.c.l.b16 %v6152
    %v7661 = vunpack.c.h.b16 %v6152
    %v7662 = vunpack.c.l.b16 %v6153
    %v7663 = vunpack.c.h.b16 %v6153
    %v7664 = vunpack.c.l.b16 %v6154
    %v7665 = vunpack.c.h.b16 %v6154
    %v7666 = vunpack.c.l.b16 %v6155
    %v7667 = vunpack.c.h.b16 %v6155
    %v7668 = vunpack.c.l.b16 %v6156
    %v7669 = vunpack.c.h.b16 %v6156
    %v7670 = vunpack.c.l.b16 %v6157
    %v7671 = vunpack.c.h.b16 %v6157
    %v7672 = vunpack.c.l.b16 %v6158
    %v7673 = vunpack.c.h.b16 %v6158
    %v7674 = vunpack.c.l.b16 %v6159
    %v7675 = vunpack.c.h.b16 %v6159
    %v7676 = vunpack.c.l.b16 %v6160
    %v7677 = vunpack.c.h.b16 %v6160
    %v7678 = vunpack.c.l.b16 %v6161
    %v7679 = vunpack.c.h.b16 %v6161
    %v7680 = vunpack.c.l.b16 %v6162
    %v7681 = vunpack.c.h.b16 %v6162
    %v7682 = vunpack.c.l.b16 %v6163
    %v7683 = vunpack.c.h.b16 %v6163
    %v7684 = vunpack.c.l.b16 %v6164
    %v7685 = vunpack.c.h.b16 %v6164
    %v7686 = vunpack.c.l.b16 %v6165
    %v7687 = vunpack.c.h.b16 %v6165
    %v7688 = vunpack.c.l.b16 %v6166
    %v7689 = vunpack.c.h.b16 %v6166
    %v7690 = vunpack.c.l.b16 %v6167
    %v7691 = vunpack.c.h.b16 %v6167
    %v7692 = vunpack.c.l.b16 %v6168
    %v7693 = vunpack.c.h.b16 %v6168
    %v7694 = vunpack.c.l.b16 %v6169
    %v7695 = vunpack.c.h.b16 %v6169
    %v7696 = vunpack.c.l.b16 %v6170
    %v7697 = vunpack.c.h.b16 %v6170
    %v7698 = vunpack.c.l.b16 %v6171
    %v7699 = vunpack.c.h.b16 %v6171
    %v7700 = vunpack.c.l.b16 %v6172
    %v7701 = vunpack.c.h.b16 %v6172
    %v7702 = vunpack.c.l.b16 %v6173
    %v7703 = vunpack.c.h.b16 %v6173
    %v7704 = vunpack.c.l.b16 %v6174
    %v7705 = vunpack.c.h.b16 %v6174
    %v7706 = vunpack.c.l.b16 %v6175
    %v7707 = vunpack.c.h.b16 %v6175
    %v7708 = vunpack.c.l.b16 %v6176
    %v7709 = vunpack.c.h.b16 %v6176
    %v7710 = vunpack.c.l.b16 %v6177
    %v7711 = vunpack.c.h.b16 %v6177
    %v7712 = vunpack.c.l.b16 %v6178
    %v7713 = vunpack.c.h.b16 %v6178
    %v7714 = vunpack.c.l.b16 %v6179
    %v7715 = vunpack.c.h.b16 %v6179
    %v7716 = vunpack.c.l.b16 %v6180
    %v7717 = vunpack.c.h.b16 %v6180
    %v7718 = vunpack.c.l.b16 %v6181
    %v7719 = vunpack.c.h.b16 %v6181
    %v7720 = vunpack.c.l.b16 %v6182
    %v7721 = vunpack.c.h.b16 %v6182
    %v7722 = vunpack.c.l.b16 %v6183
    %v7723 = vunpack.c.h.b16 %v6183
    %v7724 = vunpack.c.l.b16 %v6184
    %v7725 = vunpack.c.h.b16 %v6184
    %v7726 = vunpack.c.l.b16 %v6185
    %v7727 = vunpack.c.h.b16 %v6185
    %v7728 = vunpack.c.l.b16 %v6186
    %v7729 = vunpack.c.h.b16 %v6186
    %v7730 = vunpack.c.l.b16 %v6187
    %v7731 = vunpack.c.h.b16 %v6187
    %v7732 = vunpack.c.l.b16 %v6188
    %v7733 = vunpack.c.h.b16 %v6188
    %v7734 = vunpack.c.l.b16 %v6189
    %v7735 = vunpack.c.h.b16 %v6189
    %v7736 = vunpack.c.l.b16 %v6190
    %v7737 = vunpack.c.h.b16 %v6190
    %v7738 = vunpack.c.l.b16 %v6191
    %v7739 = vunpack.c.h.b16 %v6191
    %v7740 = vunpack.c.l.b16 %v6192
    %v7741 = vunpack.c.h.b16 %v6192
    %v7742 = vunpack.c.l.b16 %v6193
    %v7743 = vunpack.c.h.b16 %v6193
    %v7744 = vunpack.c.l.b16 %v6194
    %v7745 = vunpack.c.h.b16 %v6194
    %v7746 = vunpack.c.l.b16 %v6195
    %v7747 = vunpack.c.h.b16 %v6195
    %v7748 = vunpack.c.l.b16 %v6196
    %v7749 = vunpack.c.h.b16 %v6196
    %v7750 = vunpack.c.l.b16 %v6197
    %v7751 = vunpack.c.h.b16 %v6197
    %v7752 = vunpack.c.l.b16 %v6198
    %v7753 = vunpack.c.h.b16 %v6198
    %v7754 = vunpack.c.l.b16 %v6199
    %v7755 = vunpack.c.h.b16 %v6199
    %v7756 = vunpack.c.l.b16 %v6200
    %v7757 = vunpack.c.h.b16 %v6200
    %v7758 = vunpack.c.l.b16 %v6201
    %v7759 = vunpack.c.h.b16 %v6201
    %v7760 = vpack.c.b16 %v6740, %v6736
    %v7761 = vpack.c.b16 %v6741, %v6737
    %v7762 = vpack.c.b16 %v6742, %v6738
    %v7763 = vpack.c.b16 %v6743, %v6739
    %v7764 = vpack.c.b16 %v6748, %v6744
    %v7765 = vpack.c.b16 %v6749, %v6745
    %v7766 = vpack.c.b16 %v6750, %v6746
    %v7767 = vpack.c.b16 %v6751, %v6747
    %v7768 = vpack.c.b16 %v6756, %v6752
    %v7769 = vpack.c.b16 %v6757, %v6753
    %v7770 = vpack.c.b16 %v6758, %v6754
    %v7771 = vpack.c.b16 %v6759, %v6755
    %v7772 = vpack.c.b16 %v6764, %v6760
    %v7773 = vpack.c.b16 %v6765, %v6761
    %v7774 = vpack.c.b16 %v6766, %v6762
    %v7775 = vpack.c.b16 %v6767, %v6763
    %v7776 = vpack.c.b16 %v6772, %v6768
    %v7777 = vpack.c.b16 %v6773, %v6769
    %v7778 = vpack.c.b16 %v6774, %v6770
    %v7779 = vpack.c.b16 %v6775, %v6771
    %v7780 = vpack.c.b16 %v6780, %v6776
    %v7781 = vpack.c.b16 %v6781, %v6777
    %v7782 = vpack.c.b16 %v6782, %v6778
    %v7783 = vpack.c.b16 %v6783, %v6779
    %v7784 = vpack.c.b16 %v6788, %v6784
    %v7785 = vpack.c.b16 %v6789, %v6785
    %v7786 = vpack.c.b16 %v6790, %v6786
    %v7787 = vpack.c.b16 %v6791, %v6787
    %v7788 = vpack.c.b16 %v6796, %v6792
    %v7789 = vpack.c.b16 %v6797, %v6793
    %v7790 = vpack.c.b16 %v6798, %v6794
    %v7791 = vpack.c.b16 %v6799, %v6795
    %v7792 = vpack.c.b16 %v6804, %v6800
    %v7793 = vpack.c.b16 %v6805, %v6801
    %v7794 = vpack.c.b16 %v6806, %v6802
    %v7795 = vpack.c.b16 %v6807, %v6803
    %v7796 = vpack.c.b16 %v6812, %v6808
    %v7797 = vpack.c.b16 %v6813, %v6809
    %v7798 = vpack.c.b16 %v6814, %v6810
    %v7799 = vpack.c.b16 %v6815, %v6811
    %v7800 = vpack.c.b16 %v6820, %v6816
    %v7801 = vpack.c.b16 %v6821, %v6817
    %v7802 = vpack.c.b16 %v6822, %v6818
    %v7803 = vpack.c.b16 %v6823, %v6819
    %v7804 = vpack.c.b16 %v6828, %v6824
    %v7805 = vpack.c.b16 %v6829, %v6825
    %v7806 = vpack.c.b16 %v6830, %v6826
    %v7807 = vpack.c.b16 %v6831, %v6827
    %v7808 = vpack.c.b16 %v6836, %v6832
    %v7809 = vpack.c.b16 %v6837, %v6833
    %v7810 = vpack.c.b16 %v6838, %v6834
    %v7811 = vpack.c.b16 %v6839, %v6835
    %v7812 = vpack.c.b16 %v6844, %v6840
    %v7813 = vpack.c.b16 %v6845, %v6841
    %v7814 = vpack.c.b16 %v6846, %v6842
    %v7815 = vpack.c.b16 %v6847, %v6843
    %v7816 = vpack.c.b16 %v6852, %v6848
    %v7817 = vpack.c.b16 %v6853, %v6849
    %v7818 = vpack.c.b16 %v6854, %v6850
    %v7819 = vpack.c.b16 %v6855, %v6851
    %v7820 = vpack.c.b16 %v6860, %v6856
    %v7821 = vpack.c.b16 %v6861, %v6857
    %v7822 = vpack.c.b16 %v6862, %v6858
    %v7823 = vpack.c.b16 %v6863, %v6859
    %v7824 = vpack.c.b16 %v6868, %v6864
    %v7825 = vpack.c.b16 %v6869, %v6865
    %v7826 = vpack.c.b16 %v6870, %v6866
    %v7827 = vpack.c.b16 %v6871, %v6867
    %v7828 = vpack.c.b16 %v6876, %v6872
    %v7829 = vpack.c.b16 %v6877, %v6873
    %v7830 = vpack.c.b16 %v6878, %v6874
    %v7831 = vpack.c.b16 %v6879, %v6875
    %v7832 = vpack.c.b16 %v6884, %v6880
    %v7833 = vpack.c.b16 %v6885, %v6881
    %v7834 = vpack.c.b16 %v6886, %v6882
    %v7835 = vpack.c.b16 %v6887, %v6883
    %v7836 = vpack.c.b16 %v6892, %v6888
    %v7837 = vpack.c.b16 %v6893, %v6889
    %v7838 = vpack.c.b16 %v6894, %v6890
    %v7839 = vpack.c.b16 %v6895, %v6891
    %v7840 = vpack.c.b16 %v6900, %v6896
    %v7841 = vpack.c.b16 %v6901, %v6897
    %v7842 = vpack.c.b16 %v6902, %v6898
    %v7843 = vpack.c.b16 %v6903, %v6899
    %v7844 = vpack.c.b16 %v6908, %v6904
    %v7845 = vpack.c.b16 %v6909, %v6905
    %v7846 = vpack.c.b16 %v6910, %v6906
    %v7847 = vpack.c.b16 %v6911, %v6907
    %v7848 = vpack.c.b16 %v6916, %v6912
    %v7849 = vpack.c.b16 %v6917, %v6913
    %v7850 = vpack.c.b16 %v6918, %v6914
    %v7851 = vpack.c.b16 %v6919, %v6915
    %v7852 = vpack.c.b16 %v6924, %v6920
    %v7853 = vpack.c.b16 %v6925, %v6921
    %v7854 = vpack.c.b16 %v6926, %v6922
    %v7855 = vpack.c.b16 %v6927, %v6923
    %v7856 = vpack.c.b16 %v6932, %v6928
    %v7857 = vpack.c.b16 %v6933, %v6929
    %v7858 = vpack.c.b16 %v6934, %v6930
    %v7859 = vpack.c.b16 %v6935, %v6931
    %v7860 = vpack.c.b16 %v6940, %v6936
    %v7861 = vpack.c.b16 %v6941, %v6937
    %v7862 = vpack.c.b16 %v6942, %v6938
    %v7863 = vpack.c.b16 %v6943, %v6939
    %v7864 = vpack.c.b16 %v6948, %v6944
    %v7865 = vpack.c.b16 %v6949, %v6945
    %v7866 = vpack.c.b16 %v6950, %v6946
    %v7867 = vpack.c.b16 %v6951, %v6947
    %v7868 = vpack.c.b16 %v6956, %v6952
    %v7869 = vpack.c.b16 %v6957, %v6953
    %v7870 = vpack.c.b16 %v6958, %v6954
    %v7871 = vpack.c.b16 %v6959, %v6955
    %v7872 = vpack.c.b16 %v6964, %v6960
    %v7873 = vpack.c.b16 %v6965, %v6961
    %v7874 = vpack.c.b16 %v6966, %v6962
    %v7875 = vpack.c.b16 %v6967, %v6963
    %v7876 = vpack.c.b16 %v6972, %v6968
    %v7877 = vpack.c.b16 %v6973, %v6969
    %v7878 = vpack.c.b16 %v6974, %v6970
    %v7879 = vpack.c.b16 %v6975, %v6971
    %v7880 = vpack.c.b16 %v6980, %v6976
    %v7881 = vpack.c.b16 %v6981, %v6977
    %v7882 = vpack.c.b16 %v6982, %v6978
    %v7883 = vpack.c.b16 %v6983, %v6979
    %v7884 = vpack.c.b16 %v6988, %v6984
    %v7885 = vpack.c.b16 %v6989, %v6985
    %v7886 = vpack.c.b16 %v6990, %v6986
    %v7887 = vpack.c.b16 %v6991, %v6987
    %v7888 = vpack.c.b16 %v6996, %v6992
    %v7889 = vpack.c.b16 %v6997, %v6993
    %v7890 = vpack.c.b16 %v6998, %v6994
    %v7891 = vpack.c.b16 %v6999, %v6995
    %v7892 = vpack.c.b16 %v7004, %v7000
    %v7893 = vpack.c.b16 %v7005, %v7001
    %v7894 = vpack.c.b16 %v7006, %v7002
    %v7895 = vpack.c.b16 %v7007, %v7003
    %v7896 = vpack.c.b16 %v7012, %v7008
    %v7897 = vpack.c.b16 %v7013, %v7009
    %v7898 = vpack.c.b16 %v7014, %v7010
    %v7899 = vpack.c.b16 %v7015, %v7011
    %v7900 = vpack.c.b16 %v7020, %v7016
    %v7901 = vpack.c.b16 %v7021, %v7017
    %v7902 = vpack.c.b16 %v7022, %v7018
    %v7903 = vpack.c.b16 %v7023, %v7019
    %v7904 = vpack.c.b16 %v7028, %v7024
    %v7905 = vpack.c.b16 %v7029, %v7025
    %v7906 = vpack.c.b16 %v7030, %v7026
    %v7907 = vpack.c.b16 %v7031, %v7027
    %v7908 = vpack.c.b16 %v7036, %v7032
    %v7909 = vpack.c.b16 %v7037, %v7033
    %v7910 = vpack.c.b16 %v7038, %v7034
    %v7911 = vpack.c.b16 %v7039, %v7035
    %v7912 = vpack.c.b16 %v7044, %v7040
    %v7913 = vpack.c.b16 %v7045, %v7041
    %v7914 = vpack.c.b16 %v7046, %v7042
    %v7915 = vpack.c.b16 %v7047, %v7043
    %v7916 = vpack.c.b16 %v7052, %v7048
    %v7917 = vpack.c.b16 %v7053, %v7049
    %v7918 = vpack.c.b16 %v7054, %v7050
    %v7919 = vpack.c.b16 %v7055, %v7051
    %v7920 = vpack.c.b16 %v7060, %v7056
    %v7921 = vpack.c.b16 %v7061, %v7057
    %v7922 = vpack.c.b16 %v7062, %v7058
    %v7923 = vpack.c.b16 %v7063, %v7059
    %v7924 = vpack.c.b16 %v7068, %v7064
    %v7925 = vpack.c.b16 %v7069, %v7065
    %v7926 = vpack.c.b16 %v7070, %v7066
    %v7927 = vpack.c.b16 %v7071, %v7067
    %v7928 = vpack.c.b16 %v7076, %v7072
    %v7929 = vpack.c.b16 %v7077, %v7073
    %v7930 = vpack.c.b16 %v7078, %v7074
    %v7931 = vpack.c.b16 %v7079, %v7075
    %v7932 = vpack.c.b16 %v7084, %v7080
    %v7933 = vpack.c.b16 %v7085, %v7081
    %v7934 = vpack.c.b16 %v7086, %v7082
    %v7935 = vpack.c.b16 %v7087, %v7083
    %v7936 = vpack.c.b16 %v7092, %v7088
    %v7937 = vpack.c.b16 %v7093, %v7089
    %v7938 = vpack.c.b16 %v7094, %v7090
    %v7939 = vpack.c.b16 %v7095, %v7091
    %v7940 = vpack.c.b16 %v7100, %v7096
    %v7941 = vpack.c.b16 %v7101, %v7097
    %v7942 = vpack.c.b16 %v7102, %v7098
    %v7943 = vpack.c.b16 %v7103, %v7099
    %v7944 = vpack.c.b16 %v7108, %v7104
    %v7945 = vpack.c.b16 %v7109, %v7105
    %v7946 = vpack.c.b16 %v7110, %v7106
    %v7947 = vpack.c.b16 %v7111, %v7107
    %v7948 = vpack.c.b16 %v7116, %v7112
    %v7949 = vpack.c.b16 %v7117, %v7113
    %v7950 = vpack.c.b16 %v7118, %v7114
    %v7951 = vpack.c.b16 %v7119, %v7115
    %v7952 = vpack.c.b16 %v7124, %v7120
    %v7953 = vpack.c.b16 %v7125, %v7121
    %v7954 = vpack.c.b16 %v7126, %v7122
    %v7955 = vpack.c.b16 %v7127, %v7123
    %v7956 = vpack.c.b16 %v7132, %v7128
    %v7957 = vpack.c.b16 %v7133, %v7129
    %v7958 = vpack.c.b16 %v7134, %v7130
    %v7959 = vpack.c.b16 %v7135, %v7131
    %v7960 = vpack.c.b16 %v7140, %v7136
    %v7961 = vpack.c.b16 %v7141, %v7137
    %v7962 = vpack.c.b16 %v7142, %v7138
    %v7963 = vpack.c.b16 %v7143, %v7139
    %v7964 = vpack.c.b16 %v7148, %v7144
    %v7965 = vpack.c.b16 %v7149, %v7145
    %v7966 = vpack.c.b16 %v7150, %v7146
    %v7967 = vpack.c.b16 %v7151, %v7147
    %v7968 = vpack.c.b16 %v7156, %v7152
    %v7969 = vpack.c.b16 %v7157, %v7153
    %v7970 = vpack.c.b16 %v7158, %v7154
    %v7971 = vpack.c.b16 %v7159, %v7155
    %v7972 = vpack.c.b16 %v7164, %v7160
    %v7973 = vpack.c.b16 %v7165, %v7161
    %v7974 = vpack.c.b16 %v7166, %v7162
    %v7975 = vpack.c.b16 %v7167, %v7163
    %v7976 = vpack.c.b16 %v7172, %v7168
    %v7977 = vpack.c.b16 %v7173, %v7169
    %v7978 = vpack.c.b16 %v7174, %v7170
    %v7979 = vpack.c.b16 %v7175, %v7171
    %v7980 = vpack.c.b16 %v7180, %v7176
    %v7981 = vpack.c.b16 %v7181, %v7177
    %v7982 = vpack.c.b16 %v7182, %v7178
    %v7983 = vpack.c.b16 %v7183, %v7179
    %v7984 = vpack.c.b16 %v7188, %v7184
    %v7985 = vpack.c.b16 %v7189, %v7185
    %v7986 = vpack.c.b16 %v7190, %v7186
    %v7987 = vpack.c.b16 %v7191, %v7187
    %v7988 = vpack.c.b16 %v7196, %v7192
    %v7989 = vpack.c.b16 %v7197, %v7193
    %v7990 = vpack.c.b16 %v7198, %v7194
    %v7991 = vpack.c.b16 %v7199, %v7195
    %v7992 = vpack.c.b16 %v7204, %v7200
    %v7993 = vpack.c.b16 %v7205, %v7201
    %v7994 = vpack.c.b16 %v7206, %v7202
    %v7995 = vpack.c.b16 %v7207, %v7203
    %v7996 = vpack.c.b16 %v7212, %v7208
    %v7997 = vpack.c.b16 %v7213, %v7209
    %v7998 = vpack.c.b16 %v7214, %v7210
    %v7999 = vpack.c.b16 %v7215, %v7211
    %v8000 = vpack.c.b16 %v7220, %v7216
    %v8001 = vpack.c.b16 %v7221, %v7217
    %v8002 = vpack.c.b16 %v7222, %v7218
    %v8003 = vpack.c.b16 %v7223, %v7219
    %v8004 = vpack.c.b16 %v7228, %v7224
    %v8005 = vpack.c.b16 %v7229, %v7225
    %v8006 = vpack.c.b16 %v7230, %v7226
    %v8007 = vpack.c.b16 %v7231, %v7227
    %v8008 = vpack.c.b16 %v7236, %v7232
    %v8009 = vpack.c.b16 %v7237, %v7233
    %v8010 = vpack.c.b16 %v7238, %v7234
    %v8011 = vpack.c.b16 %v7239, %v7235
    %v8012 = vpack.c.b16 %v7244, %v7240
    %v8013 = vpack.c.b16 %v7245, %v7241
    %v8014 = vpack.c.b16 %v7246, %v7242
    %v8015 = vpack.c.b16 %v7247, %v7243
    %v8016 = vpack.c.b16 %v7252, %v7248
    %v8017 = vpack.c.b16 %v7253, %v7249
    %v8018 = vpack.c.b16 %v7254, %v7250
    %v8019 = vpack.c.b16 %v7255, %v7251
    %v8020 = vpack.c.b16 %v7260, %v7256
    %v8021 = vpack.c.b16 %v7261, %v7257
    %v8022 = vpack.c.b16 %v7262, %v7258
    %v8023 = vpack.c.b16 %v7263, %v7259
    %v8024 = vpack.c.b16 %v7268, %v7264
    %v8025 = vpack.c.b16 %v7269, %v7265
    %v8026 = vpack.c.b16 %v7270, %v7266
    %v8027 = vpack.c.b16 %v7271, %v7267
    %v8028 = vpack.c.b16 %v7276, %v7272
    %v8029 = vpack.c.b16 %v7277, %v7273
    %v8030 = vpack.c.b16 %v7278, %v7274
    %v8031 = vpack.c.b16 %v7279, %v7275
    %v8032 = vpack.c.b16 %v7284, %v7280
    %v8033 = vpack.c.b16 %v7285, %v7281
    %v8034 = vpack.c.b16 %v7286, %v7282
    %v8035 = vpack.c.b16 %v7287, %v7283
    %v8036 = vpack.c.b16 %v7292, %v7288
    %v8037 = vpack.c.b16 %v7293, %v7289
    %v8038 = vpack.c.b16 %v7294, %v7290
    %v8039 = vpack.c.b16 %v7295, %v7291
    %v8040 = vpack.c.b16 %v7300, %v7296
    %v8041 = vpack.c.b16 %v7301, %v7297
    %v8042 = vpack.c.b16 %v7302, %v7298
    %v8043 = vpack.c.b16 %v7303, %v7299
    %v8044 = vpack.c.b16 %v7308, %v7304
    %v8045 = vpack.c.b16 %v7309, %v7305
    %v8046 = vpack.c.b16 %v7310, %v7306
    %v8047 = vpack.c.b16 %v7311, %v7307
    %v8048 = vpack.c.b16 %v7316, %v7312
    %v8049 = vpack.c.b16 %v7317, %v7313
    %v8050 = vpack.c.b16 %v7318, %v7314
    %v8051 = vpack.c.b16 %v7319, %v7315
    %v8052 = vpack.c.b16 %v7324, %v7320
    %v8053 = vpack.c.b16 %v7325, %v7321
    %v8054 = vpack.c.b16 %v7326, %v7322
    %v8055 = vpack.c.b16 %v7327, %v7323
    %v8056 = vpack.c.b16 %v7332, %v7328
    %v8057 = vpack.c.b16 %v7333, %v7329
    %v8058 = vpack.c.b16 %v7334, %v7330
    %v8059 = vpack.c.b16 %v7335, %v7331
    %v8060 = vpack.c.b16 %v7340, %v7336
    %v8061 = vpack.c.b16 %v7341, %v7337
    %v8062 = vpack.c.b16 %v7342, %v7338
    %v8063 = vpack.c.b16 %v7343, %v7339
    %v8064 = vpack.c.b16 %v7348, %v7344
    %v8065 = vpack.c.b16 %v7349, %v7345
    %v8066 = vpack.c.b16 %v7350, %v7346
    %v8067 = vpack.c.b16 %v7351, %v7347
    %v8068 = vpack.c.b16 %v7356, %v7352
    %v8069 = vpack.c.b16 %v7357, %v7353
    %v8070 = vpack.c.b16 %v7358, %v7354
    %v8071 = vpack.c.b16 %v7359, %v7355
    %v8072 = vpack.c.b16 %v7364, %v7360
    %v8073 = vpack.c.b16 %v7365, %v7361
    %v8074 = vpack.c.b16 %v7366, %v7362
    %v8075 = vpack.c.b16 %v7367, %v7363
    %v8076 = vpack.c.b16 %v7372, %v7368
    %v8077 = vpack.c.b16 %v7373, %v7369
    %v8078 = vpack.c.b16 %v7374, %v7370
    %v8079 = vpack.c.b16 %v7375, %v7371
    %v8080 = vpack.c.b16 %v7380, %v7376
    %v8081 = vpack.c.b16 %v7381, %v7377
    %v8082 = vpack.c.b16 %v7382, %v7378
    %v8083 = vpack.c.b16 %v7383, %v7379
    %v8084 = vpack.c.b16 %v7388, %v7384
    %v8085 = vpack.c.b16 %v7389, %v7385
    %v8086 = vpack.c.b16 %v7390, %v7386
    %v8087 = vpack.c.b16 %v7391, %v7387
    %v8088 = vpack.c.b16 %v7396, %v7392
    %v8089 = vpack.c.b16 %v7397, %v7393
    %v8090 = vpack.c.b16 %v7398, %v7394
    %v8091 = vpack.c.b16 %v7399, %v7395
    %v8092 = vpack.c.b16 %v7404, %v7400
    %v8093 = vpack.c.b16 %v7405, %v7401
    %v8094 = vpack.c.b16 %v7406, %v7402
    %v8095 = vpack.c.b16 %v7407, %v7403
    %v8096 = vpack.c.b16 %v7412, %v7408
    %v8097 = vpack.c.b16 %v7413, %v7409
    %v8098 = vpack.c.b16 %v7414, %v7410
    %v8099 = vpack.c.b16 %v7415, %v7411
    %v8100 = vpack.c.b16 %v7420, %v7416
    %v8101 = vpack.c.b16 %v7421, %v7417
    %v8102 = vpack.c.b16 %v7422, %v7418
    %v8103 = vpack.c.b16 %v7423, %v7419
    %v8104 = vpack.c.b16 %v7428, %v7424
    %v8105 = vpack.c.b16 %v7429, %v7425
    %v8106 = vpack.c.b16 %v7430, %v7426
    %v8107 = vpack.c.b16 %v7431, %v7427
    %v8108 = vpack.c.b16 %v7436, %v7432
    %v8109 = vpack.c.b16 %v7437, %v7433
    %v8110 = vpack.c.b16 %v7438, %v7434
    %v8111 = vpack.c.b16 %v7439, %v7435
    %v8112 = vpack.c.b16 %v7444, %v7440
    %v8113 = vpack.c.b16 %v7445, %v7441
    %v8114 = vpack.c.b16 %v7446, %v7442
    %v8115 = vpack.c.b16 %v7447, %v7443
    %v8116 = vpack.c.b16 %v7452, %v7448
    %v8117 = vpack.c.b16 %v7453, %v7449
    %v8118 = vpack.c.b16 %v7454, %v7450
    %v8119 = vpack.c.b16 %v7455, %v7451
    %v8120 = vpack.c.b16 %v7460, %v7456
    %v8121 = vpack.c.b16 %v7461, %v7457
    %v8122 = vpack.c.b16 %v7462, %v7458
    %v8123 = vpack.c.b16 %v7463, %v7459
    %v8124 = vpack.c.b16 %v7468, %v7464
    %v8125 = vpack.c.b16 %v7469, %v7465
    %v8126 = vpack.c.b16 %v7470, %v7466
    %v8127 = vpack.c.b16 %v7471, %v7467
    %v8128 = vpack.c.b16 %v7476, %v7472
    %v8129 = vpack.c.b16 %v7477, %v7473
    %v8130 = vpack.c.b16 %v7478, %v7474
    %v8131 = vpack.c.b16 %v7479, %v7475
    %v8132 = vpack.c.b16 %v7484, %v7480
    %v8133 = vpack.c.b16 %v7485, %v7481
    %v8134 = vpack.c.b16 %v7486, %v7482
    %v8135 = vpack.c.b16 %v7487, %v7483
    %v8136 = vpack.c.b16 %v7492, %v7488
    %v8137 = vpack.c.b16 %v7493, %v7489
    %v8138 = vpack.c.b16 %v7494, %v7490
    %v8139 = vpack.c.b16 %v7495, %v7491
    %v8140 = vpack.c.b16 %v7500, %v7496
    %v8141 = vpack.c.b16 %v7501, %v7497
    %v8142 = vpack.c.b16 %v7502, %v7498
    %v8143 = vpack.c.b16 %v7503, %v7499
    %v8144 = vpack.c.b16 %v7508, %v7504
    %v8145 = vpack.c.b16 %v7509, %v7505
    %v8146 = vpack.c.b16 %v7510, %v7506
    %v8147 = vpack.c.b16 %v7511, %v7507
    %v8148 = vpack.c.b16 %v7516, %v7512
    %v8149 = vpack.c.b16 %v7517, %v7513
    %v8150 = vpack.c.b16 %v7518, %v7514
    %v8151 = vpack.c.b16 %v7519, %v7515
    %v8152 = vpack.c.b16 %v7524, %v7520
    %v8153 = vpack.c.b16 %v7525, %v7521
    %v8154 = vpack.c.b16 %v7526, %v7522
    %v8155 = vpack.c.b16 %v7527, %v7523
    %v8156 = vpack.c.b16 %v7532, %v7528
    %v8157 = vpack.c.b16 %v7533, %v7529
    %v8158 = vpack.c.b16 %v7534, %v7530
    %v8159 = vpack.c.b16 %v7535, %v7531
    %v8160 = vpack.c.b16 %v7540, %v7536
    %v8161 = vpack.c.b16 %v7541, %v7537
    %v8162 = vpack.c.b16 %v7542, %v7538
    %v8163 = vpack.c.b16 %v7543, %v7539
    %v8164 = vpack.c.b16 %v7548, %v7544
    %v8165 = vpack.c.b16 %v7549, %v7545
    %v8166 = vpack.c.b16 %v7550, %v7546
    %v8167 = vpack.c.b16 %v7551, %v7547
    %v8168 = vpack.c.b16 %v7556, %v7552
    %v8169 = vpack.c.b16 %v7557, %v7553
    %v8170 = vpack.c.b16 %v7558, %v7554
    %v8171 = vpack.c.b16 %v7559, %v7555
    %v8172 = vpack.c.b16 %v7564, %v7560
    %v8173 = vpack.c.b16 %v7565, %v7561
    %v8174 = vpack.c.b16 %v7566, %v7562
    %v8175 = vpack.c.b16 %v7567, %v7563
    %v8176 = vpack.c.b16 %v7572, %v7568
    %v8177 = vpack.c.b16 %v7573, %v7569
    %v8178 = vpack.c.b16 %v7574, %v7570
    %v8179 = vpack.c.b16 %v7575, %v7571
    %v8180 = vpack.c.b16 %v7580, %v7576
    %v8181 = vpack.c.b16 %v7581, %v7577
    %v8182 = vpack.c.b16 %v7582, %v7578
    %v8183 = vpack.c.b16 %v7583, %v7579
    %v8184 = vpack.c.b16 %v7588, %v7584
    %v8185 = vpack.c.b16 %v7589, %v7585
    %v8186 = vpack.c.b16 %v7590, %v7586
    %v8187 = vpack.c.b16 %v7591, %v7587
    %v8188 = vpack.c.b16 %v7596, %v7592
    %v8189 = vpack.c.b16 %v7597, %v7593
    %v8190 = vpack.c.b16 %v7598, %v7594
    %v8191 = vpack.c.b16 %v7599, %v7595
    %v8192 = vpack.c.b16 %v7604, %v7600
    %v8193 = vpack.c.b16 %v7605, %v7601
    %v8194 = vpack.c.b16 %v7606, %v7602
    %v8195 = vpack.c.b16 %v7607, %v7603
    %v8196 = vpack.c.b16 %v7612, %v7608
    %v8197 = vpack.c.b16 %v7613, %v7609
    %v8198 = vpack.c.b16 %v7614, %v7610
    %v8199 = vpack.c.b16 %v7615, %v7611
    %v8200 = vpack.c.b16 %v7620, %v7616
    %v8201 = vpack.c.b16 %v7621, %v7617
    %v8202 = vpack.c.b16 %v7622, %v7618
    %v8203 = vpack.c.b16 %v7623, %v7619
    %v8204 = vpack.c.b16 %v7628, %v7624
    %v8205 = vpack.c.b16 %v7629, %v7625
    %v8206 = vpack.c.b16 %v7630, %v7626
    %v8207 = vpack.c.b16 %v7631, %v7627
    %v8208 = vpack.c.b16 %v7636, %v7632
    %v8209 = vpack.c.b16 %v7637, %v7633
    %v8210 = vpack.c.b16 %v7638, %v7634
    %v8211 = vpack.c.b16 %v7639, %v7635
    %v8212 = vpack.c.b16 %v7644, %v7640
    %v8213 = vpack.c.b16 %v7645, %v7641
    %v8214 = vpack.c.b16 %v7646, %v7642
    %v8215 = vpack.c.b16 %v7647, %v7643
    %v8216 = vpack.c.b16 %v7652, %v7648
    %v8217 = vpack.c.b16 %v7653, %v7649
    %v8218 = vpack.c.b16 %v7654, %v7650
    %v8219 = vpack.c.b16 %v7655, %v7651
    %v8220 = vpack.c.b16 %v7660, %v7656
    %v8221 = vpack.c.b16 %v7661, %v7657
    %v8222 = vpack.c.b16 %v7662, %v7658
    %v8223 = vpack.c.b16 %v7663, %v7659
    %v8224 = vpack.c.b16 %v7668, %v7664
    %v8225 = vpack.c.b16 %v7669, %v7665
    %v8226 = vpack.c.b16 %v7670, %v7666
    %v8227 = vpack.c.b16 %v7671, %v7667
    %v8228 = vpack.c.b16 %v7676, %v7672
    %v8229 = vpack.c.b16 %v7677, %v7673
    %v8230 = vpack.c.b16 %v7678, %v7674
    %v8231 = vpack.c.b16 %v7679, %v7675
    %v8232 = vpack.c.b16 %v7684, %v7680
    %v8233 = vpack.c.b16 %v7685, %v7681
    %v8234 = vpack.c.b16 %v7686, %v7682
    %v8235 = vpack.c.b16 %v7687, %v7683
    %v8236 = vpack.c.b16 %v7692, %v7688
    %v8237 = vpack.c.b16 %v7693, %v7689
    %v8238 = vpack.c.b16 %v7694, %v7690
    %v8239 = vpack.c.b16 %v7695, %v7691
    %v8240 = vpack.c.b16 %v7700, %v7696
    %v8241 = vpack.c.b16 %v7701, %v7697
    %v8242 = vpack.c.b16 %v7702, %v7698
    %v8243 = vpack.c.b16 %v7703, %v7699
    %v8244 = vpack.c.b16 %v7708, %v7704
    %v8245 = vpack.c.b16 %v7709, %v7705
    %v8246 = vpack.c.b16 %v7710, %v7706
    %v8247 = vpack.c.b16 %v7711, %v7707
    %v8248 = vpack.c.b16 %v7716, %v7712
    %v8249 = vpack.c.b16 %v7717, %v7713
    %v8250 = vpack.c.b16 %v7718, %v7714
    %v8251 = vpack.c.b16 %v7719, %v7715
    %v8252 = vpack.c.b16 %v7724, %v7720
    %v8253 = vpack.c.b16 %v7725, %v7721
    %v8254 = vpack.c.b16 %v7726, %v7722
    %v8255 = vpack.c.b16 %v7727, %v7723
    %v8256 = vpack.c.b16 %v7732, %v7728
    %v8257 = vpack.c.b16 %v7733, %v7729
    %v8258 = vpack.c.b16 %v7734, %v7730
    %v8259 = vpack.c.b16 %v7735, %v7731
    %v8260 = vpack.c.b16 %v7740, %v7736
    %v8261 = vpack.c.b16 %v7741, %v7737
    %v8262 = vpack.c.b16 %v7742, %v7738
    %v8263 = vpack.c.b16 %v7743, %v7739
    %v8264 = vpack.c.b16 %v7748, %v7744
    %v8265 = vpack.c.b16 %v7749, %v7745
    %v8266 = vpack.c.b16 %v7750, %v7746
    %v8267 = vpack.c.b16 %v7751, %v7747
    %v8268 = vpack.c.b16 %v7756, %v7752
    %v8269 = vpack.c.b16 %v7757, %v7753
    %v8270 = vpack.c.b16 %v7758, %v7754
    %v8271 = vpack.c.b16 %v7759, %v7755
    %8784 = vmatprep.subr.bf16.mxu0 %v7761
    %8785 = vmatpush1.bf16.msra.mxu0 %v7760
    %8786 = vmatprep.subr.bf16.mxu0 %v7765
    %8787 = vmatpush1.bf16.msra.mxu0 %v7764
    %8788 = vmatprep.subr.bf16.mxu0 %v7769
    %8789 = vmatpush1.bf16.msra.mxu0 %v7768
    %8790 = vmatprep.subr.bf16.mxu0 %v7773
    %8791 = vmatpush1.bf16.msra.mxu0 %v7772
    %8792 = vmatprep.subr.bf16.mxu0 %v7777
    %8793 = vmatpush1.bf16.msra.mxu0 %v7776
    %8794 = vmatprep.subr.bf16.mxu0 %v7781
    %8795 = vmatpush1.bf16.msra.mxu0 %v7780
    %8796 = vmatprep.subr.bf16.mxu0 %v7785
    %8797 = vmatpush1.bf16.msra.mxu0 %v7784
    %8798 = vmatprep.subr.bf16.mxu0 %v7789
    %8799 = vmatpush1.bf16.msra.mxu0 %v7788
    %8800 = vmatprep.subr.bf16.mxu0 %v7793
    %8801 = vmatpush1.bf16.msra.mxu0 %v7792
    %8802 = vmatprep.subr.bf16.mxu0 %v7797
    %8803 = vmatpush1.bf16.msra.mxu0 %v7796
    %8804 = vmatprep.subr.bf16.mxu0 %v7801
    %8805 = vmatpush1.bf16.msra.mxu0 %v7800
    %8806 = vmatprep.subr.bf16.mxu0 %v7805
    %8807 = vmatpush1.bf16.msra.mxu0 %v7804
    %8808 = vmatprep.subr.bf16.mxu0 %v7809
    %8809 = vmatpush1.bf16.msra.mxu0 %v7808
    %8810 = vmatprep.subr.bf16.mxu0 %v7813
    %8811 = vmatpush1.bf16.msra.mxu0 %v7812
    %8812 = vmatprep.subr.bf16.mxu0 %v7817
    %8813 = vmatpush1.bf16.msra.mxu0 %v7816
    %8814 = vmatprep.subr.bf16.mxu0 %v7821
    %8815 = vmatpush1.bf16.msra.mxu0 %v7820
    %8816 = vmatprep.mubr.bf16.mxu0 %v5675
    %8817 = vmatmul.mubr.bf16.gmra.mrb[0].mxu0 %v5674
    %v8818 = vpop.f32.mrb[0].mxu0
    %v8819 = vadd.f32 %v6207, %v8818
    %v8820 = vpop.f32.mrb[0].mxu0
    %v8821 = vadd.f32 %v6211, %v8820
    %v8822 = vpop.f32.mrb[0].mxu0
    %v8823 = vadd.f32 %v6207, %v8822
    %v8824 = vpop.f32.mrb[0].mxu0
    %v8825 = vadd.f32 %v6211, %v8824
    %8826 = vdwg.mxu0
    %8827 = vmatprep.subr.bf16.mxu0 %v7825
    %8828 = vmatpush1.bf16.msra.mxu0 %v7824
    %8829 = vmatprep.subr.bf16.mxu0 %v7829
    %8830 = vmatpush1.bf16.msra.mxu0 %v7828
    %8831 = vmatprep.subr.bf16.mxu0 %v7833
    %8832 = vmatpush1.bf16.msra.mxu0 %v7832
    %8833 = vmatprep.subr.bf16.mxu0 %v7837
    %8834 = vmatpush1.bf16.msra.mxu0 %v7836
    %8835 = vmatprep.subr.bf16.mxu0 %v7841
    %8836 = vmatpush1.bf16.msra.mxu0 %v7840
    %8837 = vmatprep.subr.bf16.mxu0 %v7845
    %8838 = vmatpush1.bf16.msra.mxu0 %v7844
    %8839 = vmatprep.subr.bf16.mxu0 %v7849
    %8840 = vmatpush1.bf16.msra.mxu0 %v7848
    %8841 = vmatprep.subr.bf16.mxu0 %v7853
    %8842 = vmatpush1.bf16.msra.mxu0 %v7852
    %8843 = vmatprep.subr.bf16.mxu0 %v7857
    %8844 = vmatpush1.bf16.msra.mxu0 %v7856
    %8845 = vmatprep.subr.bf16.mxu0 %v7861
    %8846 = vmatpush1.bf16.msra.mxu0 %v7860
    %8847 = vmatprep.subr.bf16.mxu0 %v7865
    %8848 = vmatpush1.bf16.msra.mxu0 %v7864
    %8849 = vmatprep.subr.bf16.mxu0 %v7869
    %8850 = vmatpush1.bf16.msra.mxu0 %v7868
    %8851 = vmatprep.subr.bf16.mxu0 %v7873
    %8852 = vmatpush1.bf16.msra.mxu0 %v7872
    %8853 = vmatprep.subr.bf16.mxu0 %v7877
    %8854 = vmatpush1.bf16.msra.mxu0 %v7876
    %8855 = vmatprep.subr.bf16.mxu0 %v7881
    %8856 = vmatpush1.bf16.msra.mxu0 %v7880
    %8857 = vmatprep.subr.bf16.mxu0 %v7885
    %8858 = vmatpush1.bf16.msra.mxu0 %v7884
    %8859 = vmatprep.mubr.bf16.mxu0 %v5677
    %8860 = vmatmul.mubr.bf16.gmra.mrb[0].mxu0 %v5676
    %v8861 = vpop.f32.mrb[0].mxu0
    %v8862 = vadd.f32 %v8819, %v8861
    %v8863 = vpop.f32.mrb[0].mxu0
    %v8864 = vadd.f32 %v8821, %v8863
    %v8865 = vpop.f32.mrb[0].mxu0
    %v8866 = vadd.f32 %v8823, %v8865
    %v8867 = vpop.f32.mrb[0].mxu0
    %v8868 = vadd.f32 %v8825, %v8867
    %8869 = vdwg.mxu0
    %8870 = vmatprep.subr.bf16.mxu0 %v7889
    %8871 = vmatpush1.bf16.msra.mxu0 %v7888
    %8872 = vmatprep.subr.bf16.mxu0 %v7893
    %8873 = vmatpush1.bf16.msra.mxu0 %v7892
    %8874 = vmatprep.subr.bf16.mxu0 %v7897
    %8875 = vmatpush1.bf16.msra.mxu0 %v7896
    %8876 = vmatprep.subr.bf16.mxu0 %v7901
    %8877 = vmatpush1.bf16.msra.mxu0 %v7900
    %8878 = vmatprep.subr.bf16.mxu0 %v7905
    %8879 = vmatpush1.bf16.msra.mxu0 %v7904
    %8880 = vmatprep.subr.bf16.mxu0 %v7909
    %8881 = vmatpush1.bf16.msra.mxu0 %v7908
    %8882 = vmatprep.subr.bf16.mxu0 %v7913
    %8883 = vmatpush1.bf16.msra.mxu0 %v7912
    %8884 = vmatprep.subr.bf16.mxu0 %v7917
    %8885 = vmatpush1.bf16.msra.mxu0 %v7916
    %8886 = vmatprep.subr.bf16.mxu0 %v7921
    %8887 = vmatpush1.bf16.msra.mxu0 %v7920
    %8888 = vmatprep.subr.bf16.mxu0 %v7925
    %8889 = vmatpush1.bf16.msra.mxu0 %v7924
    %8890 = vmatprep.subr.bf16.mxu0 %v7929
    %8891 = vmatpush1.bf16.msra.mxu0 %v7928
    %8892 = vmatprep.subr.bf16.mxu0 %v7933
    %8893 = vmatpush1.bf16.msra.mxu0 %v7932
    %8894 = vmatprep.subr.bf16.mxu0 %v7937
    %8895 = vmatpush1.bf16.msra.mxu0 %v7936
    %8896 = vmatprep.subr.bf16.mxu0 %v7941
    %8897 = vmatpush1.bf16.msra.mxu0 %v7940
    %8898 = vmatprep.subr.bf16.mxu0 %v7945
    %8899 = vmatpush1.bf16.msra.mxu0 %v7944
    %8900 = vmatprep.subr.bf16.mxu0 %v7949
    %8901 = vmatpush1.bf16.msra.mxu0 %v7948
    %8902 = vmatprep.mubr.bf16.mxu0 %v5679
    %8903 = vmatmul.mubr.bf16.gmra.mrb[0].mxu0 %v5678
    %v8904 = vpop.f32.mrb[0].mxu0
    %v8905 = vadd.f32 %v8862, %v8904
    %v8906 = vpop.f32.mrb[0].mxu0
    %v8907 = vadd.f32 %v8864, %v8906
    %v8908 = vpop.f32.mrb[0].mxu0
    %v8909 = vadd.f32 %v8866, %v8908
    %v8910 = vpop.f32.mrb[0].mxu0
    %v8911 = vadd.f32 %v8868, %v8910
    %8912 = vdwg.mxu0
    %8913 = vmatprep.subr.bf16.mxu0 %v7953
    %8914 = vmatpush1.bf16.msra.mxu0 %v7952
    %8915 = vmatprep.subr.bf16.mxu0 %v7957
    %8916 = vmatpush1.bf16.msra.mxu0 %v7956
    %8917 = vmatprep.subr.bf16.mxu0 %v7961
    %8918 = vmatpush1.bf16.msra.mxu0 %v7960
    %8919 = vmatprep.subr.bf16.mxu0 %v7965
    %8920 = vmatpush1.bf16.msra.mxu0 %v7964
    %8921 = vmatprep.subr.bf16.mxu0 %v7969
    %8922 = vmatpush1.bf16.msra.mxu0 %v7968
    %8923 = vmatprep.subr.bf16.mxu0 %v7973
    %8924 = vmatpush1.bf16.msra.mxu0 %v7972
    %8925 = vmatprep.subr.bf16.mxu0 %v7977
    %8926 = vmatpush1.bf16.msra.mxu0 %v7976
    %8927 = vmatprep.subr.bf16.mxu0 %v7981
    %8928 = vmatpush1.bf16.msra.mxu0 %v7980
    %8929 = vmatprep.subr.bf16.mxu0 %v7985
    %8930 = vmatpush1.bf16.msra.mxu0 %v7984
    %8931 = vmatprep.subr.bf16.mxu0 %v7989
    %8932 = vmatpush1.bf16.msra.mxu0 %v7988
    %8933 = vmatprep.subr.bf16.mxu0 %v7993
    %8934 = vmatpush1.bf16.msra.mxu0 %v7992
    %8935 = vmatprep.subr.bf16.mxu0 %v7997
    %8936 = vmatpush1.bf16.msra.mxu0 %v7996
    %8937 = vmatprep.subr.bf16.mxu0 %v8001
    %8938 = vmatpush1.bf16.msra.mxu0 %v8000
    %8939 = vmatprep.subr.bf16.mxu0 %v8005
    %8940 = vmatpush1.bf16.msra.mxu0 %v8004
    %8941 = vmatprep.subr.bf16.mxu0 %v8009
    %8942 = vmatpush1.bf16.msra.mxu0 %v8008
    %8943 = vmatprep.subr.bf16.mxu0 %v8013
    %8944 = vmatpush1.bf16.msra.mxu0 %v8012
    %8945 = vmatprep.mubr.bf16.mxu0 %v5681
    %8946 = vmatmul.mubr.bf16.gmra.mrb[0].mxu0 %v5680
    %v8947 = vpop.f32.mrb[0].mxu0
    %v8948 = vadd.f32 %v8905, %v8947
    %v8949 = vpop.f32.mrb[0].mxu0
    %v8950 = vadd.f32 %v8907, %v8949
    %v8951 = vpop.f32.mrb[0].mxu0
    %v8952 = vadd.f32 %v8909, %v8951
    %v8953 = vpop.f32.mrb[0].mxu0
    %v8954 = vadd.f32 %v8911, %v8953
    %8955 = vdwg.mxu0
    %8956 = vmatprep.subr.bf16.mxu0 %v8017
    %8957 = vmatpush1.bf16.msra.mxu0 %v8016
    %8958 = vmatprep.subr.bf16.mxu0 %v8021
    %8959 = vmatpush1.bf16.msra.mxu0 %v8020
    %8960 = vmatprep.subr.bf16.mxu0 %v8025
    %8961 = vmatpush1.bf16.msra.mxu0 %v8024
    %8962 = vmatprep.subr.bf16.mxu0 %v8029
    %8963 = vmatpush1.bf16.msra.mxu0 %v8028
    %8964 = vmatprep.subr.bf16.mxu0 %v8033
    %8965 = vmatpush1.bf16.msra.mxu0 %v8032
    %8966 = vmatprep.subr.bf16.mxu0 %v8037
    %8967 = vmatpush1.bf16.msra.mxu0 %v8036
    %8968 = vmatprep.subr.bf16.mxu0 %v8041
    %8969 = vmatpush1.bf16.msra.mxu0 %v8040
    %8970 = vmatprep.subr.bf16.mxu0 %v8045
    %8971 = vmatpush1.bf16.msra.mxu0 %v8044
    %8972 = vmatprep.subr.bf16.mxu0 %v8049
    %8973 = vmatpush1.bf16.msra.mxu0 %v8048
    %8974 = vmatprep.subr.bf16.mxu0 %v8053
    %8975 = vmatpush1.bf16.msra.mxu0 %v8052
    %8976 = vmatprep.subr.bf16.mxu0 %v8057
    %8977 = vmatpush1.bf16.msra.mxu0 %v8056
    %8978 = vmatprep.subr.bf16.mxu0 %v8061
    %8979 = vmatpush1.bf16.msra.mxu0 %v8060
    %8980 = vmatprep.subr.bf16.mxu0 %v8065
    %8981 = vmatpush1.bf16.msra.mxu0 %v8064
    %8982 = vmatprep.subr.bf16.mxu0 %v8069
    %8983 = vmatpush1.bf16.msra.mxu0 %v8068
    %8984 = vmatprep.subr.bf16.mxu0 %v8073
    %8985 = vmatpush1.bf16.msra.mxu0 %v8072
    %8986 = vmatprep.subr.bf16.mxu0 %v8077
    %8987 = vmatpush1.bf16.msra.mxu0 %v8076
    %8988 = vmatprep.mubr.bf16.mxu0 %v5683
    %8989 = vmatmul.mubr.bf16.gmra.mrb[0].mxu0 %v5682
    %v8990 = vpop.f32.mrb[0].mxu0
    %v8991 = vadd.f32 %v8948, %v8990
    %v8992 = vpop.f32.mrb[0].mxu0
    %v8993 = vadd.f32 %v8950, %v8992
    %v8994 = vpop.f32.mrb[0].mxu0
    %v8995 = vadd.f32 %v8952, %v8994
    %v8996 = vpop.f32.mrb[0].mxu0
    %v8997 = vadd.f32 %v8954, %v8996
    %8998 = vdwg.mxu0
    %8999 = vmatprep.subr.bf16.mxu0 %v8081
    %9000 = vmatpush1.bf16.msra.mxu0 %v8080
    %9001 = vmatprep.subr.bf16.mxu0 %v8085
    %9002 = vmatpush1.bf16.msra.mxu0 %v8084
    %9003 = vmatprep.subr.bf16.mxu0 %v8089
    %9004 = vmatpush1.bf16.msra.mxu0 %v8088
    %9005 = vmatprep.subr.bf16.mxu0 %v8093
    %9006 = vmatpush1.bf16.msra.mxu0 %v8092
    %9007 = vmatprep.subr.bf16.mxu0 %v8097
    %9008 = vmatpush1.bf16.msra.mxu0 %v8096
    %9009 = vmatprep.subr.bf16.mxu0 %v8101
    %9010 = vmatpush1.bf16.msra.mxu0 %v8100
    %9011 = vmatprep.subr.bf16.mxu0 %v8105
    %9012 = vmatpush1.bf16.msra.mxu0 %v8104
    %9013 = vmatprep.subr.bf16.mxu0 %v8109
    %9014 = vmatpush1.bf16.msra.mxu0 %v8108
    %9015 = vmatprep.subr.bf16.mxu0 %v8113
    %9016 = vmatpush1.bf16.msra.mxu0 %v8112
    %9017 = vmatprep.subr.bf16.mxu0 %v8117
    %9018 = vmatpush1.bf16.msra.mxu0 %v8116
    %9019 = vmatprep.subr.bf16.mxu0 %v8121
    %9020 = vmatpush1.bf16.msra.mxu0 %v8120
    %9021 = vmatprep.subr.bf16.mxu0 %v8125
    %9022 = vmatpush1.bf16.msra.mxu0 %v8124
    %9023 = vmatprep.subr.bf16.mxu0 %v8129
    %9024 = vmatpush1.bf16.msra.mxu0 %v8128
    %9025 = vmatprep.subr.bf16.mxu0 %v8133
    %9026 = vmatpush1.bf16.msra.mxu0 %v8132
    %9027 = vmatprep.subr.bf16.mxu0 %v8137
    %9028 = vmatpush1.bf16.msra.mxu0 %v8136
    %9029 = vmatprep.subr.bf16.mxu0 %v8141
    %9030 = vmatpush1.bf16.msra.mxu0 %v8140
    %9031 = vmatprep.mubr.bf16.mxu0 %v5685
    %9032 = vmatmul.mubr.bf16.gmra.mrb[0].mxu0 %v5684
    %v9033 = vpop.f32.mrb[0].mxu0
    %v9034 = vadd.f32 %v8991, %v9033
    %v9035 = vpop.f32.mrb[0].mxu0
    %v9036 = vadd.f32 %v8993, %v9035
    %v9037 = vpop.f32.mrb[0].mxu0
    %v9038 = vadd.f32 %v8995, %v9037
    %v9039 = vpop.f32.mrb[0].mxu0
    %v9040 = vadd.f32 %v8997, %v9039
    %9041 = vdwg.mxu0
    %9042 = vmatprep.subr.bf16.mxu0 %v8145
    %9043 = vmatpush1.bf16.msra.mxu0 %v8144
    %9044 = vmatprep.subr.bf16.mxu0 %v8149
    %9045 = vmatpush1.bf16.msra.mxu0 %v8148
    %9046 = vmatprep.subr.bf16.mxu0 %v8153
    %9047 = vmatpush1.bf16.msra.mxu0 %v8152
    %9048 = vmatprep.subr.bf16.mxu0 %v8157
    %9049 = vmatpush1.bf16.msra.mxu0 %v8156
    %9050 = vmatprep.subr.bf16.mxu0 %v8161
    %9051 = vmatpush1.bf16.msra.mxu0 %v8160
    %9052 = vmatprep.subr.bf16.mxu0 %v8165
    %9053 = vmatpush1.bf16.msra.mxu0 %v8164
    %9054 = vmatprep.subr.bf16.mxu0 %v8169
    %9055 = vmatpush1.bf16.msra.mxu0 %v8168
    %9056 = vmatprep.subr.bf16.mxu0 %v8173
    %9057 = vmatpush1.bf16.msra.mxu0 %v8172
    %9058 = vmatprep.subr.bf16.mxu0 %v8177
    %9059 = vmatpush1.bf16.msra.mxu0 %v8176
    %9060 = vmatprep.subr.bf16.mxu0 %v8181
    %9061 = vmatpush1.bf16.msra.mxu0 %v8180
    %9062 = vmatprep.subr.bf16.mxu0 %v8185
    %9063 = vmatpush1.bf16.msra.mxu0 %v8184
    %9064 = vmatprep.subr.bf16.mxu0 %v8189
    %9065 = vmatpush1.bf16.msra.mxu0 %v8188
    %9066 = vmatprep.subr.bf16.mxu0 %v8193
    %9067 = vmatpush1.bf16.msra.mxu0 %v8192
    %9068 = vmatprep.subr.bf16.mxu0 %v8197
    %9069 = vmatpush1.bf16.msra.mxu0 %v8196
    %9070 = vmatprep.subr.bf16.mxu0 %v8201
    %9071 = vmatpush1.bf16.msra.mxu0 %v8200
    %9072 = vmatprep.subr.bf16.mxu0 %v8205
    %9073 = vmatpush1.bf16.msra.mxu0 %v8204
    %9074 = vmatprep.mubr.bf16.mxu0 %v5687
    %9075 = vmatmul.mubr.bf16.gmra.mrb[0].mxu0 %v5686
    %v9076 = vpop.f32.mrb[0].mxu0
    %v9077 = vadd.f32 %v9034, %v9076
    %v9078 = vpop.f32.mrb[0].mxu0
    %v9079 = vadd.f32 %v9036, %v9078
    %v9080 = vpop.f32.mrb[0].mxu0
    %v9081 = vadd.f32 %v9038, %v9080
    %v9082 = vpop.f32.mrb[0].mxu0
    %v9083 = vadd.f32 %v9040, %v9082
    %9084 = vdwg.mxu0
    %9085 = vmatprep.subr.bf16.mxu0 %v8209
    %9086 = vmatpush1.bf16.msra.mxu0 %v8208
    %9087 = vmatprep.subr.bf16.mxu0 %v8213
    %9088 = vmatpush1.bf16.msra.mxu0 %v8212
    %9089 = vmatprep.subr.bf16.mxu0 %v8217
    %9090 = vmatpush1.bf16.msra.mxu0 %v8216
    %9091 = vmatprep.subr.bf16.mxu0 %v8221
    %9092 = vmatpush1.bf16.msra.mxu0 %v8220
    %9093 = vmatprep.subr.bf16.mxu0 %v8225
    %9094 = vmatpush1.bf16.msra.mxu0 %v8224
    %9095 = vmatprep.subr.bf16.mxu0 %v8229
    %9096 = vmatpush1.bf16.msra.mxu0 %v8228
    %9097 = vmatprep.subr.bf16.mxu0 %v8233
    %9098 = vmatpush1.bf16.msra.mxu0 %v8232
    %9099 = vmatprep.subr.bf16.mxu0 %v8237
    %9100 = vmatpush1.bf16.msra.mxu0 %v8236
    %9101 = vmatprep.subr.bf16.mxu0 %v8241
    %9102 = vmatpush1.bf16.msra.mxu0 %v8240
    %9103 = vmatprep.subr.bf16.mxu0 %v8245
    %9104 = vmatpush1.bf16.msra.mxu0 %v8244
    %9105 = vmatprep.subr.bf16.mxu0 %v8249
    %9106 = vmatpush1.bf16.msra.mxu0 %v8248
    %9107 = vmatprep.subr.bf16.mxu0 %v8253
    %9108 = vmatpush1.bf16.msra.mxu0 %v8252
    %9109 = vmatprep.subr.bf16.mxu0 %v8257
    %9110 = vmatpush1.bf16.msra.mxu0 %v8256
    %9111 = vmatprep.subr.bf16.mxu0 %v8261
    %9112 = vmatpush1.bf16.msra.mxu0 %v8260
    %9113 = vmatprep.subr.bf16.mxu0 %v8265
    %9114 = vmatpush1.bf16.msra.mxu0 %v8264
    %9115 = vmatprep.subr.bf16.mxu0 %v8269
    %9116 = vmatpush1.bf16.msra.mxu0 %v8268
    %9117 = vmatprep.mubr.bf16.mxu0 %v5689
    %9118 = vmatmul.mubr.bf16.gmra.mrb[0].mxu0 %v5688
    %v9119 = vpop.f32.mrb[0].mxu0
    %v9120 = vadd.f32 %v9077, %v9119
    %v9121 = vpop.f32.mrb[0].mxu0
    %v9122 = vadd.f32 %v9079, %v9121
    %v9123 = vpop.f32.mrb[0].mxu0
    %v9124 = vadd.f32 %v9081, %v9123
    %v9125 = vpop.f32.mrb[0].mxu0
    %v9126 = vadd.f32 %v9083, %v9125
    %9127 = vdwg.mxu0
    %9128 = vmatprep.subr.bf16.mxu0 %v7763
    %9129 = vmatpush1.bf16.msra.mxu0 %v7762
    %9130 = vmatprep.subr.bf16.mxu0 %v7767
    %9131 = vmatpush1.bf16.msra.mxu0 %v7766
    %9132 = vmatprep.subr.bf16.mxu0 %v7771
    %9133 = vmatpush1.bf16.msra.mxu0 %v7770
    %9134 = vmatprep.subr.bf16.mxu0 %v7775
    %9135 = vmatpush1.bf16.msra.mxu0 %v7774
    %9136 = vmatprep.subr.bf16.mxu0 %v7779
    %9137 = vmatpush1.bf16.msra.mxu0 %v7778
    %9138 = vmatprep.subr.bf16.mxu0 %v7783
    %9139 = vmatpush1.bf16.msra.mxu0 %v7782
    %9140 = vmatprep.subr.bf16.mxu0 %v7787
    %9141 = vmatpush1.bf16.msra.mxu0 %v7786
    %9142 = vmatprep.subr.bf16.mxu0 %v7791
    %9143 = vmatpush1.bf16.msra.mxu0 %v7790
    %9144 = vmatprep.subr.bf16.mxu0 %v7795
    %9145 = vmatpush1.bf16.msra.mxu0 %v7794
    %9146 = vmatprep.subr.bf16.mxu0 %v7799
    %9147 = vmatpush1.bf16.msra.mxu0 %v7798
    %9148 = vmatprep.subr.bf16.mxu0 %v7803
    %9149 = vmatpush1.bf16.msra.mxu0 %v7802
    %9150 = vmatprep.subr.bf16.mxu0 %v7807
    %9151 = vmatpush1.bf16.msra.mxu0 %v7806
    %9152 = vmatprep.subr.bf16.mxu0 %v7811
    %9153 = vmatpush1.bf16.msra.mxu0 %v7810
    %9154 = vmatprep.subr.bf16.mxu0 %v7815
    %9155 = vmatpush1.bf16.msra.mxu0 %v7814
    %9156 = vmatprep.subr.bf16.mxu0 %v7819
    %9157 = vmatpush1.bf16.msra.mxu0 %v7818
    %9158 = vmatprep.subr.bf16.mxu0 %v7823
    %9159 = vmatpush1.bf16.msra.mxu0 %v7822
    %9160 = vmatprep.mubr.bf16.mxu0 %v5675
    %9161 = vmatmul.mubr.bf16.gmra.mrb[0].mxu0 %v5674
    %v9162 = vpop.f32.mrb[0].mxu0
    %v9163 = vadd.f32 %v6215, %v9162
    %v9164 = vpop.f32.mrb[0].mxu0
    %v9165 = vadd.f32 %v6219, %v9164
    %v9166 = vpop.f32.mrb[0].mxu0
    %v9167 = vadd.f32 %v6215, %v9166
    %v9168 = vpop.f32.mrb[0].mxu0
    %v9169 = vadd.f32 %v6219, %v9168
    %9170 = vdwg.mxu0
    %9171 = vmatprep.subr.bf16.mxu0 %v7827
    %9172 = vmatpush1.bf16.msra.mxu0 %v7826
    %9173 = vmatprep.subr.bf16.mxu0 %v7831
    %9174 = vmatpush1.bf16.msra.mxu0 %v7830
    %9175 = vmatprep.subr.bf16.mxu0 %v7835
    %9176 = vmatpush1.bf16.msra.mxu0 %v7834
    %9177 = vmatprep.subr.bf16.mxu0 %v7839
    %9178 = vmatpush1.bf16.msra.mxu0 %v7838
    %9179 = vmatprep.subr.bf16.mxu0 %v7843
    %9180 = vmatpush1.bf16.msra.mxu0 %v7842
    %9181 = vmatprep.subr.bf16.mxu0 %v7847
    %9182 = vmatpush1.bf16.msra.mxu0 %v7846
    %9183 = vmatprep.subr.bf16.mxu0 %v7851
    %9184 = vmatpush1.bf16.msra.mxu0 %v7850
    %9185 = vmatprep.subr.bf16.mxu0 %v7855
    %9186 = vmatpush1.bf16.msra.mxu0 %v7854
    %9187 = vmatprep.subr.bf16.mxu0 %v7859
    %9188 = vmatpush1.bf16.msra.mxu0 %v7858
    %9189 = vmatprep.subr.bf16.mxu0 %v7863
    %9190 = vmatpush1.bf16.msra.mxu0 %v7862
    %9191 = vmatprep.subr.bf16.mxu0 %v7867
    %9192 = vmatpush1.bf16.msra.mxu0 %v7866
    %9193 = vmatprep.subr.bf16.mxu0 %v7871
    %9194 = vmatpush1.bf16.msra.mxu0 %v7870
    %9195 = vmatprep.subr.bf16.mxu0 %v7875
    %9196 = vmatpush1.bf16.msra.mxu0 %v7874
    %9197 = vmatprep.subr.bf16.mxu0 %v7879
    %9198 = vmatpush1.bf16.msra.mxu0 %v7878
    %9199 = vmatprep.subr.bf16.mxu0 %v7883
    %9200 = vmatpush1.bf16.msra.mxu0 %v7882
    %9201 = vmatprep.subr.bf16.mxu0 %v7887
    %9202 = vmatpush1.bf16.msra.mxu0 %v7886
    %9203 = vmatprep.mubr.bf16.mxu0 %v5677
    %9204 = vmatmul.mubr.bf16.gmra.mrb[0].mxu0 %v5676
    %v9205 = vpop.f32.mrb[0].mxu0
    %v9206 = vadd.f32 %v9163, %v9205
    %v9207 = vpop.f32.mrb[0].mxu0
    %v9208 = vadd.f32 %v9165, %v9207
    %v9209 = vpop.f32.mrb[0].mxu0
    %v9210 = vadd.f32 %v9167, %v9209
    %v9211 = vpop.f32.mrb[0].mxu0
    %v9212 = vadd.f32 %v9169, %v9211
    %9213 = vdwg.mxu0
    %9214 = vmatprep.subr.bf16.mxu0 %v7891
    %9215 = vmatpush1.bf16.msra.mxu0 %v7890
    %9216 = vmatprep.subr.bf16.mxu0 %v7895
    %9217 = vmatpush1.bf16.msra.mxu0 %v7894
    %9218 = vmatprep.subr.bf16.mxu0 %v7899
    %9219 = vmatpush1.bf16.msra.mxu0 %v7898
    %9220 = vmatprep.subr.bf16.mxu0 %v7903
    %9221 = vmatpush1.bf16.msra.mxu0 %v7902
    %9222 = vmatprep.subr.bf16.mxu0 %v7907
    %9223 = vmatpush1.bf16.msra.mxu0 %v7906
    %9224 = vmatprep.subr.bf16.mxu0 %v7911
    %9225 = vmatpush1.bf16.msra.mxu0 %v7910
    %9226 = vmatprep.subr.bf16.mxu0 %v7915
    %9227 = vmatpush1.bf16.msra.mxu0 %v7914
    %9228 = vmatprep.subr.bf16.mxu0 %v7919
    %9229 = vmatpush1.bf16.msra.mxu0 %v7918
    %9230 = vmatprep.subr.bf16.mxu0 %v7923
    %9231 = vmatpush1.bf16.msra.mxu0 %v7922
    %9232 = vmatprep.subr.bf16.mxu0 %v7927
    %9233 = vmatpush1.bf16.msra.mxu0 %v7926
    %9234 = vmatprep.subr.bf16.mxu0 %v7931
    %9235 = vmatpush1.bf16.msra.mxu0 %v7930
    %9236 = vmatprep.subr.bf16.mxu0 %v7935
    %9237 = vmatpush1.bf16.msra.mxu0 %v7934
    %9238 = vmatprep.subr.bf16.mxu0 %v7939
    %9239 = vmatpush1.bf16.msra.mxu0 %v7938
    %9240 = vmatprep.subr.bf16.mxu0 %v7943
    %9241 = vmatpush1.bf16.msra.mxu0 %v7942
    %9242 = vmatprep.subr.bf16.mxu0 %v7947
    %9243 = vmatpush1.bf16.msra.mxu0 %v7946
    %9244 = vmatprep.subr.bf16.mxu0 %v7951
    %9245 = vmatpush1.bf16.msra.mxu0 %v7950
    %9246 = vmatprep.mubr.bf16.mxu0 %v5679
    %9247 = vmatmul.mubr.bf16.gmra.mrb[0].mxu0 %v5678
    %v9248 = vpop.f32.mrb[0].mxu0
    %v9249 = vadd.f32 %v9206, %v9248
    %v9250 = vpop.f32.mrb[0].mxu0
    %v9251 = vadd.f32 %v9208, %v9250
    %v9252 = vpop.f32.mrb[0].mxu0
    %v9253 = vadd.f32 %v9210, %v9252
    %v9254 = vpop.f32.mrb[0].mxu0
    %v9255 = vadd.f32 %v9212, %v9254
    %9256 = vdwg.mxu0
    %9257 = vmatprep.subr.bf16.mxu0 %v7955
    %9258 = vmatpush1.bf16.msra.mxu0 %v7954
    %9259 = vmatprep.subr.bf16.mxu0 %v7959
    %9260 = vmatpush1.bf16.msra.mxu0 %v7958
    %9261 = vmatprep.subr.bf16.mxu0 %v7963
    %9262 = vmatpush1.bf16.msra.mxu0 %v7962
    %9263 = vmatprep.subr.bf16.mxu0 %v7967
    %9264 = vmatpush1.bf16.msra.mxu0 %v7966
    %9265 = vmatprep.subr.bf16.mxu0 %v7971
    %9266 = vmatpush1.bf16.msra.mxu0 %v7970
    %9267 = vmatprep.subr.bf16.mxu0 %v7975
    %9268 = vmatpush1.bf16.msra.mxu0 %v7974
    %9269 = vmatprep.subr.bf16.mxu0 %v7979
    %9270 = vmatpush1.bf16.msra.mxu0 %v7978
    %9271 = vmatprep.subr.bf16.mxu0 %v7983
    %9272 = vmatpush1.bf16.msra.mxu0 %v7982
    %9273 = vmatprep.subr.bf16.mxu0 %v7987
    %9274 = vmatpush1.bf16.msra.mxu0 %v7986
    %9275 = vmatprep.subr.bf16.mxu0 %v7991
    %9276 = vmatpush1.bf16.msra.mxu0 %v7990
    %9277 = vmatprep.subr.bf16.mxu0 %v7995
    %9278 = vmatpush1.bf16.msra.mxu0 %v7994
    %9279 = vmatprep.subr.bf16.mxu0 %v7999
    %9280 = vmatpush1.bf16.msra.mxu0 %v7998
    %9281 = vmatprep.subr.bf16.mxu0 %v8003
    %9282 = vmatpush1.bf16.msra.mxu0 %v8002
    %9283 = vmatprep.subr.bf16.mxu0 %v8007
    %9284 = vmatpush1.bf16.msra.mxu0 %v8006
    %9285 = vmatprep.subr.bf16.mxu0 %v8011
    %9286 = vmatpush1.bf16.msra.mxu0 %v8010
    %9287 = vmatprep.subr.bf16.mxu0 %v8015
    %9288 = vmatpush1.bf16.msra.mxu0 %v8014
    %9289 = vmatprep.mubr.bf16.mxu0 %v5681
    %9290 = vmatmul.mubr.bf16.gmra.mrb[0].mxu0 %v5680
    %v9291 = vpop.f32.mrb[0].mxu0
    %v9292 = vadd.f32 %v9249, %v9291
    %v9293 = vpop.f32.mrb[0].mxu0
    %v9294 = vadd.f32 %v9251, %v9293
    %v9295 = vpop.f32.mrb[0].mxu0
    %v9296 = vadd.f32 %v9253, %v9295
    %v9297 = vpop.f32.mrb[0].mxu0
    %v9298 = vadd.f32 %v9255, %v9297
    %9299 = vdwg.mxu0
    %9300 = vmatprep.subr.bf16.mxu0 %v8019
    %9301 = vmatpush1.bf16.msra.mxu0 %v8018
    %9302 = vmatprep.subr.bf16.mxu0 %v8023
    %9303 = vmatpush1.bf16.msra.mxu0 %v8022
    %9304 = vmatprep.subr.bf16.mxu0 %v8027
    %9305 = vmatpush1.bf16.msra.mxu0 %v8026
    %9306 = vmatprep.subr.bf16.mxu0 %v8031
    %9307 = vmatpush1.bf16.msra.mxu0 %v8030
    %9308 = vmatprep.subr.bf16.mxu0 %v8035
    %9309 = vmatpush1.bf16.msra.mxu0 %v8034
    %9310 = vmatprep.subr.bf16.mxu0 %v8039
    %9311 = vmatpush1.bf16.msra.mxu0 %v8038
    %9312 = vmatprep.subr.bf16.mxu0 %v8043
    %9313 = vmatpush1.bf16.msra.mxu0 %v8042
    %9314 = vmatprep.subr.bf16.mxu0 %v8047
    %9315 = vmatpush1.bf16.msra.mxu0 %v8046
    %9316 = vmatprep.subr.bf16.mxu0 %v8051
    %9317 = vmatpush1.bf16.msra.mxu0 %v8050
    %9318 = vmatprep.subr.bf16.mxu0 %v8055
    %9319 = vmatpush1.bf16.msra.mxu0 %v8054
    %9320 = vmatprep.subr.bf16.mxu0 %v8059
    %9321 = vmatpush1.bf16.msra.mxu0 %v8058
    %9322 = vmatprep.subr.bf16.mxu0 %v8063
    %9323 = vmatpush1.bf16.msra.mxu0 %v8062
    %9324 = vmatprep.subr.bf16.mxu0 %v8067
    %9325 = vmatpush1.bf16.msra.mxu0 %v8066
    %9326 = vmatprep.subr.bf16.mxu0 %v8071
    %9327 = vmatpush1.bf16.msra.mxu0 %v8070
    %9328 = vmatprep.subr.bf16.mxu0 %v8075
    %9329 = vmatpush1.bf16.msra.mxu0 %v8074
    %9330 = vmatprep.subr.bf16.mxu0 %v8079
    %9331 = vmatpush1.bf16.msra.mxu0 %v8078
    %9332 = vmatprep.mubr.bf16.mxu0 %v5683
    %9333 = vmatmul.mubr.bf16.gmra.mrb[0].mxu0 %v5682
    %v9334 = vpop.f32.mrb[0].mxu0
    %v9335 = vadd.f32 %v9292, %v9334
    %v9336 = vpop.f32.mrb[0].mxu0
    %v9337 = vadd.f32 %v9294, %v9336
    %v9338 = vpop.f32.mrb[0].mxu0
    %v9339 = vadd.f32 %v9296, %v9338
    %v9340 = vpop.f32.mrb[0].mxu0
    %v9341 = vadd.f32 %v9298, %v9340
    %9342 = vdwg.mxu0
    %9343 = vmatprep.subr.bf16.mxu0 %v8083
    %9344 = vmatpush1.bf16.msra.mxu0 %v8082
    %9345 = vmatprep.subr.bf16.mxu0 %v8087
    %9346 = vmatpush1.bf16.msra.mxu0 %v8086
    %9347 = vmatprep.subr.bf16.mxu0 %v8091
    %9348 = vmatpush1.bf16.msra.mxu0 %v8090
    %9349 = vmatprep.subr.bf16.mxu0 %v8095
    %9350 = vmatpush1.bf16.msra.mxu0 %v8094
    %9351 = vmatprep.subr.bf16.mxu0 %v8099
    %9352 = vmatpush1.bf16.msra.mxu0 %v8098
    %9353 = vmatprep.subr.bf16.mxu0 %v8103
    %9354 = vmatpush1.bf16.msra.mxu0 %v8102
    %9355 = vmatprep.subr.bf16.mxu0 %v8107
    %9356 = vmatpush1.bf16.msra.mxu0 %v8106
    %9357 = vmatprep.subr.bf16.mxu0 %v8111
    %9358 = vmatpush1.bf16.msra.mxu0 %v8110
    %9359 = vmatprep.subr.bf16.mxu0 %v8115
    %9360 = vmatpush1.bf16.msra.mxu0 %v8114
    %9361 = vmatprep.subr.bf16.mxu0 %v8119
    %9362 = vmatpush1.bf16.msra.mxu0 %v8118
    %9363 = vmatprep.subr.bf16.mxu0 %v8123
    %9364 = vmatpush1.bf16.msra.mxu0 %v8122
    %9365 = vmatprep.subr.bf16.mxu0 %v8127
    %9366 = vmatpush1.bf16.msra.mxu0 %v8126
    %9367 = vmatprep.subr.bf16.mxu0 %v8131
    %9368 = vmatpush1.bf16.msra.mxu0 %v8130
    %9369 = vmatprep.subr.bf16.mxu0 %v8135
    %9370 = vmatpush1.bf16.msra.mxu0 %v8134
    %9371 = vmatprep.subr.bf16.mxu0 %v8139
    %9372 = vmatpush1.bf16.msra.mxu0 %v8138
    %9373 = vmatprep.subr.bf16.mxu0 %v8143
    %9374 = vmatpush1.bf16.msra.mxu0 %v8142
    %9375 = vmatprep.mubr.bf16.mxu0 %v5685
    %9376 = vmatmul.mubr.bf16.gmra.mrb[0].mxu0 %v5684
    %v9377 = vpop.f32.mrb[0].mxu0
    %v9378 = vadd.f32 %v9335, %v9377
    %v9379 = vpop.f32.mrb[0].mxu0
    %v9380 = vadd.f32 %v9337, %v9379
    %v9381 = vpop.f32.mrb[0].mxu0
    %v9382 = vadd.f32 %v9339, %v9381
    %v9383 = vpop.f32.mrb[0].mxu0
    %v9384 = vadd.f32 %v9341, %v9383
    %9385 = vdwg.mxu0
    %9386 = vmatprep.subr.bf16.mxu0 %v8147
    %9387 = vmatpush1.bf16.msra.mxu0 %v8146
    %9388 = vmatprep.subr.bf16.mxu0 %v8151
    %9389 = vmatpush1.bf16.msra.mxu0 %v8150
    %9390 = vmatprep.subr.bf16.mxu0 %v8155
    %9391 = vmatpush1.bf16.msra.mxu0 %v8154
    %9392 = vmatprep.subr.bf16.mxu0 %v8159
    %9393 = vmatpush1.bf16.msra.mxu0 %v8158
    %9394 = vmatprep.subr.bf16.mxu0 %v8163
    %9395 = vmatpush1.bf16.msra.mxu0 %v8162
    %9396 = vmatprep.subr.bf16.mxu0 %v8167
    %9397 = vmatpush1.bf16.msra.mxu0 %v8166
    %9398 = vmatprep.subr.bf16.mxu0 %v8171
    %9399 = vmatpush1.bf16.msra.mxu0 %v8170
    %9400 = vmatprep.subr.bf16.mxu0 %v8175
    %9401 = vmatpush1.bf16.msra.mxu0 %v8174
    %9402 = vmatprep.subr.bf16.mxu0 %v8179
    %9403 = vmatpush1.bf16.msra.mxu0 %v8178
    %9404 = vmatprep.subr.bf16.mxu0 %v8183
    %9405 = vmatpush1.bf16.msra.mxu0 %v8182
    %9406 = vmatprep.subr.bf16.mxu0 %v8187
    %9407 = vmatpush1.bf16.msra.mxu0 %v8186
    %9408 = vmatprep.subr.bf16.mxu0 %v8191
    %9409 = vmatpush1.bf16.msra.mxu0 %v8190
    %9410 = vmatprep.subr.bf16.mxu0 %v8195
    %9411 = vmatpush1.bf16.msra.mxu0 %v8194
    %9412 = vmatprep.subr.bf16.mxu0 %v8199
    %9413 = vmatpush1.bf16.msra.mxu0 %v8198
    %9414 = vmatprep.subr.bf16.mxu0 %v8203
    %9415 = vmatpush1.bf16.msra.mxu0 %v8202
    %9416 = vmatprep.subr.bf16.mxu0 %v8207
    %9417 = vmatpush1.bf16.msra.mxu0 %v8206
    %9418 = vmatprep.mubr.bf16.mxu0 %v5687
    %9419 = vmatmul.mubr.bf16.gmra.mrb[0].mxu0 %v5686
    %v9420 = vpop.f32.mrb[0].mxu0
    %v9421 = vadd.f32 %v9378, %v9420
    %v9422 = vpop.f32.mrb[0].mxu0
    %v9423 = vadd.f32 %v9380, %v9422
    %v9424 = vpop.f32.mrb[0].mxu0
    %v9425 = vadd.f32 %v9382, %v9424
    %v9426 = vpop.f32.mrb[0].mxu0
    %v9427 = vadd.f32 %v9384, %v9426
    %9428 = vdwg.mxu0
    %9429 = vmatprep.subr.bf16.mxu0 %v8211
    %9430 = vmatpush1.bf16.msra.mxu0 %v8210
    %9431 = vmatprep.subr.bf16.mxu0 %v8215
    %9432 = vmatpush1.bf16.msra.mxu0 %v8214
    %9433 = vmatprep.subr.bf16.mxu0 %v8219
    %9434 = vmatpush1.bf16.msra.mxu0 %v8218
    %9435 = vmatprep.subr.bf16.mxu0 %v8223
    %9436 = vmatpush1.bf16.msra.mxu0 %v8222
    %9437 = vmatprep.subr.bf16.mxu0 %v8227
    %9438 = vmatpush1.bf16.msra.mxu0 %v8226
    %9439 = vmatprep.subr.bf16.mxu0 %v8231
    %9440 = vmatpush1.bf16.msra.mxu0 %v8230
    %9441 = vmatprep.subr.bf16.mxu0 %v8235
    %9442 = vmatpush1.bf16.msra.mxu0 %v8234
    %9443 = vmatprep.subr.bf16.mxu0 %v8239
    %9444 = vmatpush1.bf16.msra.mxu0 %v8238
    %9445 = vmatprep.subr.bf16.mxu0 %v8243
    %9446 = vmatpush1.bf16.msra.mxu0 %v8242
    %9447 = vmatprep.subr.bf16.mxu0 %v8247
    %9448 = vmatpush1.bf16.msra.mxu0 %v8246
    %9449 = vmatprep.subr.bf16.mxu0 %v8251
    %9450 = vmatpush1.bf16.msra.mxu0 %v8250
    %9451 = vmatprep.subr.bf16.mxu0 %v8255
    %9452 = vmatpush1.bf16.msra.mxu0 %v8254
    %9453 = vmatprep.subr.bf16.mxu0 %v8259
    %9454 = vmatpush1.bf16.msra.mxu0 %v8258
    %9455 = vmatprep.subr.bf16.mxu0 %v8263
    %9456 = vmatpush1.bf16.msra.mxu0 %v8262
    %9457 = vmatprep.subr.bf16.mxu0 %v8267
    %9458 = vmatpush1.bf16.msra.mxu0 %v8266
    %9459 = vmatprep.subr.bf16.mxu0 %v8271
    %9460 = vmatpush1.bf16.msra.mxu0 %v8270
    %9461 = vmatprep.mubr.bf16.mxu0 %v5689
    %9462 = vmatmul.mubr.bf16.gmra.mrb[0].mxu0 %v5688
    %v9463 = vpop.f32.mrb[0].mxu0
    %v9464 = vadd.f32 %v9421, %v9463
    %v9465 = vpop.f32.mrb[0].mxu0
    %v9466 = vadd.f32 %v9423, %v9465
    %v9467 = vpop.f32.mrb[0].mxu0
    %v9468 = vadd.f32 %v9425, %v9467
    %v9469 = vpop.f32.mrb[0].mxu0
    %v9470 = vadd.f32 %v9427, %v9469
    %9471 = vdwg.mxu0
    %v9472 = vadd.f32 %v9120, %v1786
    %v9473 = vadd.f32 %v9122, %v1787
    %v9474 = vadd.f32 %v9464, %v1788
    %v9475 = vadd.f32 %v9466, %v1789
    %v9476 = vadd.f32 %v9124, %v1790
    %v9477 = vadd.f32 %v9126, %v1791
    %v9478 = vadd.f32 %v9468, %v1792
    %v9479 = vadd.f32 %v9470, %v1793
    %v9480 = vadd.f32 %v9472, %v9473
    %v9481 = vadd.f32 %v9480, %v9474
    %v9482 = vadd.f32 %v9481, %v9475
    %9483 = vadd.xlane.f32.xlu0 %v9482
    %v9484 = vpop.xlane.xlu0 %9483
    %v9485 = vadd.f32 %v9476, %v9477
    %v9486 = vadd.f32 %v9485, %v9478
    %v9487 = vadd.f32 %v9486, %v9479
    %9488 = vadd.xlane.f32.xlu0 %v9487
    %v9489 = vpop.xlane.xlu0 %9488
    %v9490 = vmul.f32 %v9484, %v1691
    %v9491 = vmul.f32 %v9489, %v1691
    %v9492 = vsub.f32 %v9472, %v9490
    %v9493 = vsub.f32 %v9473, %v9490
    %v9494 = vsub.f32 %v9474, %v9490
    %v9495 = vsub.f32 %v9475, %v9490
    %v9496 = vsub.f32 %v9476, %v9491
    %v9497 = vsub.f32 %v9477, %v9491
    %v9498 = vsub.f32 %v9478, %v9491
    %v9499 = vsub.f32 %v9479, %v9491
    %v9500 = vmul.f32 %v9492, %v9492
    %v9501 = vmul.f32 %v9493, %v9493
    %v9502 = vmul.f32 %v9494, %v9494
    %v9503 = vmul.f32 %v9495, %v9495
    %v9504 = vmul.f32 %v9496, %v9496
    %v9505 = vmul.f32 %v9497, %v9497
    %v9506 = vmul.f32 %v9498, %v9498
    %v9507 = vmul.f32 %v9499, %v9499
    %v9508 = vadd.f32 %v9500, %v9501
    %v9509 = vadd.f32 %v9508, %v9502
    %v9510 = vadd.f32 %v9509, %v9503
    %9511 = vadd.xlane.f32.xlu0 %v9510
    %v9512 = vpop.xlane.xlu0 %9511
    %v9513 = vadd.f32 %v9504, %v9505
    %v9514 = vadd.f32 %v9513, %v9506
    %v9515 = vadd.f32 %v9514, %v9507
    %9516 = vadd.xlane.f32.xlu0 %v9515
    %v9517 = vpop.xlane.xlu0 %9516
    %v9518 = vmul.f32 %v9512, %v1691
    %v9519 = vmul.f32 %v9517, %v1691
    %v9520 = vadd.f32 %v9518, 1e-05
    %v9521 = vadd.f32 %v9519, 1e-05
    %v9522 = vrsqrt.pop %v9520
    %v9523 = vrsqrt.pop %v9521
    %v9524 = vmul.f32 %v9492, %v9522
    %v9525 = vmul.f32 %v9493, %v9522
    %v9526 = vmul.f32 %v9494, %v9522
    %v9527 = vmul.f32 %v9495, %v9522
    %v9528 = vmul.f32 %v9496, %v9523
    %v9529 = vmul.f32 %v9497, %v9523
    %v9530 = vmul.f32 %v9498, %v9523
    %v9531 = vmul.f32 %v9499, %v9523
    %v9532 = vld [vmem:[#allocation22] sm:$0xf]
    %v9534 = vlaneseq
    %v9535 = vshrl.u32 %v9534, 7
    %v9536 = vsub.s32 0, %v9535
    %v9537 = vrot.slane %v9532, %v9536
    %v9538 = vlaneseq
    %v9539 = vshrl.u32 %v9538, 7
    %v9540 = vsub.s32 1, %v9539
    %v9541 = vrot.slane %v9532, %v9540
    %v9542 = vlaneseq
    %v9543 = vshrl.u32 %v9542, 7
    %v9544 = vsub.s32 2, %v9543
    %v9545 = vrot.slane %v9532, %v9544
    %v9546 = vlaneseq
    %v9547 = vshrl.u32 %v9546, 7
    %v9548 = vsub.s32 3, %v9547
    %v9549 = vrot.slane %v9532, %v9548
    %v9554 = vmul.f32 %v9524, %v9537
    %v9555 = vmul.f32 %v9525, %v9541
    %v9556 = vmul.f32 %v9526, %v9545
    %v9557 = vmul.f32 %v9527, %v9549
    %v9558 = vmul.f32 %v9528, %v9537
    %v9559 = vmul.f32 %v9529, %v9541
    %v9560 = vmul.f32 %v9530, %v9545
    %v9561 = vmul.f32 %v9531, %v9549
    %v9562 = vld [vmem:[#allocation23] sm:$0xf]
    %v9564 = vlaneseq
    %v9565 = vshrl.u32 %v9564, 7
    %v9566 = vsub.s32 0, %v9565
    %v9567 = vrot.slane %v9562, %v9566
    %v9568 = vlaneseq
    %v9569 = vshrl.u32 %v9568, 7
    %v9570 = vsub.s32 1, %v9569
    %v9571 = vrot.slane %v9562, %v9570
    %v9572 = vlaneseq
    %v9573 = vshrl.u32 %v9572, 7
    %v9574 = vsub.s32 2, %v9573
    %v9575 = vrot.slane %v9562, %v9574
    %v9576 = vlaneseq
    %v9577 = vshrl.u32 %v9576, 7
    %v9578 = vsub.s32 3, %v9577
    %v9579 = vrot.slane %v9562, %v9578
    %v9584 = vadd.f32 %v9554, %v9567
    %v9585 = vadd.f32 %v9555, %v9571
    %v9586 = vadd.f32 %v9556, %v9575
    %v9587 = vadd.f32 %v9557, %v9579
    %v9588 = vadd.f32 %v9558, %v9567
    %v9589 = vadd.f32 %v9559, %v9571
    %v9590 = vadd.f32 %v9560, %v9575
    %v9591 = vadd.f32 %v9561, %v9579
    %9592 = vst [vmem:[#allocation25] sm:$0xff] %v9584
    %9593 = vst [vmem:[#allocation25 + $0x8] sm:$0xff] %v9585
    %9594 = vst [vmem:[#allocation25 + $0x10] sm:$0xff] %v9586
    %9595 = vst [vmem:[#allocation25 + $0x18] sm:$0xff] %v9587
    %9596 = vst [vmem:[#allocation25 + $0x20] sm:$0xff] %v9588
    %9597 = vst [vmem:[#allocation25 + $0x28] sm:$0xff] %v9589
    %9598 = vst [vmem:[#allocation25 + $0x30] sm:$0xff] %v9590
    %9599 = vst [vmem:[#allocation25 + $0x38] sm:$0xff] %v9591
    // Predicated region
    $region114: #{tpu_custom_call.1} parent=1 // pred_check
      _
    $region115: #{tpu_custom_call.1} parent=1 // pred_check_branch
      %9601 = sbr.rel (0) target = $region117
    $region116: #{tpu_custom_call.1} parent=1 // pred_region
      %s9603 = ssub.s32 1024, 1024
      %9604 = vsyncadd [#allocation4], %s9603
      %s9605 = sshll.u32 [#allocation25], 4
      %s9606 = int_to_ptr.vmem [resolvable:$true] %s9605
      %9611 = dma.vmem_to_hbm [thread:$0]  %s9606, 1024, %s14, [#allocation4], 512, 512, 32
    $region117: #{tpu_custom_call.1} parent=1 // pred_fallthru
      _
    // Predicated region
    $region118: #{tpu_custom_call.1} parent=1 // pred_check
      _
    $region119: #{tpu_custom_call.1} parent=1 // pred_check_branch
      %9613 = sbr.rel (0) target = $region121
    $region120: #{tpu_custom_call.1} parent=1 // pred_region
      %9614 = dma.done [#allocation4], 1024
    $region121: #{tpu_custom_call.1} parent=1 // pred_fallthru
      _
    %9615 = vsyncpa [#allocation3], 1
    %9616 = vsyncpa [#allocation6], 1
    %9617 = vsyncpa [#allocation9], 1
    %9618 = vsyncpa [#allocation12], 1
    %9619 = vsyncpa [#allocation15], 1
    %9620 = vsyncpa [#allocation18], 1
    %9621 = vsyncpa [#allocation21], 1
    %9622 = vsyncpa [#allocation24], 1
    %9623 = vsyncpa [#allocation4], 1

</llo_original>
